<compile_context>
chip_gen: v7x
topology: tpu7x:2x2x1
jax: 0.10.0
libtpu: 0.0.40
codegen_flags: <defaults>
</compile_context>

<pallas_src>
import jax
import jax.numpy as jnp
from jax.experimental import pallas as pl
from jax.experimental.pallas import tpu as pltpu


LANE = 128


def _round_up(x, m):
    return (x + m - 1) // m * m


# ----------------------------------------------------------------------------
# Kernel: fused 5-layer MLP for one batch tile.
# ----------------------------------------------------------------------------
def qnet_kernel(x_ref,
                w1_ref, b1_ref,
                w2_ref, b2_ref,
                w3_ref, b3_ref,
                w4_ref, b4_ref,
                w5_ref, b5_ref,
                o_ref,
                h_wide, h_narrow):
    # bf16 MXU operands, f32 accumulation; bias/ReLU in f32.
    x = x_ref[...].astype(jnp.bfloat16)

    # ds1 + act1 : (bt, K) @ (K, 1024)
    h_wide[...] = jnp.maximum(
        jnp.dot(x, w1_ref[...], preferred_element_type=jnp.float32)
        + b1_ref[...], 0.0)

    # ds2 + act2 : (bt, 1024) @ (1024, 512)
    h_narrow[...] = jnp.maximum(
        jnp.dot(h_wide[...].astype(jnp.bfloat16), w2_ref[...],
                preferred_element_type=jnp.float32) + b2_ref[...], 0.0)

    # ds3 + act3 : (bt, 512) @ (512, 1024)
    h_wide[...] = jnp.maximum(
        jnp.dot(h_narrow[...].astype(jnp.bfloat16), w3_ref[...],
                preferred_element_type=jnp.float32) + b3_ref[...], 0.0)

    # ds4 + act4 : (bt, 1024) @ (1024, 512)
    h_narrow[...] = jnp.maximum(
        jnp.dot(h_wide[...].astype(jnp.bfloat16), w4_ref[...],
                preferred_element_type=jnp.float32) + b4_ref[...], 0.0)

    # ds5 (no activation), lane-dense (padded-to-128) store
    out = jnp.dot(h_narrow[...].astype(jnp.bfloat16), w5_ref[...],
                  preferred_element_type=jnp.float32) + b5_ref[...]
    o_ref[...] = out.astype(o_ref.dtype)


# ----------------------------------------------------------------------------
# Wrapper
# ----------------------------------------------------------------------------
def qnetwork_forward(state, params, *, batch_tile=None, interpret=False):
    """state: (B, state_size) f32. params: transposed f32 weights / (1,out) biases."""
    B, state_size = state.shape
    action_size = params["w5"].shape[1]

    # MXU-row-friendly batch tile; prefer >=2 grid steps (v7x megacore).
    if batch_tile is None:
        batch_tile = 256 if B >= 512 else 128

    B_pad = _round_up(B, batch_tile)
    K_pad = _round_up(state_size, LANE)    # lane-dense input features
    A_pad = _round_up(action_size, LANE)   # lane-dense output stores

    # ---- pad + cast operands (zero-padding is exact: contributes nothing) ----
    x_p = jnp.zeros((B_pad, K_pad), jnp.float32).at[:B, :state_size].set(state)

    def pad2(a, r, c):
        return jnp.zeros((r, c), a.dtype).at[:a.shape[0], :a.shape[1]].set(a)

    w1 = pad2(params["w1"], K_pad, 1024).astype(jnp.bfloat16)
    w2 = params["w2"].astype(jnp.bfloat16)
    w3 = params["w3"].astype(jnp.bfloat16)
    w4 = params["w4"].astype(jnp.bfloat16)
    w5 = pad2(params["w5"], 512, A_pad).astype(jnp.bfloat16)
    b1 = params["b1"].astype(jnp.float32)
    b2 = params["b2"].astype(jnp.float32)
    b3 = params["b3"].astype(jnp.float32)
    b4 = params["b4"].astype(jnp.float32)
    b5 = pad2(params["b5"], 1, A_pad).astype(jnp.float32)

    grid = (B_pad // batch_tile,)

    def full_spec(arr):
        # whole-array block, same block for every grid step (weights stay resident)
        return pl.BlockSpec(arr.shape, lambda i: (0, 0))

    in_specs = [
        pl.BlockSpec((batch_tile, K_pad), lambda i: (i, 0)),   # x tile
        full_spec(w1), full_spec(b1),
        full_spec(w2), full_spec(b2),
        full_spec(w3), full_spec(b3),
        full_spec(w4), full_spec(b4),
        full_spec(w5), full_spec(b5),
    ]
    out_spec = pl.BlockSpec((batch_tile, A_pad), lambda i: (i, 0))

    # Advisory cost estimate for XLA's scheduler.
    flops = 2 * B_pad * (K_pad * 1024 + 1024 * 512 + 512 * 1024
                         + 1024 * 512 + 512 * A_pad)
    bytes_weights = sum(int(a.size) * a.dtype.itemsize
                        for a in (w1, w2, w3, w4, w5, b1, b2, b3, b4, b5))
    bytes_io = B_pad * (K_pad + A_pad) * 4
    cost = pl.CostEstimate(flops=flops, transcendentals=0,
                           bytes_accessed=bytes_weights + bytes_io)

    fn = pl.pallas_call(
        qnet_kernel,
        out_shape=jax.ShapeDtypeStruct((B_pad, A_pad), jnp.float32),
        grid_spec=pltpu.PrefetchScalarGridSpec(
            num_scalar_prefetch=0,
            grid=grid,
            in_specs=in_specs,
            out_specs=out_spec,
            scratch_shapes=[
                pltpu.VMEM((batch_tile, 1024), jnp.float32),   # h1 / h3
                pltpu.VMEM((batch_tile, 512), jnp.float32),    # h2 / h4
            ],
        ),
        compiler_params=pltpu.CompilerParams(
            dimension_semantics=("parallel",),
            # Real footprint ~10 MiB (bf16 weights ~3.5 MiB x 2 buffers + tiles
            # + scratch). 48 MiB fits every generation including v7x (64 MiB).
            vmem_limit_bytes=48 << 20,
        ),
        cost_estimate=cost,
        interpret=interpret,
    )

    out = fn(x_p,
             w1, b1, w2, b2, w3, b3, w4, b4, w5, b5)
    return out[:B, :action_size]


# ----------------------------------------------------------------------------
# Deterministic parameter init (PyTorch nn.Linear default: U(-1/sqrt(fan_in), +))
# Weights stored transposed: (in_features, out_features).
# ----------------------------------------------------------------------------
def init_params(key, state_size, action_size):
    dims = [(state_size, 1024), (1024, 512), (512, 1024), (1024, 512),
            (512, action_size)]
    params = {}
    for idx, (fan_in, fan_out) in enumerate(dims, start=1):
        key, kw, kb = jax.random.split(key, 3)
        bound = 1.0 / float(fan_in) ** 0.5
        params[f"w{idx}"] = jax.random.uniform(
            kw, (fan_in, fan_out), jnp.float32, minval=-bound, maxval=bound)
        params[f"b{idx}"] = jax.random.uniform(
            kb, (1, fan_out), jnp.float32, minval=-bound, maxval=bound)
    return params


def reference_forward(state, params):
    """Numerics-matched reference: bf16 matmul operands, f32 accumulation."""
    h = state
    for idx in range(1, 5):
        y = jnp.dot(h.astype(jnp.bfloat16),
                    params[f"w{idx}"].astype(jnp.bfloat16),
                    preferred_element_type=jnp.float32) + params[f"b{idx}"]
        h = jnp.maximum(y, 0.0)
    return jnp.dot(h.astype(jnp.bfloat16),
                   params["w5"].astype(jnp.bfloat16),
                   preferred_element_type=jnp.float32) + params["b5"]


if __name__ == "__main__":
    state_size = 64
    action_size = 16
    batch = 256   # -> 2 grid steps of 128 rows (keeps both v7x TCs busy)

    key = jax.random.PRNGKey(0)
    key, kx = jax.random.split(key)
    state = jax.random.normal(kx, (batch, state_size), jnp.float32)
    params = init_params(key, state_size, action_size)

    out = qnetwork_forward(state, params)
    out = jax.block_until_ready(out)

    ref = reference_forward(state, params)
    assert out.shape == (batch, action_size), out.shape
    max_err = float(jnp.max(jnp.abs(out - ref)))
    assert jnp.allclose(out, ref, atol=5e-3, rtol=5e-3), f"mismatch, max_err={max_err}"

    print("KERNEL_OK")
</pallas_src>

<mosaic_0001>
module attributes {stable_mosaic.version = 11 : i64} {
  func.func @qnet_kernel(%arg0: i32, %arg1: memref<128x128xf32, #tpu.memory_space<vmem>>, %arg2: memref<128x1024xbf16, #tpu.memory_space<vmem>>, %arg3: memref<1x1024xf32, #tpu.memory_space<vmem>>, %arg4: memref<1024x512xbf16, #tpu.memory_space<vmem>>, %arg5: memref<1x512xf32, #tpu.memory_space<vmem>>, %arg6: memref<512x1024xbf16, #tpu.memory_space<vmem>>, %arg7: memref<1x1024xf32, #tpu.memory_space<vmem>>, %arg8: memref<1024x512xbf16, #tpu.memory_space<vmem>>, %arg9: memref<1x512xf32, #tpu.memory_space<vmem>>, %arg10: memref<512x128xbf16, #tpu.memory_space<vmem>>, %arg11: memref<1x128xf32, #tpu.memory_space<vmem>>, %arg12: memref<128x128xf32, #tpu.memory_space<vmem>>, %arg13: memref<128x1024xf32, #tpu.memory_space<vmem>>, %arg14: memref<128x512xf32, #tpu.memory_space<vmem>>) attributes {dimension_semantics = [#tpu.dimension_semantics<parallel>], iteration_bounds = array<i64: 2>, scalar_prefetch = 0 : i64, scratch_operands = 2 : i64, tpu.core_type = #tpu.core_type<tc>, window_params = [{transform_indices = @transform_0, window_bounds = array<i64: 128, 128>}, {pipeline_mode = #tpu.pipeline_mode<synchronous>, transform_indices = @transform_1, window_bounds = array<i64: 128, 1024>}, {pipeline_mode = #tpu.pipeline_mode<synchronous>, transform_indices = @transform_2, window_bounds = array<i64: 1, 1024>}, {pipeline_mode = #tpu.pipeline_mode<synchronous>, transform_indices = @transform_3, window_bounds = array<i64: 1024, 512>}, {pipeline_mode = #tpu.pipeline_mode<synchronous>, transform_indices = @transform_4, window_bounds = array<i64: 1, 512>}, {pipeline_mode = #tpu.pipeline_mode<synchronous>, transform_indices = @transform_5, window_bounds = array<i64: 512, 1024>}, {pipeline_mode = #tpu.pipeline_mode<synchronous>, transform_indices = @transform_6, window_bounds = array<i64: 1, 1024>}, {pipeline_mode = #tpu.pipeline_mode<synchronous>, transform_indices = @transform_7, window_bounds = array<i64: 1024, 512>}, {pipeline_mode = #tpu.pipeline_mode<synchronous>, transform_indices = @transform_8, window_bounds = array<i64: 1, 512>}, {pipeline_mode = #tpu.pipeline_mode<synchronous>, transform_indices = @transform_9, window_bounds = array<i64: 512, 128>}, {pipeline_mode = #tpu.pipeline_mode<synchronous>, transform_indices = @transform_10, window_bounds = array<i64: 1, 128>}, {transform_indices = @transform_11, window_bounds = array<i64: 128, 128>}]} {
    %c0 = arith.constant 0 : index
    %c0_0 = arith.constant 0 : index
    %0 = vector.load %arg1[%c0, %c0_0] : memref<128x128xf32, #tpu.memory_space<vmem>>, vector<128x128xf32>
    %1 = arith.truncf %0 : vector<128x128xf32> to vector<128x128xbf16>
    %c0_1 = arith.constant 0 : index
    %c0_2 = arith.constant 0 : index
    %2 = vector.load %arg2[%c0_1, %c0_2] : memref<128x1024xbf16, #tpu.memory_space<vmem>>, vector<128x1024xbf16>
    %cst = arith.constant dense<0.000000e+00> : vector<128x1024xf32>
    %3 = tpu.matmul %1, %2, %cst {dimension_numbers = #tpu.dot_dimension_numbers<[1], [0], [0], [1], [0, 0, 1, 1], [], []>} : vector<128x128xbf16>, vector<128x1024xbf16>, vector<128x1024xf32> -> vector<128x1024xf32>
    %c0_3 = arith.constant 0 : index
    %c0_4 = arith.constant 0 : index
    %4 = vector.load %arg3[%c0_3, %c0_4] : memref<1x1024xf32, #tpu.memory_space<vmem>>, vector<1x1024xf32>
    %5 = vector.broadcast %4 : vector<1x1024xf32> to vector<128x1024xf32>
    %6 = arith.addf %3, %5 : vector<128x1024xf32>
    %cst_5 = arith.constant 0.000000e+00 : f32
    %7 = vector.broadcast %cst_5 : f32 to vector<128x1024xf32>
    %8 = arith.maximumf %6, %7 : vector<128x1024xf32>
    %c0_6 = arith.constant 0 : index
    %c0_7 = arith.constant 0 : index
    %9 = vector.load %arg13[%c0_6, %c0_7] : memref<128x1024xf32, #tpu.memory_space<vmem>>, vector<128x1024xf32>
    tpu.vector_store %arg13[%c0_6, %c0_7], %8 {strides = array<i32>} : memref<128x1024xf32, #tpu.memory_space<vmem>>, vector<128x1024xf32>,
    %c0_8 = arith.constant 0 : index
    %c0_9 = arith.constant 0 : index
    %10 = vector.load %arg13[%c0_8, %c0_9] : memref<128x1024xf32, #tpu.memory_space<vmem>>, vector<128x1024xf32>
    %11 = arith.truncf %10 : vector<128x1024xf32> to vector<128x1024xbf16>
    %c0_10 = arith.constant 0 : index
    %c0_11 = arith.constant 0 : index
    %12 = vector.load %arg4[%c0_10, %c0_11] : memref<1024x512xbf16, #tpu.memory_space<vmem>>, vector<1024x512xbf16>
    %cst_12 = arith.constant dense<0.000000e+00> : vector<128x512xf32>
    %13 = tpu.matmul %11, %12, %cst_12 {dimension_numbers = #tpu.dot_dimension_numbers<[1], [0], [0], [1], [0, 0, 1, 1], [], []>} : vector<128x1024xbf16>, vector<1024x512xbf16>, vector<128x512xf32> -> vector<128x512xf32>
    %c0_13 = arith.constant 0 : index
    %c0_14 = arith.constant 0 : index
    %14 = vector.load %arg5[%c0_13, %c0_14] : memref<1x512xf32, #tpu.memory_space<vmem>>, vector<1x512xf32>
    %15 = vector.broadcast %14 : vector<1x512xf32> to vector<128x512xf32>
    %16 = arith.addf %13, %15 : vector<128x512xf32>
    %cst_15 = arith.constant 0.000000e+00 : f32
    %17 = vector.broadcast %cst_15 : f32 to vector<128x512xf32>
    %18 = arith.maximumf %16, %17 : vector<128x512xf32>
    %c0_16 = arith.constant 0 : index
    %c0_17 = arith.constant 0 : index
    %19 = vector.load %arg14[%c0_16, %c0_17] : memref<128x512xf32, #tpu.memory_space<vmem>>, vector<128x512xf32>
    tpu.vector_store %arg14[%c0_16, %c0_17], %18 {strides = array<i32>} : memref<128x512xf32, #tpu.memory_space<vmem>>, vector<128x512xf32>,
    %c0_18 = arith.constant 0 : index
    %c0_19 = arith.constant 0 : index
    %20 = vector.load %arg14[%c0_18, %c0_19] : memref<128x512xf32, #tpu.memory_space<vmem>>, vector<128x512xf32>
    %21 = arith.truncf %20 : vector<128x512xf32> to vector<128x512xbf16>
    %c0_20 = arith.constant 0 : index
    %c0_21 = arith.constant 0 : index
    %22 = vector.load %arg6[%c0_20, %c0_21] : memref<512x1024xbf16, #tpu.memory_space<vmem>>, vector<512x1024xbf16>
    %cst_22 = arith.constant dense<0.000000e+00> : vector<128x1024xf32>
    %23 = tpu.matmul %21, %22, %cst_22 {dimension_numbers = #tpu.dot_dimension_numbers<[1], [0], [0], [1], [0, 0, 1, 1], [], []>} : vector<128x512xbf16>, vector<512x1024xbf16>, vector<128x1024xf32> -> vector<128x1024xf32>
    %c0_23 = arith.constant 0 : index
    %c0_24 = arith.constant 0 : index
    %24 = vector.load %arg7[%c0_23, %c0_24] : memref<1x1024xf32, #tpu.memory_space<vmem>>, vector<1x1024xf32>
    %25 = vector.broadcast %24 : vector<1x1024xf32> to vector<128x1024xf32>
    %26 = arith.addf %23, %25 : vector<128x1024xf32>
    %cst_25 = arith.constant 0.000000e+00 : f32
    %27 = vector.broadcast %cst_25 : f32 to vector<128x1024xf32>
    %28 = arith.maximumf %26, %27 : vector<128x1024xf32>
    %c0_26 = arith.constant 0 : index
    %c0_27 = arith.constant 0 : index
    %29 = vector.load %arg13[%c0_26, %c0_27] : memref<128x1024xf32, #tpu.memory_space<vmem>>, vector<128x1024xf32>
    tpu.vector_store %arg13[%c0_26, %c0_27], %28 {strides = array<i32>} : memref<128x1024xf32, #tpu.memory_space<vmem>>, vector<128x1024xf32>,
    %c0_28 = arith.constant 0 : index
    %c0_29 = arith.constant 0 : index
    %30 = vector.load %arg13[%c0_28, %c0_29] : memref<128x1024xf32, #tpu.memory_space<vmem>>, vector<128x1024xf32>
    %31 = arith.truncf %30 : vector<128x1024xf32> to vector<128x1024xbf16>
    %c0_30 = arith.constant 0 : index
    %c0_31 = arith.constant 0 : index
    %32 = vector.load %arg8[%c0_30, %c0_31] : memref<1024x512xbf16, #tpu.memory_space<vmem>>, vector<1024x512xbf16>
    %cst_32 = arith.constant dense<0.000000e+00> : vector<128x512xf32>
    %33 = tpu.matmul %31, %32, %cst_32 {dimension_numbers = #tpu.dot_dimension_numbers<[1], [0], [0], [1], [0, 0, 1, 1], [], []>} : vector<128x1024xbf16>, vector<1024x512xbf16>, vector<128x512xf32> -> vector<128x512xf32>
    %c0_33 = arith.constant 0 : index
    %c0_34 = arith.constant 0 : index
    %34 = vector.load %arg9[%c0_33, %c0_34] : memref<1x512xf32, #tpu.memory_space<vmem>>, vector<1x512xf32>
    %35 = vector.broadcast %34 : vector<1x512xf32> to vector<128x512xf32>
    %36 = arith.addf %33, %35 : vector<128x512xf32>
    %cst_35 = arith.constant 0.000000e+00 : f32
    %37 = vector.broadcast %cst_35 : f32 to vector<128x512xf32>
    %38 = arith.maximumf %36, %37 : vector<128x512xf32>
    %c0_36 = arith.constant 0 : index
    %c0_37 = arith.constant 0 : index
    %39 = vector.load %arg14[%c0_36, %c0_37] : memref<128x512xf32, #tpu.memory_space<vmem>>, vector<128x512xf32>
    tpu.vector_store %arg14[%c0_36, %c0_37], %38 {strides = array<i32>} : memref<128x512xf32, #tpu.memory_space<vmem>>, vector<128x512xf32>,
    %c0_38 = arith.constant 0 : index
    %c0_39 = arith.constant 0 : index
    %40 = vector.load %arg14[%c0_38, %c0_39] : memref<128x512xf32, #tpu.memory_space<vmem>>, vector<128x512xf32>
    %41 = arith.truncf %40 : vector<128x512xf32> to vector<128x512xbf16>
    %c0_40 = arith.constant 0 : index
    %c0_41 = arith.constant 0 : index
    %42 = vector.load %arg10[%c0_40, %c0_41] : memref<512x128xbf16, #tpu.memory_space<vmem>>, vector<512x128xbf16>
    %cst_42 = arith.constant dense<0.000000e+00> : vector<128x128xf32>
    %43 = tpu.matmul %41, %42, %cst_42 {dimension_numbers = #tpu.dot_dimension_numbers<[1], [0], [0], [1], [0, 0, 1, 1], [], []>} : vector<128x512xbf16>, vector<512x128xbf16>, vector<128x128xf32> -> vector<128x128xf32>
    %c0_43 = arith.constant 0 : index
    %c0_44 = arith.constant 0 : index
    %44 = vector.load %arg11[%c0_43, %c0_44] : memref<1x128xf32, #tpu.memory_space<vmem>>, vector<1x128xf32>
    %45 = vector.broadcast %44 : vector<1x128xf32> to vector<128x128xf32>
    %46 = arith.addf %43, %45 : vector<128x128xf32>
    %c0_45 = arith.constant 0 : index
    %c0_46 = arith.constant 0 : index
    %47 = vector.load %arg12[%c0_45, %c0_46] : memref<128x128xf32, #tpu.memory_space<vmem>>, vector<128x128xf32>
    tpu.vector_store %arg12[%c0_45, %c0_46], %46 {strides = array<i32>} : memref<128x128xf32, #tpu.memory_space<vmem>>, vector<128x128xf32>,
    return
  }
  func.func @transform_0(%arg0: i32) -> (i32, i32) {
    %c0_i32 = arith.constant 0 : i32
    %c0_i32_0 = arith.constant 0 : i32
    return %arg0, %c0_i32 : i32, i32
  }
  func.func @transform_1(%arg0: i32) -> (i32, i32) {
    %c0_i32 = arith.constant 0 : i32
    %c0_i32_0 = arith.constant 0 : i32
    %c0_i32_1 = arith.constant 0 : i32
    return %c0_i32, %c0_i32_0 : i32, i32
  }
  func.func @transform_2(%arg0: i32) -> (i32, i32) {
    %c0_i32 = arith.constant 0 : i32
    %c0_i32_0 = arith.constant 0 : i32
    %c0_i32_1 = arith.constant 0 : i32
    return %c0_i32, %c0_i32_0 : i32, i32
  }
  func.func @transform_3(%arg0: i32) -> (i32, i32) {
    %c0_i32 = arith.constant 0 : i32
    %c0_i32_0 = arith.constant 0 : i32
    %c0_i32_1 = arith.constant 0 : i32
    return %c0_i32, %c0_i32_0 : i32, i32
  }
  func.func @transform_4(%arg0: i32) -> (i32, i32) {
    %c0_i32 = arith.constant 0 : i32
    %c0_i32_0 = arith.constant 0 : i32
    %c0_i32_1 = arith.constant 0 : i32
    return %c0_i32, %c0_i32_0 : i32, i32
  }
  func.func @transform_5(%arg0: i32) -> (i32, i32) {
    %c0_i32 = arith.constant 0 : i32
    %c0_i32_0 = arith.constant 0 : i32
    %c0_i32_1 = arith.constant 0 : i32
    return %c0_i32, %c0_i32_0 : i32, i32
  }
  func.func @transform_6(%arg0: i32) -> (i32, i32) {
    %c0_i32 = arith.constant 0 : i32
    %c0_i32_0 = arith.constant 0 : i32
    %c0_i32_1 = arith.constant 0 : i32
    return %c0_i32, %c0_i32_0 : i32, i32
  }
  func.func @transform_7(%arg0: i32) -> (i32, i32) {
    %c0_i32 = arith.constant 0 : i32
    %c0_i32_0 = arith.constant 0 : i32
    %c0_i32_1 = arith.constant 0 : i32
    return %c0_i32, %c0_i32_0 : i32, i32
  }
  func.func @transform_8(%arg0: i32) -> (i32, i32) {
    %c0_i32 = arith.constant 0 : i32
    %c0_i32_0 = arith.constant 0 : i32
    %c0_i32_1 = arith.constant 0 : i32
    return %c0_i32, %c0_i32_0 : i32, i32
  }
  func.func @transform_9(%arg0: i32) -> (i32, i32) {
    %c0_i32 = arith.constant 0 : i32
    %c0_i32_0 = arith.constant 0 : i32
    %c0_i32_1 = arith.constant 0 : i32
    return %c0_i32, %c0_i32_0 : i32, i32
  }
  func.func @transform_10(%arg0: i32) -> (i32, i32) {
    %c0_i32 = arith.constant 0 : i32
    %c0_i32_0 = arith.constant 0 : i32
    %c0_i32_1 = arith.constant 0 : i32
    return %c0_i32, %c0_i32_0 : i32, i32
  }
  func.func @transform_11(%arg0: i32) -> (i32, i32) {
    %c0_i32 = arith.constant 0 : i32
    %c0_i32_0 = arith.constant 0 : i32
    return %arg0, %c0_i32 : i32, i32
  }
}

</mosaic_0001>

<llo_original>
// kernel: tpu_custom_call.1
$region0: #{tpu_custom_call.1}
  #allocation0 [shape = 'u32[]', space=smem, size = 0x4, offset = 0x4, fixed_abs, tag = 'smem constant byte address 0x4 - core index']
  #allocation1 [shape = 'u32[144,128]{1,0:T(1,128)}', space=vmem, size = 0x12000, scoped, tag = 'internal scratch']
  #allocation2 [shape = 'f32[128,1024]{1,0:T(8,128)}', space=vmem, size = 0x80000, scoped, tag = 'scratch operand']
  #allocation3 [shape = 'f32[128,512]{1,0:T(8,128)}', space=vmem, size = 0x40000, scoped, tag = 'scratch operand']
  %s0 = inlined_call_operand.hbm [shape: f32[256,128], index: 0, kind: input, shape index: {}]
  %s1 = inlined_call_operand.hbm [shape: bf16[128,1024], index: 1, kind: input, shape index: {}]
  %s2 = inlined_call_operand.hbm [shape: f32[1,1024], index: 2, kind: input, shape index: {}]
  %s3 = inlined_call_operand.hbm [shape: bf16[1024,512], index: 3, kind: input, shape index: {}]
  %s4 = inlined_call_operand.vmem [shape: f32[1,512], index: 4, kind: input, shape index: {}]
  %s5 = inlined_call_operand.hbm [shape: bf16[512,1024], index: 5, kind: input, shape index: {}]
  %s6 = inlined_call_operand.vmem [shape: f32[1,1024], index: 6, kind: input, shape index: {}]
  %s7 = inlined_call_operand.hbm [shape: bf16[1024,512], index: 7, kind: input, shape index: {}]
  %s8 = inlined_call_operand.vmem [shape: f32[1,512], index: 8, kind: input, shape index: {}]
  %s9 = inlined_call_operand.hbm [shape: bf16[512,128], index: 9, kind: input, shape index: {}]
  %s10 = inlined_call_operand.vmem [shape: f32[1,128], index: 10, kind: input, shape index: {}]
  %s11 = inlined_call_operand.hbm [shape: f32[256,128], index: 11, kind: output, shape index: {}]
  %s12 = sld [smem:[#allocation0]]
  $region105: #{tpu_custom_call.1} parent=0
    _
  %s14 = ssub.s32 1, %s12
  %s15 = scalar_select 0, %s14, %s12
  $region1: #{tpu_custom_call.1} parent=0
    #allocation4 [shape = 'u8[131072]{0}', space=vmem, size = 0x20000, scoped, tag = 'input window, operand 0']
    #allocation5 [shape = 's32[2]{0}', space=sflag, size = 0x8, scoped, tag = 'scoped memory for tpu_custom_call.1']
    #allocation6 [shape = 's32[2]{0}', space=sflag, size = 0x8, scoped, tag = 'scoped memory for tpu_custom_call.1']
    #allocation7 [shape = 'u8[262144]{0}', space=vmem, size = 0x40000, scoped, tag = 'input window, operand 1, single buffered']
    #allocation8 [shape = 's32[1]{0}', space=sflag, size = 0x4, scoped, tag = 'scoped memory for tpu_custom_call.1']
    #allocation9 [shape = 'u8[4096]{0}', space=vmem, size = 0x1000, scoped, tag = 'input window, operand 2, single buffered']
    #allocation10 [shape = 'u8[1048576]{0}', space=vmem, size = 0x100000, scoped, tag = 'input window, operand 3, single buffered']
    #allocation11 [shape = 's32[1]{0}', space=sflag, size = 0x4, scoped, tag = 'scoped memory for tpu_custom_call.1']
    #allocation12 [shape = 'u8[1048576]{0}', space=vmem, size = 0x100000, scoped, tag = 'input window, operand 5, single buffered']
    #allocation13 [shape = 'u8[1048576]{0}', space=vmem, size = 0x100000, scoped, tag = 'input window, operand 7, single buffered']
    #allocation14 [shape = 's32[1]{0}', space=sflag, size = 0x4, scoped, tag = 'scoped memory for tpu_custom_call.1']
    #allocation15 [shape = 'u8[131072]{0}', space=vmem, size = 0x20000, scoped, tag = 'input window, operand 9, single buffered']
    #allocation16 [shape = 'u8[131072]{0}', space=vmem, size = 0x20000, scoped, tag = 'output window, operand 0']
    %16 = vsyncpa [#allocation5], 0
    %s17 = scalar_lea.sflag [#allocation5], 1
    %18 = vsyncpa %s17, 0
    %19 = vsyncpa [#allocation8], 0
    %20 = vsyncpa [#allocation11], 0
    %21 = vsyncpa [#allocation14], 0
    %22 = vsyncpa [#allocation6], 0
    %s23 = scalar_lea.sflag [#allocation6], 1
    %24 = vsyncpa %s23, 0
    loop: start=0, step=1, limit=4
    $region2: #{tpu_custom_call.1} parent=1 // loop_pre_header
      _
    $region3: #{tpu_custom_call.1} parent=1 // loop_header
      %s26 = sphi 0, %s30
      %p27 = scmp.ge.s32.totalorder %s26, 4
      %s36 = sphi 0, %s38
      %s39 = sphi 0, %s36
      %s40 = sphi 0, %s39
      %s56 = sphi 0, %s40
      %s60 = sphi 0, %s60
      %s62 = sphi 0, %s60
      %s63 = sphi 0, %s62
      %s77 = sphi 0, %s63
      %s81 = sphi 0, %s81
      %s83 = sphi 0, %s81
      %s84 = sphi 0, %s83
      %s98 = sphi 0, %s84
      %s102 = sphi 0, %s102
      %s104 = sphi 0, %s102
      %s105 = sphi 0, %s104
      %s119 = sphi 0, %s105
      %s123 = sphi 0, %s123
      %s125 = sphi 0, %s123
      %s126 = sphi 0, %s125
      %s140 = sphi 0, %s126
      %s144 = sphi 0, %s144
      %s146 = sphi 0, %s144
      %s147 = sphi 0, %s146
      %s161 = sphi 0, %s147
      %s165 = sphi 0, %s165
      %s167 = sphi 0, %s165
      %s168 = sphi 0, %s167
      %s182 = sphi 0, %s168
      %s186 = sphi 0, %s186
      %s188 = sphi 0, %s186
      %s189 = sphi 0, %s188
      %s203 = sphi 0, %s189
      %s207 = sphi 0, %s207
      %s209 = sphi 0, %s207
      %s210 = sphi 0, %s209
      %s224 = sphi 0, %s210
      %s228 = sphi 0, %s228
      %s230 = sphi 0, %s228
      %s231 = sphi 0, %s230
      %s245 = sphi 0, %s231
      %s249 = sphi 0, %s249
      %s251 = sphi 0, %s249
      %s252 = sphi 0, %s251
      %s266 = sphi 0, %s252
      %s272 = sphi 0, %s274
      %s275 = sphi 0, %s272
      %s276 = sphi 0, %s275
      %s292 = sphi 0, %s276
    $region4: #{tpu_custom_call.1} parent=1 // loop_header_branch
      %29 = sbr.rel (%p27) target = $region8
    $region5: #{tpu_custom_call.1} parent=1 // loop_body
      %s31 = ssub.s32 %s26, 1
      %s32 = ssub.s32 %s26, 2
      %s33 = sadd.s32 %s26, 1
      %s34 = ssub.s32 %s26, %s33
      %p35 = scmp.eq.s32.totalorder %s34, 0
      %s37 = sadd.s32 %s36, 1
      %s38 = scalar_select %p35, %s36, %s37
      %p41 = pneg %p35
      %p42 = scmp.eq.s32.totalorder %s26, 1
      %p43 = por %p41, %p42
      %p44 = scmp.ne.s32.totalorder %s36, %s39
      %p45 = scmp.eq.s32.totalorder %s26, 0
      %p46 = por %p44, %p45
      %p47 = scmp.ne.s32.totalorder %s36, %s39
      %p48 = scmp.eq.s32.totalorder %s31, 1
      %p49 = por %p47, %p48
      %p50 = scmp.ne.s32.totalorder %s39, %s40
      %p51 = scmp.eq.s32.totalorder %s31, 0
      %p52 = por %p50, %p51
      %p53 = scmp.ne.s32.totalorder %s39, %s40
      %p54 = scmp.eq.s32.totalorder %s32, 1
      %p55 = por %p53, %p54
      %p57 = scmp.ne.s32.totalorder %s40, %s56
      %p58 = scmp.eq.s32.totalorder %s32, 0
      %p59 = por %p57, %p58
      %s61 = sadd.s32 %s60, 1
      %p64 = scmp.eq.s32.totalorder %s26, 1
      %p65 = scmp.ne.s32.totalorder %s60, %s62
      %p66 = scmp.eq.s32.totalorder %s26, 0
      %p67 = por %p65, %p66
      %p68 = scmp.ne.s32.totalorder %s60, %s62
      %p69 = scmp.eq.s32.totalorder %s31, 1
      %p70 = por %p68, %p69
      %p71 = scmp.ne.s32.totalorder %s62, %s63
      %p72 = scmp.eq.s32.totalorder %s31, 0
      %p73 = por %p71, %p72
      %p74 = scmp.ne.s32.totalorder %s62, %s63
      %p75 = scmp.eq.s32.totalorder %s32, 1
      %p76 = por %p74, %p75
      %p78 = scmp.ne.s32.totalorder %s63, %s77
      %p79 = scmp.eq.s32.totalorder %s32, 0
      %p80 = por %p78, %p79
      %s82 = sadd.s32 %s81, 1
      %p85 = scmp.eq.s32.totalorder %s26, 1
      %p86 = scmp.ne.s32.totalorder %s81, %s83
      %p87 = scmp.eq.s32.totalorder %s26, 0
      %p88 = por %p86, %p87
      %p89 = scmp.ne.s32.totalorder %s81, %s83
      %p90 = scmp.eq.s32.totalorder %s31, 1
      %p91 = por %p89, %p90
      %p92 = scmp.ne.s32.totalorder %s83, %s84
      %p93 = scmp.eq.s32.totalorder %s31, 0
      %p94 = por %p92, %p93
      %p95 = scmp.ne.s32.totalorder %s83, %s84
      %p96 = scmp.eq.s32.totalorder %s32, 1
      %p97 = por %p95, %p96
      %p99 = scmp.ne.s32.totalorder %s84, %s98
      %p100 = scmp.eq.s32.totalorder %s32, 0
      %p101 = por %p99, %p100
      %s103 = sadd.s32 %s102, 1
      %p106 = scmp.eq.s32.totalorder %s26, 1
      %p107 = scmp.ne.s32.totalorder %s102, %s104
      %p108 = scmp.eq.s32.totalorder %s26, 0
      %p109 = por %p107, %p108
      %p110 = scmp.ne.s32.totalorder %s102, %s104
      %p111 = scmp.eq.s32.totalorder %s31, 1
      %p112 = por %p110, %p111
      %p113 = scmp.ne.s32.totalorder %s104, %s105
      %p114 = scmp.eq.s32.totalorder %s31, 0
      %p115 = por %p113, %p114
      %p116 = scmp.ne.s32.totalorder %s104, %s105
      %p117 = scmp.eq.s32.totalorder %s32, 1
      %p118 = por %p116, %p117
      %p120 = scmp.ne.s32.totalorder %s105, %s119
      %p121 = scmp.eq.s32.totalorder %s32, 0
      %p122 = por %p120, %p121
      %s124 = sadd.s32 %s123, 1
      %p127 = scmp.eq.s32.totalorder %s26, 1
      %p128 = scmp.ne.s32.totalorder %s123, %s125
      %p129 = scmp.eq.s32.totalorder %s26, 0
      %p130 = por %p128, %p129
      %p131 = scmp.ne.s32.totalorder %s123, %s125
      %p132 = scmp.eq.s32.totalorder %s31, 1
      %p133 = por %p131, %p132
      %p134 = scmp.ne.s32.totalorder %s125, %s126
      %p135 = scmp.eq.s32.totalorder %s31, 0
      %p136 = por %p134, %p135
      %p137 = scmp.ne.s32.totalorder %s125, %s126
      %p138 = scmp.eq.s32.totalorder %s32, 1
      %p139 = por %p137, %p138
      %p141 = scmp.ne.s32.totalorder %s126, %s140
      %p142 = scmp.eq.s32.totalorder %s32, 0
      %p143 = por %p141, %p142
      %s145 = sadd.s32 %s144, 1
      %p148 = scmp.eq.s32.totalorder %s26, 1
      %p149 = scmp.ne.s32.totalorder %s144, %s146
      %p150 = scmp.eq.s32.totalorder %s26, 0
      %p151 = por %p149, %p150
      %p152 = scmp.ne.s32.totalorder %s144, %s146
      %p153 = scmp.eq.s32.totalorder %s31, 1
      %p154 = por %p152, %p153
      %p155 = scmp.ne.s32.totalorder %s146, %s147
      %p156 = scmp.eq.s32.totalorder %s31, 0
      %p157 = por %p155, %p156
      %p158 = scmp.ne.s32.totalorder %s146, %s147
      %p159 = scmp.eq.s32.totalorder %s32, 1
      %p160 = por %p158, %p159
      %p162 = scmp.ne.s32.totalorder %s147, %s161
      %p163 = scmp.eq.s32.totalorder %s32, 0
      %p164 = por %p162, %p163
      %s166 = sadd.s32 %s165, 1
      %p169 = scmp.eq.s32.totalorder %s26, 1
      %p170 = scmp.ne.s32.totalorder %s165, %s167
      %p171 = scmp.eq.s32.totalorder %s26, 0
      %p172 = por %p170, %p171
      %p173 = scmp.ne.s32.totalorder %s165, %s167
      %p174 = scmp.eq.s32.totalorder %s31, 1
      %p175 = por %p173, %p174
      %p176 = scmp.ne.s32.totalorder %s167, %s168
      %p177 = scmp.eq.s32.totalorder %s31, 0
      %p178 = por %p176, %p177
      %p179 = scmp.ne.s32.totalorder %s167, %s168
      %p180 = scmp.eq.s32.totalorder %s32, 1
      %p181 = por %p179, %p180
      %p183 = scmp.ne.s32.totalorder %s168, %s182
      %p184 = scmp.eq.s32.totalorder %s32, 0
      %p185 = por %p183, %p184
      %s187 = sadd.s32 %s186, 1
      %p190 = scmp.eq.s32.totalorder %s26, 1
      %p191 = scmp.ne.s32.totalorder %s186, %s188
      %p192 = scmp.eq.s32.totalorder %s26, 0
      %p193 = por %p191, %p192
      %p194 = scmp.ne.s32.totalorder %s186, %s188
      %p195 = scmp.eq.s32.totalorder %s31, 1
      %p196 = por %p194, %p195
      %p197 = scmp.ne.s32.totalorder %s188, %s189
      %p198 = scmp.eq.s32.totalorder %s31, 0
      %p199 = por %p197, %p198
      %p200 = scmp.ne.s32.totalorder %s188, %s189
      %p201 = scmp.eq.s32.totalorder %s32, 1
      %p202 = por %p200, %p201
      %p204 = scmp.ne.s32.totalorder %s189, %s203
      %p205 = scmp.eq.s32.totalorder %s32, 0
      %p206 = por %p204, %p205
      %s208 = sadd.s32 %s207, 1
      %p211 = scmp.eq.s32.totalorder %s26, 1
      %p212 = scmp.ne.s32.totalorder %s207, %s209
      %p213 = scmp.eq.s32.totalorder %s26, 0
      %p214 = por %p212, %p213
      %p215 = scmp.ne.s32.totalorder %s207, %s209
      %p216 = scmp.eq.s32.totalorder %s31, 1
      %p217 = por %p215, %p216
      %p218 = scmp.ne.s32.totalorder %s209, %s210
      %p219 = scmp.eq.s32.totalorder %s31, 0
      %p220 = por %p218, %p219
      %p221 = scmp.ne.s32.totalorder %s209, %s210
      %p222 = scmp.eq.s32.totalorder %s32, 1
      %p223 = por %p221, %p222
      %p225 = scmp.ne.s32.totalorder %s210, %s224
      %p226 = scmp.eq.s32.totalorder %s32, 0
      %p227 = por %p225, %p226
      %s229 = sadd.s32 %s228, 1
      %p232 = scmp.eq.s32.totalorder %s26, 1
      %p233 = scmp.ne.s32.totalorder %s228, %s230
      %p234 = scmp.eq.s32.totalorder %s26, 0
      %p235 = por %p233, %p234
      %p236 = scmp.ne.s32.totalorder %s228, %s230
      %p237 = scmp.eq.s32.totalorder %s31, 1
      %p238 = por %p236, %p237
      %p239 = scmp.ne.s32.totalorder %s230, %s231
      %p240 = scmp.eq.s32.totalorder %s31, 0
      %p241 = por %p239, %p240
      %p242 = scmp.ne.s32.totalorder %s230, %s231
      %p243 = scmp.eq.s32.totalorder %s32, 1
      %p244 = por %p242, %p243
      %p246 = scmp.ne.s32.totalorder %s231, %s245
      %p247 = scmp.eq.s32.totalorder %s32, 0
      %p248 = por %p246, %p247
      %s250 = sadd.s32 %s249, 1
      %p253 = scmp.eq.s32.totalorder %s26, 1
      %p254 = scmp.ne.s32.totalorder %s249, %s251
      %p255 = scmp.eq.s32.totalorder %s26, 0
      %p256 = por %p254, %p255
      %p257 = scmp.ne.s32.totalorder %s249, %s251
      %p258 = scmp.eq.s32.totalorder %s31, 1
      %p259 = por %p257, %p258
      %p260 = scmp.ne.s32.totalorder %s251, %s252
      %p261 = scmp.eq.s32.totalorder %s31, 0
      %p262 = por %p260, %p261
      %p263 = scmp.ne.s32.totalorder %s251, %s252
      %p264 = scmp.eq.s32.totalorder %s32, 1
      %p265 = por %p263, %p264
      %p267 = scmp.ne.s32.totalorder %s252, %s266
      %p268 = scmp.eq.s32.totalorder %s32, 0
      %p269 = por %p267, %p268
      %s270 = ssub.s32 %s26, %s33
      %p271 = scmp.eq.s32.totalorder %s270, 0
      %s273 = sadd.s32 %s272, 1
      %s274 = scalar_select %p271, %s272, %s273
      %p277 = pneg %p271
      %p278 = scmp.eq.s32.totalorder %s26, 1
      %p279 = por %p277, %p278
      %p280 = scmp.ne.s32.totalorder %s272, %s275
      %p281 = scmp.eq.s32.totalorder %s26, 0
      %p282 = por %p280, %p281
      %p283 = scmp.ne.s32.totalorder %s272, %s275
      %p284 = scmp.eq.s32.totalorder %s31, 1
      %p285 = por %p283, %p284
      %p286 = scmp.ne.s32.totalorder %s275, %s276
      %p287 = scmp.eq.s32.totalorder %s31, 0
      %p288 = por %p286, %p287
      %p289 = scmp.ne.s32.totalorder %s275, %s276
      %p290 = scmp.eq.s32.totalorder %s32, 1
      %p291 = por %p289, %p290
      %p293 = scmp.ne.s32.totalorder %s276, %s292
      %p294 = scmp.eq.s32.totalorder %s32, 0
      %p295 = por %p293, %p294
      %p296 = scmp.le.s32.totalorder 1, %s26
      %p297 = scmp.lt.s32.totalorder %s26, 3
      %p298 = pnand %p296, %p297
      %p299 = pneg %p298
      // Predicated region
      $region9: #{tpu_custom_call.1} parent=5 // pred_check
        _
      $region10: #{tpu_custom_call.1} parent=5 // pred_check_branch
        %301 = sbr.rel (%p298) target = $region12
      $region11: #{tpu_custom_call.1} parent=5 // pred_region
        %s302 = ssub.s32 %s26, 1
        // Predicated region
        $region13: #{tpu_custom_call.1} parent=11 // pred_check
          %p303 = pneg %p73
        $region14: #{tpu_custom_call.1} parent=11 // pred_check_branch
          %305 = sbr.rel (%p303) target = $region16
        $region15: #{tpu_custom_call.1} parent=11 // pred_region
          %s307 = ssub.s32 8192, 8192
          %308 = vsyncadd [#allocation8], %s307
          %s309 = sshll.u32 [#allocation7], 4
          %s310 = int_to_ptr.vmem [resolvable:$true] %s309
          %315 = dma.hbm_to_vmem [thread:$0]  %s1, 8192, %s310, [#allocation8], 512, 512, 32
        $region16: #{tpu_custom_call.1} parent=11 // pred_fallthru
          _
        // Predicated region
        $region17: #{tpu_custom_call.1} parent=11 // pred_check
          %p316 = pneg %p94
        $region18: #{tpu_custom_call.1} parent=11 // pred_check_branch
          %318 = sbr.rel (%p316) target = $region20
        $region19: #{tpu_custom_call.1} parent=11 // pred_region
          %s320 = ssub.s32 128, 128
          %321 = vsyncadd [#allocation8], %s320
          %s323 = sshll.u32 [#allocation9], 4
          %s324 = int_to_ptr.vmem [resolvable:$true] %s323
          %326 = dma.hbm_to_vmem [thread:$0]  %s2, 128, %s324, [#allocation8]
        $region20: #{tpu_custom_call.1} parent=11 // pred_fallthru
          _
        // Predicated region
        $region21: #{tpu_custom_call.1} parent=11 // pred_check
          %p327 = pneg %p115
        $region22: #{tpu_custom_call.1} parent=11 // pred_check_branch
          %329 = sbr.rel (%p327) target = $region24
        $region23: #{tpu_custom_call.1} parent=11 // pred_region
          %s331 = ssub.s32 32768, 32768
          %332 = vsyncadd [#allocation11], %s331
          %s333 = sshll.u32 [#allocation10], 4
          %s334 = int_to_ptr.vmem [resolvable:$true] %s333
          %339 = dma.hbm_to_vmem [thread:$0]  %s3, 32768, %s334, [#allocation11], 256, 256, 16
        $region24: #{tpu_custom_call.1} parent=11 // pred_fallthru
          _
        // Predicated region
        $region25: #{tpu_custom_call.1} parent=11 // pred_check
          %p340 = pneg %p136
        $region26: #{tpu_custom_call.1} parent=11 // pred_check_branch
          %342 = sbr.rel (%p340) target = $region28
        $region27: #{tpu_custom_call.1} parent=11 // pred_region
          _
        $region28: #{tpu_custom_call.1} parent=11 // pred_fallthru
          _
        // Predicated region
        $region29: #{tpu_custom_call.1} parent=11 // pred_check
          %p343 = pneg %p157
        $region30: #{tpu_custom_call.1} parent=11 // pred_check_branch
          %345 = sbr.rel (%p343) target = $region32
        $region31: #{tpu_custom_call.1} parent=11 // pred_region
          %s347 = ssub.s32 32768, 32768
          %348 = vsyncadd [#allocation11], %s347
          %s349 = sshll.u32 [#allocation12], 4
          %s350 = int_to_ptr.vmem [resolvable:$true] %s349
          %355 = dma.hbm_to_vmem [thread:$0]  %s5, 32768, %s350, [#allocation11], 512, 512, 32
        $region32: #{tpu_custom_call.1} parent=11 // pred_fallthru
          _
        // Predicated region
        $region33: #{tpu_custom_call.1} parent=11 // pred_check
          %p356 = pneg %p178
        $region34: #{tpu_custom_call.1} parent=11 // pred_check_branch
          %358 = sbr.rel (%p356) target = $region36
        $region35: #{tpu_custom_call.1} parent=11 // pred_region
          _
        $region36: #{tpu_custom_call.1} parent=11 // pred_fallthru
          _
        // Predicated region
        $region37: #{tpu_custom_call.1} parent=11 // pred_check
          %p359 = pneg %p199
        $region38: #{tpu_custom_call.1} parent=11 // pred_check_branch
          %361 = sbr.rel (%p359) target = $region40
        $region39: #{tpu_custom_call.1} parent=11 // pred_region
          %s363 = ssub.s32 32768, 32768
          %364 = vsyncadd [#allocation14], %s363
          %s365 = sshll.u32 [#allocation13], 4
          %s366 = int_to_ptr.vmem [resolvable:$true] %s365
          %371 = dma.hbm_to_vmem [thread:$0]  %s7, 32768, %s366, [#allocation14], 256, 256, 16
        $region40: #{tpu_custom_call.1} parent=11 // pred_fallthru
          _
        // Predicated region
        $region41: #{tpu_custom_call.1} parent=11 // pred_check
          %p372 = pneg %p220
        $region42: #{tpu_custom_call.1} parent=11 // pred_check_branch
          %374 = sbr.rel (%p372) target = $region44
        $region43: #{tpu_custom_call.1} parent=11 // pred_region
          _
        $region44: #{tpu_custom_call.1} parent=11 // pred_fallthru
          _
        // Predicated region
        $region45: #{tpu_custom_call.1} parent=11 // pred_check
          %p375 = pneg %p241
        $region46: #{tpu_custom_call.1} parent=11 // pred_check_branch
          %377 = sbr.rel (%p375) target = $region48
        $region47: #{tpu_custom_call.1} parent=11 // pred_region
          %s379 = ssub.s32 4096, 4096
          %380 = vsyncadd [#allocation14], %s379
          %s381 = sshll.u32 [#allocation15], 4
          %s382 = int_to_ptr.vmem [resolvable:$true] %s381
          %387 = dma.hbm_to_vmem [thread:$0]  %s9, 4096, %s382, [#allocation14], 64, 64, 4
        $region48: #{tpu_custom_call.1} parent=11 // pred_fallthru
          _
        // Predicated region
        $region49: #{tpu_custom_call.1} parent=11 // pred_check
          %p388 = pneg %p262
        $region50: #{tpu_custom_call.1} parent=11 // pred_check_branch
          %390 = sbr.rel (%p388) target = $region52
        $region51: #{tpu_custom_call.1} parent=11 // pred_region
          _
        $region52: #{tpu_custom_call.1} parent=11 // pred_fallthru
          _
      $region12: #{tpu_custom_call.1} parent=5 // pred_fallthru
        _
      %p391 = scmp.lt.s32.totalorder %s26, 2
      // Predicated region
      $region53: #{tpu_custom_call.1} parent=5 // pred_check
        %p392 = pneg %p391
      $region54: #{tpu_custom_call.1} parent=5 // pred_check_branch
        %394 = sbr.rel (%p392) target = $region56
      $region55: #{tpu_custom_call.1} parent=5 // pred_region
        // Predicated region
        $region57: #{tpu_custom_call.1} parent=55 // pred_check
          %p395 = pneg %p46
        $region58: #{tpu_custom_call.1} parent=55 // pred_check_branch
          %397 = sbr.rel (%p395) target = $region60
        $region59: #{tpu_custom_call.1} parent=55 // pred_region
          %s398 = sand.u32 %s36, 1
          %s399 = scalar_lea.sflag [#allocation5], %s398
          %s400 = sand.u32 %s36, 1
          %s401 = smul.addr %s400, 128
          %s402 = scalar_lea.vmem [#allocation4], %s401
          %s403 = smul.u32 16, %s26
          %s405 = ssub.s32 2048, 2048
          %406 = vsyncadd %s399, %s405
          %s407 = smul.addr %s403, 128
          %s408 = scalar_lea.hbm %s0, %s407
          %s409 = sshll.u32 %s402, 4
          %s410 = int_to_ptr.vmem [resolvable:$true] %s409
          %415 = dma.hbm_to_vmem [thread:$0]  %s408, 2048, %s410, %s399, 128, 128, 8
        $region60: #{tpu_custom_call.1} parent=55 // pred_fallthru
          _
      $region56: #{tpu_custom_call.1} parent=5 // pred_fallthru
        _
      %p416 = scmp.le.s32.totalorder 1, %s26
      %p417 = scmp.lt.s32.totalorder %s26, 3
      %p418 = pnand %p416, %p417
      %p419 = pneg %p418
      // Predicated region
      $region61: #{tpu_custom_call.1} parent=5 // pred_check
        _
      $region62: #{tpu_custom_call.1} parent=5 // pred_check_branch
        %421 = sbr.rel (%p418) target = $region64
      $region63: #{tpu_custom_call.1} parent=5 // pred_region
        %s422 = ssub.s32 %s26, 1
        %s423 = sand.u32 %s39, 1
        %s424 = scalar_lea.sflag [#allocation5], %s423
        %s425 = sand.u32 %s39, 1
        %s426 = smul.addr %s425, 128
        %s427 = scalar_lea.vmem [#allocation4], %s426
        // Predicated region
        $region65: #{tpu_custom_call.1} parent=63 // pred_check
          %p428 = pneg %p52
        $region66: #{tpu_custom_call.1} parent=63 // pred_check_branch
          %430 = sbr.rel (%p428) target = $region68
        $region67: #{tpu_custom_call.1} parent=63 // pred_region
          %431 = dma.done %s424, 2048
        $region68: #{tpu_custom_call.1} parent=63 // pred_fallthru
          _
        // Predicated region
        $region69: #{tpu_custom_call.1} parent=63 // pred_check
          %p432 = pneg %p73
        $region70: #{tpu_custom_call.1} parent=63 // pred_check_branch
          %434 = sbr.rel (%p432) target = $region72
        $region71: #{tpu_custom_call.1} parent=63 // pred_region
          %435 = dma.done [#allocation8], 8192
        $region72: #{tpu_custom_call.1} parent=63 // pred_fallthru
          _
        // Predicated region
        $region73: #{tpu_custom_call.1} parent=63 // pred_check
          %p436 = pneg %p94
        $region74: #{tpu_custom_call.1} parent=63 // pred_check_branch
          %438 = sbr.rel (%p436) target = $region76
        $region75: #{tpu_custom_call.1} parent=63 // pred_region
          %439 = dma.done [#allocation8], 128
        $region76: #{tpu_custom_call.1} parent=63 // pred_fallthru
          _
        // Predicated region
        $region77: #{tpu_custom_call.1} parent=63 // pred_check
          %p440 = pneg %p115
        $region78: #{tpu_custom_call.1} parent=63 // pred_check_branch
          %442 = sbr.rel (%p440) target = $region80
        $region79: #{tpu_custom_call.1} parent=63 // pred_region
          %443 = dma.done [#allocation11], 32768
        $region80: #{tpu_custom_call.1} parent=63 // pred_fallthru
          _
        // Predicated region
        $region81: #{tpu_custom_call.1} parent=63 // pred_check
          %p444 = pneg %p157
        $region82: #{tpu_custom_call.1} parent=63 // pred_check_branch
          %446 = sbr.rel (%p444) target = $region84
        $region83: #{tpu_custom_call.1} parent=63 // pred_region
          %447 = dma.done [#allocation11], 32768
        $region84: #{tpu_custom_call.1} parent=63 // pred_fallthru
          _
        // Predicated region
        $region85: #{tpu_custom_call.1} parent=63 // pred_check
          %p448 = pneg %p199
        $region86: #{tpu_custom_call.1} parent=63 // pred_check_branch
          %450 = sbr.rel (%p448) target = $region88
        $region87: #{tpu_custom_call.1} parent=63 // pred_region
          %451 = dma.done [#allocation14], 32768
        $region88: #{tpu_custom_call.1} parent=63 // pred_fallthru
          _
        // Predicated region
        $region89: #{tpu_custom_call.1} parent=63 // pred_check
          %p452 = pneg %p241
        $region90: #{tpu_custom_call.1} parent=63 // pred_check_branch
          %454 = sbr.rel (%p452) target = $region92
        $region91: #{tpu_custom_call.1} parent=63 // pred_region
          %455 = dma.done [#allocation14], 4096
        $region92: #{tpu_custom_call.1} parent=63 // pred_fallthru
          _
        %s456 = sand.u32 %s39, 1
        %s457 = scalar_lea.sflag [#allocation5], %s456
        %s458 = sand.u32 %s39, 1
        %s459 = smul.addr %s458, 128
        %s460 = scalar_lea.vmem [#allocation4], %s459
        %p461 = pneg %p52
        %p462 = pneg %p49
        %p463 = pneg %p73
        %p464 = pneg %p70
        %p465 = pneg %p94
        %p466 = pneg %p91
        %p467 = pneg %p115
        %p468 = pneg %p112
        %p469 = pneg %p136
        %p470 = pneg %p133
        %p471 = pneg %p157
        %p472 = pneg %p154
        %p473 = pneg %p178
        %p474 = pneg %p175
        %p475 = pneg %p199
        %p476 = pneg %p196
        %p477 = pneg %p220
        %p478 = pneg %p217
        %p479 = pneg %p241
        %p480 = pneg %p238
        %p481 = pneg %p262
        %p482 = pneg %p259
        %p483 = pneg %p288
        %p484 = pneg %p285
        %s485 = sand.u32 %s275, 1
        %s486 = scalar_lea.sflag [#allocation6], %s485
        %s487 = sand.u32 %s275, 1
        %s488 = smul.addr %s487, 128
        %s489 = scalar_lea.vmem [#allocation16], %s488
        %s490 = smul.u32 16, %s31
        %s491 = smul.u32 16, %s31
        %v493 = vld [vmem:[%s427] sm:$0xff]
        %v494 = vld [vmem:[%s427 + $0x8] sm:$0xff]
        %v495 = vld [vmem:[%s427 + $0x10] sm:$0xff]
        %v496 = vld [vmem:[%s427 + $0x18] sm:$0xff]
        %v497 = vld [vmem:[%s427 + $0x20] sm:$0xff]
        %v498 = vld [vmem:[%s427 + $0x28] sm:$0xff]
        %v499 = vld [vmem:[%s427 + $0x30] sm:$0xff]
        %v500 = vld [vmem:[%s427 + $0x38] sm:$0xff]
        %v501 = vld [vmem:[%s427 + $0x40] sm:$0xff]
        %v502 = vld [vmem:[%s427 + $0x48] sm:$0xff]
        %v503 = vld [vmem:[%s427 + $0x50] sm:$0xff]
        %v504 = vld [vmem:[%s427 + $0x58] sm:$0xff]
        %v505 = vld [vmem:[%s427 + $0x60] sm:$0xff]
        %v506 = vld [vmem:[%s427 + $0x68] sm:$0xff]
        %v507 = vld [vmem:[%s427 + $0x70] sm:$0xff]
        %v508 = vld [vmem:[%s427 + $0x78] sm:$0xff]
        %v509 = vpack.c.bf16 %v494, %v493
        %v510 = vpack.c.bf16 %v496, %v495
        %v511 = vpack.c.bf16 %v498, %v497
        %v512 = vpack.c.bf16 %v500, %v499
        %v513 = vpack.c.bf16 %v502, %v501
        %v514 = vpack.c.bf16 %v504, %v503
        %v515 = vpack.c.bf16 %v506, %v505
        %v516 = vpack.c.bf16 %v508, %v507
        %v517 = vld [vmem:[#allocation7] sm:$0xff]
        %v518 = vld [vmem:[#allocation7 + $0x8] sm:$0xff]
        %v519 = vld [vmem:[#allocation7 + $0x10] sm:$0xff]
        %v520 = vld [vmem:[#allocation7 + $0x18] sm:$0xff]
        %v521 = vld [vmem:[#allocation7 + $0x20] sm:$0xff]
        %v522 = vld [vmem:[#allocation7 + $0x28] sm:$0xff]
        %v523 = vld [vmem:[#allocation7 + $0x30] sm:$0xff]
        %v524 = vld [vmem:[#allocation7 + $0x38] sm:$0xff]
        %v525 = vld [vmem:[#allocation7 + $0x40] sm:$0xff]
        %v526 = vld [vmem:[#allocation7 + $0x48] sm:$0xff]
        %v527 = vld [vmem:[#allocation7 + $0x50] sm:$0xff]
        %v528 = vld [vmem:[#allocation7 + $0x58] sm:$0xff]
        %v529 = vld [vmem:[#allocation7 + $0x60] sm:$0xff]
        %v530 = vld [vmem:[#allocation7 + $0x68] sm:$0xff]
        %v531 = vld [vmem:[#allocation7 + $0x70] sm:$0xff]
        %v532 = vld [vmem:[#allocation7 + $0x78] sm:$0xff]
        %v533 = vld [vmem:[#allocation7 + $0x80] sm:$0xff]
        %v534 = vld [vmem:[#allocation7 + $0x88] sm:$0xff]
        %v535 = vld [vmem:[#allocation7 + $0x90] sm:$0xff]
        %v536 = vld [vmem:[#allocation7 + $0x98] sm:$0xff]
        %v537 = vld [vmem:[#allocation7 + $0xa0] sm:$0xff]
        %v538 = vld [vmem:[#allocation7 + $0xa8] sm:$0xff]
        %v539 = vld [vmem:[#allocation7 + $0xb0] sm:$0xff]
        %v540 = vld [vmem:[#allocation7 + $0xb8] sm:$0xff]
        %v541 = vld [vmem:[#allocation7 + $0xc0] sm:$0xff]
        %v542 = vld [vmem:[#allocation7 + $0xc8] sm:$0xff]
        %v543 = vld [vmem:[#allocation7 + $0xd0] sm:$0xff]
        %v544 = vld [vmem:[#allocation7 + $0xd8] sm:$0xff]
        %v545 = vld [vmem:[#allocation7 + $0xe0] sm:$0xff]
        %v546 = vld [vmem:[#allocation7 + $0xe8] sm:$0xff]
        %v547 = vld [vmem:[#allocation7 + $0xf0] sm:$0xff]
        %v548 = vld [vmem:[#allocation7 + $0xf8] sm:$0xff]
        %v549 = vld [vmem:[#allocation7 + $0x100] sm:$0xff]
        %v550 = vld [vmem:[#allocation7 + $0x108] sm:$0xff]
        %v551 = vld [vmem:[#allocation7 + $0x110] sm:$0xff]
        %v552 = vld [vmem:[#allocation7 + $0x118] sm:$0xff]
        %v553 = vld [vmem:[#allocation7 + $0x120] sm:$0xff]
        %v554 = vld [vmem:[#allocation7 + $0x128] sm:$0xff]
        %v555 = vld [vmem:[#allocation7 + $0x130] sm:$0xff]
        %v556 = vld [vmem:[#allocation7 + $0x138] sm:$0xff]
        %v557 = vld [vmem:[#allocation7 + $0x140] sm:$0xff]
        %v558 = vld [vmem:[#allocation7 + $0x148] sm:$0xff]
        %v559 = vld [vmem:[#allocation7 + $0x150] sm:$0xff]
        %v560 = vld [vmem:[#allocation7 + $0x158] sm:$0xff]
        %v561 = vld [vmem:[#allocation7 + $0x160] sm:$0xff]
        %v562 = vld [vmem:[#allocation7 + $0x168] sm:$0xff]
        %v563 = vld [vmem:[#allocation7 + $0x170] sm:$0xff]
        %v564 = vld [vmem:[#allocation7 + $0x178] sm:$0xff]
        %v565 = vld [vmem:[#allocation7 + $0x180] sm:$0xff]
        %v566 = vld [vmem:[#allocation7 + $0x188] sm:$0xff]
        %v567 = vld [vmem:[#allocation7 + $0x190] sm:$0xff]
        %v568 = vld [vmem:[#allocation7 + $0x198] sm:$0xff]
        %v569 = vld [vmem:[#allocation7 + $0x1a0] sm:$0xff]
        %v570 = vld [vmem:[#allocation7 + $0x1a8] sm:$0xff]
        %v571 = vld [vmem:[#allocation7 + $0x1b0] sm:$0xff]
        %v572 = vld [vmem:[#allocation7 + $0x1b8] sm:$0xff]
        %v573 = vld [vmem:[#allocation7 + $0x1c0] sm:$0xff]
        %v574 = vld [vmem:[#allocation7 + $0x1c8] sm:$0xff]
        %v575 = vld [vmem:[#allocation7 + $0x1d0] sm:$0xff]
        %v576 = vld [vmem:[#allocation7 + $0x1d8] sm:$0xff]
        %v577 = vld [vmem:[#allocation7 + $0x1e0] sm:$0xff]
        %v578 = vld [vmem:[#allocation7 + $0x1e8] sm:$0xff]
        %v579 = vld [vmem:[#allocation7 + $0x1f0] sm:$0xff]
        %v580 = vld [vmem:[#allocation7 + $0x1f8] sm:$0xff]
        %v581 = vld [vmem:[#allocation9] sm:$0xff]
        %v583 = vlaneseq
        %v584 = vshrl.u32 %v583, 7
        %v585 = vsub.s32 0, %v584
        %v586 = vrot.slane %v581, %v585
        %v587 = vlaneseq
        %v588 = vshrl.u32 %v587, 7
        %v589 = vsub.s32 1, %v588
        %v590 = vrot.slane %v581, %v589
        %v591 = vlaneseq
        %v592 = vshrl.u32 %v591, 7
        %v593 = vsub.s32 2, %v592
        %v594 = vrot.slane %v581, %v593
        %v595 = vlaneseq
        %v596 = vshrl.u32 %v595, 7
        %v597 = vsub.s32 3, %v596
        %v598 = vrot.slane %v581, %v597
        %v599 = vlaneseq
        %v600 = vshrl.u32 %v599, 7
        %v601 = vsub.s32 4, %v600
        %v602 = vrot.slane %v581, %v601
        %v603 = vlaneseq
        %v604 = vshrl.u32 %v603, 7
        %v605 = vsub.s32 5, %v604
        %v606 = vrot.slane %v581, %v605
        %v607 = vlaneseq
        %v608 = vshrl.u32 %v607, 7
        %v609 = vsub.s32 6, %v608
        %v610 = vrot.slane %v581, %v609
        %v611 = vlaneseq
        %v612 = vshrl.u32 %v611, 7
        %v613 = vsub.s32 7, %v612
        %v614 = vrot.slane %v581, %v613
        %v687 = vunpack.c.l.b16 %v517
        %v688 = vunpack.c.h.b16 %v517
        %v689 = vunpack.c.l.b16 %v518
        %v690 = vunpack.c.h.b16 %v518
        %v691 = vunpack.c.l.b16 %v519
        %v692 = vunpack.c.h.b16 %v519
        %v693 = vunpack.c.l.b16 %v520
        %v694 = vunpack.c.h.b16 %v520
        %v695 = vunpack.c.l.b16 %v521
        %v696 = vunpack.c.h.b16 %v521
        %v697 = vunpack.c.l.b16 %v522
        %v698 = vunpack.c.h.b16 %v522
        %v699 = vunpack.c.l.b16 %v523
        %v700 = vunpack.c.h.b16 %v523
        %v701 = vunpack.c.l.b16 %v524
        %v702 = vunpack.c.h.b16 %v524
        %v703 = vunpack.c.l.b16 %v525
        %v704 = vunpack.c.h.b16 %v525
        %v705 = vunpack.c.l.b16 %v526
        %v706 = vunpack.c.h.b16 %v526
        %v707 = vunpack.c.l.b16 %v527
        %v708 = vunpack.c.h.b16 %v527
        %v709 = vunpack.c.l.b16 %v528
        %v710 = vunpack.c.h.b16 %v528
        %v711 = vunpack.c.l.b16 %v529
        %v712 = vunpack.c.h.b16 %v529
        %v713 = vunpack.c.l.b16 %v530
        %v714 = vunpack.c.h.b16 %v530
        %v715 = vunpack.c.l.b16 %v531
        %v716 = vunpack.c.h.b16 %v531
        %v717 = vunpack.c.l.b16 %v532
        %v718 = vunpack.c.h.b16 %v532
        %v719 = vunpack.c.l.b16 %v533
        %v720 = vunpack.c.h.b16 %v533
        %v721 = vunpack.c.l.b16 %v534
        %v722 = vunpack.c.h.b16 %v534
        %v723 = vunpack.c.l.b16 %v535
        %v724 = vunpack.c.h.b16 %v535
        %v725 = vunpack.c.l.b16 %v536
        %v726 = vunpack.c.h.b16 %v536
        %v727 = vunpack.c.l.b16 %v537
        %v728 = vunpack.c.h.b16 %v537
        %v729 = vunpack.c.l.b16 %v538
        %v730 = vunpack.c.h.b16 %v538
        %v731 = vunpack.c.l.b16 %v539
        %v732 = vunpack.c.h.b16 %v539
        %v733 = vunpack.c.l.b16 %v540
        %v734 = vunpack.c.h.b16 %v540
        %v735 = vunpack.c.l.b16 %v541
        %v736 = vunpack.c.h.b16 %v541
        %v737 = vunpack.c.l.b16 %v542
        %v738 = vunpack.c.h.b16 %v542
        %v739 = vunpack.c.l.b16 %v543
        %v740 = vunpack.c.h.b16 %v543
        %v741 = vunpack.c.l.b16 %v544
        %v742 = vunpack.c.h.b16 %v544
        %v743 = vunpack.c.l.b16 %v545
        %v744 = vunpack.c.h.b16 %v545
        %v745 = vunpack.c.l.b16 %v546
        %v746 = vunpack.c.h.b16 %v546
        %v747 = vunpack.c.l.b16 %v547
        %v748 = vunpack.c.h.b16 %v547
        %v749 = vunpack.c.l.b16 %v548
        %v750 = vunpack.c.h.b16 %v548
        %v751 = vunpack.c.l.b16 %v549
        %v752 = vunpack.c.h.b16 %v549
        %v753 = vunpack.c.l.b16 %v550
        %v754 = vunpack.c.h.b16 %v550
        %v755 = vunpack.c.l.b16 %v551
        %v756 = vunpack.c.h.b16 %v551
        %v757 = vunpack.c.l.b16 %v552
        %v758 = vunpack.c.h.b16 %v552
        %v759 = vunpack.c.l.b16 %v553
        %v760 = vunpack.c.h.b16 %v553
        %v761 = vunpack.c.l.b16 %v554
        %v762 = vunpack.c.h.b16 %v554
        %v763 = vunpack.c.l.b16 %v555
        %v764 = vunpack.c.h.b16 %v555
        %v765 = vunpack.c.l.b16 %v556
        %v766 = vunpack.c.h.b16 %v556
        %v767 = vunpack.c.l.b16 %v557
        %v768 = vunpack.c.h.b16 %v557
        %v769 = vunpack.c.l.b16 %v558
        %v770 = vunpack.c.h.b16 %v558
        %v771 = vunpack.c.l.b16 %v559
        %v772 = vunpack.c.h.b16 %v559
        %v773 = vunpack.c.l.b16 %v560
        %v774 = vunpack.c.h.b16 %v560
        %v775 = vunpack.c.l.b16 %v561
        %v776 = vunpack.c.h.b16 %v561
        %v777 = vunpack.c.l.b16 %v562
        %v778 = vunpack.c.h.b16 %v562
        %v779 = vunpack.c.l.b16 %v563
        %v780 = vunpack.c.h.b16 %v563
        %v781 = vunpack.c.l.b16 %v564
        %v782 = vunpack.c.h.b16 %v564
        %v783 = vunpack.c.l.b16 %v565
        %v784 = vunpack.c.h.b16 %v565
        %v785 = vunpack.c.l.b16 %v566
        %v786 = vunpack.c.h.b16 %v566
        %v787 = vunpack.c.l.b16 %v567
        %v788 = vunpack.c.h.b16 %v567
        %v789 = vunpack.c.l.b16 %v568
        %v790 = vunpack.c.h.b16 %v568
        %v791 = vunpack.c.l.b16 %v569
        %v792 = vunpack.c.h.b16 %v569
        %v793 = vunpack.c.l.b16 %v570
        %v794 = vunpack.c.h.b16 %v570
        %v795 = vunpack.c.l.b16 %v571
        %v796 = vunpack.c.h.b16 %v571
        %v797 = vunpack.c.l.b16 %v572
        %v798 = vunpack.c.h.b16 %v572
        %v799 = vunpack.c.l.b16 %v573
        %v800 = vunpack.c.h.b16 %v573
        %v801 = vunpack.c.l.b16 %v574
        %v802 = vunpack.c.h.b16 %v574
        %v803 = vunpack.c.l.b16 %v575
        %v804 = vunpack.c.h.b16 %v575
        %v805 = vunpack.c.l.b16 %v576
        %v806 = vunpack.c.h.b16 %v576
        %v807 = vunpack.c.l.b16 %v577
        %v808 = vunpack.c.h.b16 %v577
        %v809 = vunpack.c.l.b16 %v578
        %v810 = vunpack.c.h.b16 %v578
        %v811 = vunpack.c.l.b16 %v579
        %v812 = vunpack.c.h.b16 %v579
        %v813 = vunpack.c.l.b16 %v580
        %v814 = vunpack.c.h.b16 %v580
        %v815 = vpack.c.b16 %v695, %v687
        %v816 = vpack.c.b16 %v696, %v688
        %v817 = vpack.c.b16 %v697, %v689
        %v818 = vpack.c.b16 %v698, %v690
        %v819 = vpack.c.b16 %v699, %v691
        %v820 = vpack.c.b16 %v700, %v692
        %v821 = vpack.c.b16 %v701, %v693
        %v822 = vpack.c.b16 %v702, %v694
        %v823 = vpack.c.b16 %v711, %v703
        %v824 = vpack.c.b16 %v712, %v704
        %v825 = vpack.c.b16 %v713, %v705
        %v826 = vpack.c.b16 %v714, %v706
        %v827 = vpack.c.b16 %v715, %v707
        %v828 = vpack.c.b16 %v716, %v708
        %v829 = vpack.c.b16 %v717, %v709
        %v830 = vpack.c.b16 %v718, %v710
        %v831 = vpack.c.b16 %v727, %v719
        %v832 = vpack.c.b16 %v728, %v720
        %v833 = vpack.c.b16 %v729, %v721
        %v834 = vpack.c.b16 %v730, %v722
        %v835 = vpack.c.b16 %v731, %v723
        %v836 = vpack.c.b16 %v732, %v724
        %v837 = vpack.c.b16 %v733, %v725
        %v838 = vpack.c.b16 %v734, %v726
        %v839 = vpack.c.b16 %v743, %v735
        %v840 = vpack.c.b16 %v744, %v736
        %v841 = vpack.c.b16 %v745, %v737
        %v842 = vpack.c.b16 %v746, %v738
        %v843 = vpack.c.b16 %v747, %v739
        %v844 = vpack.c.b16 %v748, %v740
        %v845 = vpack.c.b16 %v749, %v741
        %v846 = vpack.c.b16 %v750, %v742
        %v847 = vpack.c.b16 %v759, %v751
        %v848 = vpack.c.b16 %v760, %v752
        %v849 = vpack.c.b16 %v761, %v753
        %v850 = vpack.c.b16 %v762, %v754
        %v851 = vpack.c.b16 %v763, %v755
        %v852 = vpack.c.b16 %v764, %v756
        %v853 = vpack.c.b16 %v765, %v757
        %v854 = vpack.c.b16 %v766, %v758
        %v855 = vpack.c.b16 %v775, %v767
        %v856 = vpack.c.b16 %v776, %v768
        %v857 = vpack.c.b16 %v777, %v769
        %v858 = vpack.c.b16 %v778, %v770
        %v859 = vpack.c.b16 %v779, %v771
        %v860 = vpack.c.b16 %v780, %v772
        %v861 = vpack.c.b16 %v781, %v773
        %v862 = vpack.c.b16 %v782, %v774
        %v863 = vpack.c.b16 %v791, %v783
        %v864 = vpack.c.b16 %v792, %v784
        %v865 = vpack.c.b16 %v793, %v785
        %v866 = vpack.c.b16 %v794, %v786
        %v867 = vpack.c.b16 %v795, %v787
        %v868 = vpack.c.b16 %v796, %v788
        %v869 = vpack.c.b16 %v797, %v789
        %v870 = vpack.c.b16 %v798, %v790
        %v871 = vpack.c.b16 %v807, %v799
        %v872 = vpack.c.b16 %v808, %v800
        %v873 = vpack.c.b16 %v809, %v801
        %v874 = vpack.c.b16 %v810, %v802
        %v875 = vpack.c.b16 %v811, %v803
        %v876 = vpack.c.b16 %v812, %v804
        %v877 = vpack.c.b16 %v813, %v805
        %v878 = vpack.c.b16 %v814, %v806
        %943 = vmatprep.subr.bf16.mxu0 %v816
        %944 = vmatpush1.bf16.msra.mxu0 %v815
        %945 = vmatprep.subr.bf16.mxu0 %v824
        %946 = vmatpush1.bf16.msra.mxu0 %v823
        %947 = vmatprep.subr.bf16.mxu0 %v832
        %948 = vmatpush1.bf16.msra.mxu0 %v831
        %949 = vmatprep.subr.bf16.mxu0 %v840
        %950 = vmatpush1.bf16.msra.mxu0 %v839
        %951 = vmatprep.subr.bf16.mxu0 %v848
        %952 = vmatpush1.bf16.msra.mxu0 %v847
        %953 = vmatprep.subr.bf16.mxu0 %v856
        %954 = vmatpush1.bf16.msra.mxu0 %v855
        %955 = vmatprep.subr.bf16.mxu0 %v864
        %956 = vmatpush1.bf16.msra.mxu0 %v863
        %957 = vmatprep.subr.bf16.mxu0 %v872
        %958 = vmatpush1.bf16.msra.mxu0 %v871
        %959 = vmatprep.subr.bf16.mxu0 0
        %960 = vmatpush1.bf16.msra.mxu0 0
        %961 = vmatprep.subr.bf16.mxu0 0
        %962 = vmatpush1.bf16.msra.mxu0 0
        %963 = vmatprep.subr.bf16.mxu0 0
        %964 = vmatpush1.bf16.msra.mxu0 0
        %965 = vmatprep.subr.bf16.mxu0 0
        %966 = vmatpush1.bf16.msra.mxu0 0
        %967 = vmatprep.subr.bf16.mxu0 0
        %968 = vmatpush1.bf16.msra.mxu0 0
        %969 = vmatprep.subr.bf16.mxu0 0
        %970 = vmatpush1.bf16.msra.mxu0 0
        %971 = vmatprep.subr.bf16.mxu0 0
        %972 = vmatpush1.bf16.msra.mxu0 0
        %973 = vmatprep.subr.bf16.mxu0 0
        %974 = vmatpush1.bf16.msra.mxu0 0
        %975 = vmatprep.mubr.bf16.mxu0 0
        %976 = vmatmul.mubr.bf16.gmra.mrb[0].mxu0 %v509
        %v977 = vpop.f32.mrb[0].mxu0
        %v978 = vadd.f32 %v586, %v977
        %v979 = vpop.f32.mrb[0].mxu0
        %v980 = vadd.f32 %v590, %v979
        %v981 = vpop.f32.mrb[0].mxu0
        %v982 = vadd.f32 %v586, %v981
        %v983 = vpop.f32.mrb[0].mxu0
        %v984 = vadd.f32 %v590, %v983
        %985 = vmatprep.mubr.bf16.mxu0 0
        %986 = vmatmul.mubr.bf16.gmra.mrb[0].mxu0 %v510
        %v987 = vpop.f32.mrb[0].mxu0
        %v988 = vadd.f32 %v586, %v987
        %v989 = vpop.f32.mrb[0].mxu0
        %v990 = vadd.f32 %v590, %v989
        %v991 = vpop.f32.mrb[0].mxu0
        %v992 = vadd.f32 %v586, %v991
        %v993 = vpop.f32.mrb[0].mxu0
        %v994 = vadd.f32 %v590, %v993
        %995 = vmatprep.mubr.bf16.mxu0 0
        %996 = vmatmul.mubr.bf16.gmra.mrb[0].mxu0 %v511
        %v997 = vpop.f32.mrb[0].mxu0
        %v998 = vadd.f32 %v586, %v997
        %v999 = vpop.f32.mrb[0].mxu0
        %v1000 = vadd.f32 %v590, %v999
        %v1001 = vpop.f32.mrb[0].mxu0
        %v1002 = vadd.f32 %v586, %v1001
        %v1003 = vpop.f32.mrb[0].mxu0
        %v1004 = vadd.f32 %v590, %v1003
        %1005 = vmatprep.mubr.bf16.mxu0 0
        %1006 = vmatmul.mubr.bf16.gmra.mrb[0].mxu0 %v512
        %v1007 = vpop.f32.mrb[0].mxu0
        %v1008 = vadd.f32 %v586, %v1007
        %v1009 = vpop.f32.mrb[0].mxu0
        %v1010 = vadd.f32 %v590, %v1009
        %v1011 = vpop.f32.mrb[0].mxu0
        %v1012 = vadd.f32 %v586, %v1011
        %v1013 = vpop.f32.mrb[0].mxu0
        %v1014 = vadd.f32 %v590, %v1013
        %1015 = vmatprep.mubr.bf16.mxu0 0
        %1016 = vmatmul.mubr.bf16.gmra.mrb[0].mxu0 %v513
        %v1017 = vpop.f32.mrb[0].mxu0
        %v1018 = vadd.f32 %v586, %v1017
        %v1019 = vpop.f32.mrb[0].mxu0
        %v1020 = vadd.f32 %v590, %v1019
        %v1021 = vpop.f32.mrb[0].mxu0
        %v1022 = vadd.f32 %v586, %v1021
        %v1023 = vpop.f32.mrb[0].mxu0
        %v1024 = vadd.f32 %v590, %v1023
        %1025 = vmatprep.mubr.bf16.mxu0 0
        %1026 = vmatmul.mubr.bf16.gmra.mrb[0].mxu0 %v514
        %v1027 = vpop.f32.mrb[0].mxu0
        %v1028 = vadd.f32 %v586, %v1027
        %v1029 = vpop.f32.mrb[0].mxu0
        %v1030 = vadd.f32 %v590, %v1029
        %v1031 = vpop.f32.mrb[0].mxu0
        %v1032 = vadd.f32 %v586, %v1031
        %v1033 = vpop.f32.mrb[0].mxu0
        %v1034 = vadd.f32 %v590, %v1033
        %1035 = vmatprep.mubr.bf16.mxu0 0
        %1036 = vmatmul.mubr.bf16.gmra.mrb[0].mxu0 %v515
        %v1037 = vpop.f32.mrb[0].mxu0
        %v1038 = vadd.f32 %v586, %v1037
        %v1039 = vpop.f32.mrb[0].mxu0
        %v1040 = vadd.f32 %v590, %v1039
        %v1041 = vpop.f32.mrb[0].mxu0
        %v1042 = vadd.f32 %v586, %v1041
        %v1043 = vpop.f32.mrb[0].mxu0
        %v1044 = vadd.f32 %v590, %v1043
        %1045 = vmatprep.mubr.bf16.mxu0 0
        %1046 = vmatmul.mubr.bf16.gmra.mrb[0].mxu0 %v516
        %v1047 = vpop.f32.mrb[0].mxu0
        %v1048 = vadd.f32 %v586, %v1047
        %v1049 = vpop.f32.mrb[0].mxu0
        %v1050 = vadd.f32 %v590, %v1049
        %v1051 = vpop.f32.mrb[0].mxu0
        %v1052 = vadd.f32 %v586, %v1051
        %v1053 = vpop.f32.mrb[0].mxu0
        %v1054 = vadd.f32 %v590, %v1053
        %1055 = vdwg.mxu0
        %1056 = vmatprep.subr.bf16.mxu0 %v818
        %1057 = vmatpush1.bf16.msra.mxu0 %v817
        %1058 = vmatprep.subr.bf16.mxu0 %v826
        %1059 = vmatpush1.bf16.msra.mxu0 %v825
        %1060 = vmatprep.subr.bf16.mxu0 %v834
        %1061 = vmatpush1.bf16.msra.mxu0 %v833
        %1062 = vmatprep.subr.bf16.mxu0 %v842
        %1063 = vmatpush1.bf16.msra.mxu0 %v841
        %1064 = vmatprep.subr.bf16.mxu0 %v850
        %1065 = vmatpush1.bf16.msra.mxu0 %v849
        %1066 = vmatprep.subr.bf16.mxu0 %v858
        %1067 = vmatpush1.bf16.msra.mxu0 %v857
        %1068 = vmatprep.subr.bf16.mxu0 %v866
        %1069 = vmatpush1.bf16.msra.mxu0 %v865
        %1070 = vmatprep.subr.bf16.mxu0 %v874
        %1071 = vmatpush1.bf16.msra.mxu0 %v873
        %1072 = vmatprep.subr.bf16.mxu0 0
        %1073 = vmatpush1.bf16.msra.mxu0 0
        %1074 = vmatprep.subr.bf16.mxu0 0
        %1075 = vmatpush1.bf16.msra.mxu0 0
        %1076 = vmatprep.subr.bf16.mxu0 0
        %1077 = vmatpush1.bf16.msra.mxu0 0
        %1078 = vmatprep.subr.bf16.mxu0 0
        %1079 = vmatpush1.bf16.msra.mxu0 0
        %1080 = vmatprep.subr.bf16.mxu0 0
        %1081 = vmatpush1.bf16.msra.mxu0 0
        %1082 = vmatprep.subr.bf16.mxu0 0
        %1083 = vmatpush1.bf16.msra.mxu0 0
        %1084 = vmatprep.subr.bf16.mxu0 0
        %1085 = vmatpush1.bf16.msra.mxu0 0
        %1086 = vmatprep.subr.bf16.mxu0 0
        %1087 = vmatpush1.bf16.msra.mxu0 0
        %1088 = vmatprep.mubr.bf16.mxu0 0
        %1089 = vmatmul.mubr.bf16.gmra.mrb[0].mxu0 %v509
        %v1090 = vpop.f32.mrb[0].mxu0
        %v1091 = vadd.f32 %v594, %v1090
        %v1092 = vpop.f32.mrb[0].mxu0
        %v1093 = vadd.f32 %v598, %v1092
        %v1094 = vpop.f32.mrb[0].mxu0
        %v1095 = vadd.f32 %v594, %v1094
        %v1096 = vpop.f32.mrb[0].mxu0
        %v1097 = vadd.f32 %v598, %v1096
        %1098 = vmatprep.mubr.bf16.mxu0 0
        %1099 = vmatmul.mubr.bf16.gmra.mrb[0].mxu0 %v510
        %v1100 = vpop.f32.mrb[0].mxu0
        %v1101 = vadd.f32 %v594, %v1100
        %v1102 = vpop.f32.mrb[0].mxu0
        %v1103 = vadd.f32 %v598, %v1102
        %v1104 = vpop.f32.mrb[0].mxu0
        %v1105 = vadd.f32 %v594, %v1104
        %v1106 = vpop.f32.mrb[0].mxu0
        %v1107 = vadd.f32 %v598, %v1106
        %1108 = vmatprep.mubr.bf16.mxu0 0
        %1109 = vmatmul.mubr.bf16.gmra.mrb[0].mxu0 %v511
        %v1110 = vpop.f32.mrb[0].mxu0
        %v1111 = vadd.f32 %v594, %v1110
        %v1112 = vpop.f32.mrb[0].mxu0
        %v1113 = vadd.f32 %v598, %v1112
        %v1114 = vpop.f32.mrb[0].mxu0
        %v1115 = vadd.f32 %v594, %v1114
        %v1116 = vpop.f32.mrb[0].mxu0
        %v1117 = vadd.f32 %v598, %v1116
        %1118 = vmatprep.mubr.bf16.mxu0 0
        %1119 = vmatmul.mubr.bf16.gmra.mrb[0].mxu0 %v512
        %v1120 = vpop.f32.mrb[0].mxu0
        %v1121 = vadd.f32 %v594, %v1120
        %v1122 = vpop.f32.mrb[0].mxu0
        %v1123 = vadd.f32 %v598, %v1122
        %v1124 = vpop.f32.mrb[0].mxu0
        %v1125 = vadd.f32 %v594, %v1124
        %v1126 = vpop.f32.mrb[0].mxu0
        %v1127 = vadd.f32 %v598, %v1126
        %1128 = vmatprep.mubr.bf16.mxu0 0
        %1129 = vmatmul.mubr.bf16.gmra.mrb[0].mxu0 %v513
        %v1130 = vpop.f32.mrb[0].mxu0
        %v1131 = vadd.f32 %v594, %v1130
        %v1132 = vpop.f32.mrb[0].mxu0
        %v1133 = vadd.f32 %v598, %v1132
        %v1134 = vpop.f32.mrb[0].mxu0
        %v1135 = vadd.f32 %v594, %v1134
        %v1136 = vpop.f32.mrb[0].mxu0
        %v1137 = vadd.f32 %v598, %v1136
        %1138 = vmatprep.mubr.bf16.mxu0 0
        %1139 = vmatmul.mubr.bf16.gmra.mrb[0].mxu0 %v514
        %v1140 = vpop.f32.mrb[0].mxu0
        %v1141 = vadd.f32 %v594, %v1140
        %v1142 = vpop.f32.mrb[0].mxu0
        %v1143 = vadd.f32 %v598, %v1142
        %v1144 = vpop.f32.mrb[0].mxu0
        %v1145 = vadd.f32 %v594, %v1144
        %v1146 = vpop.f32.mrb[0].mxu0
        %v1147 = vadd.f32 %v598, %v1146
        %1148 = vmatprep.mubr.bf16.mxu0 0
        %1149 = vmatmul.mubr.bf16.gmra.mrb[0].mxu0 %v515
        %v1150 = vpop.f32.mrb[0].mxu0
        %v1151 = vadd.f32 %v594, %v1150
        %v1152 = vpop.f32.mrb[0].mxu0
        %v1153 = vadd.f32 %v598, %v1152
        %v1154 = vpop.f32.mrb[0].mxu0
        %v1155 = vadd.f32 %v594, %v1154
        %v1156 = vpop.f32.mrb[0].mxu0
        %v1157 = vadd.f32 %v598, %v1156
        %1158 = vmatprep.mubr.bf16.mxu0 0
        %1159 = vmatmul.mubr.bf16.gmra.mrb[0].mxu0 %v516
        %v1160 = vpop.f32.mrb[0].mxu0
        %v1161 = vadd.f32 %v594, %v1160
        %v1162 = vpop.f32.mrb[0].mxu0
        %v1163 = vadd.f32 %v598, %v1162
        %v1164 = vpop.f32.mrb[0].mxu0
        %v1165 = vadd.f32 %v594, %v1164
        %v1166 = vpop.f32.mrb[0].mxu0
        %v1167 = vadd.f32 %v598, %v1166
        %1168 = vdwg.mxu0
        %1169 = vmatprep.subr.bf16.mxu0 %v820
        %1170 = vmatpush1.bf16.msra.mxu0 %v819
        %1171 = vmatprep.subr.bf16.mxu0 %v828
        %1172 = vmatpush1.bf16.msra.mxu0 %v827
        %1173 = vmatprep.subr.bf16.mxu0 %v836
        %1174 = vmatpush1.bf16.msra.mxu0 %v835
        %1175 = vmatprep.subr.bf16.mxu0 %v844
        %1176 = vmatpush1.bf16.msra.mxu0 %v843
        %1177 = vmatprep.subr.bf16.mxu0 %v852
        %1178 = vmatpush1.bf16.msra.mxu0 %v851
        %1179 = vmatprep.subr.bf16.mxu0 %v860
        %1180 = vmatpush1.bf16.msra.mxu0 %v859
        %1181 = vmatprep.subr.bf16.mxu0 %v868
        %1182 = vmatpush1.bf16.msra.mxu0 %v867
        %1183 = vmatprep.subr.bf16.mxu0 %v876
        %1184 = vmatpush1.bf16.msra.mxu0 %v875
        %1185 = vmatprep.subr.bf16.mxu0 0
        %1186 = vmatpush1.bf16.msra.mxu0 0
        %1187 = vmatprep.subr.bf16.mxu0 0
        %1188 = vmatpush1.bf16.msra.mxu0 0
        %1189 = vmatprep.subr.bf16.mxu0 0
        %1190 = vmatpush1.bf16.msra.mxu0 0
        %1191 = vmatprep.subr.bf16.mxu0 0
        %1192 = vmatpush1.bf16.msra.mxu0 0
        %1193 = vmatprep.subr.bf16.mxu0 0
        %1194 = vmatpush1.bf16.msra.mxu0 0
        %1195 = vmatprep.subr.bf16.mxu0 0
        %1196 = vmatpush1.bf16.msra.mxu0 0
        %1197 = vmatprep.subr.bf16.mxu0 0
        %1198 = vmatpush1.bf16.msra.mxu0 0
        %1199 = vmatprep.subr.bf16.mxu0 0
        %1200 = vmatpush1.bf16.msra.mxu0 0
        %1201 = vmatprep.mubr.bf16.mxu0 0
        %1202 = vmatmul.mubr.bf16.gmra.mrb[0].mxu0 %v509
        %v1203 = vpop.f32.mrb[0].mxu0
        %v1204 = vadd.f32 %v602, %v1203
        %v1205 = vpop.f32.mrb[0].mxu0
        %v1206 = vadd.f32 %v606, %v1205
        %v1207 = vpop.f32.mrb[0].mxu0
        %v1208 = vadd.f32 %v602, %v1207
        %v1209 = vpop.f32.mrb[0].mxu0
        %v1210 = vadd.f32 %v606, %v1209
        %1211 = vmatprep.mubr.bf16.mxu0 0
        %1212 = vmatmul.mubr.bf16.gmra.mrb[0].mxu0 %v510
        %v1213 = vpop.f32.mrb[0].mxu0
        %v1214 = vadd.f32 %v602, %v1213
        %v1215 = vpop.f32.mrb[0].mxu0
        %v1216 = vadd.f32 %v606, %v1215
        %v1217 = vpop.f32.mrb[0].mxu0
        %v1218 = vadd.f32 %v602, %v1217
        %v1219 = vpop.f32.mrb[0].mxu0
        %v1220 = vadd.f32 %v606, %v1219
        %1221 = vmatprep.mubr.bf16.mxu0 0
        %1222 = vmatmul.mubr.bf16.gmra.mrb[0].mxu0 %v511
        %v1223 = vpop.f32.mrb[0].mxu0
        %v1224 = vadd.f32 %v602, %v1223
        %v1225 = vpop.f32.mrb[0].mxu0
        %v1226 = vadd.f32 %v606, %v1225
        %v1227 = vpop.f32.mrb[0].mxu0
        %v1228 = vadd.f32 %v602, %v1227
        %v1229 = vpop.f32.mrb[0].mxu0
        %v1230 = vadd.f32 %v606, %v1229
        %1231 = vmatprep.mubr.bf16.mxu0 0
        %1232 = vmatmul.mubr.bf16.gmra.mrb[0].mxu0 %v512
        %v1233 = vpop.f32.mrb[0].mxu0
        %v1234 = vadd.f32 %v602, %v1233
        %v1235 = vpop.f32.mrb[0].mxu0
        %v1236 = vadd.f32 %v606, %v1235
        %v1237 = vpop.f32.mrb[0].mxu0
        %v1238 = vadd.f32 %v602, %v1237
        %v1239 = vpop.f32.mrb[0].mxu0
        %v1240 = vadd.f32 %v606, %v1239
        %1241 = vmatprep.mubr.bf16.mxu0 0
        %1242 = vmatmul.mubr.bf16.gmra.mrb[0].mxu0 %v513
        %v1243 = vpop.f32.mrb[0].mxu0
        %v1244 = vadd.f32 %v602, %v1243
        %v1245 = vpop.f32.mrb[0].mxu0
        %v1246 = vadd.f32 %v606, %v1245
        %v1247 = vpop.f32.mrb[0].mxu0
        %v1248 = vadd.f32 %v602, %v1247
        %v1249 = vpop.f32.mrb[0].mxu0
        %v1250 = vadd.f32 %v606, %v1249
        %1251 = vmatprep.mubr.bf16.mxu0 0
        %1252 = vmatmul.mubr.bf16.gmra.mrb[0].mxu0 %v514
        %v1253 = vpop.f32.mrb[0].mxu0
        %v1254 = vadd.f32 %v602, %v1253
        %v1255 = vpop.f32.mrb[0].mxu0
        %v1256 = vadd.f32 %v606, %v1255
        %v1257 = vpop.f32.mrb[0].mxu0
        %v1258 = vadd.f32 %v602, %v1257
        %v1259 = vpop.f32.mrb[0].mxu0
        %v1260 = vadd.f32 %v606, %v1259
        %1261 = vmatprep.mubr.bf16.mxu0 0
        %1262 = vmatmul.mubr.bf16.gmra.mrb[0].mxu0 %v515
        %v1263 = vpop.f32.mrb[0].mxu0
        %v1264 = vadd.f32 %v602, %v1263
        %v1265 = vpop.f32.mrb[0].mxu0
        %v1266 = vadd.f32 %v606, %v1265
        %v1267 = vpop.f32.mrb[0].mxu0
        %v1268 = vadd.f32 %v602, %v1267
        %v1269 = vpop.f32.mrb[0].mxu0
        %v1270 = vadd.f32 %v606, %v1269
        %1271 = vmatprep.mubr.bf16.mxu0 0
        %1272 = vmatmul.mubr.bf16.gmra.mrb[0].mxu0 %v516
        %v1273 = vpop.f32.mrb[0].mxu0
        %v1274 = vadd.f32 %v602, %v1273
        %v1275 = vpop.f32.mrb[0].mxu0
        %v1276 = vadd.f32 %v606, %v1275
        %v1277 = vpop.f32.mrb[0].mxu0
        %v1278 = vadd.f32 %v602, %v1277
        %v1279 = vpop.f32.mrb[0].mxu0
        %v1280 = vadd.f32 %v606, %v1279
        %1281 = vdwg.mxu0
        %1282 = vmatprep.subr.bf16.mxu0 %v822
        %1283 = vmatpush1.bf16.msra.mxu0 %v821
        %1284 = vmatprep.subr.bf16.mxu0 %v830
        %1285 = vmatpush1.bf16.msra.mxu0 %v829
        %1286 = vmatprep.subr.bf16.mxu0 %v838
        %1287 = vmatpush1.bf16.msra.mxu0 %v837
        %1288 = vmatprep.subr.bf16.mxu0 %v846
        %1289 = vmatpush1.bf16.msra.mxu0 %v845
        %1290 = vmatprep.subr.bf16.mxu0 %v854
        %1291 = vmatpush1.bf16.msra.mxu0 %v853
        %1292 = vmatprep.subr.bf16.mxu0 %v862
        %1293 = vmatpush1.bf16.msra.mxu0 %v861
        %1294 = vmatprep.subr.bf16.mxu0 %v870
        %1295 = vmatpush1.bf16.msra.mxu0 %v869
        %1296 = vmatprep.subr.bf16.mxu0 %v878
        %1297 = vmatpush1.bf16.msra.mxu0 %v877
        %1298 = vmatprep.subr.bf16.mxu0 0
        %1299 = vmatpush1.bf16.msra.mxu0 0
        %1300 = vmatprep.subr.bf16.mxu0 0
        %1301 = vmatpush1.bf16.msra.mxu0 0
        %1302 = vmatprep.subr.bf16.mxu0 0
        %1303 = vmatpush1.bf16.msra.mxu0 0
        %1304 = vmatprep.subr.bf16.mxu0 0
        %1305 = vmatpush1.bf16.msra.mxu0 0
        %1306 = vmatprep.subr.bf16.mxu0 0
        %1307 = vmatpush1.bf16.msra.mxu0 0
        %1308 = vmatprep.subr.bf16.mxu0 0
        %1309 = vmatpush1.bf16.msra.mxu0 0
        %1310 = vmatprep.subr.bf16.mxu0 0
        %1311 = vmatpush1.bf16.msra.mxu0 0
        %1312 = vmatprep.subr.bf16.mxu0 0
        %1313 = vmatpush1.bf16.msra.mxu0 0
        %1314 = vmatprep.mubr.bf16.mxu0 0
        %1315 = vmatmul.mubr.bf16.gmra.mrb[0].mxu0 %v509
        %v1316 = vpop.f32.mrb[0].mxu0
        %v1317 = vadd.f32 %v610, %v1316
        %v1318 = vpop.f32.mrb[0].mxu0
        %v1319 = vadd.f32 %v614, %v1318
        %v1320 = vpop.f32.mrb[0].mxu0
        %v1321 = vadd.f32 %v610, %v1320
        %v1322 = vpop.f32.mrb[0].mxu0
        %v1323 = vadd.f32 %v614, %v1322
        %1324 = vmatprep.mubr.bf16.mxu0 0
        %1325 = vmatmul.mubr.bf16.gmra.mrb[0].mxu0 %v510
        %v1326 = vpop.f32.mrb[0].mxu0
        %v1327 = vadd.f32 %v610, %v1326
        %v1328 = vpop.f32.mrb[0].mxu0
        %v1329 = vadd.f32 %v614, %v1328
        %v1330 = vpop.f32.mrb[0].mxu0
        %v1331 = vadd.f32 %v610, %v1330
        %v1332 = vpop.f32.mrb[0].mxu0
        %v1333 = vadd.f32 %v614, %v1332
        %1334 = vmatprep.mubr.bf16.mxu0 0
        %1335 = vmatmul.mubr.bf16.gmra.mrb[0].mxu0 %v511
        %v1336 = vpop.f32.mrb[0].mxu0
        %v1337 = vadd.f32 %v610, %v1336
        %v1338 = vpop.f32.mrb[0].mxu0
        %v1339 = vadd.f32 %v614, %v1338
        %v1340 = vpop.f32.mrb[0].mxu0
        %v1341 = vadd.f32 %v610, %v1340
        %v1342 = vpop.f32.mrb[0].mxu0
        %v1343 = vadd.f32 %v614, %v1342
        %1344 = vmatprep.mubr.bf16.mxu0 0
        %1345 = vmatmul.mubr.bf16.gmra.mrb[0].mxu0 %v512
        %v1346 = vpop.f32.mrb[0].mxu0
        %v1347 = vadd.f32 %v610, %v1346
        %v1348 = vpop.f32.mrb[0].mxu0
        %v1349 = vadd.f32 %v614, %v1348
        %v1350 = vpop.f32.mrb[0].mxu0
        %v1351 = vadd.f32 %v610, %v1350
        %v1352 = vpop.f32.mrb[0].mxu0
        %v1353 = vadd.f32 %v614, %v1352
        %1354 = vmatprep.mubr.bf16.mxu0 0
        %1355 = vmatmul.mubr.bf16.gmra.mrb[0].mxu0 %v513
        %v1356 = vpop.f32.mrb[0].mxu0
        %v1357 = vadd.f32 %v610, %v1356
        %v1358 = vpop.f32.mrb[0].mxu0
        %v1359 = vadd.f32 %v614, %v1358
        %v1360 = vpop.f32.mrb[0].mxu0
        %v1361 = vadd.f32 %v610, %v1360
        %v1362 = vpop.f32.mrb[0].mxu0
        %v1363 = vadd.f32 %v614, %v1362
        %1364 = vmatprep.mubr.bf16.mxu0 0
        %1365 = vmatmul.mubr.bf16.gmra.mrb[0].mxu0 %v514
        %v1366 = vpop.f32.mrb[0].mxu0
        %v1367 = vadd.f32 %v610, %v1366
        %v1368 = vpop.f32.mrb[0].mxu0
        %v1369 = vadd.f32 %v614, %v1368
        %v1370 = vpop.f32.mrb[0].mxu0
        %v1371 = vadd.f32 %v610, %v1370
        %v1372 = vpop.f32.mrb[0].mxu0
        %v1373 = vadd.f32 %v614, %v1372
        %1374 = vmatprep.mubr.bf16.mxu0 0
        %1375 = vmatmul.mubr.bf16.gmra.mrb[0].mxu0 %v515
        %v1376 = vpop.f32.mrb[0].mxu0
        %v1377 = vadd.f32 %v610, %v1376
        %v1378 = vpop.f32.mrb[0].mxu0
        %v1379 = vadd.f32 %v614, %v1378
        %v1380 = vpop.f32.mrb[0].mxu0
        %v1381 = vadd.f32 %v610, %v1380
        %v1382 = vpop.f32.mrb[0].mxu0
        %v1383 = vadd.f32 %v614, %v1382
        %1384 = vmatprep.mubr.bf16.mxu0 0
        %1385 = vmatmul.mubr.bf16.gmra.mrb[0].mxu0 %v516
        %v1386 = vpop.f32.mrb[0].mxu0
        %v1387 = vadd.f32 %v610, %v1386
        %v1388 = vpop.f32.mrb[0].mxu0
        %v1389 = vadd.f32 %v614, %v1388
        %v1390 = vpop.f32.mrb[0].mxu0
        %v1391 = vadd.f32 %v610, %v1390
        %v1392 = vpop.f32.mrb[0].mxu0
        %v1393 = vadd.f32 %v614, %v1392
        %1394 = vdwg.mxu0
        %v1395 = vmax.f32 %v978, 0.0
        %v1396 = vmax.f32 %v980, 0.0
        %v1397 = vmax.f32 %v1091, 0.0
        %v1398 = vmax.f32 %v1093, 0.0
        %v1399 = vmax.f32 %v1204, 0.0
        %v1400 = vmax.f32 %v1206, 0.0
        %v1401 = vmax.f32 %v1317, 0.0
        %v1402 = vmax.f32 %v1319, 0.0
        %v1403 = vmax.f32 %v982, 0.0
        %v1404 = vmax.f32 %v984, 0.0
        %v1405 = vmax.f32 %v1095, 0.0
        %v1406 = vmax.f32 %v1097, 0.0
        %v1407 = vmax.f32 %v1208, 0.0
        %v1408 = vmax.f32 %v1210, 0.0
        %v1409 = vmax.f32 %v1321, 0.0
        %v1410 = vmax.f32 %v1323, 0.0
        %v1411 = vmax.f32 %v988, 0.0
        %v1412 = vmax.f32 %v990, 0.0
        %v1413 = vmax.f32 %v1101, 0.0
        %v1414 = vmax.f32 %v1103, 0.0
        %v1415 = vmax.f32 %v1214, 0.0
        %v1416 = vmax.f32 %v1216, 0.0
        %v1417 = vmax.f32 %v1327, 0.0
        %v1418 = vmax.f32 %v1329, 0.0
        %v1419 = vmax.f32 %v992, 0.0
        %v1420 = vmax.f32 %v994, 0.0
        %v1421 = vmax.f32 %v1105, 0.0
        %v1422 = vmax.f32 %v1107, 0.0
        %v1423 = vmax.f32 %v1218, 0.0
        %v1424 = vmax.f32 %v1220, 0.0
        %v1425 = vmax.f32 %v1331, 0.0
        %v1426 = vmax.f32 %v1333, 0.0
        %v1427 = vmax.f32 %v998, 0.0
        %v1428 = vmax.f32 %v1000, 0.0
        %v1429 = vmax.f32 %v1111, 0.0
        %v1430 = vmax.f32 %v1113, 0.0
        %v1431 = vmax.f32 %v1224, 0.0
        %v1432 = vmax.f32 %v1226, 0.0
        %v1433 = vmax.f32 %v1337, 0.0
        %v1434 = vmax.f32 %v1339, 0.0
        %v1435 = vmax.f32 %v1002, 0.0
        %v1436 = vmax.f32 %v1004, 0.0
        %v1437 = vmax.f32 %v1115, 0.0
        %v1438 = vmax.f32 %v1117, 0.0
        %v1439 = vmax.f32 %v1228, 0.0
        %v1440 = vmax.f32 %v1230, 0.0
        %v1441 = vmax.f32 %v1341, 0.0
        %v1442 = vmax.f32 %v1343, 0.0
        %v1443 = vmax.f32 %v1008, 0.0
        %v1444 = vmax.f32 %v1010, 0.0
        %v1445 = vmax.f32 %v1121, 0.0
        %v1446 = vmax.f32 %v1123, 0.0
        %v1447 = vmax.f32 %v1234, 0.0
        %v1448 = vmax.f32 %v1236, 0.0
        %v1449 = vmax.f32 %v1347, 0.0
        %v1450 = vmax.f32 %v1349, 0.0
        %v1451 = vmax.f32 %v1012, 0.0
        %v1452 = vmax.f32 %v1014, 0.0
        %v1453 = vmax.f32 %v1125, 0.0
        %v1454 = vmax.f32 %v1127, 0.0
        %v1455 = vmax.f32 %v1238, 0.0
        %v1456 = vmax.f32 %v1240, 0.0
        %v1457 = vmax.f32 %v1351, 0.0
        %v1458 = vmax.f32 %v1353, 0.0
        %v1459 = vmax.f32 %v1018, 0.0
        %v1460 = vmax.f32 %v1020, 0.0
        %v1461 = vmax.f32 %v1131, 0.0
        %v1462 = vmax.f32 %v1133, 0.0
        %v1463 = vmax.f32 %v1244, 0.0
        %v1464 = vmax.f32 %v1246, 0.0
        %v1465 = vmax.f32 %v1357, 0.0
        %v1466 = vmax.f32 %v1359, 0.0
        %v1467 = vmax.f32 %v1022, 0.0
        %v1468 = vmax.f32 %v1024, 0.0
        %v1469 = vmax.f32 %v1135, 0.0
        %v1470 = vmax.f32 %v1137, 0.0
        %v1471 = vmax.f32 %v1248, 0.0
        %v1472 = vmax.f32 %v1250, 0.0
        %v1473 = vmax.f32 %v1361, 0.0
        %v1474 = vmax.f32 %v1363, 0.0
        %v1475 = vmax.f32 %v1028, 0.0
        %v1476 = vmax.f32 %v1030, 0.0
        %v1477 = vmax.f32 %v1141, 0.0
        %v1478 = vmax.f32 %v1143, 0.0
        %v1479 = vmax.f32 %v1254, 0.0
        %v1480 = vmax.f32 %v1256, 0.0
        %v1481 = vmax.f32 %v1367, 0.0
        %v1482 = vmax.f32 %v1369, 0.0
        %v1483 = vmax.f32 %v1032, 0.0
        %v1484 = vmax.f32 %v1034, 0.0
        %v1485 = vmax.f32 %v1145, 0.0
        %v1486 = vmax.f32 %v1147, 0.0
        %v1487 = vmax.f32 %v1258, 0.0
        %v1488 = vmax.f32 %v1260, 0.0
        %v1489 = vmax.f32 %v1371, 0.0
        %v1490 = vmax.f32 %v1373, 0.0
        %v1491 = vmax.f32 %v1038, 0.0
        %v1492 = vmax.f32 %v1040, 0.0
        %v1493 = vmax.f32 %v1151, 0.0
        %v1494 = vmax.f32 %v1153, 0.0
        %v1495 = vmax.f32 %v1264, 0.0
        %v1496 = vmax.f32 %v1266, 0.0
        %v1497 = vmax.f32 %v1377, 0.0
        %v1498 = vmax.f32 %v1379, 0.0
        %v1499 = vmax.f32 %v1042, 0.0
        %v1500 = vmax.f32 %v1044, 0.0
        %v1501 = vmax.f32 %v1155, 0.0
        %v1502 = vmax.f32 %v1157, 0.0
        %v1503 = vmax.f32 %v1268, 0.0
        %v1504 = vmax.f32 %v1270, 0.0
        %v1505 = vmax.f32 %v1381, 0.0
        %v1506 = vmax.f32 %v1383, 0.0
        %v1507 = vmax.f32 %v1048, 0.0
        %v1508 = vmax.f32 %v1050, 0.0
        %v1509 = vmax.f32 %v1161, 0.0
        %v1510 = vmax.f32 %v1163, 0.0
        %v1511 = vmax.f32 %v1274, 0.0
        %v1512 = vmax.f32 %v1276, 0.0
        %v1513 = vmax.f32 %v1387, 0.0
        %v1514 = vmax.f32 %v1389, 0.0
        %v1515 = vmax.f32 %v1052, 0.0
        %v1516 = vmax.f32 %v1054, 0.0
        %v1517 = vmax.f32 %v1165, 0.0
        %v1518 = vmax.f32 %v1167, 0.0
        %v1519 = vmax.f32 %v1278, 0.0
        %v1520 = vmax.f32 %v1280, 0.0
        %v1521 = vmax.f32 %v1391, 0.0
        %v1522 = vmax.f32 %v1393, 0.0
        %1523 = vst [vmem:[#allocation2] sm:$0xff] %v1395
        %1524 = vst [vmem:[#allocation2 + $0x8] sm:$0xff] %v1396
        %1525 = vst [vmem:[#allocation2 + $0x10] sm:$0xff] %v1397
        %1526 = vst [vmem:[#allocation2 + $0x18] sm:$0xff] %v1398
        %1527 = vst [vmem:[#allocation2 + $0x20] sm:$0xff] %v1399
        %1528 = vst [vmem:[#allocation2 + $0x28] sm:$0xff] %v1400
        %1529 = vst [vmem:[#allocation2 + $0x30] sm:$0xff] %v1401
        %1530 = vst [vmem:[#allocation2 + $0x38] sm:$0xff] %v1402
        %1531 = vst [vmem:[#allocation2 + $0x40] sm:$0xff] %v1403
        %1532 = vst [vmem:[#allocation2 + $0x48] sm:$0xff] %v1404
        %1533 = vst [vmem:[#allocation2 + $0x50] sm:$0xff] %v1405
        %1534 = vst [vmem:[#allocation2 + $0x58] sm:$0xff] %v1406
        %1535 = vst [vmem:[#allocation2 + $0x60] sm:$0xff] %v1407
        %1536 = vst [vmem:[#allocation2 + $0x68] sm:$0xff] %v1408
        %1537 = vst [vmem:[#allocation2 + $0x70] sm:$0xff] %v1409
        %1538 = vst [vmem:[#allocation2 + $0x78] sm:$0xff] %v1410
        %1539 = vst [vmem:[#allocation2 + $0x80] sm:$0xff] %v1411
        %1540 = vst [vmem:[#allocation2 + $0x88] sm:$0xff] %v1412
        %1541 = vst [vmem:[#allocation2 + $0x90] sm:$0xff] %v1413
        %1542 = vst [vmem:[#allocation2 + $0x98] sm:$0xff] %v1414
        %1543 = vst [vmem:[#allocation2 + $0xa0] sm:$0xff] %v1415
        %1544 = vst [vmem:[#allocation2 + $0xa8] sm:$0xff] %v1416
        %1545 = vst [vmem:[#allocation2 + $0xb0] sm:$0xff] %v1417
        %1546 = vst [vmem:[#allocation2 + $0xb8] sm:$0xff] %v1418
        %1547 = vst [vmem:[#allocation2 + $0xc0] sm:$0xff] %v1419
        %1548 = vst [vmem:[#allocation2 + $0xc8] sm:$0xff] %v1420
        %1549 = vst [vmem:[#allocation2 + $0xd0] sm:$0xff] %v1421
        %1550 = vst [vmem:[#allocation2 + $0xd8] sm:$0xff] %v1422
        %1551 = vst [vmem:[#allocation2 + $0xe0] sm:$0xff] %v1423
        %1552 = vst [vmem:[#allocation2 + $0xe8] sm:$0xff] %v1424
        %1553 = vst [vmem:[#allocation2 + $0xf0] sm:$0xff] %v1425
        %1554 = vst [vmem:[#allocation2 + $0xf8] sm:$0xff] %v1426
        %1555 = vst [vmem:[#allocation2 + $0x100] sm:$0xff] %v1427
        %1556 = vst [vmem:[#allocation2 + $0x108] sm:$0xff] %v1428
        %1557 = vst [vmem:[#allocation2 + $0x110] sm:$0xff] %v1429
        %1558 = vst [vmem:[#allocation2 + $0x118] sm:$0xff] %v1430
        %1559 = vst [vmem:[#allocation2 + $0x120] sm:$0xff] %v1431
        %1560 = vst [vmem:[#allocation2 + $0x128] sm:$0xff] %v1432
        %1561 = vst [vmem:[#allocation2 + $0x130] sm:$0xff] %v1433
        %1562 = vst [vmem:[#allocation2 + $0x138] sm:$0xff] %v1434
        %1563 = vst [vmem:[#allocation2 + $0x140] sm:$0xff] %v1435
        %1564 = vst [vmem:[#allocation2 + $0x148] sm:$0xff] %v1436
        %1565 = vst [vmem:[#allocation2 + $0x150] sm:$0xff] %v1437
        %1566 = vst [vmem:[#allocation2 + $0x158] sm:$0xff] %v1438
        %1567 = vst [vmem:[#allocation2 + $0x160] sm:$0xff] %v1439
        %1568 = vst [vmem:[#allocation2 + $0x168] sm:$0xff] %v1440
        %1569 = vst [vmem:[#allocation2 + $0x170] sm:$0xff] %v1441
        %1570 = vst [vmem:[#allocation2 + $0x178] sm:$0xff] %v1442
        %1571 = vst [vmem:[#allocation2 + $0x180] sm:$0xff] %v1443
        %1572 = vst [vmem:[#allocation2 + $0x188] sm:$0xff] %v1444
        %1573 = vst [vmem:[#allocation2 + $0x190] sm:$0xff] %v1445
        %1574 = vst [vmem:[#allocation2 + $0x198] sm:$0xff] %v1446
        %1575 = vst [vmem:[#allocation2 + $0x1a0] sm:$0xff] %v1447
        %1576 = vst [vmem:[#allocation2 + $0x1a8] sm:$0xff] %v1448
        %1577 = vst [vmem:[#allocation2 + $0x1b0] sm:$0xff] %v1449
        %1578 = vst [vmem:[#allocation2 + $0x1b8] sm:$0xff] %v1450
        %1579 = vst [vmem:[#allocation2 + $0x1c0] sm:$0xff] %v1451
        %1580 = vst [vmem:[#allocation2 + $0x1c8] sm:$0xff] %v1452
        %1581 = vst [vmem:[#allocation2 + $0x1d0] sm:$0xff] %v1453
        %1582 = vst [vmem:[#allocation2 + $0x1d8] sm:$0xff] %v1454
        %1583 = vst [vmem:[#allocation2 + $0x1e0] sm:$0xff] %v1455
        %1584 = vst [vmem:[#allocation2 + $0x1e8] sm:$0xff] %v1456
        %1585 = vst [vmem:[#allocation2 + $0x1f0] sm:$0xff] %v1457
        %1586 = vst [vmem:[#allocation2 + $0x1f8] sm:$0xff] %v1458
        %1587 = vst [vmem:[#allocation2 + $0x200] sm:$0xff] %v1459
        %1588 = vst [vmem:[#allocation2 + $0x208] sm:$0xff] %v1460
        %1589 = vst [vmem:[#allocation2 + $0x210] sm:$0xff] %v1461
        %1590 = vst [vmem:[#allocation2 + $0x218] sm:$0xff] %v1462
        %1591 = vst [vmem:[#allocation2 + $0x220] sm:$0xff] %v1463
        %1592 = vst [vmem:[#allocation2 + $0x228] sm:$0xff] %v1464
        %1593 = vst [vmem:[#allocation2 + $0x230] sm:$0xff] %v1465
        %1594 = vst [vmem:[#allocation2 + $0x238] sm:$0xff] %v1466
        %1595 = vst [vmem:[#allocation2 + $0x240] sm:$0xff] %v1467
        %1596 = vst [vmem:[#allocation2 + $0x248] sm:$0xff] %v1468
        %1597 = vst [vmem:[#allocation2 + $0x250] sm:$0xff] %v1469
        %1598 = vst [vmem:[#allocation2 + $0x258] sm:$0xff] %v1470
        %1599 = vst [vmem:[#allocation2 + $0x260] sm:$0xff] %v1471
        %1600 = vst [vmem:[#allocation2 + $0x268] sm:$0xff] %v1472
        %1601 = vst [vmem:[#allocation2 + $0x270] sm:$0xff] %v1473
        %1602 = vst [vmem:[#allocation2 + $0x278] sm:$0xff] %v1474
        %1603 = vst [vmem:[#allocation2 + $0x280] sm:$0xff] %v1475
        %1604 = vst [vmem:[#allocation2 + $0x288] sm:$0xff] %v1476
        %1605 = vst [vmem:[#allocation2 + $0x290] sm:$0xff] %v1477
        %1606 = vst [vmem:[#allocation2 + $0x298] sm:$0xff] %v1478
        %1607 = vst [vmem:[#allocation2 + $0x2a0] sm:$0xff] %v1479
        %1608 = vst [vmem:[#allocation2 + $0x2a8] sm:$0xff] %v1480
        %1609 = vst [vmem:[#allocation2 + $0x2b0] sm:$0xff] %v1481
        %1610 = vst [vmem:[#allocation2 + $0x2b8] sm:$0xff] %v1482
        %1611 = vst [vmem:[#allocation2 + $0x2c0] sm:$0xff] %v1483
        %1612 = vst [vmem:[#allocation2 + $0x2c8] sm:$0xff] %v1484
        %1613 = vst [vmem:[#allocation2 + $0x2d0] sm:$0xff] %v1485
        %1614 = vst [vmem:[#allocation2 + $0x2d8] sm:$0xff] %v1486
        %1615 = vst [vmem:[#allocation2 + $0x2e0] sm:$0xff] %v1487
        %1616 = vst [vmem:[#allocation2 + $0x2e8] sm:$0xff] %v1488
        %1617 = vst [vmem:[#allocation2 + $0x2f0] sm:$0xff] %v1489
        %1618 = vst [vmem:[#allocation2 + $0x2f8] sm:$0xff] %v1490
        %1619 = vst [vmem:[#allocation2 + $0x300] sm:$0xff] %v1491
        %1620 = vst [vmem:[#allocation2 + $0x308] sm:$0xff] %v1492
        %1621 = vst [vmem:[#allocation2 + $0x310] sm:$0xff] %v1493
        %1622 = vst [vmem:[#allocation2 + $0x318] sm:$0xff] %v1494
        %1623 = vst [vmem:[#allocation2 + $0x320] sm:$0xff] %v1495
        %1624 = vst [vmem:[#allocation2 + $0x328] sm:$0xff] %v1496
        %1625 = vst [vmem:[#allocation2 + $0x330] sm:$0xff] %v1497
        %1626 = vst [vmem:[#allocation2 + $0x338] sm:$0xff] %v1498
        %1627 = vst [vmem:[#allocation2 + $0x340] sm:$0xff] %v1499
        %1628 = vst [vmem:[#allocation2 + $0x348] sm:$0xff] %v1500
        %1629 = vst [vmem:[#allocation2 + $0x350] sm:$0xff] %v1501
        %1630 = vst [vmem:[#allocation2 + $0x358] sm:$0xff] %v1502
        %1631 = vst [vmem:[#allocation2 + $0x360] sm:$0xff] %v1503
        %1632 = vst [vmem:[#allocation2 + $0x368] sm:$0xff] %v1504
        %1633 = vst [vmem:[#allocation2 + $0x370] sm:$0xff] %v1505
        %1634 = vst [vmem:[#allocation2 + $0x378] sm:$0xff] %v1506
        %1635 = vst [vmem:[#allocation2 + $0x380] sm:$0xff] %v1507
        %1636 = vst [vmem:[#allocation2 + $0x388] sm:$0xff] %v1508
        %1637 = vst [vmem:[#allocation2 + $0x390] sm:$0xff] %v1509
        %1638 = vst [vmem:[#allocation2 + $0x398] sm:$0xff] %v1510
        %1639 = vst [vmem:[#allocation2 + $0x3a0] sm:$0xff] %v1511
        %1640 = vst [vmem:[#allocation2 + $0x3a8] sm:$0xff] %v1512
        %1641 = vst [vmem:[#allocation2 + $0x3b0] sm:$0xff] %v1513
        %1642 = vst [vmem:[#allocation2 + $0x3b8] sm:$0xff] %v1514
        %1643 = vst [vmem:[#allocation2 + $0x3c0] sm:$0xff] %v1515
        %1644 = vst [vmem:[#allocation2 + $0x3c8] sm:$0xff] %v1516
        %1645 = vst [vmem:[#allocation2 + $0x3d0] sm:$0xff] %v1517
        %1646 = vst [vmem:[#allocation2 + $0x3d8] sm:$0xff] %v1518
        %1647 = vst [vmem:[#allocation2 + $0x3e0] sm:$0xff] %v1519
        %1648 = vst [vmem:[#allocation2 + $0x3e8] sm:$0xff] %v1520
        %1649 = vst [vmem:[#allocation2 + $0x3f0] sm:$0xff] %v1521
        %1650 = vst [vmem:[#allocation2 + $0x3f8] sm:$0xff] %v1522
        %v1651 = vld [vmem:[#allocation2] sm:$0xff]
        %v1652 = vld [vmem:[#allocation2 + $0x8] sm:$0xff]
        %v1653 = vld [vmem:[#allocation2 + $0x10] sm:$0xff]
        %v1654 = vld [vmem:[#allocation2 + $0x18] sm:$0xff]
        %v1655 = vld [vmem:[#allocation2 + $0x20] sm:$0xff]
        %v1656 = vld [vmem:[#allocation2 + $0x28] sm:$0xff]
        %v1657 = vld [vmem:[#allocation2 + $0x30] sm:$0xff]
        %v1658 = vld [vmem:[#allocation2 + $0x38] sm:$0xff]
        %v1659 = vld [vmem:[#allocation2 + $0x40] sm:$0xff]
        %v1660 = vld [vmem:[#allocation2 + $0x48] sm:$0xff]
        %v1661 = vld [vmem:[#allocation2 + $0x50] sm:$0xff]
        %v1662 = vld [vmem:[#allocation2 + $0x58] sm:$0xff]
        %v1663 = vld [vmem:[#allocation2 + $0x60] sm:$0xff]
        %v1664 = vld [vmem:[#allocation2 + $0x68] sm:$0xff]
        %v1665 = vld [vmem:[#allocation2 + $0x70] sm:$0xff]
        %v1666 = vld [vmem:[#allocation2 + $0x78] sm:$0xff]
        %v1667 = vld [vmem:[#allocation2 + $0x80] sm:$0xff]
        %v1668 = vld [vmem:[#allocation2 + $0x88] sm:$0xff]
        %v1669 = vld [vmem:[#allocation2 + $0x90] sm:$0xff]
        %v1670 = vld [vmem:[#allocation2 + $0x98] sm:$0xff]
        %v1671 = vld [vmem:[#allocation2 + $0xa0] sm:$0xff]
        %v1672 = vld [vmem:[#allocation2 + $0xa8] sm:$0xff]
        %v1673 = vld [vmem:[#allocation2 + $0xb0] sm:$0xff]
        %v1674 = vld [vmem:[#allocation2 + $0xb8] sm:$0xff]
        %v1675 = vld [vmem:[#allocation2 + $0xc0] sm:$0xff]
        %v1676 = vld [vmem:[#allocation2 + $0xc8] sm:$0xff]
        %v1677 = vld [vmem:[#allocation2 + $0xd0] sm:$0xff]
        %v1678 = vld [vmem:[#allocation2 + $0xd8] sm:$0xff]
        %v1679 = vld [vmem:[#allocation2 + $0xe0] sm:$0xff]
        %v1680 = vld [vmem:[#allocation2 + $0xe8] sm:$0xff]
        %v1681 = vld [vmem:[#allocation2 + $0xf0] sm:$0xff]
        %v1682 = vld [vmem:[#allocation2 + $0xf8] sm:$0xff]
        %v1683 = vld [vmem:[#allocation2 + $0x100] sm:$0xff]
        %v1684 = vld [vmem:[#allocation2 + $0x108] sm:$0xff]
        %v1685 = vld [vmem:[#allocation2 + $0x110] sm:$0xff]
        %v1686 = vld [vmem:[#allocation2 + $0x118] sm:$0xff]
        %v1687 = vld [vmem:[#allocation2 + $0x120] sm:$0xff]
        %v1688 = vld [vmem:[#allocation2 + $0x128] sm:$0xff]
        %v1689 = vld [vmem:[#allocation2 + $0x130] sm:$0xff]
        %v1690 = vld [vmem:[#allocation2 + $0x138] sm:$0xff]
        %v1691 = vld [vmem:[#allocation2 + $0x140] sm:$0xff]
        %v1692 = vld [vmem:[#allocation2 + $0x148] sm:$0xff]
        %v1693 = vld [vmem:[#allocation2 + $0x150] sm:$0xff]
        %v1694 = vld [vmem:[#allocation2 + $0x158] sm:$0xff]
        %v1695 = vld [vmem:[#allocation2 + $0x160] sm:$0xff]
        %v1696 = vld [vmem:[#allocation2 + $0x168] sm:$0xff]
        %v1697 = vld [vmem:[#allocation2 + $0x170] sm:$0xff]
        %v1698 = vld [vmem:[#allocation2 + $0x178] sm:$0xff]
        %v1699 = vld [vmem:[#allocation2 + $0x180] sm:$0xff]
        %v1700 = vld [vmem:[#allocation2 + $0x188] sm:$0xff]
        %v1701 = vld [vmem:[#allocation2 + $0x190] sm:$0xff]
        %v1702 = vld [vmem:[#allocation2 + $0x198] sm:$0xff]
        %v1703 = vld [vmem:[#allocation2 + $0x1a0] sm:$0xff]
        %v1704 = vld [vmem:[#allocation2 + $0x1a8] sm:$0xff]
        %v1705 = vld [vmem:[#allocation2 + $0x1b0] sm:$0xff]
        %v1706 = vld [vmem:[#allocation2 + $0x1b8] sm:$0xff]
        %v1707 = vld [vmem:[#allocation2 + $0x1c0] sm:$0xff]
        %v1708 = vld [vmem:[#allocation2 + $0x1c8] sm:$0xff]
        %v1709 = vld [vmem:[#allocation2 + $0x1d0] sm:$0xff]
        %v1710 = vld [vmem:[#allocation2 + $0x1d8] sm:$0xff]
        %v1711 = vld [vmem:[#allocation2 + $0x1e0] sm:$0xff]
        %v1712 = vld [vmem:[#allocation2 + $0x1e8] sm:$0xff]
        %v1713 = vld [vmem:[#allocation2 + $0x1f0] sm:$0xff]
        %v1714 = vld [vmem:[#allocation2 + $0x1f8] sm:$0xff]
        %v1715 = vld [vmem:[#allocation2 + $0x200] sm:$0xff]
        %v1716 = vld [vmem:[#allocation2 + $0x208] sm:$0xff]
        %v1717 = vld [vmem:[#allocation2 + $0x210] sm:$0xff]
        %v1718 = vld [vmem:[#allocation2 + $0x218] sm:$0xff]
        %v1719 = vld [vmem:[#allocation2 + $0x220] sm:$0xff]
        %v1720 = vld [vmem:[#allocation2 + $0x228] sm:$0xff]
        %v1721 = vld [vmem:[#allocation2 + $0x230] sm:$0xff]
        %v1722 = vld [vmem:[#allocation2 + $0x238] sm:$0xff]
        %v1723 = vld [vmem:[#allocation2 + $0x240] sm:$0xff]
        %v1724 = vld [vmem:[#allocation2 + $0x248] sm:$0xff]
        %v1725 = vld [vmem:[#allocation2 + $0x250] sm:$0xff]
        %v1726 = vld [vmem:[#allocation2 + $0x258] sm:$0xff]
        %v1727 = vld [vmem:[#allocation2 + $0x260] sm:$0xff]
        %v1728 = vld [vmem:[#allocation2 + $0x268] sm:$0xff]
        %v1729 = vld [vmem:[#allocation2 + $0x270] sm:$0xff]
        %v1730 = vld [vmem:[#allocation2 + $0x278] sm:$0xff]
        %v1731 = vld [vmem:[#allocation2 + $0x280] sm:$0xff]
        %v1732 = vld [vmem:[#allocation2 + $0x288] sm:$0xff]
        %v1733 = vld [vmem:[#allocation2 + $0x290] sm:$0xff]
        %v1734 = vld [vmem:[#allocation2 + $0x298] sm:$0xff]
        %v1735 = vld [vmem:[#allocation2 + $0x2a0] sm:$0xff]
        %v1736 = vld [vmem:[#allocation2 + $0x2a8] sm:$0xff]
        %v1737 = vld [vmem:[#allocation2 + $0x2b0] sm:$0xff]
        %v1738 = vld [vmem:[#allocation2 + $0x2b8] sm:$0xff]
        %v1739 = vld [vmem:[#allocation2 + $0x2c0] sm:$0xff]
        %v1740 = vld [vmem:[#allocation2 + $0x2c8] sm:$0xff]
        %v1741 = vld [vmem:[#allocation2 + $0x2d0] sm:$0xff]
        %v1742 = vld [vmem:[#allocation2 + $0x2d8] sm:$0xff]
        %v1743 = vld [vmem:[#allocation2 + $0x2e0] sm:$0xff]
        %v1744 = vld [vmem:[#allocation2 + $0x2e8] sm:$0xff]
        %v1745 = vld [vmem:[#allocation2 + $0x2f0] sm:$0xff]
        %v1746 = vld [vmem:[#allocation2 + $0x2f8] sm:$0xff]
        %v1747 = vld [vmem:[#allocation2 + $0x300] sm:$0xff]
        %v1748 = vld [vmem:[#allocation2 + $0x308] sm:$0xff]
        %v1749 = vld [vmem:[#allocation2 + $0x310] sm:$0xff]
        %v1750 = vld [vmem:[#allocation2 + $0x318] sm:$0xff]
        %v1751 = vld [vmem:[#allocation2 + $0x320] sm:$0xff]
        %v1752 = vld [vmem:[#allocation2 + $0x328] sm:$0xff]
        %v1753 = vld [vmem:[#allocation2 + $0x330] sm:$0xff]
        %v1754 = vld [vmem:[#allocation2 + $0x338] sm:$0xff]
        %v1755 = vld [vmem:[#allocation2 + $0x340] sm:$0xff]
        %v1756 = vld [vmem:[#allocation2 + $0x348] sm:$0xff]
        %v1757 = vld [vmem:[#allocation2 + $0x350] sm:$0xff]
        %v1758 = vld [vmem:[#allocation2 + $0x358] sm:$0xff]
        %v1759 = vld [vmem:[#allocation2 + $0x360] sm:$0xff]
        %v1760 = vld [vmem:[#allocation2 + $0x368] sm:$0xff]
        %v1761 = vld [vmem:[#allocation2 + $0x370] sm:$0xff]
        %v1762 = vld [vmem:[#allocation2 + $0x378] sm:$0xff]
        %v1763 = vld [vmem:[#allocation2 + $0x380] sm:$0xff]
        %v1764 = vld [vmem:[#allocation2 + $0x388] sm:$0xff]
        %v1765 = vld [vmem:[#allocation2 + $0x390] sm:$0xff]
        %v1766 = vld [vmem:[#allocation2 + $0x398] sm:$0xff]
        %v1767 = vld [vmem:[#allocation2 + $0x3a0] sm:$0xff]
        %v1768 = vld [vmem:[#allocation2 + $0x3a8] sm:$0xff]
        %v1769 = vld [vmem:[#allocation2 + $0x3b0] sm:$0xff]
        %v1770 = vld [vmem:[#allocation2 + $0x3b8] sm:$0xff]
        %v1771 = vld [vmem:[#allocation2 + $0x3c0] sm:$0xff]
        %v1772 = vld [vmem:[#allocation2 + $0x3c8] sm:$0xff]
        %v1773 = vld [vmem:[#allocation2 + $0x3d0] sm:$0xff]
        %v1774 = vld [vmem:[#allocation2 + $0x3d8] sm:$0xff]
        %v1775 = vld [vmem:[#allocation2 + $0x3e0] sm:$0xff]
        %v1776 = vld [vmem:[#allocation2 + $0x3e8] sm:$0xff]
        %v1777 = vld [vmem:[#allocation2 + $0x3f0] sm:$0xff]
        %v1778 = vld [vmem:[#allocation2 + $0x3f8] sm:$0xff]
        %v1779 = vpack.c.bf16 %v1659, %v1651
        %v1780 = vpack.c.bf16 %v1660, %v1652
        %v1781 = vpack.c.bf16 %v1661, %v1653
        %v1782 = vpack.c.bf16 %v1662, %v1654
        %v1783 = vpack.c.bf16 %v1663, %v1655
        %v1784 = vpack.c.bf16 %v1664, %v1656
        %v1785 = vpack.c.bf16 %v1665, %v1657
        %v1786 = vpack.c.bf16 %v1666, %v1658
        %v1787 = vpack.c.bf16 %v1675, %v1667
        %v1788 = vpack.c.bf16 %v1676, %v1668
        %v1789 = vpack.c.bf16 %v1677, %v1669
        %v1790 = vpack.c.bf16 %v1678, %v1670
        %v1791 = vpack.c.bf16 %v1679, %v1671
        %v1792 = vpack.c.bf16 %v1680, %v1672
        %v1793 = vpack.c.bf16 %v1681, %v1673
        %v1794 = vpack.c.bf16 %v1682, %v1674
        %v1795 = vpack.c.bf16 %v1691, %v1683
        %v1796 = vpack.c.bf16 %v1692, %v1684
        %v1797 = vpack.c.bf16 %v1693, %v1685
        %v1798 = vpack.c.bf16 %v1694, %v1686
        %v1799 = vpack.c.bf16 %v1695, %v1687
        %v1800 = vpack.c.bf16 %v1696, %v1688
        %v1801 = vpack.c.bf16 %v1697, %v1689
        %v1802 = vpack.c.bf16 %v1698, %v1690
        %v1803 = vpack.c.bf16 %v1707, %v1699
        %v1804 = vpack.c.bf16 %v1708, %v1700
        %v1805 = vpack.c.bf16 %v1709, %v1701
        %v1806 = vpack.c.bf16 %v1710, %v1702
        %v1807 = vpack.c.bf16 %v1711, %v1703
        %v1808 = vpack.c.bf16 %v1712, %v1704
        %v1809 = vpack.c.bf16 %v1713, %v1705
        %v1810 = vpack.c.bf16 %v1714, %v1706
        %v1811 = vpack.c.bf16 %v1723, %v1715
        %v1812 = vpack.c.bf16 %v1724, %v1716
        %v1813 = vpack.c.bf16 %v1725, %v1717
        %v1814 = vpack.c.bf16 %v1726, %v1718
        %v1815 = vpack.c.bf16 %v1727, %v1719
        %v1816 = vpack.c.bf16 %v1728, %v1720
        %v1817 = vpack.c.bf16 %v1729, %v1721
        %v1818 = vpack.c.bf16 %v1730, %v1722
        %v1819 = vpack.c.bf16 %v1739, %v1731
        %v1820 = vpack.c.bf16 %v1740, %v1732
        %v1821 = vpack.c.bf16 %v1741, %v1733
        %v1822 = vpack.c.bf16 %v1742, %v1734
        %v1823 = vpack.c.bf16 %v1743, %v1735
        %v1824 = vpack.c.bf16 %v1744, %v1736
        %v1825 = vpack.c.bf16 %v1745, %v1737
        %v1826 = vpack.c.bf16 %v1746, %v1738
        %v1827 = vpack.c.bf16 %v1755, %v1747
        %v1828 = vpack.c.bf16 %v1756, %v1748
        %v1829 = vpack.c.bf16 %v1757, %v1749
        %v1830 = vpack.c.bf16 %v1758, %v1750
        %v1831 = vpack.c.bf16 %v1759, %v1751
        %v1832 = vpack.c.bf16 %v1760, %v1752
        %v1833 = vpack.c.bf16 %v1761, %v1753
        %v1834 = vpack.c.bf16 %v1762, %v1754
        %v1835 = vpack.c.bf16 %v1771, %v1763
        %v1836 = vpack.c.bf16 %v1772, %v1764
        %v1837 = vpack.c.bf16 %v1773, %v1765
        %v1838 = vpack.c.bf16 %v1774, %v1766
        %v1839 = vpack.c.bf16 %v1775, %v1767
        %v1840 = vpack.c.bf16 %v1776, %v1768
        %v1841 = vpack.c.bf16 %v1777, %v1769
        %v1842 = vpack.c.bf16 %v1778, %v1770
        %v1843 = vld [vmem:[#allocation10] sm:$0xff]
        %v1844 = vld [vmem:[#allocation10 + $0x8] sm:$0xff]
        %v1845 = vld [vmem:[#allocation10 + $0x10] sm:$0xff]
        %v1846 = vld [vmem:[#allocation10 + $0x18] sm:$0xff]
        %v1847 = vld [vmem:[#allocation10 + $0x20] sm:$0xff]
        %v1848 = vld [vmem:[#allocation10 + $0x28] sm:$0xff]
        %v1849 = vld [vmem:[#allocation10 + $0x30] sm:$0xff]
        %v1850 = vld [vmem:[#allocation10 + $0x38] sm:$0xff]
        %v1851 = vld [vmem:[#allocation10 + $0x40] sm:$0xff]
        %v1852 = vld [vmem:[#allocation10 + $0x48] sm:$0xff]
        %v1853 = vld [vmem:[#allocation10 + $0x50] sm:$0xff]
        %v1854 = vld [vmem:[#allocation10 + $0x58] sm:$0xff]
        %v1855 = vld [vmem:[#allocation10 + $0x60] sm:$0xff]
        %v1856 = vld [vmem:[#allocation10 + $0x68] sm:$0xff]
        %v1857 = vld [vmem:[#allocation10 + $0x70] sm:$0xff]
        %v1858 = vld [vmem:[#allocation10 + $0x78] sm:$0xff]
        %v1859 = vld [vmem:[#allocation10 + $0x80] sm:$0xff]
        %v1860 = vld [vmem:[#allocation10 + $0x88] sm:$0xff]
        %v1861 = vld [vmem:[#allocation10 + $0x90] sm:$0xff]
        %v1862 = vld [vmem:[#allocation10 + $0x98] sm:$0xff]
        %v1863 = vld [vmem:[#allocation10 + $0xa0] sm:$0xff]
        %v1864 = vld [vmem:[#allocation10 + $0xa8] sm:$0xff]
        %v1865 = vld [vmem:[#allocation10 + $0xb0] sm:$0xff]
        %v1866 = vld [vmem:[#allocation10 + $0xb8] sm:$0xff]
        %v1867 = vld [vmem:[#allocation10 + $0xc0] sm:$0xff]
        %v1868 = vld [vmem:[#allocation10 + $0xc8] sm:$0xff]
        %v1869 = vld [vmem:[#allocation10 + $0xd0] sm:$0xff]
        %v1870 = vld [vmem:[#allocation10 + $0xd8] sm:$0xff]
        %v1871 = vld [vmem:[#allocation10 + $0xe0] sm:$0xff]
        %v1872 = vld [vmem:[#allocation10 + $0xe8] sm:$0xff]
        %v1873 = vld [vmem:[#allocation10 + $0xf0] sm:$0xff]
        %v1874 = vld [vmem:[#allocation10 + $0xf8] sm:$0xff]
        %v1875 = vld [vmem:[#allocation10 + $0x100] sm:$0xff]
        %v1876 = vld [vmem:[#allocation10 + $0x108] sm:$0xff]
        %v1877 = vld [vmem:[#allocation10 + $0x110] sm:$0xff]
        %v1878 = vld [vmem:[#allocation10 + $0x118] sm:$0xff]
        %v1879 = vld [vmem:[#allocation10 + $0x120] sm:$0xff]
        %v1880 = vld [vmem:[#allocation10 + $0x128] sm:$0xff]
        %v1881 = vld [vmem:[#allocation10 + $0x130] sm:$0xff]
        %v1882 = vld [vmem:[#allocation10 + $0x138] sm:$0xff]
        %v1883 = vld [vmem:[#allocation10 + $0x140] sm:$0xff]
        %v1884 = vld [vmem:[#allocation10 + $0x148] sm:$0xff]
        %v1885 = vld [vmem:[#allocation10 + $0x150] sm:$0xff]
        %v1886 = vld [vmem:[#allocation10 + $0x158] sm:$0xff]
        %v1887 = vld [vmem:[#allocation10 + $0x160] sm:$0xff]
        %v1888 = vld [vmem:[#allocation10 + $0x168] sm:$0xff]
        %v1889 = vld [vmem:[#allocation10 + $0x170] sm:$0xff]
        %v1890 = vld [vmem:[#allocation10 + $0x178] sm:$0xff]
        %v1891 = vld [vmem:[#allocation10 + $0x180] sm:$0xff]
        %v1892 = vld [vmem:[#allocation10 + $0x188] sm:$0xff]
        %v1893 = vld [vmem:[#allocation10 + $0x190] sm:$0xff]
        %v1894 = vld [vmem:[#allocation10 + $0x198] sm:$0xff]
        %v1895 = vld [vmem:[#allocation10 + $0x1a0] sm:$0xff]
        %v1896 = vld [vmem:[#allocation10 + $0x1a8] sm:$0xff]
        %v1897 = vld [vmem:[#allocation10 + $0x1b0] sm:$0xff]
        %v1898 = vld [vmem:[#allocation10 + $0x1b8] sm:$0xff]
        %v1899 = vld [vmem:[#allocation10 + $0x1c0] sm:$0xff]
        %v1900 = vld [vmem:[#allocation10 + $0x1c8] sm:$0xff]
        %v1901 = vld [vmem:[#allocation10 + $0x1d0] sm:$0xff]
        %v1902 = vld [vmem:[#allocation10 + $0x1d8] sm:$0xff]
        %v1903 = vld [vmem:[#allocation10 + $0x1e0] sm:$0xff]
        %v1904 = vld [vmem:[#allocation10 + $0x1e8] sm:$0xff]
        %v1905 = vld [vmem:[#allocation10 + $0x1f0] sm:$0xff]
        %v1906 = vld [vmem:[#allocation10 + $0x1f8] sm:$0xff]
        %v1907 = vld [vmem:[#allocation10 + $0x200] sm:$0xff]
        %v1908 = vld [vmem:[#allocation10 + $0x208] sm:$0xff]
        %v1909 = vld [vmem:[#allocation10 + $0x210] sm:$0xff]
        %v1910 = vld [vmem:[#allocation10 + $0x218] sm:$0xff]
        %v1911 = vld [vmem:[#allocation10 + $0x220] sm:$0xff]
        %v1912 = vld [vmem:[#allocation10 + $0x228] sm:$0xff]
        %v1913 = vld [vmem:[#allocation10 + $0x230] sm:$0xff]
        %v1914 = vld [vmem:[#allocation10 + $0x238] sm:$0xff]
        %v1915 = vld [vmem:[#allocation10 + $0x240] sm:$0xff]
        %v1916 = vld [vmem:[#allocation10 + $0x248] sm:$0xff]
        %v1917 = vld [vmem:[#allocation10 + $0x250] sm:$0xff]
        %v1918 = vld [vmem:[#allocation10 + $0x258] sm:$0xff]
        %v1919 = vld [vmem:[#allocation10 + $0x260] sm:$0xff]
        %v1920 = vld [vmem:[#allocation10 + $0x268] sm:$0xff]
        %v1921 = vld [vmem:[#allocation10 + $0x270] sm:$0xff]
        %v1922 = vld [vmem:[#allocation10 + $0x278] sm:$0xff]
        %v1923 = vld [vmem:[#allocation10 + $0x280] sm:$0xff]
        %v1924 = vld [vmem:[#allocation10 + $0x288] sm:$0xff]
        %v1925 = vld [vmem:[#allocation10 + $0x290] sm:$0xff]
        %v1926 = vld [vmem:[#allocation10 + $0x298] sm:$0xff]
        %v1927 = vld [vmem:[#allocation10 + $0x2a0] sm:$0xff]
        %v1928 = vld [vmem:[#allocation10 + $0x2a8] sm:$0xff]
        %v1929 = vld [vmem:[#allocation10 + $0x2b0] sm:$0xff]
        %v1930 = vld [vmem:[#allocation10 + $0x2b8] sm:$0xff]
        %v1931 = vld [vmem:[#allocation10 + $0x2c0] sm:$0xff]
        %v1932 = vld [vmem:[#allocation10 + $0x2c8] sm:$0xff]
        %v1933 = vld [vmem:[#allocation10 + $0x2d0] sm:$0xff]
        %v1934 = vld [vmem:[#allocation10 + $0x2d8] sm:$0xff]
        %v1935 = vld [vmem:[#allocation10 + $0x2e0] sm:$0xff]
        %v1936 = vld [vmem:[#allocation10 + $0x2e8] sm:$0xff]
        %v1937 = vld [vmem:[#allocation10 + $0x2f0] sm:$0xff]
        %v1938 = vld [vmem:[#allocation10 + $0x2f8] sm:$0xff]
        %v1939 = vld [vmem:[#allocation10 + $0x300] sm:$0xff]
        %v1940 = vld [vmem:[#allocation10 + $0x308] sm:$0xff]
        %v1941 = vld [vmem:[#allocation10 + $0x310] sm:$0xff]
        %v1942 = vld [vmem:[#allocation10 + $0x318] sm:$0xff]
        %v1943 = vld [vmem:[#allocation10 + $0x320] sm:$0xff]
        %v1944 = vld [vmem:[#allocation10 + $0x328] sm:$0xff]
        %v1945 = vld [vmem:[#allocation10 + $0x330] sm:$0xff]
        %v1946 = vld [vmem:[#allocation10 + $0x338] sm:$0xff]
        %v1947 = vld [vmem:[#allocation10 + $0x340] sm:$0xff]
        %v1948 = vld [vmem:[#allocation10 + $0x348] sm:$0xff]
        %v1949 = vld [vmem:[#allocation10 + $0x350] sm:$0xff]
        %v1950 = vld [vmem:[#allocation10 + $0x358] sm:$0xff]
        %v1951 = vld [vmem:[#allocation10 + $0x360] sm:$0xff]
        %v1952 = vld [vmem:[#allocation10 + $0x368] sm:$0xff]
        %v1953 = vld [vmem:[#allocation10 + $0x370] sm:$0xff]
        %v1954 = vld [vmem:[#allocation10 + $0x378] sm:$0xff]
        %v1955 = vld [vmem:[#allocation10 + $0x380] sm:$0xff]
        %v1956 = vld [vmem:[#allocation10 + $0x388] sm:$0xff]
        %v1957 = vld [vmem:[#allocation10 + $0x390] sm:$0xff]
        %v1958 = vld [vmem:[#allocation10 + $0x398] sm:$0xff]
        %v1959 = vld [vmem:[#allocation10 + $0x3a0] sm:$0xff]
        %v1960 = vld [vmem:[#allocation10 + $0x3a8] sm:$0xff]
        %v1961 = vld [vmem:[#allocation10 + $0x3b0] sm:$0xff]
        %v1962 = vld [vmem:[#allocation10 + $0x3b8] sm:$0xff]
        %v1963 = vld [vmem:[#allocation10 + $0x3c0] sm:$0xff]
        %v1964 = vld [vmem:[#allocation10 + $0x3c8] sm:$0xff]
        %v1965 = vld [vmem:[#allocation10 + $0x3d0] sm:$0xff]
        %v1966 = vld [vmem:[#allocation10 + $0x3d8] sm:$0xff]
        %v1967 = vld [vmem:[#allocation10 + $0x3e0] sm:$0xff]
        %v1968 = vld [vmem:[#allocation10 + $0x3e8] sm:$0xff]
        %v1969 = vld [vmem:[#allocation10 + $0x3f0] sm:$0xff]
        %v1970 = vld [vmem:[#allocation10 + $0x3f8] sm:$0xff]
        %v1971 = vld [vmem:[#allocation10 + $0x400] sm:$0xff]
        %v1972 = vld [vmem:[#allocation10 + $0x408] sm:$0xff]
        %v1973 = vld [vmem:[#allocation10 + $0x410] sm:$0xff]
        %v1974 = vld [vmem:[#allocation10 + $0x418] sm:$0xff]
        %v1975 = vld [vmem:[#allocation10 + $0x420] sm:$0xff]
        %v1976 = vld [vmem:[#allocation10 + $0x428] sm:$0xff]
        %v1977 = vld [vmem:[#allocation10 + $0x430] sm:$0xff]
        %v1978 = vld [vmem:[#allocation10 + $0x438] sm:$0xff]
        %v1979 = vld [vmem:[#allocation10 + $0x440] sm:$0xff]
        %v1980 = vld [vmem:[#allocation10 + $0x448] sm:$0xff]
        %v1981 = vld [vmem:[#allocation10 + $0x450] sm:$0xff]
        %v1982 = vld [vmem:[#allocation10 + $0x458] sm:$0xff]
        %v1983 = vld [vmem:[#allocation10 + $0x460] sm:$0xff]
        %v1984 = vld [vmem:[#allocation10 + $0x468] sm:$0xff]
        %v1985 = vld [vmem:[#allocation10 + $0x470] sm:$0xff]
        %v1986 = vld [vmem:[#allocation10 + $0x478] sm:$0xff]
        %v1987 = vld [vmem:[#allocation10 + $0x480] sm:$0xff]
        %v1988 = vld [vmem:[#allocation10 + $0x488] sm:$0xff]
        %v1989 = vld [vmem:[#allocation10 + $0x490] sm:$0xff]
        %v1990 = vld [vmem:[#allocation10 + $0x498] sm:$0xff]
        %v1991 = vld [vmem:[#allocation10 + $0x4a0] sm:$0xff]
        %v1992 = vld [vmem:[#allocation10 + $0x4a8] sm:$0xff]
        %v1993 = vld [vmem:[#allocation10 + $0x4b0] sm:$0xff]
        %v1994 = vld [vmem:[#allocation10 + $0x4b8] sm:$0xff]
        %v1995 = vld [vmem:[#allocation10 + $0x4c0] sm:$0xff]
        %v1996 = vld [vmem:[#allocation10 + $0x4c8] sm:$0xff]
        %v1997 = vld [vmem:[#allocation10 + $0x4d0] sm:$0xff]
        %v1998 = vld [vmem:[#allocation10 + $0x4d8] sm:$0xff]
        %v1999 = vld [vmem:[#allocation10 + $0x4e0] sm:$0xff]
        %v2000 = vld [vmem:[#allocation10 + $0x4e8] sm:$0xff]
        %v2001 = vld [vmem:[#allocation10 + $0x4f0] sm:$0xff]
        %v2002 = vld [vmem:[#allocation10 + $0x4f8] sm:$0xff]
        %v2003 = vld [vmem:[#allocation10 + $0x500] sm:$0xff]
        %v2004 = vld [vmem:[#allocation10 + $0x508] sm:$0xff]
        %v2005 = vld [vmem:[#allocation10 + $0x510] sm:$0xff]
        %v2006 = vld [vmem:[#allocation10 + $0x518] sm:$0xff]
        %v2007 = vld [vmem:[#allocation10 + $0x520] sm:$0xff]
        %v2008 = vld [vmem:[#allocation10 + $0x528] sm:$0xff]
        %v2009 = vld [vmem:[#allocation10 + $0x530] sm:$0xff]
        %v2010 = vld [vmem:[#allocation10 + $0x538] sm:$0xff]
        %v2011 = vld [vmem:[#allocation10 + $0x540] sm:$0xff]
        %v2012 = vld [vmem:[#allocation10 + $0x548] sm:$0xff]
        %v2013 = vld [vmem:[#allocation10 + $0x550] sm:$0xff]
        %v2014 = vld [vmem:[#allocation10 + $0x558] sm:$0xff]
        %v2015 = vld [vmem:[#allocation10 + $0x560] sm:$0xff]
        %v2016 = vld [vmem:[#allocation10 + $0x568] sm:$0xff]
        %v2017 = vld [vmem:[#allocation10 + $0x570] sm:$0xff]
        %v2018 = vld [vmem:[#allocation10 + $0x578] sm:$0xff]
        %v2019 = vld [vmem:[#allocation10 + $0x580] sm:$0xff]
        %v2020 = vld [vmem:[#allocation10 + $0x588] sm:$0xff]
        %v2021 = vld [vmem:[#allocation10 + $0x590] sm:$0xff]
        %v2022 = vld [vmem:[#allocation10 + $0x598] sm:$0xff]
        %v2023 = vld [vmem:[#allocation10 + $0x5a0] sm:$0xff]
        %v2024 = vld [vmem:[#allocation10 + $0x5a8] sm:$0xff]
        %v2025 = vld [vmem:[#allocation10 + $0x5b0] sm:$0xff]
        %v2026 = vld [vmem:[#allocation10 + $0x5b8] sm:$0xff]
        %v2027 = vld [vmem:[#allocation10 + $0x5c0] sm:$0xff]
        %v2028 = vld [vmem:[#allocation10 + $0x5c8] sm:$0xff]
        %v2029 = vld [vmem:[#allocation10 + $0x5d0] sm:$0xff]
        %v2030 = vld [vmem:[#allocation10 + $0x5d8] sm:$0xff]
        %v2031 = vld [vmem:[#allocation10 + $0x5e0] sm:$0xff]
        %v2032 = vld [vmem:[#allocation10 + $0x5e8] sm:$0xff]
        %v2033 = vld [vmem:[#allocation10 + $0x5f0] sm:$0xff]
        %v2034 = vld [vmem:[#allocation10 + $0x5f8] sm:$0xff]
        %v2035 = vld [vmem:[#allocation10 + $0x600] sm:$0xff]
        %v2036 = vld [vmem:[#allocation10 + $0x608] sm:$0xff]
        %v2037 = vld [vmem:[#allocation10 + $0x610] sm:$0xff]
        %v2038 = vld [vmem:[#allocation10 + $0x618] sm:$0xff]
        %v2039 = vld [vmem:[#allocation10 + $0x620] sm:$0xff]
        %v2040 = vld [vmem:[#allocation10 + $0x628] sm:$0xff]
        %v2041 = vld [vmem:[#allocation10 + $0x630] sm:$0xff]
        %v2042 = vld [vmem:[#allocation10 + $0x638] sm:$0xff]
        %v2043 = vld [vmem:[#allocation10 + $0x640] sm:$0xff]
        %v2044 = vld [vmem:[#allocation10 + $0x648] sm:$0xff]
        %v2045 = vld [vmem:[#allocation10 + $0x650] sm:$0xff]
        %v2046 = vld [vmem:[#allocation10 + $0x658] sm:$0xff]
        %v2047 = vld [vmem:[#allocation10 + $0x660] sm:$0xff]
        %v2048 = vld [vmem:[#allocation10 + $0x668] sm:$0xff]
        %v2049 = vld [vmem:[#allocation10 + $0x670] sm:$0xff]
        %v2050 = vld [vmem:[#allocation10 + $0x678] sm:$0xff]
        %v2051 = vld [vmem:[#allocation10 + $0x680] sm:$0xff]
        %v2052 = vld [vmem:[#allocation10 + $0x688] sm:$0xff]
        %v2053 = vld [vmem:[#allocation10 + $0x690] sm:$0xff]
        %v2054 = vld [vmem:[#allocation10 + $0x698] sm:$0xff]
        %v2055 = vld [vmem:[#allocation10 + $0x6a0] sm:$0xff]
        %v2056 = vld [vmem:[#allocation10 + $0x6a8] sm:$0xff]
        %v2057 = vld [vmem:[#allocation10 + $0x6b0] sm:$0xff]
        %v2058 = vld [vmem:[#allocation10 + $0x6b8] sm:$0xff]
        %v2059 = vld [vmem:[#allocation10 + $0x6c0] sm:$0xff]
        %v2060 = vld [vmem:[#allocation10 + $0x6c8] sm:$0xff]
        %v2061 = vld [vmem:[#allocation10 + $0x6d0] sm:$0xff]
        %v2062 = vld [vmem:[#allocation10 + $0x6d8] sm:$0xff]
        %v2063 = vld [vmem:[#allocation10 + $0x6e0] sm:$0xff]
        %v2064 = vld [vmem:[#allocation10 + $0x6e8] sm:$0xff]
        %v2065 = vld [vmem:[#allocation10 + $0x6f0] sm:$0xff]
        %v2066 = vld [vmem:[#allocation10 + $0x6f8] sm:$0xff]
        %v2067 = vld [vmem:[#allocation10 + $0x700] sm:$0xff]
        %v2068 = vld [vmem:[#allocation10 + $0x708] sm:$0xff]
        %v2069 = vld [vmem:[#allocation10 + $0x710] sm:$0xff]
        %v2070 = vld [vmem:[#allocation10 + $0x718] sm:$0xff]
        %v2071 = vld [vmem:[#allocation10 + $0x720] sm:$0xff]
        %v2072 = vld [vmem:[#allocation10 + $0x728] sm:$0xff]
        %v2073 = vld [vmem:[#allocation10 + $0x730] sm:$0xff]
        %v2074 = vld [vmem:[#allocation10 + $0x738] sm:$0xff]
        %v2075 = vld [vmem:[#allocation10 + $0x740] sm:$0xff]
        %v2076 = vld [vmem:[#allocation10 + $0x748] sm:$0xff]
        %v2077 = vld [vmem:[#allocation10 + $0x750] sm:$0xff]
        %v2078 = vld [vmem:[#allocation10 + $0x758] sm:$0xff]
        %v2079 = vld [vmem:[#allocation10 + $0x760] sm:$0xff]
        %v2080 = vld [vmem:[#allocation10 + $0x768] sm:$0xff]
        %v2081 = vld [vmem:[#allocation10 + $0x770] sm:$0xff]
        %v2082 = vld [vmem:[#allocation10 + $0x778] sm:$0xff]
        %v2083 = vld [vmem:[#allocation10 + $0x780] sm:$0xff]
        %v2084 = vld [vmem:[#allocation10 + $0x788] sm:$0xff]
        %v2085 = vld [vmem:[#allocation10 + $0x790] sm:$0xff]
        %v2086 = vld [vmem:[#allocation10 + $0x798] sm:$0xff]
        %v2087 = vld [vmem:[#allocation10 + $0x7a0] sm:$0xff]
        %v2088 = vld [vmem:[#allocation10 + $0x7a8] sm:$0xff]
        %v2089 = vld [vmem:[#allocation10 + $0x7b0] sm:$0xff]
        %v2090 = vld [vmem:[#allocation10 + $0x7b8] sm:$0xff]
        %v2091 = vld [vmem:[#allocation10 + $0x7c0] sm:$0xff]
        %v2092 = vld [vmem:[#allocation10 + $0x7c8] sm:$0xff]
        %v2093 = vld [vmem:[#allocation10 + $0x7d0] sm:$0xff]
        %v2094 = vld [vmem:[#allocation10 + $0x7d8] sm:$0xff]
        %v2095 = vld [vmem:[#allocation10 + $0x7e0] sm:$0xff]
        %v2096 = vld [vmem:[#allocation10 + $0x7e8] sm:$0xff]
        %v2097 = vld [vmem:[#allocation10 + $0x7f0] sm:$0xff]
        %v2098 = vld [vmem:[#allocation10 + $0x7f8] sm:$0xff]
        %v2099 = vld [vmem:[%s4] sm:$0xf]
        %v2101 = vlaneseq
        %v2102 = vshrl.u32 %v2101, 7
        %v2103 = vsub.s32 0, %v2102
        %v2104 = vrot.slane %v2099, %v2103
        %v2105 = vlaneseq
        %v2106 = vshrl.u32 %v2105, 7
        %v2107 = vsub.s32 1, %v2106
        %v2108 = vrot.slane %v2099, %v2107
        %v2109 = vlaneseq
        %v2110 = vshrl.u32 %v2109, 7
        %v2111 = vsub.s32 2, %v2110
        %v2112 = vrot.slane %v2099, %v2111
        %v2113 = vlaneseq
        %v2114 = vshrl.u32 %v2113, 7
        %v2115 = vsub.s32 3, %v2114
        %v2116 = vrot.slane %v2099, %v2115
        %v2377 = vunpack.c.l.b16 %v1843
        %v2378 = vunpack.c.h.b16 %v1843
        %v2379 = vunpack.c.l.b16 %v1844
        %v2380 = vunpack.c.h.b16 %v1844
        %v2381 = vunpack.c.l.b16 %v1845
        %v2382 = vunpack.c.h.b16 %v1845
        %v2383 = vunpack.c.l.b16 %v1846
        %v2384 = vunpack.c.h.b16 %v1846
        %v2385 = vunpack.c.l.b16 %v1847
        %v2386 = vunpack.c.h.b16 %v1847
        %v2387 = vunpack.c.l.b16 %v1848
        %v2388 = vunpack.c.h.b16 %v1848
        %v2389 = vunpack.c.l.b16 %v1849
        %v2390 = vunpack.c.h.b16 %v1849
        %v2391 = vunpack.c.l.b16 %v1850
        %v2392 = vunpack.c.h.b16 %v1850
        %v2393 = vunpack.c.l.b16 %v1851
        %v2394 = vunpack.c.h.b16 %v1851
        %v2395 = vunpack.c.l.b16 %v1852
        %v2396 = vunpack.c.h.b16 %v1852
        %v2397 = vunpack.c.l.b16 %v1853
        %v2398 = vunpack.c.h.b16 %v1853
        %v2399 = vunpack.c.l.b16 %v1854
        %v2400 = vunpack.c.h.b16 %v1854
        %v2401 = vunpack.c.l.b16 %v1855
        %v2402 = vunpack.c.h.b16 %v1855
        %v2403 = vunpack.c.l.b16 %v1856
        %v2404 = vunpack.c.h.b16 %v1856
        %v2405 = vunpack.c.l.b16 %v1857
        %v2406 = vunpack.c.h.b16 %v1857
        %v2407 = vunpack.c.l.b16 %v1858
        %v2408 = vunpack.c.h.b16 %v1858
        %v2409 = vunpack.c.l.b16 %v1859
        %v2410 = vunpack.c.h.b16 %v1859
        %v2411 = vunpack.c.l.b16 %v1860
        %v2412 = vunpack.c.h.b16 %v1860
        %v2413 = vunpack.c.l.b16 %v1861
        %v2414 = vunpack.c.h.b16 %v1861
        %v2415 = vunpack.c.l.b16 %v1862
        %v2416 = vunpack.c.h.b16 %v1862
        %v2417 = vunpack.c.l.b16 %v1863
        %v2418 = vunpack.c.h.b16 %v1863
        %v2419 = vunpack.c.l.b16 %v1864
        %v2420 = vunpack.c.h.b16 %v1864
        %v2421 = vunpack.c.l.b16 %v1865
        %v2422 = vunpack.c.h.b16 %v1865
        %v2423 = vunpack.c.l.b16 %v1866
        %v2424 = vunpack.c.h.b16 %v1866
        %v2425 = vunpack.c.l.b16 %v1867
        %v2426 = vunpack.c.h.b16 %v1867
        %v2427 = vunpack.c.l.b16 %v1868
        %v2428 = vunpack.c.h.b16 %v1868
        %v2429 = vunpack.c.l.b16 %v1869
        %v2430 = vunpack.c.h.b16 %v1869
        %v2431 = vunpack.c.l.b16 %v1870
        %v2432 = vunpack.c.h.b16 %v1870
        %v2433 = vunpack.c.l.b16 %v1871
        %v2434 = vunpack.c.h.b16 %v1871
        %v2435 = vunpack.c.l.b16 %v1872
        %v2436 = vunpack.c.h.b16 %v1872
        %v2437 = vunpack.c.l.b16 %v1873
        %v2438 = vunpack.c.h.b16 %v1873
        %v2439 = vunpack.c.l.b16 %v1874
        %v2440 = vunpack.c.h.b16 %v1874
        %v2441 = vunpack.c.l.b16 %v1875
        %v2442 = vunpack.c.h.b16 %v1875
        %v2443 = vunpack.c.l.b16 %v1876
        %v2444 = vunpack.c.h.b16 %v1876
        %v2445 = vunpack.c.l.b16 %v1877
        %v2446 = vunpack.c.h.b16 %v1877
        %v2447 = vunpack.c.l.b16 %v1878
        %v2448 = vunpack.c.h.b16 %v1878
        %v2449 = vunpack.c.l.b16 %v1879
        %v2450 = vunpack.c.h.b16 %v1879
        %v2451 = vunpack.c.l.b16 %v1880
        %v2452 = vunpack.c.h.b16 %v1880
        %v2453 = vunpack.c.l.b16 %v1881
        %v2454 = vunpack.c.h.b16 %v1881
        %v2455 = vunpack.c.l.b16 %v1882
        %v2456 = vunpack.c.h.b16 %v1882
        %v2457 = vunpack.c.l.b16 %v1883
        %v2458 = vunpack.c.h.b16 %v1883
        %v2459 = vunpack.c.l.b16 %v1884
        %v2460 = vunpack.c.h.b16 %v1884
        %v2461 = vunpack.c.l.b16 %v1885
        %v2462 = vunpack.c.h.b16 %v1885
        %v2463 = vunpack.c.l.b16 %v1886
        %v2464 = vunpack.c.h.b16 %v1886
        %v2465 = vunpack.c.l.b16 %v1887
        %v2466 = vunpack.c.h.b16 %v1887
        %v2467 = vunpack.c.l.b16 %v1888
        %v2468 = vunpack.c.h.b16 %v1888
        %v2469 = vunpack.c.l.b16 %v1889
        %v2470 = vunpack.c.h.b16 %v1889
        %v2471 = vunpack.c.l.b16 %v1890
        %v2472 = vunpack.c.h.b16 %v1890
        %v2473 = vunpack.c.l.b16 %v1891
        %v2474 = vunpack.c.h.b16 %v1891
        %v2475 = vunpack.c.l.b16 %v1892
        %v2476 = vunpack.c.h.b16 %v1892
        %v2477 = vunpack.c.l.b16 %v1893
        %v2478 = vunpack.c.h.b16 %v1893
        %v2479 = vunpack.c.l.b16 %v1894
        %v2480 = vunpack.c.h.b16 %v1894
        %v2481 = vunpack.c.l.b16 %v1895
        %v2482 = vunpack.c.h.b16 %v1895
        %v2483 = vunpack.c.l.b16 %v1896
        %v2484 = vunpack.c.h.b16 %v1896
        %v2485 = vunpack.c.l.b16 %v1897
        %v2486 = vunpack.c.h.b16 %v1897
        %v2487 = vunpack.c.l.b16 %v1898
        %v2488 = vunpack.c.h.b16 %v1898
        %v2489 = vunpack.c.l.b16 %v1899
        %v2490 = vunpack.c.h.b16 %v1899
        %v2491 = vunpack.c.l.b16 %v1900
        %v2492 = vunpack.c.h.b16 %v1900
        %v2493 = vunpack.c.l.b16 %v1901
        %v2494 = vunpack.c.h.b16 %v1901
        %v2495 = vunpack.c.l.b16 %v1902
        %v2496 = vunpack.c.h.b16 %v1902
        %v2497 = vunpack.c.l.b16 %v1903
        %v2498 = vunpack.c.h.b16 %v1903
        %v2499 = vunpack.c.l.b16 %v1904
        %v2500 = vunpack.c.h.b16 %v1904
        %v2501 = vunpack.c.l.b16 %v1905
        %v2502 = vunpack.c.h.b16 %v1905
        %v2503 = vunpack.c.l.b16 %v1906
        %v2504 = vunpack.c.h.b16 %v1906
        %v2505 = vunpack.c.l.b16 %v1907
        %v2506 = vunpack.c.h.b16 %v1907
        %v2507 = vunpack.c.l.b16 %v1908
        %v2508 = vunpack.c.h.b16 %v1908
        %v2509 = vunpack.c.l.b16 %v1909
        %v2510 = vunpack.c.h.b16 %v1909
        %v2511 = vunpack.c.l.b16 %v1910
        %v2512 = vunpack.c.h.b16 %v1910
        %v2513 = vunpack.c.l.b16 %v1911
        %v2514 = vunpack.c.h.b16 %v1911
        %v2515 = vunpack.c.l.b16 %v1912
        %v2516 = vunpack.c.h.b16 %v1912
        %v2517 = vunpack.c.l.b16 %v1913
        %v2518 = vunpack.c.h.b16 %v1913
        %v2519 = vunpack.c.l.b16 %v1914
        %v2520 = vunpack.c.h.b16 %v1914
        %v2521 = vunpack.c.l.b16 %v1915
        %v2522 = vunpack.c.h.b16 %v1915
        %v2523 = vunpack.c.l.b16 %v1916
        %v2524 = vunpack.c.h.b16 %v1916
        %v2525 = vunpack.c.l.b16 %v1917
        %v2526 = vunpack.c.h.b16 %v1917
        %v2527 = vunpack.c.l.b16 %v1918
        %v2528 = vunpack.c.h.b16 %v1918
        %v2529 = vunpack.c.l.b16 %v1919
        %v2530 = vunpack.c.h.b16 %v1919
        %v2531 = vunpack.c.l.b16 %v1920
        %v2532 = vunpack.c.h.b16 %v1920
        %v2533 = vunpack.c.l.b16 %v1921
        %v2534 = vunpack.c.h.b16 %v1921
        %v2535 = vunpack.c.l.b16 %v1922
        %v2536 = vunpack.c.h.b16 %v1922
        %v2537 = vunpack.c.l.b16 %v1923
        %v2538 = vunpack.c.h.b16 %v1923
        %v2539 = vunpack.c.l.b16 %v1924
        %v2540 = vunpack.c.h.b16 %v1924
        %v2541 = vunpack.c.l.b16 %v1925
        %v2542 = vunpack.c.h.b16 %v1925
        %v2543 = vunpack.c.l.b16 %v1926
        %v2544 = vunpack.c.h.b16 %v1926
        %v2545 = vunpack.c.l.b16 %v1927
        %v2546 = vunpack.c.h.b16 %v1927
        %v2547 = vunpack.c.l.b16 %v1928
        %v2548 = vunpack.c.h.b16 %v1928
        %v2549 = vunpack.c.l.b16 %v1929
        %v2550 = vunpack.c.h.b16 %v1929
        %v2551 = vunpack.c.l.b16 %v1930
        %v2552 = vunpack.c.h.b16 %v1930
        %v2553 = vunpack.c.l.b16 %v1931
        %v2554 = vunpack.c.h.b16 %v1931
        %v2555 = vunpack.c.l.b16 %v1932
        %v2556 = vunpack.c.h.b16 %v1932
        %v2557 = vunpack.c.l.b16 %v1933
        %v2558 = vunpack.c.h.b16 %v1933
        %v2559 = vunpack.c.l.b16 %v1934
        %v2560 = vunpack.c.h.b16 %v1934
        %v2561 = vunpack.c.l.b16 %v1935
        %v2562 = vunpack.c.h.b16 %v1935
        %v2563 = vunpack.c.l.b16 %v1936
        %v2564 = vunpack.c.h.b16 %v1936
        %v2565 = vunpack.c.l.b16 %v1937
        %v2566 = vunpack.c.h.b16 %v1937
        %v2567 = vunpack.c.l.b16 %v1938
        %v2568 = vunpack.c.h.b16 %v1938
        %v2569 = vunpack.c.l.b16 %v1939
        %v2570 = vunpack.c.h.b16 %v1939
        %v2571 = vunpack.c.l.b16 %v1940
        %v2572 = vunpack.c.h.b16 %v1940
        %v2573 = vunpack.c.l.b16 %v1941
        %v2574 = vunpack.c.h.b16 %v1941
        %v2575 = vunpack.c.l.b16 %v1942
        %v2576 = vunpack.c.h.b16 %v1942
        %v2577 = vunpack.c.l.b16 %v1943
        %v2578 = vunpack.c.h.b16 %v1943
        %v2579 = vunpack.c.l.b16 %v1944
        %v2580 = vunpack.c.h.b16 %v1944
        %v2581 = vunpack.c.l.b16 %v1945
        %v2582 = vunpack.c.h.b16 %v1945
        %v2583 = vunpack.c.l.b16 %v1946
        %v2584 = vunpack.c.h.b16 %v1946
        %v2585 = vunpack.c.l.b16 %v1947
        %v2586 = vunpack.c.h.b16 %v1947
        %v2587 = vunpack.c.l.b16 %v1948
        %v2588 = vunpack.c.h.b16 %v1948
        %v2589 = vunpack.c.l.b16 %v1949
        %v2590 = vunpack.c.h.b16 %v1949
        %v2591 = vunpack.c.l.b16 %v1950
        %v2592 = vunpack.c.h.b16 %v1950
        %v2593 = vunpack.c.l.b16 %v1951
        %v2594 = vunpack.c.h.b16 %v1951
        %v2595 = vunpack.c.l.b16 %v1952
        %v2596 = vunpack.c.h.b16 %v1952
        %v2597 = vunpack.c.l.b16 %v1953
        %v2598 = vunpack.c.h.b16 %v1953
        %v2599 = vunpack.c.l.b16 %v1954
        %v2600 = vunpack.c.h.b16 %v1954
        %v2601 = vunpack.c.l.b16 %v1955
        %v2602 = vunpack.c.h.b16 %v1955
        %v2603 = vunpack.c.l.b16 %v1956
        %v2604 = vunpack.c.h.b16 %v1956
        %v2605 = vunpack.c.l.b16 %v1957
        %v2606 = vunpack.c.h.b16 %v1957
        %v2607 = vunpack.c.l.b16 %v1958
        %v2608 = vunpack.c.h.b16 %v1958
        %v2609 = vunpack.c.l.b16 %v1959
        %v2610 = vunpack.c.h.b16 %v1959
        %v2611 = vunpack.c.l.b16 %v1960
        %v2612 = vunpack.c.h.b16 %v1960
        %v2613 = vunpack.c.l.b16 %v1961
        %v2614 = vunpack.c.h.b16 %v1961
        %v2615 = vunpack.c.l.b16 %v1962
        %v2616 = vunpack.c.h.b16 %v1962
        %v2617 = vunpack.c.l.b16 %v1963
        %v2618 = vunpack.c.h.b16 %v1963
        %v2619 = vunpack.c.l.b16 %v1964
        %v2620 = vunpack.c.h.b16 %v1964
        %v2621 = vunpack.c.l.b16 %v1965
        %v2622 = vunpack.c.h.b16 %v1965
        %v2623 = vunpack.c.l.b16 %v1966
        %v2624 = vunpack.c.h.b16 %v1966
        %v2625 = vunpack.c.l.b16 %v1967
        %v2626 = vunpack.c.h.b16 %v1967
        %v2627 = vunpack.c.l.b16 %v1968
        %v2628 = vunpack.c.h.b16 %v1968
        %v2629 = vunpack.c.l.b16 %v1969
        %v2630 = vunpack.c.h.b16 %v1969
        %v2631 = vunpack.c.l.b16 %v1970
        %v2632 = vunpack.c.h.b16 %v1970
        %v2633 = vunpack.c.l.b16 %v1971
        %v2634 = vunpack.c.h.b16 %v1971
        %v2635 = vunpack.c.l.b16 %v1972
        %v2636 = vunpack.c.h.b16 %v1972
        %v2637 = vunpack.c.l.b16 %v1973
        %v2638 = vunpack.c.h.b16 %v1973
        %v2639 = vunpack.c.l.b16 %v1974
        %v2640 = vunpack.c.h.b16 %v1974
        %v2641 = vunpack.c.l.b16 %v1975
        %v2642 = vunpack.c.h.b16 %v1975
        %v2643 = vunpack.c.l.b16 %v1976
        %v2644 = vunpack.c.h.b16 %v1976
        %v2645 = vunpack.c.l.b16 %v1977
        %v2646 = vunpack.c.h.b16 %v1977
        %v2647 = vunpack.c.l.b16 %v1978
        %v2648 = vunpack.c.h.b16 %v1978
        %v2649 = vunpack.c.l.b16 %v1979
        %v2650 = vunpack.c.h.b16 %v1979
        %v2651 = vunpack.c.l.b16 %v1980
        %v2652 = vunpack.c.h.b16 %v1980
        %v2653 = vunpack.c.l.b16 %v1981
        %v2654 = vunpack.c.h.b16 %v1981
        %v2655 = vunpack.c.l.b16 %v1982
        %v2656 = vunpack.c.h.b16 %v1982
        %v2657 = vunpack.c.l.b16 %v1983
        %v2658 = vunpack.c.h.b16 %v1983
        %v2659 = vunpack.c.l.b16 %v1984
        %v2660 = vunpack.c.h.b16 %v1984
        %v2661 = vunpack.c.l.b16 %v1985
        %v2662 = vunpack.c.h.b16 %v1985
        %v2663 = vunpack.c.l.b16 %v1986
        %v2664 = vunpack.c.h.b16 %v1986
        %v2665 = vunpack.c.l.b16 %v1987
        %v2666 = vunpack.c.h.b16 %v1987
        %v2667 = vunpack.c.l.b16 %v1988
        %v2668 = vunpack.c.h.b16 %v1988
        %v2669 = vunpack.c.l.b16 %v1989
        %v2670 = vunpack.c.h.b16 %v1989
        %v2671 = vunpack.c.l.b16 %v1990
        %v2672 = vunpack.c.h.b16 %v1990
        %v2673 = vunpack.c.l.b16 %v1991
        %v2674 = vunpack.c.h.b16 %v1991
        %v2675 = vunpack.c.l.b16 %v1992
        %v2676 = vunpack.c.h.b16 %v1992
        %v2677 = vunpack.c.l.b16 %v1993
        %v2678 = vunpack.c.h.b16 %v1993
        %v2679 = vunpack.c.l.b16 %v1994
        %v2680 = vunpack.c.h.b16 %v1994
        %v2681 = vunpack.c.l.b16 %v1995
        %v2682 = vunpack.c.h.b16 %v1995
        %v2683 = vunpack.c.l.b16 %v1996
        %v2684 = vunpack.c.h.b16 %v1996
        %v2685 = vunpack.c.l.b16 %v1997
        %v2686 = vunpack.c.h.b16 %v1997
        %v2687 = vunpack.c.l.b16 %v1998
        %v2688 = vunpack.c.h.b16 %v1998
        %v2689 = vunpack.c.l.b16 %v1999
        %v2690 = vunpack.c.h.b16 %v1999
        %v2691 = vunpack.c.l.b16 %v2000
        %v2692 = vunpack.c.h.b16 %v2000
        %v2693 = vunpack.c.l.b16 %v2001
        %v2694 = vunpack.c.h.b16 %v2001
        %v2695 = vunpack.c.l.b16 %v2002
        %v2696 = vunpack.c.h.b16 %v2002
        %v2697 = vunpack.c.l.b16 %v2003
        %v2698 = vunpack.c.h.b16 %v2003
        %v2699 = vunpack.c.l.b16 %v2004
        %v2700 = vunpack.c.h.b16 %v2004
        %v2701 = vunpack.c.l.b16 %v2005
        %v2702 = vunpack.c.h.b16 %v2005
        %v2703 = vunpack.c.l.b16 %v2006
        %v2704 = vunpack.c.h.b16 %v2006
        %v2705 = vunpack.c.l.b16 %v2007
        %v2706 = vunpack.c.h.b16 %v2007
        %v2707 = vunpack.c.l.b16 %v2008
        %v2708 = vunpack.c.h.b16 %v2008
        %v2709 = vunpack.c.l.b16 %v2009
        %v2710 = vunpack.c.h.b16 %v2009
        %v2711 = vunpack.c.l.b16 %v2010
        %v2712 = vunpack.c.h.b16 %v2010
        %v2713 = vunpack.c.l.b16 %v2011
        %v2714 = vunpack.c.h.b16 %v2011
        %v2715 = vunpack.c.l.b16 %v2012
        %v2716 = vunpack.c.h.b16 %v2012
        %v2717 = vunpack.c.l.b16 %v2013
        %v2718 = vunpack.c.h.b16 %v2013
        %v2719 = vunpack.c.l.b16 %v2014
        %v2720 = vunpack.c.h.b16 %v2014
        %v2721 = vunpack.c.l.b16 %v2015
        %v2722 = vunpack.c.h.b16 %v2015
        %v2723 = vunpack.c.l.b16 %v2016
        %v2724 = vunpack.c.h.b16 %v2016
        %v2725 = vunpack.c.l.b16 %v2017
        %v2726 = vunpack.c.h.b16 %v2017
        %v2727 = vunpack.c.l.b16 %v2018
        %v2728 = vunpack.c.h.b16 %v2018
        %v2729 = vunpack.c.l.b16 %v2019
        %v2730 = vunpack.c.h.b16 %v2019
        %v2731 = vunpack.c.l.b16 %v2020
        %v2732 = vunpack.c.h.b16 %v2020
        %v2733 = vunpack.c.l.b16 %v2021
        %v2734 = vunpack.c.h.b16 %v2021
        %v2735 = vunpack.c.l.b16 %v2022
        %v2736 = vunpack.c.h.b16 %v2022
        %v2737 = vunpack.c.l.b16 %v2023
        %v2738 = vunpack.c.h.b16 %v2023
        %v2739 = vunpack.c.l.b16 %v2024
        %v2740 = vunpack.c.h.b16 %v2024
        %v2741 = vunpack.c.l.b16 %v2025
        %v2742 = vunpack.c.h.b16 %v2025
        %v2743 = vunpack.c.l.b16 %v2026
        %v2744 = vunpack.c.h.b16 %v2026
        %v2745 = vunpack.c.l.b16 %v2027
        %v2746 = vunpack.c.h.b16 %v2027
        %v2747 = vunpack.c.l.b16 %v2028
        %v2748 = vunpack.c.h.b16 %v2028
        %v2749 = vunpack.c.l.b16 %v2029
        %v2750 = vunpack.c.h.b16 %v2029
        %v2751 = vunpack.c.l.b16 %v2030
        %v2752 = vunpack.c.h.b16 %v2030
        %v2753 = vunpack.c.l.b16 %v2031
        %v2754 = vunpack.c.h.b16 %v2031
        %v2755 = vunpack.c.l.b16 %v2032
        %v2756 = vunpack.c.h.b16 %v2032
        %v2757 = vunpack.c.l.b16 %v2033
        %v2758 = vunpack.c.h.b16 %v2033
        %v2759 = vunpack.c.l.b16 %v2034
        %v2760 = vunpack.c.h.b16 %v2034
        %v2761 = vunpack.c.l.b16 %v2035
        %v2762 = vunpack.c.h.b16 %v2035
        %v2763 = vunpack.c.l.b16 %v2036
        %v2764 = vunpack.c.h.b16 %v2036
        %v2765 = vunpack.c.l.b16 %v2037
        %v2766 = vunpack.c.h.b16 %v2037
        %v2767 = vunpack.c.l.b16 %v2038
        %v2768 = vunpack.c.h.b16 %v2038
        %v2769 = vunpack.c.l.b16 %v2039
        %v2770 = vunpack.c.h.b16 %v2039
        %v2771 = vunpack.c.l.b16 %v2040
        %v2772 = vunpack.c.h.b16 %v2040
        %v2773 = vunpack.c.l.b16 %v2041
        %v2774 = vunpack.c.h.b16 %v2041
        %v2775 = vunpack.c.l.b16 %v2042
        %v2776 = vunpack.c.h.b16 %v2042
        %v2777 = vunpack.c.l.b16 %v2043
        %v2778 = vunpack.c.h.b16 %v2043
        %v2779 = vunpack.c.l.b16 %v2044
        %v2780 = vunpack.c.h.b16 %v2044
        %v2781 = vunpack.c.l.b16 %v2045
        %v2782 = vunpack.c.h.b16 %v2045
        %v2783 = vunpack.c.l.b16 %v2046
        %v2784 = vunpack.c.h.b16 %v2046
        %v2785 = vunpack.c.l.b16 %v2047
        %v2786 = vunpack.c.h.b16 %v2047
        %v2787 = vunpack.c.l.b16 %v2048
        %v2788 = vunpack.c.h.b16 %v2048
        %v2789 = vunpack.c.l.b16 %v2049
        %v2790 = vunpack.c.h.b16 %v2049
        %v2791 = vunpack.c.l.b16 %v2050
        %v2792 = vunpack.c.h.b16 %v2050
        %v2793 = vunpack.c.l.b16 %v2051
        %v2794 = vunpack.c.h.b16 %v2051
        %v2795 = vunpack.c.l.b16 %v2052
        %v2796 = vunpack.c.h.b16 %v2052
        %v2797 = vunpack.c.l.b16 %v2053
        %v2798 = vunpack.c.h.b16 %v2053
        %v2799 = vunpack.c.l.b16 %v2054
        %v2800 = vunpack.c.h.b16 %v2054
        %v2801 = vunpack.c.l.b16 %v2055
        %v2802 = vunpack.c.h.b16 %v2055
        %v2803 = vunpack.c.l.b16 %v2056
        %v2804 = vunpack.c.h.b16 %v2056
        %v2805 = vunpack.c.l.b16 %v2057
        %v2806 = vunpack.c.h.b16 %v2057
        %v2807 = vunpack.c.l.b16 %v2058
        %v2808 = vunpack.c.h.b16 %v2058
        %v2809 = vunpack.c.l.b16 %v2059
        %v2810 = vunpack.c.h.b16 %v2059
        %v2811 = vunpack.c.l.b16 %v2060
        %v2812 = vunpack.c.h.b16 %v2060
        %v2813 = vunpack.c.l.b16 %v2061
        %v2814 = vunpack.c.h.b16 %v2061
        %v2815 = vunpack.c.l.b16 %v2062
        %v2816 = vunpack.c.h.b16 %v2062
        %v2817 = vunpack.c.l.b16 %v2063
        %v2818 = vunpack.c.h.b16 %v2063
        %v2819 = vunpack.c.l.b16 %v2064
        %v2820 = vunpack.c.h.b16 %v2064
        %v2821 = vunpack.c.l.b16 %v2065
        %v2822 = vunpack.c.h.b16 %v2065
        %v2823 = vunpack.c.l.b16 %v2066
        %v2824 = vunpack.c.h.b16 %v2066
        %v2825 = vunpack.c.l.b16 %v2067
        %v2826 = vunpack.c.h.b16 %v2067
        %v2827 = vunpack.c.l.b16 %v2068
        %v2828 = vunpack.c.h.b16 %v2068
        %v2829 = vunpack.c.l.b16 %v2069
        %v2830 = vunpack.c.h.b16 %v2069
        %v2831 = vunpack.c.l.b16 %v2070
        %v2832 = vunpack.c.h.b16 %v2070
        %v2833 = vunpack.c.l.b16 %v2071
        %v2834 = vunpack.c.h.b16 %v2071
        %v2835 = vunpack.c.l.b16 %v2072
        %v2836 = vunpack.c.h.b16 %v2072
        %v2837 = vunpack.c.l.b16 %v2073
        %v2838 = vunpack.c.h.b16 %v2073
        %v2839 = vunpack.c.l.b16 %v2074
        %v2840 = vunpack.c.h.b16 %v2074
        %v2841 = vunpack.c.l.b16 %v2075
        %v2842 = vunpack.c.h.b16 %v2075
        %v2843 = vunpack.c.l.b16 %v2076
        %v2844 = vunpack.c.h.b16 %v2076
        %v2845 = vunpack.c.l.b16 %v2077
        %v2846 = vunpack.c.h.b16 %v2077
        %v2847 = vunpack.c.l.b16 %v2078
        %v2848 = vunpack.c.h.b16 %v2078
        %v2849 = vunpack.c.l.b16 %v2079
        %v2850 = vunpack.c.h.b16 %v2079
        %v2851 = vunpack.c.l.b16 %v2080
        %v2852 = vunpack.c.h.b16 %v2080
        %v2853 = vunpack.c.l.b16 %v2081
        %v2854 = vunpack.c.h.b16 %v2081
        %v2855 = vunpack.c.l.b16 %v2082
        %v2856 = vunpack.c.h.b16 %v2082
        %v2857 = vunpack.c.l.b16 %v2083
        %v2858 = vunpack.c.h.b16 %v2083
        %v2859 = vunpack.c.l.b16 %v2084
        %v2860 = vunpack.c.h.b16 %v2084
        %v2861 = vunpack.c.l.b16 %v2085
        %v2862 = vunpack.c.h.b16 %v2085
        %v2863 = vunpack.c.l.b16 %v2086
        %v2864 = vunpack.c.h.b16 %v2086
        %v2865 = vunpack.c.l.b16 %v2087
        %v2866 = vunpack.c.h.b16 %v2087
        %v2867 = vunpack.c.l.b16 %v2088
        %v2868 = vunpack.c.h.b16 %v2088
        %v2869 = vunpack.c.l.b16 %v2089
        %v2870 = vunpack.c.h.b16 %v2089
        %v2871 = vunpack.c.l.b16 %v2090
        %v2872 = vunpack.c.h.b16 %v2090
        %v2873 = vunpack.c.l.b16 %v2091
        %v2874 = vunpack.c.h.b16 %v2091
        %v2875 = vunpack.c.l.b16 %v2092
        %v2876 = vunpack.c.h.b16 %v2092
        %v2877 = vunpack.c.l.b16 %v2093
        %v2878 = vunpack.c.h.b16 %v2093
        %v2879 = vunpack.c.l.b16 %v2094
        %v2880 = vunpack.c.h.b16 %v2094
        %v2881 = vunpack.c.l.b16 %v2095
        %v2882 = vunpack.c.h.b16 %v2095
        %v2883 = vunpack.c.l.b16 %v2096
        %v2884 = vunpack.c.h.b16 %v2096
        %v2885 = vunpack.c.l.b16 %v2097
        %v2886 = vunpack.c.h.b16 %v2097
        %v2887 = vunpack.c.l.b16 %v2098
        %v2888 = vunpack.c.h.b16 %v2098
        %v2889 = vpack.c.b16 %v2381, %v2377
        %v2890 = vpack.c.b16 %v2382, %v2378
        %v2891 = vpack.c.b16 %v2383, %v2379
        %v2892 = vpack.c.b16 %v2384, %v2380
        %v2893 = vpack.c.b16 %v2389, %v2385
        %v2894 = vpack.c.b16 %v2390, %v2386
        %v2895 = vpack.c.b16 %v2391, %v2387
        %v2896 = vpack.c.b16 %v2392, %v2388
        %v2897 = vpack.c.b16 %v2397, %v2393
        %v2898 = vpack.c.b16 %v2398, %v2394
        %v2899 = vpack.c.b16 %v2399, %v2395
        %v2900 = vpack.c.b16 %v2400, %v2396
        %v2901 = vpack.c.b16 %v2405, %v2401
        %v2902 = vpack.c.b16 %v2406, %v2402
        %v2903 = vpack.c.b16 %v2407, %v2403
        %v2904 = vpack.c.b16 %v2408, %v2404
        %v2905 = vpack.c.b16 %v2413, %v2409
        %v2906 = vpack.c.b16 %v2414, %v2410
        %v2907 = vpack.c.b16 %v2415, %v2411
        %v2908 = vpack.c.b16 %v2416, %v2412
        %v2909 = vpack.c.b16 %v2421, %v2417
        %v2910 = vpack.c.b16 %v2422, %v2418
        %v2911 = vpack.c.b16 %v2423, %v2419
        %v2912 = vpack.c.b16 %v2424, %v2420
        %v2913 = vpack.c.b16 %v2429, %v2425
        %v2914 = vpack.c.b16 %v2430, %v2426
        %v2915 = vpack.c.b16 %v2431, %v2427
        %v2916 = vpack.c.b16 %v2432, %v2428
        %v2917 = vpack.c.b16 %v2437, %v2433
        %v2918 = vpack.c.b16 %v2438, %v2434
        %v2919 = vpack.c.b16 %v2439, %v2435
        %v2920 = vpack.c.b16 %v2440, %v2436
        %v2921 = vpack.c.b16 %v2445, %v2441
        %v2922 = vpack.c.b16 %v2446, %v2442
        %v2923 = vpack.c.b16 %v2447, %v2443
        %v2924 = vpack.c.b16 %v2448, %v2444
        %v2925 = vpack.c.b16 %v2453, %v2449
        %v2926 = vpack.c.b16 %v2454, %v2450
        %v2927 = vpack.c.b16 %v2455, %v2451
        %v2928 = vpack.c.b16 %v2456, %v2452
        %v2929 = vpack.c.b16 %v2461, %v2457
        %v2930 = vpack.c.b16 %v2462, %v2458
        %v2931 = vpack.c.b16 %v2463, %v2459
        %v2932 = vpack.c.b16 %v2464, %v2460
        %v2933 = vpack.c.b16 %v2469, %v2465
        %v2934 = vpack.c.b16 %v2470, %v2466
        %v2935 = vpack.c.b16 %v2471, %v2467
        %v2936 = vpack.c.b16 %v2472, %v2468
        %v2937 = vpack.c.b16 %v2477, %v2473
        %v2938 = vpack.c.b16 %v2478, %v2474
        %v2939 = vpack.c.b16 %v2479, %v2475
        %v2940 = vpack.c.b16 %v2480, %v2476
        %v2941 = vpack.c.b16 %v2485, %v2481
        %v2942 = vpack.c.b16 %v2486, %v2482
        %v2943 = vpack.c.b16 %v2487, %v2483
        %v2944 = vpack.c.b16 %v2488, %v2484
        %v2945 = vpack.c.b16 %v2493, %v2489
        %v2946 = vpack.c.b16 %v2494, %v2490
        %v2947 = vpack.c.b16 %v2495, %v2491
        %v2948 = vpack.c.b16 %v2496, %v2492
        %v2949 = vpack.c.b16 %v2501, %v2497
        %v2950 = vpack.c.b16 %v2502, %v2498
        %v2951 = vpack.c.b16 %v2503, %v2499
        %v2952 = vpack.c.b16 %v2504, %v2500
        %v2953 = vpack.c.b16 %v2509, %v2505
        %v2954 = vpack.c.b16 %v2510, %v2506
        %v2955 = vpack.c.b16 %v2511, %v2507
        %v2956 = vpack.c.b16 %v2512, %v2508
        %v2957 = vpack.c.b16 %v2517, %v2513
        %v2958 = vpack.c.b16 %v2518, %v2514
        %v2959 = vpack.c.b16 %v2519, %v2515
        %v2960 = vpack.c.b16 %v2520, %v2516
        %v2961 = vpack.c.b16 %v2525, %v2521
        %v2962 = vpack.c.b16 %v2526, %v2522
        %v2963 = vpack.c.b16 %v2527, %v2523
        %v2964 = vpack.c.b16 %v2528, %v2524
        %v2965 = vpack.c.b16 %v2533, %v2529
        %v2966 = vpack.c.b16 %v2534, %v2530
        %v2967 = vpack.c.b16 %v2535, %v2531
        %v2968 = vpack.c.b16 %v2536, %v2532
        %v2969 = vpack.c.b16 %v2541, %v2537
        %v2970 = vpack.c.b16 %v2542, %v2538
        %v2971 = vpack.c.b16 %v2543, %v2539
        %v2972 = vpack.c.b16 %v2544, %v2540
        %v2973 = vpack.c.b16 %v2549, %v2545
        %v2974 = vpack.c.b16 %v2550, %v2546
        %v2975 = vpack.c.b16 %v2551, %v2547
        %v2976 = vpack.c.b16 %v2552, %v2548
        %v2977 = vpack.c.b16 %v2557, %v2553
        %v2978 = vpack.c.b16 %v2558, %v2554
        %v2979 = vpack.c.b16 %v2559, %v2555
        %v2980 = vpack.c.b16 %v2560, %v2556
        %v2981 = vpack.c.b16 %v2565, %v2561
        %v2982 = vpack.c.b16 %v2566, %v2562
        %v2983 = vpack.c.b16 %v2567, %v2563
        %v2984 = vpack.c.b16 %v2568, %v2564
        %v2985 = vpack.c.b16 %v2573, %v2569
        %v2986 = vpack.c.b16 %v2574, %v2570
        %v2987 = vpack.c.b16 %v2575, %v2571
        %v2988 = vpack.c.b16 %v2576, %v2572
        %v2989 = vpack.c.b16 %v2581, %v2577
        %v2990 = vpack.c.b16 %v2582, %v2578
        %v2991 = vpack.c.b16 %v2583, %v2579
        %v2992 = vpack.c.b16 %v2584, %v2580
        %v2993 = vpack.c.b16 %v2589, %v2585
        %v2994 = vpack.c.b16 %v2590, %v2586
        %v2995 = vpack.c.b16 %v2591, %v2587
        %v2996 = vpack.c.b16 %v2592, %v2588
        %v2997 = vpack.c.b16 %v2597, %v2593
        %v2998 = vpack.c.b16 %v2598, %v2594
        %v2999 = vpack.c.b16 %v2599, %v2595
        %v3000 = vpack.c.b16 %v2600, %v2596
        %v3001 = vpack.c.b16 %v2605, %v2601
        %v3002 = vpack.c.b16 %v2606, %v2602
        %v3003 = vpack.c.b16 %v2607, %v2603
        %v3004 = vpack.c.b16 %v2608, %v2604
        %v3005 = vpack.c.b16 %v2613, %v2609
        %v3006 = vpack.c.b16 %v2614, %v2610
        %v3007 = vpack.c.b16 %v2615, %v2611
        %v3008 = vpack.c.b16 %v2616, %v2612
        %v3009 = vpack.c.b16 %v2621, %v2617
        %v3010 = vpack.c.b16 %v2622, %v2618
        %v3011 = vpack.c.b16 %v2623, %v2619
        %v3012 = vpack.c.b16 %v2624, %v2620
        %v3013 = vpack.c.b16 %v2629, %v2625
        %v3014 = vpack.c.b16 %v2630, %v2626
        %v3015 = vpack.c.b16 %v2631, %v2627
        %v3016 = vpack.c.b16 %v2632, %v2628
        %v3017 = vpack.c.b16 %v2637, %v2633
        %v3018 = vpack.c.b16 %v2638, %v2634
        %v3019 = vpack.c.b16 %v2639, %v2635
        %v3020 = vpack.c.b16 %v2640, %v2636
        %v3021 = vpack.c.b16 %v2645, %v2641
        %v3022 = vpack.c.b16 %v2646, %v2642
        %v3023 = vpack.c.b16 %v2647, %v2643
        %v3024 = vpack.c.b16 %v2648, %v2644
        %v3025 = vpack.c.b16 %v2653, %v2649
        %v3026 = vpack.c.b16 %v2654, %v2650
        %v3027 = vpack.c.b16 %v2655, %v2651
        %v3028 = vpack.c.b16 %v2656, %v2652
        %v3029 = vpack.c.b16 %v2661, %v2657
        %v3030 = vpack.c.b16 %v2662, %v2658
        %v3031 = vpack.c.b16 %v2663, %v2659
        %v3032 = vpack.c.b16 %v2664, %v2660
        %v3033 = vpack.c.b16 %v2669, %v2665
        %v3034 = vpack.c.b16 %v2670, %v2666
        %v3035 = vpack.c.b16 %v2671, %v2667
        %v3036 = vpack.c.b16 %v2672, %v2668
        %v3037 = vpack.c.b16 %v2677, %v2673
        %v3038 = vpack.c.b16 %v2678, %v2674
        %v3039 = vpack.c.b16 %v2679, %v2675
        %v3040 = vpack.c.b16 %v2680, %v2676
        %v3041 = vpack.c.b16 %v2685, %v2681
        %v3042 = vpack.c.b16 %v2686, %v2682
        %v3043 = vpack.c.b16 %v2687, %v2683
        %v3044 = vpack.c.b16 %v2688, %v2684
        %v3045 = vpack.c.b16 %v2693, %v2689
        %v3046 = vpack.c.b16 %v2694, %v2690
        %v3047 = vpack.c.b16 %v2695, %v2691
        %v3048 = vpack.c.b16 %v2696, %v2692
        %v3049 = vpack.c.b16 %v2701, %v2697
        %v3050 = vpack.c.b16 %v2702, %v2698
        %v3051 = vpack.c.b16 %v2703, %v2699
        %v3052 = vpack.c.b16 %v2704, %v2700
        %v3053 = vpack.c.b16 %v2709, %v2705
        %v3054 = vpack.c.b16 %v2710, %v2706
        %v3055 = vpack.c.b16 %v2711, %v2707
        %v3056 = vpack.c.b16 %v2712, %v2708
        %v3057 = vpack.c.b16 %v2717, %v2713
        %v3058 = vpack.c.b16 %v2718, %v2714
        %v3059 = vpack.c.b16 %v2719, %v2715
        %v3060 = vpack.c.b16 %v2720, %v2716
        %v3061 = vpack.c.b16 %v2725, %v2721
        %v3062 = vpack.c.b16 %v2726, %v2722
        %v3063 = vpack.c.b16 %v2727, %v2723
        %v3064 = vpack.c.b16 %v2728, %v2724
        %v3065 = vpack.c.b16 %v2733, %v2729
        %v3066 = vpack.c.b16 %v2734, %v2730
        %v3067 = vpack.c.b16 %v2735, %v2731
        %v3068 = vpack.c.b16 %v2736, %v2732
        %v3069 = vpack.c.b16 %v2741, %v2737
        %v3070 = vpack.c.b16 %v2742, %v2738
        %v3071 = vpack.c.b16 %v2743, %v2739
        %v3072 = vpack.c.b16 %v2744, %v2740
        %v3073 = vpack.c.b16 %v2749, %v2745
        %v3074 = vpack.c.b16 %v2750, %v2746
        %v3075 = vpack.c.b16 %v2751, %v2747
        %v3076 = vpack.c.b16 %v2752, %v2748
        %v3077 = vpack.c.b16 %v2757, %v2753
        %v3078 = vpack.c.b16 %v2758, %v2754
        %v3079 = vpack.c.b16 %v2759, %v2755
        %v3080 = vpack.c.b16 %v2760, %v2756
        %v3081 = vpack.c.b16 %v2765, %v2761
        %v3082 = vpack.c.b16 %v2766, %v2762
        %v3083 = vpack.c.b16 %v2767, %v2763
        %v3084 = vpack.c.b16 %v2768, %v2764
        %v3085 = vpack.c.b16 %v2773, %v2769
        %v3086 = vpack.c.b16 %v2774, %v2770
        %v3087 = vpack.c.b16 %v2775, %v2771
        %v3088 = vpack.c.b16 %v2776, %v2772
        %v3089 = vpack.c.b16 %v2781, %v2777
        %v3090 = vpack.c.b16 %v2782, %v2778
        %v3091 = vpack.c.b16 %v2783, %v2779
        %v3092 = vpack.c.b16 %v2784, %v2780
        %v3093 = vpack.c.b16 %v2789, %v2785
        %v3094 = vpack.c.b16 %v2790, %v2786
        %v3095 = vpack.c.b16 %v2791, %v2787
        %v3096 = vpack.c.b16 %v2792, %v2788
        %v3097 = vpack.c.b16 %v2797, %v2793
        %v3098 = vpack.c.b16 %v2798, %v2794
        %v3099 = vpack.c.b16 %v2799, %v2795
        %v3100 = vpack.c.b16 %v2800, %v2796
        %v3101 = vpack.c.b16 %v2805, %v2801
        %v3102 = vpack.c.b16 %v2806, %v2802
        %v3103 = vpack.c.b16 %v2807, %v2803
        %v3104 = vpack.c.b16 %v2808, %v2804
        %v3105 = vpack.c.b16 %v2813, %v2809
        %v3106 = vpack.c.b16 %v2814, %v2810
        %v3107 = vpack.c.b16 %v2815, %v2811
        %v3108 = vpack.c.b16 %v2816, %v2812
        %v3109 = vpack.c.b16 %v2821, %v2817
        %v3110 = vpack.c.b16 %v2822, %v2818
        %v3111 = vpack.c.b16 %v2823, %v2819
        %v3112 = vpack.c.b16 %v2824, %v2820
        %v3113 = vpack.c.b16 %v2829, %v2825
        %v3114 = vpack.c.b16 %v2830, %v2826
        %v3115 = vpack.c.b16 %v2831, %v2827
        %v3116 = vpack.c.b16 %v2832, %v2828
        %v3117 = vpack.c.b16 %v2837, %v2833
        %v3118 = vpack.c.b16 %v2838, %v2834
        %v3119 = vpack.c.b16 %v2839, %v2835
        %v3120 = vpack.c.b16 %v2840, %v2836
        %v3121 = vpack.c.b16 %v2845, %v2841
        %v3122 = vpack.c.b16 %v2846, %v2842
        %v3123 = vpack.c.b16 %v2847, %v2843
        %v3124 = vpack.c.b16 %v2848, %v2844
        %v3125 = vpack.c.b16 %v2853, %v2849
        %v3126 = vpack.c.b16 %v2854, %v2850
        %v3127 = vpack.c.b16 %v2855, %v2851
        %v3128 = vpack.c.b16 %v2856, %v2852
        %v3129 = vpack.c.b16 %v2861, %v2857
        %v3130 = vpack.c.b16 %v2862, %v2858
        %v3131 = vpack.c.b16 %v2863, %v2859
        %v3132 = vpack.c.b16 %v2864, %v2860
        %v3133 = vpack.c.b16 %v2869, %v2865
        %v3134 = vpack.c.b16 %v2870, %v2866
        %v3135 = vpack.c.b16 %v2871, %v2867
        %v3136 = vpack.c.b16 %v2872, %v2868
        %v3137 = vpack.c.b16 %v2877, %v2873
        %v3138 = vpack.c.b16 %v2878, %v2874
        %v3139 = vpack.c.b16 %v2879, %v2875
        %v3140 = vpack.c.b16 %v2880, %v2876
        %v3141 = vpack.c.b16 %v2885, %v2881
        %v3142 = vpack.c.b16 %v2886, %v2882
        %v3143 = vpack.c.b16 %v2887, %v2883
        %v3144 = vpack.c.b16 %v2888, %v2884
        %3401 = vmatprep.subr.bf16.mxu0 %v2890
        %3402 = vmatpush1.bf16.msra.mxu0 %v2889
        %3403 = vmatprep.subr.bf16.mxu0 %v2894
        %3404 = vmatpush1.bf16.msra.mxu0 %v2893
        %3405 = vmatprep.subr.bf16.mxu0 %v2898
        %3406 = vmatpush1.bf16.msra.mxu0 %v2897
        %3407 = vmatprep.subr.bf16.mxu0 %v2902
        %3408 = vmatpush1.bf16.msra.mxu0 %v2901
        %3409 = vmatprep.subr.bf16.mxu0 %v2906
        %3410 = vmatpush1.bf16.msra.mxu0 %v2905
        %3411 = vmatprep.subr.bf16.mxu0 %v2910
        %3412 = vmatpush1.bf16.msra.mxu0 %v2909
        %3413 = vmatprep.subr.bf16.mxu0 %v2914
        %3414 = vmatpush1.bf16.msra.mxu0 %v2913
        %3415 = vmatprep.subr.bf16.mxu0 %v2918
        %3416 = vmatpush1.bf16.msra.mxu0 %v2917
        %3417 = vmatprep.subr.bf16.mxu0 %v2922
        %3418 = vmatpush1.bf16.msra.mxu0 %v2921
        %3419 = vmatprep.subr.bf16.mxu0 %v2926
        %3420 = vmatpush1.bf16.msra.mxu0 %v2925
        %3421 = vmatprep.subr.bf16.mxu0 %v2930
        %3422 = vmatpush1.bf16.msra.mxu0 %v2929
        %3423 = vmatprep.subr.bf16.mxu0 %v2934
        %3424 = vmatpush1.bf16.msra.mxu0 %v2933
        %3425 = vmatprep.subr.bf16.mxu0 %v2938
        %3426 = vmatpush1.bf16.msra.mxu0 %v2937
        %3427 = vmatprep.subr.bf16.mxu0 %v2942
        %3428 = vmatpush1.bf16.msra.mxu0 %v2941
        %3429 = vmatprep.subr.bf16.mxu0 %v2946
        %3430 = vmatpush1.bf16.msra.mxu0 %v2945
        %3431 = vmatprep.subr.bf16.mxu0 %v2950
        %3432 = vmatpush1.bf16.msra.mxu0 %v2949
        %3433 = vmatprep.mubr.bf16.mxu0 %v1780
        %3434 = vmatmul.mubr.bf16.gmra.mrb[0].mxu0 %v1779
        %v3435 = vpop.f32.mrb[0].mxu0
        %v3436 = vadd.f32 %v2104, %v3435
        %v3437 = vpop.f32.mrb[0].mxu0
        %v3438 = vadd.f32 %v2108, %v3437
        %v3439 = vpop.f32.mrb[0].mxu0
        %v3440 = vadd.f32 %v2104, %v3439
        %v3441 = vpop.f32.mrb[0].mxu0
        %v3442 = vadd.f32 %v2108, %v3441
        %3443 = vmatprep.mubr.bf16.mxu0 %v1788
        %3444 = vmatmul.mubr.bf16.gmra.mrb[0].mxu0 %v1787
        %v3445 = vpop.f32.mrb[0].mxu0
        %v3446 = vadd.f32 %v2104, %v3445
        %v3447 = vpop.f32.mrb[0].mxu0
        %v3448 = vadd.f32 %v2108, %v3447
        %v3449 = vpop.f32.mrb[0].mxu0
        %v3450 = vadd.f32 %v2104, %v3449
        %v3451 = vpop.f32.mrb[0].mxu0
        %v3452 = vadd.f32 %v2108, %v3451
        %3453 = vmatprep.mubr.bf16.mxu0 %v1796
        %3454 = vmatmul.mubr.bf16.gmra.mrb[0].mxu0 %v1795
        %v3455 = vpop.f32.mrb[0].mxu0
        %v3456 = vadd.f32 %v2104, %v3455
        %v3457 = vpop.f32.mrb[0].mxu0
        %v3458 = vadd.f32 %v2108, %v3457
        %v3459 = vpop.f32.mrb[0].mxu0
        %v3460 = vadd.f32 %v2104, %v3459
        %v3461 = vpop.f32.mrb[0].mxu0
        %v3462 = vadd.f32 %v2108, %v3461
        %3463 = vmatprep.mubr.bf16.mxu0 %v1804
        %3464 = vmatmul.mubr.bf16.gmra.mrb[0].mxu0 %v1803
        %v3465 = vpop.f32.mrb[0].mxu0
        %v3466 = vadd.f32 %v2104, %v3465
        %v3467 = vpop.f32.mrb[0].mxu0
        %v3468 = vadd.f32 %v2108, %v3467
        %v3469 = vpop.f32.mrb[0].mxu0
        %v3470 = vadd.f32 %v2104, %v3469
        %v3471 = vpop.f32.mrb[0].mxu0
        %v3472 = vadd.f32 %v2108, %v3471
        %3473 = vmatprep.mubr.bf16.mxu0 %v1812
        %3474 = vmatmul.mubr.bf16.gmra.mrb[0].mxu0 %v1811
        %v3475 = vpop.f32.mrb[0].mxu0
        %v3476 = vadd.f32 %v2104, %v3475
        %v3477 = vpop.f32.mrb[0].mxu0
        %v3478 = vadd.f32 %v2108, %v3477
        %v3479 = vpop.f32.mrb[0].mxu0
        %v3480 = vadd.f32 %v2104, %v3479
        %v3481 = vpop.f32.mrb[0].mxu0
        %v3482 = vadd.f32 %v2108, %v3481
        %3483 = vmatprep.mubr.bf16.mxu0 %v1820
        %3484 = vmatmul.mubr.bf16.gmra.mrb[0].mxu0 %v1819
        %v3485 = vpop.f32.mrb[0].mxu0
        %v3486 = vadd.f32 %v2104, %v3485
        %v3487 = vpop.f32.mrb[0].mxu0
        %v3488 = vadd.f32 %v2108, %v3487
        %v3489 = vpop.f32.mrb[0].mxu0
        %v3490 = vadd.f32 %v2104, %v3489
        %v3491 = vpop.f32.mrb[0].mxu0
        %v3492 = vadd.f32 %v2108, %v3491
        %3493 = vmatprep.mubr.bf16.mxu0 %v1828
        %3494 = vmatmul.mubr.bf16.gmra.mrb[0].mxu0 %v1827
        %v3495 = vpop.f32.mrb[0].mxu0
        %v3496 = vadd.f32 %v2104, %v3495
        %v3497 = vpop.f32.mrb[0].mxu0
        %v3498 = vadd.f32 %v2108, %v3497
        %v3499 = vpop.f32.mrb[0].mxu0
        %v3500 = vadd.f32 %v2104, %v3499
        %v3501 = vpop.f32.mrb[0].mxu0
        %v3502 = vadd.f32 %v2108, %v3501
        %3503 = vmatprep.mubr.bf16.mxu0 %v1836
        %3504 = vmatmul.mubr.bf16.gmra.mrb[0].mxu0 %v1835
        %v3505 = vpop.f32.mrb[0].mxu0
        %v3506 = vadd.f32 %v2104, %v3505
        %v3507 = vpop.f32.mrb[0].mxu0
        %v3508 = vadd.f32 %v2108, %v3507
        %v3509 = vpop.f32.mrb[0].mxu0
        %v3510 = vadd.f32 %v2104, %v3509
        %v3511 = vpop.f32.mrb[0].mxu0
        %v3512 = vadd.f32 %v2108, %v3511
        %3513 = vdwg.mxu0
        %3514 = vmatprep.subr.bf16.mxu0 %v2954
        %3515 = vmatpush1.bf16.msra.mxu0 %v2953
        %3516 = vmatprep.subr.bf16.mxu0 %v2958
        %3517 = vmatpush1.bf16.msra.mxu0 %v2957
        %3518 = vmatprep.subr.bf16.mxu0 %v2962
        %3519 = vmatpush1.bf16.msra.mxu0 %v2961
        %3520 = vmatprep.subr.bf16.mxu0 %v2966
        %3521 = vmatpush1.bf16.msra.mxu0 %v2965
        %3522 = vmatprep.subr.bf16.mxu0 %v2970
        %3523 = vmatpush1.bf16.msra.mxu0 %v2969
        %3524 = vmatprep.subr.bf16.mxu0 %v2974
        %3525 = vmatpush1.bf16.msra.mxu0 %v2973
        %3526 = vmatprep.subr.bf16.mxu0 %v2978
        %3527 = vmatpush1.bf16.msra.mxu0 %v2977
        %3528 = vmatprep.subr.bf16.mxu0 %v2982
        %3529 = vmatpush1.bf16.msra.mxu0 %v2981
        %3530 = vmatprep.subr.bf16.mxu0 %v2986
        %3531 = vmatpush1.bf16.msra.mxu0 %v2985
        %3532 = vmatprep.subr.bf16.mxu0 %v2990
        %3533 = vmatpush1.bf16.msra.mxu0 %v2989
        %3534 = vmatprep.subr.bf16.mxu0 %v2994
        %3535 = vmatpush1.bf16.msra.mxu0 %v2993
        %3536 = vmatprep.subr.bf16.mxu0 %v2998
        %3537 = vmatpush1.bf16.msra.mxu0 %v2997
        %3538 = vmatprep.subr.bf16.mxu0 %v3002
        %3539 = vmatpush1.bf16.msra.mxu0 %v3001
        %3540 = vmatprep.subr.bf16.mxu0 %v3006
        %3541 = vmatpush1.bf16.msra.mxu0 %v3005
        %3542 = vmatprep.subr.bf16.mxu0 %v3010
        %3543 = vmatpush1.bf16.msra.mxu0 %v3009
        %3544 = vmatprep.subr.bf16.mxu0 %v3014
        %3545 = vmatpush1.bf16.msra.mxu0 %v3013
        %3546 = vmatprep.mubr.bf16.mxu0 %v1782
        %3547 = vmatmul.mubr.bf16.gmra.mrb[0].mxu0 %v1781
        %v3548 = vpop.f32.mrb[0].mxu0
        %v3549 = vadd.f32 %v3436, %v3548
        %v3550 = vpop.f32.mrb[0].mxu0
        %v3551 = vadd.f32 %v3438, %v3550
        %v3552 = vpop.f32.mrb[0].mxu0
        %v3553 = vadd.f32 %v3440, %v3552
        %v3554 = vpop.f32.mrb[0].mxu0
        %v3555 = vadd.f32 %v3442, %v3554
        %3556 = vmatprep.mubr.bf16.mxu0 %v1790
        %3557 = vmatmul.mubr.bf16.gmra.mrb[0].mxu0 %v1789
        %v3558 = vpop.f32.mrb[0].mxu0
        %v3559 = vadd.f32 %v3446, %v3558
        %v3560 = vpop.f32.mrb[0].mxu0
        %v3561 = vadd.f32 %v3448, %v3560
        %v3562 = vpop.f32.mrb[0].mxu0
        %v3563 = vadd.f32 %v3450, %v3562
        %v3564 = vpop.f32.mrb[0].mxu0
        %v3565 = vadd.f32 %v3452, %v3564
        %3566 = vmatprep.mubr.bf16.mxu0 %v1798
        %3567 = vmatmul.mubr.bf16.gmra.mrb[0].mxu0 %v1797
        %v3568 = vpop.f32.mrb[0].mxu0
        %v3569 = vadd.f32 %v3456, %v3568
        %v3570 = vpop.f32.mrb[0].mxu0
        %v3571 = vadd.f32 %v3458, %v3570
        %v3572 = vpop.f32.mrb[0].mxu0
        %v3573 = vadd.f32 %v3460, %v3572
        %v3574 = vpop.f32.mrb[0].mxu0
        %v3575 = vadd.f32 %v3462, %v3574
        %3576 = vmatprep.mubr.bf16.mxu0 %v1806
        %3577 = vmatmul.mubr.bf16.gmra.mrb[0].mxu0 %v1805
        %v3578 = vpop.f32.mrb[0].mxu0
        %v3579 = vadd.f32 %v3466, %v3578
        %v3580 = vpop.f32.mrb[0].mxu0
        %v3581 = vadd.f32 %v3468, %v3580
        %v3582 = vpop.f32.mrb[0].mxu0
        %v3583 = vadd.f32 %v3470, %v3582
        %v3584 = vpop.f32.mrb[0].mxu0
        %v3585 = vadd.f32 %v3472, %v3584
        %3586 = vmatprep.mubr.bf16.mxu0 %v1814
        %3587 = vmatmul.mubr.bf16.gmra.mrb[0].mxu0 %v1813
        %v3588 = vpop.f32.mrb[0].mxu0
        %v3589 = vadd.f32 %v3476, %v3588
        %v3590 = vpop.f32.mrb[0].mxu0
        %v3591 = vadd.f32 %v3478, %v3590
        %v3592 = vpop.f32.mrb[0].mxu0
        %v3593 = vadd.f32 %v3480, %v3592
        %v3594 = vpop.f32.mrb[0].mxu0
        %v3595 = vadd.f32 %v3482, %v3594
        %3596 = vmatprep.mubr.bf16.mxu0 %v1822
        %3597 = vmatmul.mubr.bf16.gmra.mrb[0].mxu0 %v1821
        %v3598 = vpop.f32.mrb[0].mxu0
        %v3599 = vadd.f32 %v3486, %v3598
        %v3600 = vpop.f32.mrb[0].mxu0
        %v3601 = vadd.f32 %v3488, %v3600
        %v3602 = vpop.f32.mrb[0].mxu0
        %v3603 = vadd.f32 %v3490, %v3602
        %v3604 = vpop.f32.mrb[0].mxu0
        %v3605 = vadd.f32 %v3492, %v3604
        %3606 = vmatprep.mubr.bf16.mxu0 %v1830
        %3607 = vmatmul.mubr.bf16.gmra.mrb[0].mxu0 %v1829
        %v3608 = vpop.f32.mrb[0].mxu0
        %v3609 = vadd.f32 %v3496, %v3608
        %v3610 = vpop.f32.mrb[0].mxu0
        %v3611 = vadd.f32 %v3498, %v3610
        %v3612 = vpop.f32.mrb[0].mxu0
        %v3613 = vadd.f32 %v3500, %v3612
        %v3614 = vpop.f32.mrb[0].mxu0
        %v3615 = vadd.f32 %v3502, %v3614
        %3616 = vmatprep.mubr.bf16.mxu0 %v1838
        %3617 = vmatmul.mubr.bf16.gmra.mrb[0].mxu0 %v1837
        %v3618 = vpop.f32.mrb[0].mxu0
        %v3619 = vadd.f32 %v3506, %v3618
        %v3620 = vpop.f32.mrb[0].mxu0
        %v3621 = vadd.f32 %v3508, %v3620
        %v3622 = vpop.f32.mrb[0].mxu0
        %v3623 = vadd.f32 %v3510, %v3622
        %v3624 = vpop.f32.mrb[0].mxu0
        %v3625 = vadd.f32 %v3512, %v3624
        %3626 = vdwg.mxu0
        %3627 = vmatprep.subr.bf16.mxu0 %v3018
        %3628 = vmatpush1.bf16.msra.mxu0 %v3017
        %3629 = vmatprep.subr.bf16.mxu0 %v3022
        %3630 = vmatpush1.bf16.msra.mxu0 %v3021
        %3631 = vmatprep.subr.bf16.mxu0 %v3026
        %3632 = vmatpush1.bf16.msra.mxu0 %v3025
        %3633 = vmatprep.subr.bf16.mxu0 %v3030
        %3634 = vmatpush1.bf16.msra.mxu0 %v3029
        %3635 = vmatprep.subr.bf16.mxu0 %v3034
        %3636 = vmatpush1.bf16.msra.mxu0 %v3033
        %3637 = vmatprep.subr.bf16.mxu0 %v3038
        %3638 = vmatpush1.bf16.msra.mxu0 %v3037
        %3639 = vmatprep.subr.bf16.mxu0 %v3042
        %3640 = vmatpush1.bf16.msra.mxu0 %v3041
        %3641 = vmatprep.subr.bf16.mxu0 %v3046
        %3642 = vmatpush1.bf16.msra.mxu0 %v3045
        %3643 = vmatprep.subr.bf16.mxu0 %v3050
        %3644 = vmatpush1.bf16.msra.mxu0 %v3049
        %3645 = vmatprep.subr.bf16.mxu0 %v3054
        %3646 = vmatpush1.bf16.msra.mxu0 %v3053
        %3647 = vmatprep.subr.bf16.mxu0 %v3058
        %3648 = vmatpush1.bf16.msra.mxu0 %v3057
        %3649 = vmatprep.subr.bf16.mxu0 %v3062
        %3650 = vmatpush1.bf16.msra.mxu0 %v3061
        %3651 = vmatprep.subr.bf16.mxu0 %v3066
        %3652 = vmatpush1.bf16.msra.mxu0 %v3065
        %3653 = vmatprep.subr.bf16.mxu0 %v3070
        %3654 = vmatpush1.bf16.msra.mxu0 %v3069
        %3655 = vmatprep.subr.bf16.mxu0 %v3074
        %3656 = vmatpush1.bf16.msra.mxu0 %v3073
        %3657 = vmatprep.subr.bf16.mxu0 %v3078
        %3658 = vmatpush1.bf16.msra.mxu0 %v3077
        %3659 = vmatprep.mubr.bf16.mxu0 %v1784
        %3660 = vmatmul.mubr.bf16.gmra.mrb[0].mxu0 %v1783
        %v3661 = vpop.f32.mrb[0].mxu0
        %v3662 = vadd.f32 %v3549, %v3661
        %v3663 = vpop.f32.mrb[0].mxu0
        %v3664 = vadd.f32 %v3551, %v3663
        %v3665 = vpop.f32.mrb[0].mxu0
        %v3666 = vadd.f32 %v3553, %v3665
        %v3667 = vpop.f32.mrb[0].mxu0
        %v3668 = vadd.f32 %v3555, %v3667
        %3669 = vmatprep.mubr.bf16.mxu0 %v1792
        %3670 = vmatmul.mubr.bf16.gmra.mrb[0].mxu0 %v1791
        %v3671 = vpop.f32.mrb[0].mxu0
        %v3672 = vadd.f32 %v3559, %v3671
        %v3673 = vpop.f32.mrb[0].mxu0
        %v3674 = vadd.f32 %v3561, %v3673
        %v3675 = vpop.f32.mrb[0].mxu0
        %v3676 = vadd.f32 %v3563, %v3675
        %v3677 = vpop.f32.mrb[0].mxu0
        %v3678 = vadd.f32 %v3565, %v3677
        %3679 = vmatprep.mubr.bf16.mxu0 %v1800
        %3680 = vmatmul.mubr.bf16.gmra.mrb[0].mxu0 %v1799
        %v3681 = vpop.f32.mrb[0].mxu0
        %v3682 = vadd.f32 %v3569, %v3681
        %v3683 = vpop.f32.mrb[0].mxu0
        %v3684 = vadd.f32 %v3571, %v3683
        %v3685 = vpop.f32.mrb[0].mxu0
        %v3686 = vadd.f32 %v3573, %v3685
        %v3687 = vpop.f32.mrb[0].mxu0
        %v3688 = vadd.f32 %v3575, %v3687
        %3689 = vmatprep.mubr.bf16.mxu0 %v1808
        %3690 = vmatmul.mubr.bf16.gmra.mrb[0].mxu0 %v1807
        %v3691 = vpop.f32.mrb[0].mxu0
        %v3692 = vadd.f32 %v3579, %v3691
        %v3693 = vpop.f32.mrb[0].mxu0
        %v3694 = vadd.f32 %v3581, %v3693
        %v3695 = vpop.f32.mrb[0].mxu0
        %v3696 = vadd.f32 %v3583, %v3695
        %v3697 = vpop.f32.mrb[0].mxu0
        %v3698 = vadd.f32 %v3585, %v3697
        %3699 = vmatprep.mubr.bf16.mxu0 %v1816
        %3700 = vmatmul.mubr.bf16.gmra.mrb[0].mxu0 %v1815
        %v3701 = vpop.f32.mrb[0].mxu0
        %v3702 = vadd.f32 %v3589, %v3701
        %v3703 = vpop.f32.mrb[0].mxu0
        %v3704 = vadd.f32 %v3591, %v3703
        %v3705 = vpop.f32.mrb[0].mxu0
        %v3706 = vadd.f32 %v3593, %v3705
        %v3707 = vpop.f32.mrb[0].mxu0
        %v3708 = vadd.f32 %v3595, %v3707
        %3709 = vmatprep.mubr.bf16.mxu0 %v1824
        %3710 = vmatmul.mubr.bf16.gmra.mrb[0].mxu0 %v1823
        %v3711 = vpop.f32.mrb[0].mxu0
        %v3712 = vadd.f32 %v3599, %v3711
        %v3713 = vpop.f32.mrb[0].mxu0
        %v3714 = vadd.f32 %v3601, %v3713
        %v3715 = vpop.f32.mrb[0].mxu0
        %v3716 = vadd.f32 %v3603, %v3715
        %v3717 = vpop.f32.mrb[0].mxu0
        %v3718 = vadd.f32 %v3605, %v3717
        %3719 = vmatprep.mubr.bf16.mxu0 %v1832
        %3720 = vmatmul.mubr.bf16.gmra.mrb[0].mxu0 %v1831
        %v3721 = vpop.f32.mrb[0].mxu0
        %v3722 = vadd.f32 %v3609, %v3721
        %v3723 = vpop.f32.mrb[0].mxu0
        %v3724 = vadd.f32 %v3611, %v3723
        %v3725 = vpop.f32.mrb[0].mxu0
        %v3726 = vadd.f32 %v3613, %v3725
        %v3727 = vpop.f32.mrb[0].mxu0
        %v3728 = vadd.f32 %v3615, %v3727
        %3729 = vmatprep.mubr.bf16.mxu0 %v1840
        %3730 = vmatmul.mubr.bf16.gmra.mrb[0].mxu0 %v1839
        %v3731 = vpop.f32.mrb[0].mxu0
        %v3732 = vadd.f32 %v3619, %v3731
        %v3733 = vpop.f32.mrb[0].mxu0
        %v3734 = vadd.f32 %v3621, %v3733
        %v3735 = vpop.f32.mrb[0].mxu0
        %v3736 = vadd.f32 %v3623, %v3735
        %v3737 = vpop.f32.mrb[0].mxu0
        %v3738 = vadd.f32 %v3625, %v3737
        %3739 = vdwg.mxu0
        %3740 = vmatprep.subr.bf16.mxu0 %v3082
        %3741 = vmatpush1.bf16.msra.mxu0 %v3081
        %3742 = vmatprep.subr.bf16.mxu0 %v3086
        %3743 = vmatpush1.bf16.msra.mxu0 %v3085
        %3744 = vmatprep.subr.bf16.mxu0 %v3090
        %3745 = vmatpush1.bf16.msra.mxu0 %v3089
        %3746 = vmatprep.subr.bf16.mxu0 %v3094
        %3747 = vmatpush1.bf16.msra.mxu0 %v3093
        %3748 = vmatprep.subr.bf16.mxu0 %v3098
        %3749 = vmatpush1.bf16.msra.mxu0 %v3097
        %3750 = vmatprep.subr.bf16.mxu0 %v3102
        %3751 = vmatpush1.bf16.msra.mxu0 %v3101
        %3752 = vmatprep.subr.bf16.mxu0 %v3106
        %3753 = vmatpush1.bf16.msra.mxu0 %v3105
        %3754 = vmatprep.subr.bf16.mxu0 %v3110
        %3755 = vmatpush1.bf16.msra.mxu0 %v3109
        %3756 = vmatprep.subr.bf16.mxu0 %v3114
        %3757 = vmatpush1.bf16.msra.mxu0 %v3113
        %3758 = vmatprep.subr.bf16.mxu0 %v3118
        %3759 = vmatpush1.bf16.msra.mxu0 %v3117
        %3760 = vmatprep.subr.bf16.mxu0 %v3122
        %3761 = vmatpush1.bf16.msra.mxu0 %v3121
        %3762 = vmatprep.subr.bf16.mxu0 %v3126
        %3763 = vmatpush1.bf16.msra.mxu0 %v3125
        %3764 = vmatprep.subr.bf16.mxu0 %v3130
        %3765 = vmatpush1.bf16.msra.mxu0 %v3129
        %3766 = vmatprep.subr.bf16.mxu0 %v3134
        %3767 = vmatpush1.bf16.msra.mxu0 %v3133
        %3768 = vmatprep.subr.bf16.mxu0 %v3138
        %3769 = vmatpush1.bf16.msra.mxu0 %v3137
        %3770 = vmatprep.subr.bf16.mxu0 %v3142
        %3771 = vmatpush1.bf16.msra.mxu0 %v3141
        %3772 = vmatprep.mubr.bf16.mxu0 %v1786
        %3773 = vmatmul.mubr.bf16.gmra.mrb[0].mxu0 %v1785
        %v3774 = vpop.f32.mrb[0].mxu0
        %v3775 = vadd.f32 %v3662, %v3774
        %v3776 = vpop.f32.mrb[0].mxu0
        %v3777 = vadd.f32 %v3664, %v3776
        %v3778 = vpop.f32.mrb[0].mxu0
        %v3779 = vadd.f32 %v3666, %v3778
        %v3780 = vpop.f32.mrb[0].mxu0
        %v3781 = vadd.f32 %v3668, %v3780
        %3782 = vmatprep.mubr.bf16.mxu0 %v1794
        %3783 = vmatmul.mubr.bf16.gmra.mrb[0].mxu0 %v1793
        %v3784 = vpop.f32.mrb[0].mxu0
        %v3785 = vadd.f32 %v3672, %v3784
        %v3786 = vpop.f32.mrb[0].mxu0
        %v3787 = vadd.f32 %v3674, %v3786
        %v3788 = vpop.f32.mrb[0].mxu0
        %v3789 = vadd.f32 %v3676, %v3788
        %v3790 = vpop.f32.mrb[0].mxu0
        %v3791 = vadd.f32 %v3678, %v3790
        %3792 = vmatprep.mubr.bf16.mxu0 %v1802
        %3793 = vmatmul.mubr.bf16.gmra.mrb[0].mxu0 %v1801
        %v3794 = vpop.f32.mrb[0].mxu0
        %v3795 = vadd.f32 %v3682, %v3794
        %v3796 = vpop.f32.mrb[0].mxu0
        %v3797 = vadd.f32 %v3684, %v3796
        %v3798 = vpop.f32.mrb[0].mxu0
        %v3799 = vadd.f32 %v3686, %v3798
        %v3800 = vpop.f32.mrb[0].mxu0
        %v3801 = vadd.f32 %v3688, %v3800
        %3802 = vmatprep.mubr.bf16.mxu0 %v1810
        %3803 = vmatmul.mubr.bf16.gmra.mrb[0].mxu0 %v1809
        %v3804 = vpop.f32.mrb[0].mxu0
        %v3805 = vadd.f32 %v3692, %v3804
        %v3806 = vpop.f32.mrb[0].mxu0
        %v3807 = vadd.f32 %v3694, %v3806
        %v3808 = vpop.f32.mrb[0].mxu0
        %v3809 = vadd.f32 %v3696, %v3808
        %v3810 = vpop.f32.mrb[0].mxu0
        %v3811 = vadd.f32 %v3698, %v3810
        %3812 = vmatprep.mubr.bf16.mxu0 %v1818
        %3813 = vmatmul.mubr.bf16.gmra.mrb[0].mxu0 %v1817
        %v3814 = vpop.f32.mrb[0].mxu0
        %v3815 = vadd.f32 %v3702, %v3814
        %v3816 = vpop.f32.mrb[0].mxu0
        %v3817 = vadd.f32 %v3704, %v3816
        %v3818 = vpop.f32.mrb[0].mxu0
        %v3819 = vadd.f32 %v3706, %v3818
        %v3820 = vpop.f32.mrb[0].mxu0
        %v3821 = vadd.f32 %v3708, %v3820
        %3822 = vmatprep.mubr.bf16.mxu0 %v1826
        %3823 = vmatmul.mubr.bf16.gmra.mrb[0].mxu0 %v1825
        %v3824 = vpop.f32.mrb[0].mxu0
        %v3825 = vadd.f32 %v3712, %v3824
        %v3826 = vpop.f32.mrb[0].mxu0
        %v3827 = vadd.f32 %v3714, %v3826
        %v3828 = vpop.f32.mrb[0].mxu0
        %v3829 = vadd.f32 %v3716, %v3828
        %v3830 = vpop.f32.mrb[0].mxu0
        %v3831 = vadd.f32 %v3718, %v3830
        %3832 = vmatprep.mubr.bf16.mxu0 %v1834
        %3833 = vmatmul.mubr.bf16.gmra.mrb[0].mxu0 %v1833
        %v3834 = vpop.f32.mrb[0].mxu0
        %v3835 = vadd.f32 %v3722, %v3834
        %v3836 = vpop.f32.mrb[0].mxu0
        %v3837 = vadd.f32 %v3724, %v3836
        %v3838 = vpop.f32.mrb[0].mxu0
        %v3839 = vadd.f32 %v3726, %v3838
        %v3840 = vpop.f32.mrb[0].mxu0
        %v3841 = vadd.f32 %v3728, %v3840
        %3842 = vmatprep.mubr.bf16.mxu0 %v1842
        %3843 = vmatmul.mubr.bf16.gmra.mrb[0].mxu0 %v1841
        %v3844 = vpop.f32.mrb[0].mxu0
        %v3845 = vadd.f32 %v3732, %v3844
        %v3846 = vpop.f32.mrb[0].mxu0
        %v3847 = vadd.f32 %v3734, %v3846
        %v3848 = vpop.f32.mrb[0].mxu0
        %v3849 = vadd.f32 %v3736, %v3848
        %v3850 = vpop.f32.mrb[0].mxu0
        %v3851 = vadd.f32 %v3738, %v3850
        %3852 = vdwg.mxu0
        %3853 = vmatprep.subr.bf16.mxu0 %v2892
        %3854 = vmatpush1.bf16.msra.mxu0 %v2891
        %3855 = vmatprep.subr.bf16.mxu0 %v2896
        %3856 = vmatpush1.bf16.msra.mxu0 %v2895
        %3857 = vmatprep.subr.bf16.mxu0 %v2900
        %3858 = vmatpush1.bf16.msra.mxu0 %v2899
        %3859 = vmatprep.subr.bf16.mxu0 %v2904
        %3860 = vmatpush1.bf16.msra.mxu0 %v2903
        %3861 = vmatprep.subr.bf16.mxu0 %v2908
        %3862 = vmatpush1.bf16.msra.mxu0 %v2907
        %3863 = vmatprep.subr.bf16.mxu0 %v2912
        %3864 = vmatpush1.bf16.msra.mxu0 %v2911
        %3865 = vmatprep.subr.bf16.mxu0 %v2916
        %3866 = vmatpush1.bf16.msra.mxu0 %v2915
        %3867 = vmatprep.subr.bf16.mxu0 %v2920
        %3868 = vmatpush1.bf16.msra.mxu0 %v2919
        %3869 = vmatprep.subr.bf16.mxu0 %v2924
        %3870 = vmatpush1.bf16.msra.mxu0 %v2923
        %3871 = vmatprep.subr.bf16.mxu0 %v2928
        %3872 = vmatpush1.bf16.msra.mxu0 %v2927
        %3873 = vmatprep.subr.bf16.mxu0 %v2932
        %3874 = vmatpush1.bf16.msra.mxu0 %v2931
        %3875 = vmatprep.subr.bf16.mxu0 %v2936
        %3876 = vmatpush1.bf16.msra.mxu0 %v2935
        %3877 = vmatprep.subr.bf16.mxu0 %v2940
        %3878 = vmatpush1.bf16.msra.mxu0 %v2939
        %3879 = vmatprep.subr.bf16.mxu0 %v2944
        %3880 = vmatpush1.bf16.msra.mxu0 %v2943
        %3881 = vmatprep.subr.bf16.mxu0 %v2948
        %3882 = vmatpush1.bf16.msra.mxu0 %v2947
        %3883 = vmatprep.subr.bf16.mxu0 %v2952
        %3884 = vmatpush1.bf16.msra.mxu0 %v2951
        %3885 = vmatprep.mubr.bf16.mxu0 %v1780
        %3886 = vmatmul.mubr.bf16.gmra.mrb[0].mxu0 %v1779
        %v3887 = vpop.f32.mrb[0].mxu0
        %v3888 = vadd.f32 %v2112, %v3887
        %v3889 = vpop.f32.mrb[0].mxu0
        %v3890 = vadd.f32 %v2116, %v3889
        %v3891 = vpop.f32.mrb[0].mxu0
        %v3892 = vadd.f32 %v2112, %v3891
        %v3893 = vpop.f32.mrb[0].mxu0
        %v3894 = vadd.f32 %v2116, %v3893
        %3895 = vmatprep.mubr.bf16.mxu0 %v1788
        %3896 = vmatmul.mubr.bf16.gmra.mrb[0].mxu0 %v1787
        %v3897 = vpop.f32.mrb[0].mxu0
        %v3898 = vadd.f32 %v2112, %v3897
        %v3899 = vpop.f32.mrb[0].mxu0
        %v3900 = vadd.f32 %v2116, %v3899
        %v3901 = vpop.f32.mrb[0].mxu0
        %v3902 = vadd.f32 %v2112, %v3901
        %v3903 = vpop.f32.mrb[0].mxu0
        %v3904 = vadd.f32 %v2116, %v3903
        %3905 = vmatprep.mubr.bf16.mxu0 %v1796
        %3906 = vmatmul.mubr.bf16.gmra.mrb[0].mxu0 %v1795
        %v3907 = vpop.f32.mrb[0].mxu0
        %v3908 = vadd.f32 %v2112, %v3907
        %v3909 = vpop.f32.mrb[0].mxu0
        %v3910 = vadd.f32 %v2116, %v3909
        %v3911 = vpop.f32.mrb[0].mxu0
        %v3912 = vadd.f32 %v2112, %v3911
        %v3913 = vpop.f32.mrb[0].mxu0
        %v3914 = vadd.f32 %v2116, %v3913
        %3915 = vmatprep.mubr.bf16.mxu0 %v1804
        %3916 = vmatmul.mubr.bf16.gmra.mrb[0].mxu0 %v1803
        %v3917 = vpop.f32.mrb[0].mxu0
        %v3918 = vadd.f32 %v2112, %v3917
        %v3919 = vpop.f32.mrb[0].mxu0
        %v3920 = vadd.f32 %v2116, %v3919
        %v3921 = vpop.f32.mrb[0].mxu0
        %v3922 = vadd.f32 %v2112, %v3921
        %v3923 = vpop.f32.mrb[0].mxu0
        %v3924 = vadd.f32 %v2116, %v3923
        %3925 = vmatprep.mubr.bf16.mxu0 %v1812
        %3926 = vmatmul.mubr.bf16.gmra.mrb[0].mxu0 %v1811
        %v3927 = vpop.f32.mrb[0].mxu0
        %v3928 = vadd.f32 %v2112, %v3927
        %v3929 = vpop.f32.mrb[0].mxu0
        %v3930 = vadd.f32 %v2116, %v3929
        %v3931 = vpop.f32.mrb[0].mxu0
        %v3932 = vadd.f32 %v2112, %v3931
        %v3933 = vpop.f32.mrb[0].mxu0
        %v3934 = vadd.f32 %v2116, %v3933
        %3935 = vmatprep.mubr.bf16.mxu0 %v1820
        %3936 = vmatmul.mubr.bf16.gmra.mrb[0].mxu0 %v1819
        %v3937 = vpop.f32.mrb[0].mxu0
        %v3938 = vadd.f32 %v2112, %v3937
        %v3939 = vpop.f32.mrb[0].mxu0
        %v3940 = vadd.f32 %v2116, %v3939
        %v3941 = vpop.f32.mrb[0].mxu0
        %v3942 = vadd.f32 %v2112, %v3941
        %v3943 = vpop.f32.mrb[0].mxu0
        %v3944 = vadd.f32 %v2116, %v3943
        %3945 = vmatprep.mubr.bf16.mxu0 %v1828
        %3946 = vmatmul.mubr.bf16.gmra.mrb[0].mxu0 %v1827
        %v3947 = vpop.f32.mrb[0].mxu0
        %v3948 = vadd.f32 %v2112, %v3947
        %v3949 = vpop.f32.mrb[0].mxu0
        %v3950 = vadd.f32 %v2116, %v3949
        %v3951 = vpop.f32.mrb[0].mxu0
        %v3952 = vadd.f32 %v2112, %v3951
        %v3953 = vpop.f32.mrb[0].mxu0
        %v3954 = vadd.f32 %v2116, %v3953
        %3955 = vmatprep.mubr.bf16.mxu0 %v1836
        %3956 = vmatmul.mubr.bf16.gmra.mrb[0].mxu0 %v1835
        %v3957 = vpop.f32.mrb[0].mxu0
        %v3958 = vadd.f32 %v2112, %v3957
        %v3959 = vpop.f32.mrb[0].mxu0
        %v3960 = vadd.f32 %v2116, %v3959
        %v3961 = vpop.f32.mrb[0].mxu0
        %v3962 = vadd.f32 %v2112, %v3961
        %v3963 = vpop.f32.mrb[0].mxu0
        %v3964 = vadd.f32 %v2116, %v3963
        %3965 = vdwg.mxu0
        %3966 = vmatprep.subr.bf16.mxu0 %v2956
        %3967 = vmatpush1.bf16.msra.mxu0 %v2955
        %3968 = vmatprep.subr.bf16.mxu0 %v2960
        %3969 = vmatpush1.bf16.msra.mxu0 %v2959
        %3970 = vmatprep.subr.bf16.mxu0 %v2964
        %3971 = vmatpush1.bf16.msra.mxu0 %v2963
        %3972 = vmatprep.subr.bf16.mxu0 %v2968
        %3973 = vmatpush1.bf16.msra.mxu0 %v2967
        %3974 = vmatprep.subr.bf16.mxu0 %v2972
        %3975 = vmatpush1.bf16.msra.mxu0 %v2971
        %3976 = vmatprep.subr.bf16.mxu0 %v2976
        %3977 = vmatpush1.bf16.msra.mxu0 %v2975
        %3978 = vmatprep.subr.bf16.mxu0 %v2980
        %3979 = vmatpush1.bf16.msra.mxu0 %v2979
        %3980 = vmatprep.subr.bf16.mxu0 %v2984
        %3981 = vmatpush1.bf16.msra.mxu0 %v2983
        %3982 = vmatprep.subr.bf16.mxu0 %v2988
        %3983 = vmatpush1.bf16.msra.mxu0 %v2987
        %3984 = vmatprep.subr.bf16.mxu0 %v2992
        %3985 = vmatpush1.bf16.msra.mxu0 %v2991
        %3986 = vmatprep.subr.bf16.mxu0 %v2996
        %3987 = vmatpush1.bf16.msra.mxu0 %v2995
        %3988 = vmatprep.subr.bf16.mxu0 %v3000
        %3989 = vmatpush1.bf16.msra.mxu0 %v2999
        %3990 = vmatprep.subr.bf16.mxu0 %v3004
        %3991 = vmatpush1.bf16.msra.mxu0 %v3003
        %3992 = vmatprep.subr.bf16.mxu0 %v3008
        %3993 = vmatpush1.bf16.msra.mxu0 %v3007
        %3994 = vmatprep.subr.bf16.mxu0 %v3012
        %3995 = vmatpush1.bf16.msra.mxu0 %v3011
        %3996 = vmatprep.subr.bf16.mxu0 %v3016
        %3997 = vmatpush1.bf16.msra.mxu0 %v3015
        %3998 = vmatprep.mubr.bf16.mxu0 %v1782
        %3999 = vmatmul.mubr.bf16.gmra.mrb[0].mxu0 %v1781
        %v4000 = vpop.f32.mrb[0].mxu0
        %v4001 = vadd.f32 %v3888, %v4000
        %v4002 = vpop.f32.mrb[0].mxu0
        %v4003 = vadd.f32 %v3890, %v4002
        %v4004 = vpop.f32.mrb[0].mxu0
        %v4005 = vadd.f32 %v3892, %v4004
        %v4006 = vpop.f32.mrb[0].mxu0
        %v4007 = vadd.f32 %v3894, %v4006
        %4008 = vmatprep.mubr.bf16.mxu0 %v1790
        %4009 = vmatmul.mubr.bf16.gmra.mrb[0].mxu0 %v1789
        %v4010 = vpop.f32.mrb[0].mxu0
        %v4011 = vadd.f32 %v3898, %v4010
        %v4012 = vpop.f32.mrb[0].mxu0
        %v4013 = vadd.f32 %v3900, %v4012
        %v4014 = vpop.f32.mrb[0].mxu0
        %v4015 = vadd.f32 %v3902, %v4014
        %v4016 = vpop.f32.mrb[0].mxu0
        %v4017 = vadd.f32 %v3904, %v4016
        %4018 = vmatprep.mubr.bf16.mxu0 %v1798
        %4019 = vmatmul.mubr.bf16.gmra.mrb[0].mxu0 %v1797
        %v4020 = vpop.f32.mrb[0].mxu0
        %v4021 = vadd.f32 %v3908, %v4020
        %v4022 = vpop.f32.mrb[0].mxu0
        %v4023 = vadd.f32 %v3910, %v4022
        %v4024 = vpop.f32.mrb[0].mxu0
        %v4025 = vadd.f32 %v3912, %v4024
        %v4026 = vpop.f32.mrb[0].mxu0
        %v4027 = vadd.f32 %v3914, %v4026
        %4028 = vmatprep.mubr.bf16.mxu0 %v1806
        %4029 = vmatmul.mubr.bf16.gmra.mrb[0].mxu0 %v1805
        %v4030 = vpop.f32.mrb[0].mxu0
        %v4031 = vadd.f32 %v3918, %v4030
        %v4032 = vpop.f32.mrb[0].mxu0
        %v4033 = vadd.f32 %v3920, %v4032
        %v4034 = vpop.f32.mrb[0].mxu0
        %v4035 = vadd.f32 %v3922, %v4034
        %v4036 = vpop.f32.mrb[0].mxu0
        %v4037 = vadd.f32 %v3924, %v4036
        %4038 = vmatprep.mubr.bf16.mxu0 %v1814
        %4039 = vmatmul.mubr.bf16.gmra.mrb[0].mxu0 %v1813
        %v4040 = vpop.f32.mrb[0].mxu0
        %v4041 = vadd.f32 %v3928, %v4040
        %v4042 = vpop.f32.mrb[0].mxu0
        %v4043 = vadd.f32 %v3930, %v4042
        %v4044 = vpop.f32.mrb[0].mxu0
        %v4045 = vadd.f32 %v3932, %v4044
        %v4046 = vpop.f32.mrb[0].mxu0
        %v4047 = vadd.f32 %v3934, %v4046
        %4048 = vmatprep.mubr.bf16.mxu0 %v1822
        %4049 = vmatmul.mubr.bf16.gmra.mrb[0].mxu0 %v1821
        %v4050 = vpop.f32.mrb[0].mxu0
        %v4051 = vadd.f32 %v3938, %v4050
        %v4052 = vpop.f32.mrb[0].mxu0
        %v4053 = vadd.f32 %v3940, %v4052
        %v4054 = vpop.f32.mrb[0].mxu0
        %v4055 = vadd.f32 %v3942, %v4054
        %v4056 = vpop.f32.mrb[0].mxu0
        %v4057 = vadd.f32 %v3944, %v4056
        %4058 = vmatprep.mubr.bf16.mxu0 %v1830
        %4059 = vmatmul.mubr.bf16.gmra.mrb[0].mxu0 %v1829
        %v4060 = vpop.f32.mrb[0].mxu0
        %v4061 = vadd.f32 %v3948, %v4060
        %v4062 = vpop.f32.mrb[0].mxu0
        %v4063 = vadd.f32 %v3950, %v4062
        %v4064 = vpop.f32.mrb[0].mxu0
        %v4065 = vadd.f32 %v3952, %v4064
        %v4066 = vpop.f32.mrb[0].mxu0
        %v4067 = vadd.f32 %v3954, %v4066
        %4068 = vmatprep.mubr.bf16.mxu0 %v1838
        %4069 = vmatmul.mubr.bf16.gmra.mrb[0].mxu0 %v1837
        %v4070 = vpop.f32.mrb[0].mxu0
        %v4071 = vadd.f32 %v3958, %v4070
        %v4072 = vpop.f32.mrb[0].mxu0
        %v4073 = vadd.f32 %v3960, %v4072
        %v4074 = vpop.f32.mrb[0].mxu0
        %v4075 = vadd.f32 %v3962, %v4074
        %v4076 = vpop.f32.mrb[0].mxu0
        %v4077 = vadd.f32 %v3964, %v4076
        %4078 = vdwg.mxu0
        %4079 = vmatprep.subr.bf16.mxu0 %v3020
        %4080 = vmatpush1.bf16.msra.mxu0 %v3019
        %4081 = vmatprep.subr.bf16.mxu0 %v3024
        %4082 = vmatpush1.bf16.msra.mxu0 %v3023
        %4083 = vmatprep.subr.bf16.mxu0 %v3028
        %4084 = vmatpush1.bf16.msra.mxu0 %v3027
        %4085 = vmatprep.subr.bf16.mxu0 %v3032
        %4086 = vmatpush1.bf16.msra.mxu0 %v3031
        %4087 = vmatprep.subr.bf16.mxu0 %v3036
        %4088 = vmatpush1.bf16.msra.mxu0 %v3035
        %4089 = vmatprep.subr.bf16.mxu0 %v3040
        %4090 = vmatpush1.bf16.msra.mxu0 %v3039
        %4091 = vmatprep.subr.bf16.mxu0 %v3044
        %4092 = vmatpush1.bf16.msra.mxu0 %v3043
        %4093 = vmatprep.subr.bf16.mxu0 %v3048
        %4094 = vmatpush1.bf16.msra.mxu0 %v3047
        %4095 = vmatprep.subr.bf16.mxu0 %v3052
        %4096 = vmatpush1.bf16.msra.mxu0 %v3051
        %4097 = vmatprep.subr.bf16.mxu0 %v3056
        %4098 = vmatpush1.bf16.msra.mxu0 %v3055
        %4099 = vmatprep.subr.bf16.mxu0 %v3060
        %4100 = vmatpush1.bf16.msra.mxu0 %v3059
        %4101 = vmatprep.subr.bf16.mxu0 %v3064
        %4102 = vmatpush1.bf16.msra.mxu0 %v3063
        %4103 = vmatprep.subr.bf16.mxu0 %v3068
        %4104 = vmatpush1.bf16.msra.mxu0 %v3067
        %4105 = vmatprep.subr.bf16.mxu0 %v3072
        %4106 = vmatpush1.bf16.msra.mxu0 %v3071
        %4107 = vmatprep.subr.bf16.mxu0 %v3076
        %4108 = vmatpush1.bf16.msra.mxu0 %v3075
        %4109 = vmatprep.subr.bf16.mxu0 %v3080
        %4110 = vmatpush1.bf16.msra.mxu0 %v3079
        %4111 = vmatprep.mubr.bf16.mxu0 %v1784
        %4112 = vmatmul.mubr.bf16.gmra.mrb[0].mxu0 %v1783
        %v4113 = vpop.f32.mrb[0].mxu0
        %v4114 = vadd.f32 %v4001, %v4113
        %v4115 = vpop.f32.mrb[0].mxu0
        %v4116 = vadd.f32 %v4003, %v4115
        %v4117 = vpop.f32.mrb[0].mxu0
        %v4118 = vadd.f32 %v4005, %v4117
        %v4119 = vpop.f32.mrb[0].mxu0
        %v4120 = vadd.f32 %v4007, %v4119
        %4121 = vmatprep.mubr.bf16.mxu0 %v1792
        %4122 = vmatmul.mubr.bf16.gmra.mrb[0].mxu0 %v1791
        %v4123 = vpop.f32.mrb[0].mxu0
        %v4124 = vadd.f32 %v4011, %v4123
        %v4125 = vpop.f32.mrb[0].mxu0
        %v4126 = vadd.f32 %v4013, %v4125
        %v4127 = vpop.f32.mrb[0].mxu0
        %v4128 = vadd.f32 %v4015, %v4127
        %v4129 = vpop.f32.mrb[0].mxu0
        %v4130 = vadd.f32 %v4017, %v4129
        %4131 = vmatprep.mubr.bf16.mxu0 %v1800
        %4132 = vmatmul.mubr.bf16.gmra.mrb[0].mxu0 %v1799
        %v4133 = vpop.f32.mrb[0].mxu0
        %v4134 = vadd.f32 %v4021, %v4133
        %v4135 = vpop.f32.mrb[0].mxu0
        %v4136 = vadd.f32 %v4023, %v4135
        %v4137 = vpop.f32.mrb[0].mxu0
        %v4138 = vadd.f32 %v4025, %v4137
        %v4139 = vpop.f32.mrb[0].mxu0
        %v4140 = vadd.f32 %v4027, %v4139
        %4141 = vmatprep.mubr.bf16.mxu0 %v1808
        %4142 = vmatmul.mubr.bf16.gmra.mrb[0].mxu0 %v1807
        %v4143 = vpop.f32.mrb[0].mxu0
        %v4144 = vadd.f32 %v4031, %v4143
        %v4145 = vpop.f32.mrb[0].mxu0
        %v4146 = vadd.f32 %v4033, %v4145
        %v4147 = vpop.f32.mrb[0].mxu0
        %v4148 = vadd.f32 %v4035, %v4147
        %v4149 = vpop.f32.mrb[0].mxu0
        %v4150 = vadd.f32 %v4037, %v4149
        %4151 = vmatprep.mubr.bf16.mxu0 %v1816
        %4152 = vmatmul.mubr.bf16.gmra.mrb[0].mxu0 %v1815
        %v4153 = vpop.f32.mrb[0].mxu0
        %v4154 = vadd.f32 %v4041, %v4153
        %v4155 = vpop.f32.mrb[0].mxu0
        %v4156 = vadd.f32 %v4043, %v4155
        %v4157 = vpop.f32.mrb[0].mxu0
        %v4158 = vadd.f32 %v4045, %v4157
        %v4159 = vpop.f32.mrb[0].mxu0
        %v4160 = vadd.f32 %v4047, %v4159
        %4161 = vmatprep.mubr.bf16.mxu0 %v1824
        %4162 = vmatmul.mubr.bf16.gmra.mrb[0].mxu0 %v1823
        %v4163 = vpop.f32.mrb[0].mxu0
        %v4164 = vadd.f32 %v4051, %v4163
        %v4165 = vpop.f32.mrb[0].mxu0
        %v4166 = vadd.f32 %v4053, %v4165
        %v4167 = vpop.f32.mrb[0].mxu0
        %v4168 = vadd.f32 %v4055, %v4167
        %v4169 = vpop.f32.mrb[0].mxu0
        %v4170 = vadd.f32 %v4057, %v4169
        %4171 = vmatprep.mubr.bf16.mxu0 %v1832
        %4172 = vmatmul.mubr.bf16.gmra.mrb[0].mxu0 %v1831
        %v4173 = vpop.f32.mrb[0].mxu0
        %v4174 = vadd.f32 %v4061, %v4173
        %v4175 = vpop.f32.mrb[0].mxu0
        %v4176 = vadd.f32 %v4063, %v4175
        %v4177 = vpop.f32.mrb[0].mxu0
        %v4178 = vadd.f32 %v4065, %v4177
        %v4179 = vpop.f32.mrb[0].mxu0
        %v4180 = vadd.f32 %v4067, %v4179
        %4181 = vmatprep.mubr.bf16.mxu0 %v1840
        %4182 = vmatmul.mubr.bf16.gmra.mrb[0].mxu0 %v1839
        %v4183 = vpop.f32.mrb[0].mxu0
        %v4184 = vadd.f32 %v4071, %v4183
        %v4185 = vpop.f32.mrb[0].mxu0
        %v4186 = vadd.f32 %v4073, %v4185
        %v4187 = vpop.f32.mrb[0].mxu0
        %v4188 = vadd.f32 %v4075, %v4187
        %v4189 = vpop.f32.mrb[0].mxu0
        %v4190 = vadd.f32 %v4077, %v4189
        %4191 = vdwg.mxu0
        %4192 = vmatprep.subr.bf16.mxu0 %v3084
        %4193 = vmatpush1.bf16.msra.mxu0 %v3083
        %4194 = vmatprep.subr.bf16.mxu0 %v3088
        %4195 = vmatpush1.bf16.msra.mxu0 %v3087
        %4196 = vmatprep.subr.bf16.mxu0 %v3092
        %4197 = vmatpush1.bf16.msra.mxu0 %v3091
        %4198 = vmatprep.subr.bf16.mxu0 %v3096
        %4199 = vmatpush1.bf16.msra.mxu0 %v3095
        %4200 = vmatprep.subr.bf16.mxu0 %v3100
        %4201 = vmatpush1.bf16.msra.mxu0 %v3099
        %4202 = vmatprep.subr.bf16.mxu0 %v3104
        %4203 = vmatpush1.bf16.msra.mxu0 %v3103
        %4204 = vmatprep.subr.bf16.mxu0 %v3108
        %4205 = vmatpush1.bf16.msra.mxu0 %v3107
        %4206 = vmatprep.subr.bf16.mxu0 %v3112
        %4207 = vmatpush1.bf16.msra.mxu0 %v3111
        %4208 = vmatprep.subr.bf16.mxu0 %v3116
        %4209 = vmatpush1.bf16.msra.mxu0 %v3115
        %4210 = vmatprep.subr.bf16.mxu0 %v3120
        %4211 = vmatpush1.bf16.msra.mxu0 %v3119
        %4212 = vmatprep.subr.bf16.mxu0 %v3124
        %4213 = vmatpush1.bf16.msra.mxu0 %v3123
        %4214 = vmatprep.subr.bf16.mxu0 %v3128
        %4215 = vmatpush1.bf16.msra.mxu0 %v3127
        %4216 = vmatprep.subr.bf16.mxu0 %v3132
        %4217 = vmatpush1.bf16.msra.mxu0 %v3131
        %4218 = vmatprep.subr.bf16.mxu0 %v3136
        %4219 = vmatpush1.bf16.msra.mxu0 %v3135
        %4220 = vmatprep.subr.bf16.mxu0 %v3140
        %4221 = vmatpush1.bf16.msra.mxu0 %v3139
        %4222 = vmatprep.subr.bf16.mxu0 %v3144
        %4223 = vmatpush1.bf16.msra.mxu0 %v3143
        %4224 = vmatprep.mubr.bf16.mxu0 %v1786
        %4225 = vmatmul.mubr.bf16.gmra.mrb[0].mxu0 %v1785
        %v4226 = vpop.f32.mrb[0].mxu0
        %v4227 = vadd.f32 %v4114, %v4226
        %v4228 = vpop.f32.mrb[0].mxu0
        %v4229 = vadd.f32 %v4116, %v4228
        %v4230 = vpop.f32.mrb[0].mxu0
        %v4231 = vadd.f32 %v4118, %v4230
        %v4232 = vpop.f32.mrb[0].mxu0
        %v4233 = vadd.f32 %v4120, %v4232
        %4234 = vmatprep.mubr.bf16.mxu0 %v1794
        %4235 = vmatmul.mubr.bf16.gmra.mrb[0].mxu0 %v1793
        %v4236 = vpop.f32.mrb[0].mxu0
        %v4237 = vadd.f32 %v4124, %v4236
        %v4238 = vpop.f32.mrb[0].mxu0
        %v4239 = vadd.f32 %v4126, %v4238
        %v4240 = vpop.f32.mrb[0].mxu0
        %v4241 = vadd.f32 %v4128, %v4240
        %v4242 = vpop.f32.mrb[0].mxu0
        %v4243 = vadd.f32 %v4130, %v4242
        %4244 = vmatprep.mubr.bf16.mxu0 %v1802
        %4245 = vmatmul.mubr.bf16.gmra.mrb[0].mxu0 %v1801
        %v4246 = vpop.f32.mrb[0].mxu0
        %v4247 = vadd.f32 %v4134, %v4246
        %v4248 = vpop.f32.mrb[0].mxu0
        %v4249 = vadd.f32 %v4136, %v4248
        %v4250 = vpop.f32.mrb[0].mxu0
        %v4251 = vadd.f32 %v4138, %v4250
        %v4252 = vpop.f32.mrb[0].mxu0
        %v4253 = vadd.f32 %v4140, %v4252
        %4254 = vmatprep.mubr.bf16.mxu0 %v1810
        %4255 = vmatmul.mubr.bf16.gmra.mrb[0].mxu0 %v1809
        %v4256 = vpop.f32.mrb[0].mxu0
        %v4257 = vadd.f32 %v4144, %v4256
        %v4258 = vpop.f32.mrb[0].mxu0
        %v4259 = vadd.f32 %v4146, %v4258
        %v4260 = vpop.f32.mrb[0].mxu0
        %v4261 = vadd.f32 %v4148, %v4260
        %v4262 = vpop.f32.mrb[0].mxu0
        %v4263 = vadd.f32 %v4150, %v4262
        %4264 = vmatprep.mubr.bf16.mxu0 %v1818
        %4265 = vmatmul.mubr.bf16.gmra.mrb[0].mxu0 %v1817
        %v4266 = vpop.f32.mrb[0].mxu0
        %v4267 = vadd.f32 %v4154, %v4266
        %v4268 = vpop.f32.mrb[0].mxu0
        %v4269 = vadd.f32 %v4156, %v4268
        %v4270 = vpop.f32.mrb[0].mxu0
        %v4271 = vadd.f32 %v4158, %v4270
        %v4272 = vpop.f32.mrb[0].mxu0
        %v4273 = vadd.f32 %v4160, %v4272
        %4274 = vmatprep.mubr.bf16.mxu0 %v1826
        %4275 = vmatmul.mubr.bf16.gmra.mrb[0].mxu0 %v1825
        %v4276 = vpop.f32.mrb[0].mxu0
        %v4277 = vadd.f32 %v4164, %v4276
        %v4278 = vpop.f32.mrb[0].mxu0
        %v4279 = vadd.f32 %v4166, %v4278
        %v4280 = vpop.f32.mrb[0].mxu0
        %v4281 = vadd.f32 %v4168, %v4280
        %v4282 = vpop.f32.mrb[0].mxu0
        %v4283 = vadd.f32 %v4170, %v4282
        %4284 = vmatprep.mubr.bf16.mxu0 %v1834
        %4285 = vmatmul.mubr.bf16.gmra.mrb[0].mxu0 %v1833
        %v4286 = vpop.f32.mrb[0].mxu0
        %v4287 = vadd.f32 %v4174, %v4286
        %v4288 = vpop.f32.mrb[0].mxu0
        %v4289 = vadd.f32 %v4176, %v4288
        %v4290 = vpop.f32.mrb[0].mxu0
        %v4291 = vadd.f32 %v4178, %v4290
        %v4292 = vpop.f32.mrb[0].mxu0
        %v4293 = vadd.f32 %v4180, %v4292
        %4294 = vmatprep.mubr.bf16.mxu0 %v1842
        %4295 = vmatmul.mubr.bf16.gmra.mrb[0].mxu0 %v1841
        %v4296 = vpop.f32.mrb[0].mxu0
        %v4297 = vadd.f32 %v4184, %v4296
        %v4298 = vpop.f32.mrb[0].mxu0
        %v4299 = vadd.f32 %v4186, %v4298
        %v4300 = vpop.f32.mrb[0].mxu0
        %v4301 = vadd.f32 %v4188, %v4300
        %v4302 = vpop.f32.mrb[0].mxu0
        %v4303 = vadd.f32 %v4190, %v4302
        %4304 = vdwg.mxu0
        %v4305 = vmax.f32 %v3775, 0.0
        %v4306 = vmax.f32 %v3777, 0.0
        %v4307 = vmax.f32 %v4227, 0.0
        %v4308 = vmax.f32 %v4229, 0.0
        %v4309 = vmax.f32 %v3779, 0.0
        %v4310 = vmax.f32 %v3781, 0.0
        %v4311 = vmax.f32 %v4231, 0.0
        %v4312 = vmax.f32 %v4233, 0.0
        %v4313 = vmax.f32 %v3785, 0.0
        %v4314 = vmax.f32 %v3787, 0.0
        %v4315 = vmax.f32 %v4237, 0.0
        %v4316 = vmax.f32 %v4239, 0.0
        %v4317 = vmax.f32 %v3789, 0.0
        %v4318 = vmax.f32 %v3791, 0.0
        %v4319 = vmax.f32 %v4241, 0.0
        %v4320 = vmax.f32 %v4243, 0.0
        %v4321 = vmax.f32 %v3795, 0.0
        %v4322 = vmax.f32 %v3797, 0.0
        %v4323 = vmax.f32 %v4247, 0.0
        %v4324 = vmax.f32 %v4249, 0.0
        %v4325 = vmax.f32 %v3799, 0.0
        %v4326 = vmax.f32 %v3801, 0.0
        %v4327 = vmax.f32 %v4251, 0.0
        %v4328 = vmax.f32 %v4253, 0.0
        %v4329 = vmax.f32 %v3805, 0.0
        %v4330 = vmax.f32 %v3807, 0.0
        %v4331 = vmax.f32 %v4257, 0.0
        %v4332 = vmax.f32 %v4259, 0.0
        %v4333 = vmax.f32 %v3809, 0.0
        %v4334 = vmax.f32 %v3811, 0.0
        %v4335 = vmax.f32 %v4261, 0.0
        %v4336 = vmax.f32 %v4263, 0.0
        %v4337 = vmax.f32 %v3815, 0.0
        %v4338 = vmax.f32 %v3817, 0.0
        %v4339 = vmax.f32 %v4267, 0.0
        %v4340 = vmax.f32 %v4269, 0.0
        %v4341 = vmax.f32 %v3819, 0.0
        %v4342 = vmax.f32 %v3821, 0.0
        %v4343 = vmax.f32 %v4271, 0.0
        %v4344 = vmax.f32 %v4273, 0.0
        %v4345 = vmax.f32 %v3825, 0.0
        %v4346 = vmax.f32 %v3827, 0.0
        %v4347 = vmax.f32 %v4277, 0.0
        %v4348 = vmax.f32 %v4279, 0.0
        %v4349 = vmax.f32 %v3829, 0.0
        %v4350 = vmax.f32 %v3831, 0.0
        %v4351 = vmax.f32 %v4281, 0.0
        %v4352 = vmax.f32 %v4283, 0.0
        %v4353 = vmax.f32 %v3835, 0.0
        %v4354 = vmax.f32 %v3837, 0.0
        %v4355 = vmax.f32 %v4287, 0.0
        %v4356 = vmax.f32 %v4289, 0.0
        %v4357 = vmax.f32 %v3839, 0.0
        %v4358 = vmax.f32 %v3841, 0.0
        %v4359 = vmax.f32 %v4291, 0.0
        %v4360 = vmax.f32 %v4293, 0.0
        %v4361 = vmax.f32 %v3845, 0.0
        %v4362 = vmax.f32 %v3847, 0.0
        %v4363 = vmax.f32 %v4297, 0.0
        %v4364 = vmax.f32 %v4299, 0.0
        %v4365 = vmax.f32 %v3849, 0.0
        %v4366 = vmax.f32 %v3851, 0.0
        %v4367 = vmax.f32 %v4301, 0.0
        %v4368 = vmax.f32 %v4303, 0.0
        %4369 = vst [vmem:[#allocation3] sm:$0xff] %v4305
        %4370 = vst [vmem:[#allocation3 + $0x8] sm:$0xff] %v4306
        %4371 = vst [vmem:[#allocation3 + $0x10] sm:$0xff] %v4307
        %4372 = vst [vmem:[#allocation3 + $0x18] sm:$0xff] %v4308
        %4373 = vst [vmem:[#allocation3 + $0x20] sm:$0xff] %v4309
        %4374 = vst [vmem:[#allocation3 + $0x28] sm:$0xff] %v4310
        %4375 = vst [vmem:[#allocation3 + $0x30] sm:$0xff] %v4311
        %4376 = vst [vmem:[#allocation3 + $0x38] sm:$0xff] %v4312
        %4377 = vst [vmem:[#allocation3 + $0x40] sm:$0xff] %v4313
        %4378 = vst [vmem:[#allocation3 + $0x48] sm:$0xff] %v4314
        %4379 = vst [vmem:[#allocation3 + $0x50] sm:$0xff] %v4315
        %4380 = vst [vmem:[#allocation3 + $0x58] sm:$0xff] %v4316
        %4381 = vst [vmem:[#allocation3 + $0x60] sm:$0xff] %v4317
        %4382 = vst [vmem:[#allocation3 + $0x68] sm:$0xff] %v4318
        %4383 = vst [vmem:[#allocation3 + $0x70] sm:$0xff] %v4319
        %4384 = vst [vmem:[#allocation3 + $0x78] sm:$0xff] %v4320
        %4385 = vst [vmem:[#allocation3 + $0x80] sm:$0xff] %v4321
        %4386 = vst [vmem:[#allocation3 + $0x88] sm:$0xff] %v4322
        %4387 = vst [vmem:[#allocation3 + $0x90] sm:$0xff] %v4323
        %4388 = vst [vmem:[#allocation3 + $0x98] sm:$0xff] %v4324
        %4389 = vst [vmem:[#allocation3 + $0xa0] sm:$0xff] %v4325
        %4390 = vst [vmem:[#allocation3 + $0xa8] sm:$0xff] %v4326
        %4391 = vst [vmem:[#allocation3 + $0xb0] sm:$0xff] %v4327
        %4392 = vst [vmem:[#allocation3 + $0xb8] sm:$0xff] %v4328
        %4393 = vst [vmem:[#allocation3 + $0xc0] sm:$0xff] %v4329
        %4394 = vst [vmem:[#allocation3 + $0xc8] sm:$0xff] %v4330
        %4395 = vst [vmem:[#allocation3 + $0xd0] sm:$0xff] %v4331
        %4396 = vst [vmem:[#allocation3 + $0xd8] sm:$0xff] %v4332
        %4397 = vst [vmem:[#allocation3 + $0xe0] sm:$0xff] %v4333
        %4398 = vst [vmem:[#allocation3 + $0xe8] sm:$0xff] %v4334
        %4399 = vst [vmem:[#allocation3 + $0xf0] sm:$0xff] %v4335
        %4400 = vst [vmem:[#allocation3 + $0xf8] sm:$0xff] %v4336
        %4401 = vst [vmem:[#allocation3 + $0x100] sm:$0xff] %v4337
        %4402 = vst [vmem:[#allocation3 + $0x108] sm:$0xff] %v4338
        %4403 = vst [vmem:[#allocation3 + $0x110] sm:$0xff] %v4339
        %4404 = vst [vmem:[#allocation3 + $0x118] sm:$0xff] %v4340
        %4405 = vst [vmem:[#allocation3 + $0x120] sm:$0xff] %v4341
        %4406 = vst [vmem:[#allocation3 + $0x128] sm:$0xff] %v4342
        %4407 = vst [vmem:[#allocation3 + $0x130] sm:$0xff] %v4343
        %4408 = vst [vmem:[#allocation3 + $0x138] sm:$0xff] %v4344
        %4409 = vst [vmem:[#allocation3 + $0x140] sm:$0xff] %v4345
        %4410 = vst [vmem:[#allocation3 + $0x148] sm:$0xff] %v4346
        %4411 = vst [vmem:[#allocation3 + $0x150] sm:$0xff] %v4347
        %4412 = vst [vmem:[#allocation3 + $0x158] sm:$0xff] %v4348
        %4413 = vst [vmem:[#allocation3 + $0x160] sm:$0xff] %v4349
        %4414 = vst [vmem:[#allocation3 + $0x168] sm:$0xff] %v4350
        %4415 = vst [vmem:[#allocation3 + $0x170] sm:$0xff] %v4351
        %4416 = vst [vmem:[#allocation3 + $0x178] sm:$0xff] %v4352
        %4417 = vst [vmem:[#allocation3 + $0x180] sm:$0xff] %v4353
        %4418 = vst [vmem:[#allocation3 + $0x188] sm:$0xff] %v4354
        %4419 = vst [vmem:[#allocation3 + $0x190] sm:$0xff] %v4355
        %4420 = vst [vmem:[#allocation3 + $0x198] sm:$0xff] %v4356
        %4421 = vst [vmem:[#allocation3 + $0x1a0] sm:$0xff] %v4357
        %4422 = vst [vmem:[#allocation3 + $0x1a8] sm:$0xff] %v4358
        %4423 = vst [vmem:[#allocation3 + $0x1b0] sm:$0xff] %v4359
        %4424 = vst [vmem:[#allocation3 + $0x1b8] sm:$0xff] %v4360
        %4425 = vst [vmem:[#allocation3 + $0x1c0] sm:$0xff] %v4361
        %4426 = vst [vmem:[#allocation3 + $0x1c8] sm:$0xff] %v4362
        %4427 = vst [vmem:[#allocation3 + $0x1d0] sm:$0xff] %v4363
        %4428 = vst [vmem:[#allocation3 + $0x1d8] sm:$0xff] %v4364
        %4429 = vst [vmem:[#allocation3 + $0x1e0] sm:$0xff] %v4365
        %4430 = vst [vmem:[#allocation3 + $0x1e8] sm:$0xff] %v4366
        %4431 = vst [vmem:[#allocation3 + $0x1f0] sm:$0xff] %v4367
        %4432 = vst [vmem:[#allocation3 + $0x1f8] sm:$0xff] %v4368
        %v4433 = vld [vmem:[#allocation3] sm:$0xff]
        %v4434 = vld [vmem:[#allocation3 + $0x8] sm:$0xff]
        %v4435 = vld [vmem:[#allocation3 + $0x10] sm:$0xff]
        %v4436 = vld [vmem:[#allocation3 + $0x18] sm:$0xff]
        %v4437 = vld [vmem:[#allocation3 + $0x20] sm:$0xff]
        %v4438 = vld [vmem:[#allocation3 + $0x28] sm:$0xff]
        %v4439 = vld [vmem:[#allocation3 + $0x30] sm:$0xff]
        %v4440 = vld [vmem:[#allocation3 + $0x38] sm:$0xff]
        %v4441 = vld [vmem:[#allocation3 + $0x40] sm:$0xff]
        %v4442 = vld [vmem:[#allocation3 + $0x48] sm:$0xff]
        %v4443 = vld [vmem:[#allocation3 + $0x50] sm:$0xff]
        %v4444 = vld [vmem:[#allocation3 + $0x58] sm:$0xff]
        %v4445 = vld [vmem:[#allocation3 + $0x60] sm:$0xff]
        %v4446 = vld [vmem:[#allocation3 + $0x68] sm:$0xff]
        %v4447 = vld [vmem:[#allocation3 + $0x70] sm:$0xff]
        %v4448 = vld [vmem:[#allocation3 + $0x78] sm:$0xff]
        %v4449 = vld [vmem:[#allocation3 + $0x80] sm:$0xff]
        %v4450 = vld [vmem:[#allocation3 + $0x88] sm:$0xff]
        %v4451 = vld [vmem:[#allocation3 + $0x90] sm:$0xff]
        %v4452 = vld [vmem:[#allocation3 + $0x98] sm:$0xff]
        %v4453 = vld [vmem:[#allocation3 + $0xa0] sm:$0xff]
        %v4454 = vld [vmem:[#allocation3 + $0xa8] sm:$0xff]
        %v4455 = vld [vmem:[#allocation3 + $0xb0] sm:$0xff]
        %v4456 = vld [vmem:[#allocation3 + $0xb8] sm:$0xff]
        %v4457 = vld [vmem:[#allocation3 + $0xc0] sm:$0xff]
        %v4458 = vld [vmem:[#allocation3 + $0xc8] sm:$0xff]
        %v4459 = vld [vmem:[#allocation3 + $0xd0] sm:$0xff]
        %v4460 = vld [vmem:[#allocation3 + $0xd8] sm:$0xff]
        %v4461 = vld [vmem:[#allocation3 + $0xe0] sm:$0xff]
        %v4462 = vld [vmem:[#allocation3 + $0xe8] sm:$0xff]
        %v4463 = vld [vmem:[#allocation3 + $0xf0] sm:$0xff]
        %v4464 = vld [vmem:[#allocation3 + $0xf8] sm:$0xff]
        %v4465 = vld [vmem:[#allocation3 + $0x100] sm:$0xff]
        %v4466 = vld [vmem:[#allocation3 + $0x108] sm:$0xff]
        %v4467 = vld [vmem:[#allocation3 + $0x110] sm:$0xff]
        %v4468 = vld [vmem:[#allocation3 + $0x118] sm:$0xff]
        %v4469 = vld [vmem:[#allocation3 + $0x120] sm:$0xff]
        %v4470 = vld [vmem:[#allocation3 + $0x128] sm:$0xff]
        %v4471 = vld [vmem:[#allocation3 + $0x130] sm:$0xff]
        %v4472 = vld [vmem:[#allocation3 + $0x138] sm:$0xff]
        %v4473 = vld [vmem:[#allocation3 + $0x140] sm:$0xff]
        %v4474 = vld [vmem:[#allocation3 + $0x148] sm:$0xff]
        %v4475 = vld [vmem:[#allocation3 + $0x150] sm:$0xff]
        %v4476 = vld [vmem:[#allocation3 + $0x158] sm:$0xff]
        %v4477 = vld [vmem:[#allocation3 + $0x160] sm:$0xff]
        %v4478 = vld [vmem:[#allocation3 + $0x168] sm:$0xff]
        %v4479 = vld [vmem:[#allocation3 + $0x170] sm:$0xff]
        %v4480 = vld [vmem:[#allocation3 + $0x178] sm:$0xff]
        %v4481 = vld [vmem:[#allocation3 + $0x180] sm:$0xff]
        %v4482 = vld [vmem:[#allocation3 + $0x188] sm:$0xff]
        %v4483 = vld [vmem:[#allocation3 + $0x190] sm:$0xff]
        %v4484 = vld [vmem:[#allocation3 + $0x198] sm:$0xff]
        %v4485 = vld [vmem:[#allocation3 + $0x1a0] sm:$0xff]
        %v4486 = vld [vmem:[#allocation3 + $0x1a8] sm:$0xff]
        %v4487 = vld [vmem:[#allocation3 + $0x1b0] sm:$0xff]
        %v4488 = vld [vmem:[#allocation3 + $0x1b8] sm:$0xff]
        %v4489 = vld [vmem:[#allocation3 + $0x1c0] sm:$0xff]
        %v4490 = vld [vmem:[#allocation3 + $0x1c8] sm:$0xff]
        %v4491 = vld [vmem:[#allocation3 + $0x1d0] sm:$0xff]
        %v4492 = vld [vmem:[#allocation3 + $0x1d8] sm:$0xff]
        %v4493 = vld [vmem:[#allocation3 + $0x1e0] sm:$0xff]
        %v4494 = vld [vmem:[#allocation3 + $0x1e8] sm:$0xff]
        %v4495 = vld [vmem:[#allocation3 + $0x1f0] sm:$0xff]
        %v4496 = vld [vmem:[#allocation3 + $0x1f8] sm:$0xff]
        %v4497 = vpack.c.bf16 %v4437, %v4433
        %v4498 = vpack.c.bf16 %v4438, %v4434
        %v4499 = vpack.c.bf16 %v4439, %v4435
        %v4500 = vpack.c.bf16 %v4440, %v4436
        %v4501 = vpack.c.bf16 %v4445, %v4441
        %v4502 = vpack.c.bf16 %v4446, %v4442
        %v4503 = vpack.c.bf16 %v4447, %v4443
        %v4504 = vpack.c.bf16 %v4448, %v4444
        %v4505 = vpack.c.bf16 %v4453, %v4449
        %v4506 = vpack.c.bf16 %v4454, %v4450
        %v4507 = vpack.c.bf16 %v4455, %v4451
        %v4508 = vpack.c.bf16 %v4456, %v4452
        %v4509 = vpack.c.bf16 %v4461, %v4457
        %v4510 = vpack.c.bf16 %v4462, %v4458
        %v4511 = vpack.c.bf16 %v4463, %v4459
        %v4512 = vpack.c.bf16 %v4464, %v4460
        %v4513 = vpack.c.bf16 %v4469, %v4465
        %v4514 = vpack.c.bf16 %v4470, %v4466
        %v4515 = vpack.c.bf16 %v4471, %v4467
        %v4516 = vpack.c.bf16 %v4472, %v4468
        %v4517 = vpack.c.bf16 %v4477, %v4473
        %v4518 = vpack.c.bf16 %v4478, %v4474
        %v4519 = vpack.c.bf16 %v4479, %v4475
        %v4520 = vpack.c.bf16 %v4480, %v4476
        %v4521 = vpack.c.bf16 %v4485, %v4481
        %v4522 = vpack.c.bf16 %v4486, %v4482
        %v4523 = vpack.c.bf16 %v4487, %v4483
        %v4524 = vpack.c.bf16 %v4488, %v4484
        %v4525 = vpack.c.bf16 %v4493, %v4489
        %v4526 = vpack.c.bf16 %v4494, %v4490
        %v4527 = vpack.c.bf16 %v4495, %v4491
        %v4528 = vpack.c.bf16 %v4496, %v4492
        %v4529 = vld [vmem:[#allocation12] sm:$0xff]
        %v4530 = vld [vmem:[#allocation12 + $0x8] sm:$0xff]
        %v4531 = vld [vmem:[#allocation12 + $0x10] sm:$0xff]
        %v4532 = vld [vmem:[#allocation12 + $0x18] sm:$0xff]
        %v4533 = vld [vmem:[#allocation12 + $0x20] sm:$0xff]
        %v4534 = vld [vmem:[#allocation12 + $0x28] sm:$0xff]
        %v4535 = vld [vmem:[#allocation12 + $0x30] sm:$0xff]
        %v4536 = vld [vmem:[#allocation12 + $0x38] sm:$0xff]
        %v4537 = vld [vmem:[#allocation12 + $0x40] sm:$0xff]
        %v4538 = vld [vmem:[#allocation12 + $0x48] sm:$0xff]
        %v4539 = vld [vmem:[#allocation12 + $0x50] sm:$0xff]
        %v4540 = vld [vmem:[#allocation12 + $0x58] sm:$0xff]
        %v4541 = vld [vmem:[#allocation12 + $0x60] sm:$0xff]
        %v4542 = vld [vmem:[#allocation12 + $0x68] sm:$0xff]
        %v4543 = vld [vmem:[#allocation12 + $0x70] sm:$0xff]
        %v4544 = vld [vmem:[#allocation12 + $0x78] sm:$0xff]
        %v4545 = vld [vmem:[#allocation12 + $0x80] sm:$0xff]
        %v4546 = vld [vmem:[#allocation12 + $0x88] sm:$0xff]
        %v4547 = vld [vmem:[#allocation12 + $0x90] sm:$0xff]
        %v4548 = vld [vmem:[#allocation12 + $0x98] sm:$0xff]
        %v4549 = vld [vmem:[#allocation12 + $0xa0] sm:$0xff]
        %v4550 = vld [vmem:[#allocation12 + $0xa8] sm:$0xff]
        %v4551 = vld [vmem:[#allocation12 + $0xb0] sm:$0xff]
        %v4552 = vld [vmem:[#allocation12 + $0xb8] sm:$0xff]
        %v4553 = vld [vmem:[#allocation12 + $0xc0] sm:$0xff]
        %v4554 = vld [vmem:[#allocation12 + $0xc8] sm:$0xff]
        %v4555 = vld [vmem:[#allocation12 + $0xd0] sm:$0xff]
        %v4556 = vld [vmem:[#allocation12 + $0xd8] sm:$0xff]
        %v4557 = vld [vmem:[#allocation12 + $0xe0] sm:$0xff]
        %v4558 = vld [vmem:[#allocation12 + $0xe8] sm:$0xff]
        %v4559 = vld [vmem:[#allocation12 + $0xf0] sm:$0xff]
        %v4560 = vld [vmem:[#allocation12 + $0xf8] sm:$0xff]
        %v4561 = vld [vmem:[#allocation12 + $0x100] sm:$0xff]
        %v4562 = vld [vmem:[#allocation12 + $0x108] sm:$0xff]
        %v4563 = vld [vmem:[#allocation12 + $0x110] sm:$0xff]
        %v4564 = vld [vmem:[#allocation12 + $0x118] sm:$0xff]
        %v4565 = vld [vmem:[#allocation12 + $0x120] sm:$0xff]
        %v4566 = vld [vmem:[#allocation12 + $0x128] sm:$0xff]
        %v4567 = vld [vmem:[#allocation12 + $0x130] sm:$0xff]
        %v4568 = vld [vmem:[#allocation12 + $0x138] sm:$0xff]
        %v4569 = vld [vmem:[#allocation12 + $0x140] sm:$0xff]
        %v4570 = vld [vmem:[#allocation12 + $0x148] sm:$0xff]
        %v4571 = vld [vmem:[#allocation12 + $0x150] sm:$0xff]
        %v4572 = vld [vmem:[#allocation12 + $0x158] sm:$0xff]
        %v4573 = vld [vmem:[#allocation12 + $0x160] sm:$0xff]
        %v4574 = vld [vmem:[#allocation12 + $0x168] sm:$0xff]
        %v4575 = vld [vmem:[#allocation12 + $0x170] sm:$0xff]
        %v4576 = vld [vmem:[#allocation12 + $0x178] sm:$0xff]
        %v4577 = vld [vmem:[#allocation12 + $0x180] sm:$0xff]
        %v4578 = vld [vmem:[#allocation12 + $0x188] sm:$0xff]
        %v4579 = vld [vmem:[#allocation12 + $0x190] sm:$0xff]
        %v4580 = vld [vmem:[#allocation12 + $0x198] sm:$0xff]
        %v4581 = vld [vmem:[#allocation12 + $0x1a0] sm:$0xff]
        %v4582 = vld [vmem:[#allocation12 + $0x1a8] sm:$0xff]
        %v4583 = vld [vmem:[#allocation12 + $0x1b0] sm:$0xff]
        %v4584 = vld [vmem:[#allocation12 + $0x1b8] sm:$0xff]
        %v4585 = vld [vmem:[#allocation12 + $0x1c0] sm:$0xff]
        %v4586 = vld [vmem:[#allocation12 + $0x1c8] sm:$0xff]
        %v4587 = vld [vmem:[#allocation12 + $0x1d0] sm:$0xff]
        %v4588 = vld [vmem:[#allocation12 + $0x1d8] sm:$0xff]
        %v4589 = vld [vmem:[#allocation12 + $0x1e0] sm:$0xff]
        %v4590 = vld [vmem:[#allocation12 + $0x1e8] sm:$0xff]
        %v4591 = vld [vmem:[#allocation12 + $0x1f0] sm:$0xff]
        %v4592 = vld [vmem:[#allocation12 + $0x1f8] sm:$0xff]
        %v4593 = vld [vmem:[#allocation12 + $0x200] sm:$0xff]
        %v4594 = vld [vmem:[#allocation12 + $0x208] sm:$0xff]
        %v4595 = vld [vmem:[#allocation12 + $0x210] sm:$0xff]
        %v4596 = vld [vmem:[#allocation12 + $0x218] sm:$0xff]
        %v4597 = vld [vmem:[#allocation12 + $0x220] sm:$0xff]
        %v4598 = vld [vmem:[#allocation12 + $0x228] sm:$0xff]
        %v4599 = vld [vmem:[#allocation12 + $0x230] sm:$0xff]
        %v4600 = vld [vmem:[#allocation12 + $0x238] sm:$0xff]
        %v4601 = vld [vmem:[#allocation12 + $0x240] sm:$0xff]
        %v4602 = vld [vmem:[#allocation12 + $0x248] sm:$0xff]
        %v4603 = vld [vmem:[#allocation12 + $0x250] sm:$0xff]
        %v4604 = vld [vmem:[#allocation12 + $0x258] sm:$0xff]
        %v4605 = vld [vmem:[#allocation12 + $0x260] sm:$0xff]
        %v4606 = vld [vmem:[#allocation12 + $0x268] sm:$0xff]
        %v4607 = vld [vmem:[#allocation12 + $0x270] sm:$0xff]
        %v4608 = vld [vmem:[#allocation12 + $0x278] sm:$0xff]
        %v4609 = vld [vmem:[#allocation12 + $0x280] sm:$0xff]
        %v4610 = vld [vmem:[#allocation12 + $0x288] sm:$0xff]
        %v4611 = vld [vmem:[#allocation12 + $0x290] sm:$0xff]
        %v4612 = vld [vmem:[#allocation12 + $0x298] sm:$0xff]
        %v4613 = vld [vmem:[#allocation12 + $0x2a0] sm:$0xff]
        %v4614 = vld [vmem:[#allocation12 + $0x2a8] sm:$0xff]
        %v4615 = vld [vmem:[#allocation12 + $0x2b0] sm:$0xff]
        %v4616 = vld [vmem:[#allocation12 + $0x2b8] sm:$0xff]
        %v4617 = vld [vmem:[#allocation12 + $0x2c0] sm:$0xff]
        %v4618 = vld [vmem:[#allocation12 + $0x2c8] sm:$0xff]
        %v4619 = vld [vmem:[#allocation12 + $0x2d0] sm:$0xff]
        %v4620 = vld [vmem:[#allocation12 + $0x2d8] sm:$0xff]
        %v4621 = vld [vmem:[#allocation12 + $0x2e0] sm:$0xff]
        %v4622 = vld [vmem:[#allocation12 + $0x2e8] sm:$0xff]
        %v4623 = vld [vmem:[#allocation12 + $0x2f0] sm:$0xff]
        %v4624 = vld [vmem:[#allocation12 + $0x2f8] sm:$0xff]
        %v4625 = vld [vmem:[#allocation12 + $0x300] sm:$0xff]
        %v4626 = vld [vmem:[#allocation12 + $0x308] sm:$0xff]
        %v4627 = vld [vmem:[#allocation12 + $0x310] sm:$0xff]
        %v4628 = vld [vmem:[#allocation12 + $0x318] sm:$0xff]
        %v4629 = vld [vmem:[#allocation12 + $0x320] sm:$0xff]
        %v4630 = vld [vmem:[#allocation12 + $0x328] sm:$0xff]
        %v4631 = vld [vmem:[#allocation12 + $0x330] sm:$0xff]
        %v4632 = vld [vmem:[#allocation12 + $0x338] sm:$0xff]
        %v4633 = vld [vmem:[#allocation12 + $0x340] sm:$0xff]
        %v4634 = vld [vmem:[#allocation12 + $0x348] sm:$0xff]
        %v4635 = vld [vmem:[#allocation12 + $0x350] sm:$0xff]
        %v4636 = vld [vmem:[#allocation12 + $0x358] sm:$0xff]
        %v4637 = vld [vmem:[#allocation12 + $0x360] sm:$0xff]
        %v4638 = vld [vmem:[#allocation12 + $0x368] sm:$0xff]
        %v4639 = vld [vmem:[#allocation12 + $0x370] sm:$0xff]
        %v4640 = vld [vmem:[#allocation12 + $0x378] sm:$0xff]
        %v4641 = vld [vmem:[#allocation12 + $0x380] sm:$0xff]
        %v4642 = vld [vmem:[#allocation12 + $0x388] sm:$0xff]
        %v4643 = vld [vmem:[#allocation12 + $0x390] sm:$0xff]
        %v4644 = vld [vmem:[#allocation12 + $0x398] sm:$0xff]
        %v4645 = vld [vmem:[#allocation12 + $0x3a0] sm:$0xff]
        %v4646 = vld [vmem:[#allocation12 + $0x3a8] sm:$0xff]
        %v4647 = vld [vmem:[#allocation12 + $0x3b0] sm:$0xff]
        %v4648 = vld [vmem:[#allocation12 + $0x3b8] sm:$0xff]
        %v4649 = vld [vmem:[#allocation12 + $0x3c0] sm:$0xff]
        %v4650 = vld [vmem:[#allocation12 + $0x3c8] sm:$0xff]
        %v4651 = vld [vmem:[#allocation12 + $0x3d0] sm:$0xff]
        %v4652 = vld [vmem:[#allocation12 + $0x3d8] sm:$0xff]
        %v4653 = vld [vmem:[#allocation12 + $0x3e0] sm:$0xff]
        %v4654 = vld [vmem:[#allocation12 + $0x3e8] sm:$0xff]
        %v4655 = vld [vmem:[#allocation12 + $0x3f0] sm:$0xff]
        %v4656 = vld [vmem:[#allocation12 + $0x3f8] sm:$0xff]
        %v4657 = vld [vmem:[#allocation12 + $0x400] sm:$0xff]
        %v4658 = vld [vmem:[#allocation12 + $0x408] sm:$0xff]
        %v4659 = vld [vmem:[#allocation12 + $0x410] sm:$0xff]
        %v4660 = vld [vmem:[#allocation12 + $0x418] sm:$0xff]
        %v4661 = vld [vmem:[#allocation12 + $0x420] sm:$0xff]
        %v4662 = vld [vmem:[#allocation12 + $0x428] sm:$0xff]
        %v4663 = vld [vmem:[#allocation12 + $0x430] sm:$0xff]
        %v4664 = vld [vmem:[#allocation12 + $0x438] sm:$0xff]
        %v4665 = vld [vmem:[#allocation12 + $0x440] sm:$0xff]
        %v4666 = vld [vmem:[#allocation12 + $0x448] sm:$0xff]
        %v4667 = vld [vmem:[#allocation12 + $0x450] sm:$0xff]
        %v4668 = vld [vmem:[#allocation12 + $0x458] sm:$0xff]
        %v4669 = vld [vmem:[#allocation12 + $0x460] sm:$0xff]
        %v4670 = vld [vmem:[#allocation12 + $0x468] sm:$0xff]
        %v4671 = vld [vmem:[#allocation12 + $0x470] sm:$0xff]
        %v4672 = vld [vmem:[#allocation12 + $0x478] sm:$0xff]
        %v4673 = vld [vmem:[#allocation12 + $0x480] sm:$0xff]
        %v4674 = vld [vmem:[#allocation12 + $0x488] sm:$0xff]
        %v4675 = vld [vmem:[#allocation12 + $0x490] sm:$0xff]
        %v4676 = vld [vmem:[#allocation12 + $0x498] sm:$0xff]
        %v4677 = vld [vmem:[#allocation12 + $0x4a0] sm:$0xff]
        %v4678 = vld [vmem:[#allocation12 + $0x4a8] sm:$0xff]
        %v4679 = vld [vmem:[#allocation12 + $0x4b0] sm:$0xff]
        %v4680 = vld [vmem:[#allocation12 + $0x4b8] sm:$0xff]
        %v4681 = vld [vmem:[#allocation12 + $0x4c0] sm:$0xff]
        %v4682 = vld [vmem:[#allocation12 + $0x4c8] sm:$0xff]
        %v4683 = vld [vmem:[#allocation12 + $0x4d0] sm:$0xff]
        %v4684 = vld [vmem:[#allocation12 + $0x4d8] sm:$0xff]
        %v4685 = vld [vmem:[#allocation12 + $0x4e0] sm:$0xff]
        %v4686 = vld [vmem:[#allocation12 + $0x4e8] sm:$0xff]
        %v4687 = vld [vmem:[#allocation12 + $0x4f0] sm:$0xff]
        %v4688 = vld [vmem:[#allocation12 + $0x4f8] sm:$0xff]
        %v4689 = vld [vmem:[#allocation12 + $0x500] sm:$0xff]
        %v4690 = vld [vmem:[#allocation12 + $0x508] sm:$0xff]
        %v4691 = vld [vmem:[#allocation12 + $0x510] sm:$0xff]
        %v4692 = vld [vmem:[#allocation12 + $0x518] sm:$0xff]
        %v4693 = vld [vmem:[#allocation12 + $0x520] sm:$0xff]
        %v4694 = vld [vmem:[#allocation12 + $0x528] sm:$0xff]
        %v4695 = vld [vmem:[#allocation12 + $0x530] sm:$0xff]
        %v4696 = vld [vmem:[#allocation12 + $0x538] sm:$0xff]
        %v4697 = vld [vmem:[#allocation12 + $0x540] sm:$0xff]
        %v4698 = vld [vmem:[#allocation12 + $0x548] sm:$0xff]
        %v4699 = vld [vmem:[#allocation12 + $0x550] sm:$0xff]
        %v4700 = vld [vmem:[#allocation12 + $0x558] sm:$0xff]
        %v4701 = vld [vmem:[#allocation12 + $0x560] sm:$0xff]
        %v4702 = vld [vmem:[#allocation12 + $0x568] sm:$0xff]
        %v4703 = vld [vmem:[#allocation12 + $0x570] sm:$0xff]
        %v4704 = vld [vmem:[#allocation12 + $0x578] sm:$0xff]
        %v4705 = vld [vmem:[#allocation12 + $0x580] sm:$0xff]
        %v4706 = vld [vmem:[#allocation12 + $0x588] sm:$0xff]
        %v4707 = vld [vmem:[#allocation12 + $0x590] sm:$0xff]
        %v4708 = vld [vmem:[#allocation12 + $0x598] sm:$0xff]
        %v4709 = vld [vmem:[#allocation12 + $0x5a0] sm:$0xff]
        %v4710 = vld [vmem:[#allocation12 + $0x5a8] sm:$0xff]
        %v4711 = vld [vmem:[#allocation12 + $0x5b0] sm:$0xff]
        %v4712 = vld [vmem:[#allocation12 + $0x5b8] sm:$0xff]
        %v4713 = vld [vmem:[#allocation12 + $0x5c0] sm:$0xff]
        %v4714 = vld [vmem:[#allocation12 + $0x5c8] sm:$0xff]
        %v4715 = vld [vmem:[#allocation12 + $0x5d0] sm:$0xff]
        %v4716 = vld [vmem:[#allocation12 + $0x5d8] sm:$0xff]
        %v4717 = vld [vmem:[#allocation12 + $0x5e0] sm:$0xff]
        %v4718 = vld [vmem:[#allocation12 + $0x5e8] sm:$0xff]
        %v4719 = vld [vmem:[#allocation12 + $0x5f0] sm:$0xff]
        %v4720 = vld [vmem:[#allocation12 + $0x5f8] sm:$0xff]
        %v4721 = vld [vmem:[#allocation12 + $0x600] sm:$0xff]
        %v4722 = vld [vmem:[#allocation12 + $0x608] sm:$0xff]
        %v4723 = vld [vmem:[#allocation12 + $0x610] sm:$0xff]
        %v4724 = vld [vmem:[#allocation12 + $0x618] sm:$0xff]
        %v4725 = vld [vmem:[#allocation12 + $0x620] sm:$0xff]
        %v4726 = vld [vmem:[#allocation12 + $0x628] sm:$0xff]
        %v4727 = vld [vmem:[#allocation12 + $0x630] sm:$0xff]
        %v4728 = vld [vmem:[#allocation12 + $0x638] sm:$0xff]
        %v4729 = vld [vmem:[#allocation12 + $0x640] sm:$0xff]
        %v4730 = vld [vmem:[#allocation12 + $0x648] sm:$0xff]
        %v4731 = vld [vmem:[#allocation12 + $0x650] sm:$0xff]
        %v4732 = vld [vmem:[#allocation12 + $0x658] sm:$0xff]
        %v4733 = vld [vmem:[#allocation12 + $0x660] sm:$0xff]
        %v4734 = vld [vmem:[#allocation12 + $0x668] sm:$0xff]
        %v4735 = vld [vmem:[#allocation12 + $0x670] sm:$0xff]
        %v4736 = vld [vmem:[#allocation12 + $0x678] sm:$0xff]
        %v4737 = vld [vmem:[#allocation12 + $0x680] sm:$0xff]
        %v4738 = vld [vmem:[#allocation12 + $0x688] sm:$0xff]
        %v4739 = vld [vmem:[#allocation12 + $0x690] sm:$0xff]
        %v4740 = vld [vmem:[#allocation12 + $0x698] sm:$0xff]
        %v4741 = vld [vmem:[#allocation12 + $0x6a0] sm:$0xff]
        %v4742 = vld [vmem:[#allocation12 + $0x6a8] sm:$0xff]
        %v4743 = vld [vmem:[#allocation12 + $0x6b0] sm:$0xff]
        %v4744 = vld [vmem:[#allocation12 + $0x6b8] sm:$0xff]
        %v4745 = vld [vmem:[#allocation12 + $0x6c0] sm:$0xff]
        %v4746 = vld [vmem:[#allocation12 + $0x6c8] sm:$0xff]
        %v4747 = vld [vmem:[#allocation12 + $0x6d0] sm:$0xff]
        %v4748 = vld [vmem:[#allocation12 + $0x6d8] sm:$0xff]
        %v4749 = vld [vmem:[#allocation12 + $0x6e0] sm:$0xff]
        %v4750 = vld [vmem:[#allocation12 + $0x6e8] sm:$0xff]
        %v4751 = vld [vmem:[#allocation12 + $0x6f0] sm:$0xff]
        %v4752 = vld [vmem:[#allocation12 + $0x6f8] sm:$0xff]
        %v4753 = vld [vmem:[#allocation12 + $0x700] sm:$0xff]
        %v4754 = vld [vmem:[#allocation12 + $0x708] sm:$0xff]
        %v4755 = vld [vmem:[#allocation12 + $0x710] sm:$0xff]
        %v4756 = vld [vmem:[#allocation12 + $0x718] sm:$0xff]
        %v4757 = vld [vmem:[#allocation12 + $0x720] sm:$0xff]
        %v4758 = vld [vmem:[#allocation12 + $0x728] sm:$0xff]
        %v4759 = vld [vmem:[#allocation12 + $0x730] sm:$0xff]
        %v4760 = vld [vmem:[#allocation12 + $0x738] sm:$0xff]
        %v4761 = vld [vmem:[#allocation12 + $0x740] sm:$0xff]
        %v4762 = vld [vmem:[#allocation12 + $0x748] sm:$0xff]
        %v4763 = vld [vmem:[#allocation12 + $0x750] sm:$0xff]
        %v4764 = vld [vmem:[#allocation12 + $0x758] sm:$0xff]
        %v4765 = vld [vmem:[#allocation12 + $0x760] sm:$0xff]
        %v4766 = vld [vmem:[#allocation12 + $0x768] sm:$0xff]
        %v4767 = vld [vmem:[#allocation12 + $0x770] sm:$0xff]
        %v4768 = vld [vmem:[#allocation12 + $0x778] sm:$0xff]
        %v4769 = vld [vmem:[#allocation12 + $0x780] sm:$0xff]
        %v4770 = vld [vmem:[#allocation12 + $0x788] sm:$0xff]
        %v4771 = vld [vmem:[#allocation12 + $0x790] sm:$0xff]
        %v4772 = vld [vmem:[#allocation12 + $0x798] sm:$0xff]
        %v4773 = vld [vmem:[#allocation12 + $0x7a0] sm:$0xff]
        %v4774 = vld [vmem:[#allocation12 + $0x7a8] sm:$0xff]
        %v4775 = vld [vmem:[#allocation12 + $0x7b0] sm:$0xff]
        %v4776 = vld [vmem:[#allocation12 + $0x7b8] sm:$0xff]
        %v4777 = vld [vmem:[#allocation12 + $0x7c0] sm:$0xff]
        %v4778 = vld [vmem:[#allocation12 + $0x7c8] sm:$0xff]
        %v4779 = vld [vmem:[#allocation12 + $0x7d0] sm:$0xff]
        %v4780 = vld [vmem:[#allocation12 + $0x7d8] sm:$0xff]
        %v4781 = vld [vmem:[#allocation12 + $0x7e0] sm:$0xff]
        %v4782 = vld [vmem:[#allocation12 + $0x7e8] sm:$0xff]
        %v4783 = vld [vmem:[#allocation12 + $0x7f0] sm:$0xff]
        %v4784 = vld [vmem:[#allocation12 + $0x7f8] sm:$0xff]
        %v4785 = vld [vmem:[%s6] sm:$0xff]
        %v4787 = vlaneseq
        %v4788 = vshrl.u32 %v4787, 7
        %v4789 = vsub.s32 0, %v4788
        %v4790 = vrot.slane %v4785, %v4789
        %v4791 = vlaneseq
        %v4792 = vshrl.u32 %v4791, 7
        %v4793 = vsub.s32 1, %v4792
        %v4794 = vrot.slane %v4785, %v4793
        %v4795 = vlaneseq
        %v4796 = vshrl.u32 %v4795, 7
        %v4797 = vsub.s32 2, %v4796
        %v4798 = vrot.slane %v4785, %v4797
        %v4799 = vlaneseq
        %v4800 = vshrl.u32 %v4799, 7
        %v4801 = vsub.s32 3, %v4800
        %v4802 = vrot.slane %v4785, %v4801
        %v4803 = vlaneseq
        %v4804 = vshrl.u32 %v4803, 7
        %v4805 = vsub.s32 4, %v4804
        %v4806 = vrot.slane %v4785, %v4805
        %v4807 = vlaneseq
        %v4808 = vshrl.u32 %v4807, 7
        %v4809 = vsub.s32 5, %v4808
        %v4810 = vrot.slane %v4785, %v4809
        %v4811 = vlaneseq
        %v4812 = vshrl.u32 %v4811, 7
        %v4813 = vsub.s32 6, %v4812
        %v4814 = vrot.slane %v4785, %v4813
        %v4815 = vlaneseq
        %v4816 = vshrl.u32 %v4815, 7
        %v4817 = vsub.s32 7, %v4816
        %v4818 = vrot.slane %v4785, %v4817
        %v5083 = vunpack.c.l.b16 %v4529
        %v5084 = vunpack.c.h.b16 %v4529
        %v5085 = vunpack.c.l.b16 %v4530
        %v5086 = vunpack.c.h.b16 %v4530
        %v5087 = vunpack.c.l.b16 %v4531
        %v5088 = vunpack.c.h.b16 %v4531
        %v5089 = vunpack.c.l.b16 %v4532
        %v5090 = vunpack.c.h.b16 %v4532
        %v5091 = vunpack.c.l.b16 %v4533
        %v5092 = vunpack.c.h.b16 %v4533
        %v5093 = vunpack.c.l.b16 %v4534
        %v5094 = vunpack.c.h.b16 %v4534
        %v5095 = vunpack.c.l.b16 %v4535
        %v5096 = vunpack.c.h.b16 %v4535
        %v5097 = vunpack.c.l.b16 %v4536
        %v5098 = vunpack.c.h.b16 %v4536
        %v5099 = vunpack.c.l.b16 %v4537
        %v5100 = vunpack.c.h.b16 %v4537
        %v5101 = vunpack.c.l.b16 %v4538
        %v5102 = vunpack.c.h.b16 %v4538
        %v5103 = vunpack.c.l.b16 %v4539
        %v5104 = vunpack.c.h.b16 %v4539
        %v5105 = vunpack.c.l.b16 %v4540
        %v5106 = vunpack.c.h.b16 %v4540
        %v5107 = vunpack.c.l.b16 %v4541
        %v5108 = vunpack.c.h.b16 %v4541
        %v5109 = vunpack.c.l.b16 %v4542
        %v5110 = vunpack.c.h.b16 %v4542
        %v5111 = vunpack.c.l.b16 %v4543
        %v5112 = vunpack.c.h.b16 %v4543
        %v5113 = vunpack.c.l.b16 %v4544
        %v5114 = vunpack.c.h.b16 %v4544
        %v5115 = vunpack.c.l.b16 %v4545
        %v5116 = vunpack.c.h.b16 %v4545
        %v5117 = vunpack.c.l.b16 %v4546
        %v5118 = vunpack.c.h.b16 %v4546
        %v5119 = vunpack.c.l.b16 %v4547
        %v5120 = vunpack.c.h.b16 %v4547
        %v5121 = vunpack.c.l.b16 %v4548
        %v5122 = vunpack.c.h.b16 %v4548
        %v5123 = vunpack.c.l.b16 %v4549
        %v5124 = vunpack.c.h.b16 %v4549
        %v5125 = vunpack.c.l.b16 %v4550
        %v5126 = vunpack.c.h.b16 %v4550
        %v5127 = vunpack.c.l.b16 %v4551
        %v5128 = vunpack.c.h.b16 %v4551
        %v5129 = vunpack.c.l.b16 %v4552
        %v5130 = vunpack.c.h.b16 %v4552
        %v5131 = vunpack.c.l.b16 %v4553
        %v5132 = vunpack.c.h.b16 %v4553
        %v5133 = vunpack.c.l.b16 %v4554
        %v5134 = vunpack.c.h.b16 %v4554
        %v5135 = vunpack.c.l.b16 %v4555
        %v5136 = vunpack.c.h.b16 %v4555
        %v5137 = vunpack.c.l.b16 %v4556
        %v5138 = vunpack.c.h.b16 %v4556
        %v5139 = vunpack.c.l.b16 %v4557
        %v5140 = vunpack.c.h.b16 %v4557
        %v5141 = vunpack.c.l.b16 %v4558
        %v5142 = vunpack.c.h.b16 %v4558
        %v5143 = vunpack.c.l.b16 %v4559
        %v5144 = vunpack.c.h.b16 %v4559
        %v5145 = vunpack.c.l.b16 %v4560
        %v5146 = vunpack.c.h.b16 %v4560
        %v5147 = vunpack.c.l.b16 %v4561
        %v5148 = vunpack.c.h.b16 %v4561
        %v5149 = vunpack.c.l.b16 %v4562
        %v5150 = vunpack.c.h.b16 %v4562
        %v5151 = vunpack.c.l.b16 %v4563
        %v5152 = vunpack.c.h.b16 %v4563
        %v5153 = vunpack.c.l.b16 %v4564
        %v5154 = vunpack.c.h.b16 %v4564
        %v5155 = vunpack.c.l.b16 %v4565
        %v5156 = vunpack.c.h.b16 %v4565
        %v5157 = vunpack.c.l.b16 %v4566
        %v5158 = vunpack.c.h.b16 %v4566
        %v5159 = vunpack.c.l.b16 %v4567
        %v5160 = vunpack.c.h.b16 %v4567
        %v5161 = vunpack.c.l.b16 %v4568
        %v5162 = vunpack.c.h.b16 %v4568
        %v5163 = vunpack.c.l.b16 %v4569
        %v5164 = vunpack.c.h.b16 %v4569
        %v5165 = vunpack.c.l.b16 %v4570
        %v5166 = vunpack.c.h.b16 %v4570
        %v5167 = vunpack.c.l.b16 %v4571
        %v5168 = vunpack.c.h.b16 %v4571
        %v5169 = vunpack.c.l.b16 %v4572
        %v5170 = vunpack.c.h.b16 %v4572
        %v5171 = vunpack.c.l.b16 %v4573
        %v5172 = vunpack.c.h.b16 %v4573
        %v5173 = vunpack.c.l.b16 %v4574
        %v5174 = vunpack.c.h.b16 %v4574
        %v5175 = vunpack.c.l.b16 %v4575
        %v5176 = vunpack.c.h.b16 %v4575
        %v5177 = vunpack.c.l.b16 %v4576
        %v5178 = vunpack.c.h.b16 %v4576
        %v5179 = vunpack.c.l.b16 %v4577
        %v5180 = vunpack.c.h.b16 %v4577
        %v5181 = vunpack.c.l.b16 %v4578
        %v5182 = vunpack.c.h.b16 %v4578
        %v5183 = vunpack.c.l.b16 %v4579
        %v5184 = vunpack.c.h.b16 %v4579
        %v5185 = vunpack.c.l.b16 %v4580
        %v5186 = vunpack.c.h.b16 %v4580
        %v5187 = vunpack.c.l.b16 %v4581
        %v5188 = vunpack.c.h.b16 %v4581
        %v5189 = vunpack.c.l.b16 %v4582
        %v5190 = vunpack.c.h.b16 %v4582
        %v5191 = vunpack.c.l.b16 %v4583
        %v5192 = vunpack.c.h.b16 %v4583
        %v5193 = vunpack.c.l.b16 %v4584
        %v5194 = vunpack.c.h.b16 %v4584
        %v5195 = vunpack.c.l.b16 %v4585
        %v5196 = vunpack.c.h.b16 %v4585
        %v5197 = vunpack.c.l.b16 %v4586
        %v5198 = vunpack.c.h.b16 %v4586
        %v5199 = vunpack.c.l.b16 %v4587
        %v5200 = vunpack.c.h.b16 %v4587
        %v5201 = vunpack.c.l.b16 %v4588
        %v5202 = vunpack.c.h.b16 %v4588
        %v5203 = vunpack.c.l.b16 %v4589
        %v5204 = vunpack.c.h.b16 %v4589
        %v5205 = vunpack.c.l.b16 %v4590
        %v5206 = vunpack.c.h.b16 %v4590
        %v5207 = vunpack.c.l.b16 %v4591
        %v5208 = vunpack.c.h.b16 %v4591
        %v5209 = vunpack.c.l.b16 %v4592
        %v5210 = vunpack.c.h.b16 %v4592
        %v5211 = vunpack.c.l.b16 %v4593
        %v5212 = vunpack.c.h.b16 %v4593
        %v5213 = vunpack.c.l.b16 %v4594
        %v5214 = vunpack.c.h.b16 %v4594
        %v5215 = vunpack.c.l.b16 %v4595
        %v5216 = vunpack.c.h.b16 %v4595
        %v5217 = vunpack.c.l.b16 %v4596
        %v5218 = vunpack.c.h.b16 %v4596
        %v5219 = vunpack.c.l.b16 %v4597
        %v5220 = vunpack.c.h.b16 %v4597
        %v5221 = vunpack.c.l.b16 %v4598
        %v5222 = vunpack.c.h.b16 %v4598
        %v5223 = vunpack.c.l.b16 %v4599
        %v5224 = vunpack.c.h.b16 %v4599
        %v5225 = vunpack.c.l.b16 %v4600
        %v5226 = vunpack.c.h.b16 %v4600
        %v5227 = vunpack.c.l.b16 %v4601
        %v5228 = vunpack.c.h.b16 %v4601
        %v5229 = vunpack.c.l.b16 %v4602
        %v5230 = vunpack.c.h.b16 %v4602
        %v5231 = vunpack.c.l.b16 %v4603
        %v5232 = vunpack.c.h.b16 %v4603
        %v5233 = vunpack.c.l.b16 %v4604
        %v5234 = vunpack.c.h.b16 %v4604
        %v5235 = vunpack.c.l.b16 %v4605
        %v5236 = vunpack.c.h.b16 %v4605
        %v5237 = vunpack.c.l.b16 %v4606
        %v5238 = vunpack.c.h.b16 %v4606
        %v5239 = vunpack.c.l.b16 %v4607
        %v5240 = vunpack.c.h.b16 %v4607
        %v5241 = vunpack.c.l.b16 %v4608
        %v5242 = vunpack.c.h.b16 %v4608
        %v5243 = vunpack.c.l.b16 %v4609
        %v5244 = vunpack.c.h.b16 %v4609
        %v5245 = vunpack.c.l.b16 %v4610
        %v5246 = vunpack.c.h.b16 %v4610
        %v5247 = vunpack.c.l.b16 %v4611
        %v5248 = vunpack.c.h.b16 %v4611
        %v5249 = vunpack.c.l.b16 %v4612
        %v5250 = vunpack.c.h.b16 %v4612
        %v5251 = vunpack.c.l.b16 %v4613
        %v5252 = vunpack.c.h.b16 %v4613
        %v5253 = vunpack.c.l.b16 %v4614
        %v5254 = vunpack.c.h.b16 %v4614
        %v5255 = vunpack.c.l.b16 %v4615
        %v5256 = vunpack.c.h.b16 %v4615
        %v5257 = vunpack.c.l.b16 %v4616
        %v5258 = vunpack.c.h.b16 %v4616
        %v5259 = vunpack.c.l.b16 %v4617
        %v5260 = vunpack.c.h.b16 %v4617
        %v5261 = vunpack.c.l.b16 %v4618
        %v5262 = vunpack.c.h.b16 %v4618
        %v5263 = vunpack.c.l.b16 %v4619
        %v5264 = vunpack.c.h.b16 %v4619
        %v5265 = vunpack.c.l.b16 %v4620
        %v5266 = vunpack.c.h.b16 %v4620
        %v5267 = vunpack.c.l.b16 %v4621
        %v5268 = vunpack.c.h.b16 %v4621
        %v5269 = vunpack.c.l.b16 %v4622
        %v5270 = vunpack.c.h.b16 %v4622
        %v5271 = vunpack.c.l.b16 %v4623
        %v5272 = vunpack.c.h.b16 %v4623
        %v5273 = vunpack.c.l.b16 %v4624
        %v5274 = vunpack.c.h.b16 %v4624
        %v5275 = vunpack.c.l.b16 %v4625
        %v5276 = vunpack.c.h.b16 %v4625
        %v5277 = vunpack.c.l.b16 %v4626
        %v5278 = vunpack.c.h.b16 %v4626
        %v5279 = vunpack.c.l.b16 %v4627
        %v5280 = vunpack.c.h.b16 %v4627
        %v5281 = vunpack.c.l.b16 %v4628
        %v5282 = vunpack.c.h.b16 %v4628
        %v5283 = vunpack.c.l.b16 %v4629
        %v5284 = vunpack.c.h.b16 %v4629
        %v5285 = vunpack.c.l.b16 %v4630
        %v5286 = vunpack.c.h.b16 %v4630
        %v5287 = vunpack.c.l.b16 %v4631
        %v5288 = vunpack.c.h.b16 %v4631
        %v5289 = vunpack.c.l.b16 %v4632
        %v5290 = vunpack.c.h.b16 %v4632
        %v5291 = vunpack.c.l.b16 %v4633
        %v5292 = vunpack.c.h.b16 %v4633
        %v5293 = vunpack.c.l.b16 %v4634
        %v5294 = vunpack.c.h.b16 %v4634
        %v5295 = vunpack.c.l.b16 %v4635
        %v5296 = vunpack.c.h.b16 %v4635
        %v5297 = vunpack.c.l.b16 %v4636
        %v5298 = vunpack.c.h.b16 %v4636
        %v5299 = vunpack.c.l.b16 %v4637
        %v5300 = vunpack.c.h.b16 %v4637
        %v5301 = vunpack.c.l.b16 %v4638
        %v5302 = vunpack.c.h.b16 %v4638
        %v5303 = vunpack.c.l.b16 %v4639
        %v5304 = vunpack.c.h.b16 %v4639
        %v5305 = vunpack.c.l.b16 %v4640
        %v5306 = vunpack.c.h.b16 %v4640
        %v5307 = vunpack.c.l.b16 %v4641
        %v5308 = vunpack.c.h.b16 %v4641
        %v5309 = vunpack.c.l.b16 %v4642
        %v5310 = vunpack.c.h.b16 %v4642
        %v5311 = vunpack.c.l.b16 %v4643
        %v5312 = vunpack.c.h.b16 %v4643
        %v5313 = vunpack.c.l.b16 %v4644
        %v5314 = vunpack.c.h.b16 %v4644
        %v5315 = vunpack.c.l.b16 %v4645
        %v5316 = vunpack.c.h.b16 %v4645
        %v5317 = vunpack.c.l.b16 %v4646
        %v5318 = vunpack.c.h.b16 %v4646
        %v5319 = vunpack.c.l.b16 %v4647
        %v5320 = vunpack.c.h.b16 %v4647
        %v5321 = vunpack.c.l.b16 %v4648
        %v5322 = vunpack.c.h.b16 %v4648
        %v5323 = vunpack.c.l.b16 %v4649
        %v5324 = vunpack.c.h.b16 %v4649
        %v5325 = vunpack.c.l.b16 %v4650
        %v5326 = vunpack.c.h.b16 %v4650
        %v5327 = vunpack.c.l.b16 %v4651
        %v5328 = vunpack.c.h.b16 %v4651
        %v5329 = vunpack.c.l.b16 %v4652
        %v5330 = vunpack.c.h.b16 %v4652
        %v5331 = vunpack.c.l.b16 %v4653
        %v5332 = vunpack.c.h.b16 %v4653
        %v5333 = vunpack.c.l.b16 %v4654
        %v5334 = vunpack.c.h.b16 %v4654
        %v5335 = vunpack.c.l.b16 %v4655
        %v5336 = vunpack.c.h.b16 %v4655
        %v5337 = vunpack.c.l.b16 %v4656
        %v5338 = vunpack.c.h.b16 %v4656
        %v5339 = vunpack.c.l.b16 %v4657
        %v5340 = vunpack.c.h.b16 %v4657
        %v5341 = vunpack.c.l.b16 %v4658
        %v5342 = vunpack.c.h.b16 %v4658
        %v5343 = vunpack.c.l.b16 %v4659
        %v5344 = vunpack.c.h.b16 %v4659
        %v5345 = vunpack.c.l.b16 %v4660
        %v5346 = vunpack.c.h.b16 %v4660
        %v5347 = vunpack.c.l.b16 %v4661
        %v5348 = vunpack.c.h.b16 %v4661
        %v5349 = vunpack.c.l.b16 %v4662
        %v5350 = vunpack.c.h.b16 %v4662
        %v5351 = vunpack.c.l.b16 %v4663
        %v5352 = vunpack.c.h.b16 %v4663
        %v5353 = vunpack.c.l.b16 %v4664
        %v5354 = vunpack.c.h.b16 %v4664
        %v5355 = vunpack.c.l.b16 %v4665
        %v5356 = vunpack.c.h.b16 %v4665
        %v5357 = vunpack.c.l.b16 %v4666
        %v5358 = vunpack.c.h.b16 %v4666
        %v5359 = vunpack.c.l.b16 %v4667
        %v5360 = vunpack.c.h.b16 %v4667
        %v5361 = vunpack.c.l.b16 %v4668
        %v5362 = vunpack.c.h.b16 %v4668
        %v5363 = vunpack.c.l.b16 %v4669
        %v5364 = vunpack.c.h.b16 %v4669
        %v5365 = vunpack.c.l.b16 %v4670
        %v5366 = vunpack.c.h.b16 %v4670
        %v5367 = vunpack.c.l.b16 %v4671
        %v5368 = vunpack.c.h.b16 %v4671
        %v5369 = vunpack.c.l.b16 %v4672
        %v5370 = vunpack.c.h.b16 %v4672
        %v5371 = vunpack.c.l.b16 %v4673
        %v5372 = vunpack.c.h.b16 %v4673
        %v5373 = vunpack.c.l.b16 %v4674
        %v5374 = vunpack.c.h.b16 %v4674
        %v5375 = vunpack.c.l.b16 %v4675
        %v5376 = vunpack.c.h.b16 %v4675
        %v5377 = vunpack.c.l.b16 %v4676
        %v5378 = vunpack.c.h.b16 %v4676
        %v5379 = vunpack.c.l.b16 %v4677
        %v5380 = vunpack.c.h.b16 %v4677
        %v5381 = vunpack.c.l.b16 %v4678
        %v5382 = vunpack.c.h.b16 %v4678
        %v5383 = vunpack.c.l.b16 %v4679
        %v5384 = vunpack.c.h.b16 %v4679
        %v5385 = vunpack.c.l.b16 %v4680
        %v5386 = vunpack.c.h.b16 %v4680
        %v5387 = vunpack.c.l.b16 %v4681
        %v5388 = vunpack.c.h.b16 %v4681
        %v5389 = vunpack.c.l.b16 %v4682
        %v5390 = vunpack.c.h.b16 %v4682
        %v5391 = vunpack.c.l.b16 %v4683
        %v5392 = vunpack.c.h.b16 %v4683
        %v5393 = vunpack.c.l.b16 %v4684
        %v5394 = vunpack.c.h.b16 %v4684
        %v5395 = vunpack.c.l.b16 %v4685
        %v5396 = vunpack.c.h.b16 %v4685
        %v5397 = vunpack.c.l.b16 %v4686
        %v5398 = vunpack.c.h.b16 %v4686
        %v5399 = vunpack.c.l.b16 %v4687
        %v5400 = vunpack.c.h.b16 %v4687
        %v5401 = vunpack.c.l.b16 %v4688
        %v5402 = vunpack.c.h.b16 %v4688
        %v5403 = vunpack.c.l.b16 %v4689
        %v5404 = vunpack.c.h.b16 %v4689
        %v5405 = vunpack.c.l.b16 %v4690
        %v5406 = vunpack.c.h.b16 %v4690
        %v5407 = vunpack.c.l.b16 %v4691
        %v5408 = vunpack.c.h.b16 %v4691
        %v5409 = vunpack.c.l.b16 %v4692
        %v5410 = vunpack.c.h.b16 %v4692
        %v5411 = vunpack.c.l.b16 %v4693
        %v5412 = vunpack.c.h.b16 %v4693
        %v5413 = vunpack.c.l.b16 %v4694
        %v5414 = vunpack.c.h.b16 %v4694
        %v5415 = vunpack.c.l.b16 %v4695
        %v5416 = vunpack.c.h.b16 %v4695
        %v5417 = vunpack.c.l.b16 %v4696
        %v5418 = vunpack.c.h.b16 %v4696
        %v5419 = vunpack.c.l.b16 %v4697
        %v5420 = vunpack.c.h.b16 %v4697
        %v5421 = vunpack.c.l.b16 %v4698
        %v5422 = vunpack.c.h.b16 %v4698
        %v5423 = vunpack.c.l.b16 %v4699
        %v5424 = vunpack.c.h.b16 %v4699
        %v5425 = vunpack.c.l.b16 %v4700
        %v5426 = vunpack.c.h.b16 %v4700
        %v5427 = vunpack.c.l.b16 %v4701
        %v5428 = vunpack.c.h.b16 %v4701
        %v5429 = vunpack.c.l.b16 %v4702
        %v5430 = vunpack.c.h.b16 %v4702
        %v5431 = vunpack.c.l.b16 %v4703
        %v5432 = vunpack.c.h.b16 %v4703
        %v5433 = vunpack.c.l.b16 %v4704
        %v5434 = vunpack.c.h.b16 %v4704
        %v5435 = vunpack.c.l.b16 %v4705
        %v5436 = vunpack.c.h.b16 %v4705
        %v5437 = vunpack.c.l.b16 %v4706
        %v5438 = vunpack.c.h.b16 %v4706
        %v5439 = vunpack.c.l.b16 %v4707
        %v5440 = vunpack.c.h.b16 %v4707
        %v5441 = vunpack.c.l.b16 %v4708
        %v5442 = vunpack.c.h.b16 %v4708
        %v5443 = vunpack.c.l.b16 %v4709
        %v5444 = vunpack.c.h.b16 %v4709
        %v5445 = vunpack.c.l.b16 %v4710
        %v5446 = vunpack.c.h.b16 %v4710
        %v5447 = vunpack.c.l.b16 %v4711
        %v5448 = vunpack.c.h.b16 %v4711
        %v5449 = vunpack.c.l.b16 %v4712
        %v5450 = vunpack.c.h.b16 %v4712
        %v5451 = vunpack.c.l.b16 %v4713
        %v5452 = vunpack.c.h.b16 %v4713
        %v5453 = vunpack.c.l.b16 %v4714
        %v5454 = vunpack.c.h.b16 %v4714
        %v5455 = vunpack.c.l.b16 %v4715
        %v5456 = vunpack.c.h.b16 %v4715
        %v5457 = vunpack.c.l.b16 %v4716
        %v5458 = vunpack.c.h.b16 %v4716
        %v5459 = vunpack.c.l.b16 %v4717
        %v5460 = vunpack.c.h.b16 %v4717
        %v5461 = vunpack.c.l.b16 %v4718
        %v5462 = vunpack.c.h.b16 %v4718
        %v5463 = vunpack.c.l.b16 %v4719
        %v5464 = vunpack.c.h.b16 %v4719
        %v5465 = vunpack.c.l.b16 %v4720
        %v5466 = vunpack.c.h.b16 %v4720
        %v5467 = vunpack.c.l.b16 %v4721
        %v5468 = vunpack.c.h.b16 %v4721
        %v5469 = vunpack.c.l.b16 %v4722
        %v5470 = vunpack.c.h.b16 %v4722
        %v5471 = vunpack.c.l.b16 %v4723
        %v5472 = vunpack.c.h.b16 %v4723
        %v5473 = vunpack.c.l.b16 %v4724
        %v5474 = vunpack.c.h.b16 %v4724
        %v5475 = vunpack.c.l.b16 %v4725
        %v5476 = vunpack.c.h.b16 %v4725
        %v5477 = vunpack.c.l.b16 %v4726
        %v5478 = vunpack.c.h.b16 %v4726
        %v5479 = vunpack.c.l.b16 %v4727
        %v5480 = vunpack.c.h.b16 %v4727
        %v5481 = vunpack.c.l.b16 %v4728
        %v5482 = vunpack.c.h.b16 %v4728
        %v5483 = vunpack.c.l.b16 %v4729
        %v5484 = vunpack.c.h.b16 %v4729
        %v5485 = vunpack.c.l.b16 %v4730
        %v5486 = vunpack.c.h.b16 %v4730
        %v5487 = vunpack.c.l.b16 %v4731
        %v5488 = vunpack.c.h.b16 %v4731
        %v5489 = vunpack.c.l.b16 %v4732
        %v5490 = vunpack.c.h.b16 %v4732
        %v5491 = vunpack.c.l.b16 %v4733
        %v5492 = vunpack.c.h.b16 %v4733
        %v5493 = vunpack.c.l.b16 %v4734
        %v5494 = vunpack.c.h.b16 %v4734
        %v5495 = vunpack.c.l.b16 %v4735
        %v5496 = vunpack.c.h.b16 %v4735
        %v5497 = vunpack.c.l.b16 %v4736
        %v5498 = vunpack.c.h.b16 %v4736
        %v5499 = vunpack.c.l.b16 %v4737
        %v5500 = vunpack.c.h.b16 %v4737
        %v5501 = vunpack.c.l.b16 %v4738
        %v5502 = vunpack.c.h.b16 %v4738
        %v5503 = vunpack.c.l.b16 %v4739
        %v5504 = vunpack.c.h.b16 %v4739
        %v5505 = vunpack.c.l.b16 %v4740
        %v5506 = vunpack.c.h.b16 %v4740
        %v5507 = vunpack.c.l.b16 %v4741
        %v5508 = vunpack.c.h.b16 %v4741
        %v5509 = vunpack.c.l.b16 %v4742
        %v5510 = vunpack.c.h.b16 %v4742
        %v5511 = vunpack.c.l.b16 %v4743
        %v5512 = vunpack.c.h.b16 %v4743
        %v5513 = vunpack.c.l.b16 %v4744
        %v5514 = vunpack.c.h.b16 %v4744
        %v5515 = vunpack.c.l.b16 %v4745
        %v5516 = vunpack.c.h.b16 %v4745
        %v5517 = vunpack.c.l.b16 %v4746
        %v5518 = vunpack.c.h.b16 %v4746
        %v5519 = vunpack.c.l.b16 %v4747
        %v5520 = vunpack.c.h.b16 %v4747
        %v5521 = vunpack.c.l.b16 %v4748
        %v5522 = vunpack.c.h.b16 %v4748
        %v5523 = vunpack.c.l.b16 %v4749
        %v5524 = vunpack.c.h.b16 %v4749
        %v5525 = vunpack.c.l.b16 %v4750
        %v5526 = vunpack.c.h.b16 %v4750
        %v5527 = vunpack.c.l.b16 %v4751
        %v5528 = vunpack.c.h.b16 %v4751
        %v5529 = vunpack.c.l.b16 %v4752
        %v5530 = vunpack.c.h.b16 %v4752
        %v5531 = vunpack.c.l.b16 %v4753
        %v5532 = vunpack.c.h.b16 %v4753
        %v5533 = vunpack.c.l.b16 %v4754
        %v5534 = vunpack.c.h.b16 %v4754
        %v5535 = vunpack.c.l.b16 %v4755
        %v5536 = vunpack.c.h.b16 %v4755
        %v5537 = vunpack.c.l.b16 %v4756
        %v5538 = vunpack.c.h.b16 %v4756
        %v5539 = vunpack.c.l.b16 %v4757
        %v5540 = vunpack.c.h.b16 %v4757
        %v5541 = vunpack.c.l.b16 %v4758
        %v5542 = vunpack.c.h.b16 %v4758
        %v5543 = vunpack.c.l.b16 %v4759
        %v5544 = vunpack.c.h.b16 %v4759
        %v5545 = vunpack.c.l.b16 %v4760
        %v5546 = vunpack.c.h.b16 %v4760
        %v5547 = vunpack.c.l.b16 %v4761
        %v5548 = vunpack.c.h.b16 %v4761
        %v5549 = vunpack.c.l.b16 %v4762
        %v5550 = vunpack.c.h.b16 %v4762
        %v5551 = vunpack.c.l.b16 %v4763
        %v5552 = vunpack.c.h.b16 %v4763
        %v5553 = vunpack.c.l.b16 %v4764
        %v5554 = vunpack.c.h.b16 %v4764
        %v5555 = vunpack.c.l.b16 %v4765
        %v5556 = vunpack.c.h.b16 %v4765
        %v5557 = vunpack.c.l.b16 %v4766
        %v5558 = vunpack.c.h.b16 %v4766
        %v5559 = vunpack.c.l.b16 %v4767
        %v5560 = vunpack.c.h.b16 %v4767
        %v5561 = vunpack.c.l.b16 %v4768
        %v5562 = vunpack.c.h.b16 %v4768
        %v5563 = vunpack.c.l.b16 %v4769
        %v5564 = vunpack.c.h.b16 %v4769
        %v5565 = vunpack.c.l.b16 %v4770
        %v5566 = vunpack.c.h.b16 %v4770
        %v5567 = vunpack.c.l.b16 %v4771
        %v5568 = vunpack.c.h.b16 %v4771
        %v5569 = vunpack.c.l.b16 %v4772
        %v5570 = vunpack.c.h.b16 %v4772
        %v5571 = vunpack.c.l.b16 %v4773
        %v5572 = vunpack.c.h.b16 %v4773
        %v5573 = vunpack.c.l.b16 %v4774
        %v5574 = vunpack.c.h.b16 %v4774
        %v5575 = vunpack.c.l.b16 %v4775
        %v5576 = vunpack.c.h.b16 %v4775
        %v5577 = vunpack.c.l.b16 %v4776
        %v5578 = vunpack.c.h.b16 %v4776
        %v5579 = vunpack.c.l.b16 %v4777
        %v5580 = vunpack.c.h.b16 %v4777
        %v5581 = vunpack.c.l.b16 %v4778
        %v5582 = vunpack.c.h.b16 %v4778
        %v5583 = vunpack.c.l.b16 %v4779
        %v5584 = vunpack.c.h.b16 %v4779
        %v5585 = vunpack.c.l.b16 %v4780
        %v5586 = vunpack.c.h.b16 %v4780
        %v5587 = vunpack.c.l.b16 %v4781
        %v5588 = vunpack.c.h.b16 %v4781
        %v5589 = vunpack.c.l.b16 %v4782
        %v5590 = vunpack.c.h.b16 %v4782
        %v5591 = vunpack.c.l.b16 %v4783
        %v5592 = vunpack.c.h.b16 %v4783
        %v5593 = vunpack.c.l.b16 %v4784
        %v5594 = vunpack.c.h.b16 %v4784
        %v5595 = vpack.c.b16 %v5091, %v5083
        %v5596 = vpack.c.b16 %v5092, %v5084
        %v5597 = vpack.c.b16 %v5093, %v5085
        %v5598 = vpack.c.b16 %v5094, %v5086
        %v5599 = vpack.c.b16 %v5095, %v5087
        %v5600 = vpack.c.b16 %v5096, %v5088
        %v5601 = vpack.c.b16 %v5097, %v5089
        %v5602 = vpack.c.b16 %v5098, %v5090
        %v5603 = vpack.c.b16 %v5107, %v5099
        %v5604 = vpack.c.b16 %v5108, %v5100
        %v5605 = vpack.c.b16 %v5109, %v5101
        %v5606 = vpack.c.b16 %v5110, %v5102
        %v5607 = vpack.c.b16 %v5111, %v5103
        %v5608 = vpack.c.b16 %v5112, %v5104
        %v5609 = vpack.c.b16 %v5113, %v5105
        %v5610 = vpack.c.b16 %v5114, %v5106
        %v5611 = vpack.c.b16 %v5123, %v5115
        %v5612 = vpack.c.b16 %v5124, %v5116
        %v5613 = vpack.c.b16 %v5125, %v5117
        %v5614 = vpack.c.b16 %v5126, %v5118
        %v5615 = vpack.c.b16 %v5127, %v5119
        %v5616 = vpack.c.b16 %v5128, %v5120
        %v5617 = vpack.c.b16 %v5129, %v5121
        %v5618 = vpack.c.b16 %v5130, %v5122
        %v5619 = vpack.c.b16 %v5139, %v5131
        %v5620 = vpack.c.b16 %v5140, %v5132
        %v5621 = vpack.c.b16 %v5141, %v5133
        %v5622 = vpack.c.b16 %v5142, %v5134
        %v5623 = vpack.c.b16 %v5143, %v5135
        %v5624 = vpack.c.b16 %v5144, %v5136
        %v5625 = vpack.c.b16 %v5145, %v5137
        %v5626 = vpack.c.b16 %v5146, %v5138
        %v5627 = vpack.c.b16 %v5155, %v5147
        %v5628 = vpack.c.b16 %v5156, %v5148
        %v5629 = vpack.c.b16 %v5157, %v5149
        %v5630 = vpack.c.b16 %v5158, %v5150
        %v5631 = vpack.c.b16 %v5159, %v5151
        %v5632 = vpack.c.b16 %v5160, %v5152
        %v5633 = vpack.c.b16 %v5161, %v5153
        %v5634 = vpack.c.b16 %v5162, %v5154
        %v5635 = vpack.c.b16 %v5171, %v5163
        %v5636 = vpack.c.b16 %v5172, %v5164
        %v5637 = vpack.c.b16 %v5173, %v5165
        %v5638 = vpack.c.b16 %v5174, %v5166
        %v5639 = vpack.c.b16 %v5175, %v5167
        %v5640 = vpack.c.b16 %v5176, %v5168
        %v5641 = vpack.c.b16 %v5177, %v5169
        %v5642 = vpack.c.b16 %v5178, %v5170
        %v5643 = vpack.c.b16 %v5187, %v5179
        %v5644 = vpack.c.b16 %v5188, %v5180
        %v5645 = vpack.c.b16 %v5189, %v5181
        %v5646 = vpack.c.b16 %v5190, %v5182
        %v5647 = vpack.c.b16 %v5191, %v5183
        %v5648 = vpack.c.b16 %v5192, %v5184
        %v5649 = vpack.c.b16 %v5193, %v5185
        %v5650 = vpack.c.b16 %v5194, %v5186
        %v5651 = vpack.c.b16 %v5203, %v5195
        %v5652 = vpack.c.b16 %v5204, %v5196
        %v5653 = vpack.c.b16 %v5205, %v5197
        %v5654 = vpack.c.b16 %v5206, %v5198
        %v5655 = vpack.c.b16 %v5207, %v5199
        %v5656 = vpack.c.b16 %v5208, %v5200
        %v5657 = vpack.c.b16 %v5209, %v5201
        %v5658 = vpack.c.b16 %v5210, %v5202
        %v5659 = vpack.c.b16 %v5219, %v5211
        %v5660 = vpack.c.b16 %v5220, %v5212
        %v5661 = vpack.c.b16 %v5221, %v5213
        %v5662 = vpack.c.b16 %v5222, %v5214
        %v5663 = vpack.c.b16 %v5223, %v5215
        %v5664 = vpack.c.b16 %v5224, %v5216
        %v5665 = vpack.c.b16 %v5225, %v5217
        %v5666 = vpack.c.b16 %v5226, %v5218
        %v5667 = vpack.c.b16 %v5235, %v5227
        %v5668 = vpack.c.b16 %v5236, %v5228
        %v5669 = vpack.c.b16 %v5237, %v5229
        %v5670 = vpack.c.b16 %v5238, %v5230
        %v5671 = vpack.c.b16 %v5239, %v5231
        %v5672 = vpack.c.b16 %v5240, %v5232
        %v5673 = vpack.c.b16 %v5241, %v5233
        %v5674 = vpack.c.b16 %v5242, %v5234
        %v5675 = vpack.c.b16 %v5251, %v5243
        %v5676 = vpack.c.b16 %v5252, %v5244
        %v5677 = vpack.c.b16 %v5253, %v5245
        %v5678 = vpack.c.b16 %v5254, %v5246
        %v5679 = vpack.c.b16 %v5255, %v5247
        %v5680 = vpack.c.b16 %v5256, %v5248
        %v5681 = vpack.c.b16 %v5257, %v5249
        %v5682 = vpack.c.b16 %v5258, %v5250
        %v5683 = vpack.c.b16 %v5267, %v5259
        %v5684 = vpack.c.b16 %v5268, %v5260
        %v5685 = vpack.c.b16 %v5269, %v5261
        %v5686 = vpack.c.b16 %v5270, %v5262
        %v5687 = vpack.c.b16 %v5271, %v5263
        %v5688 = vpack.c.b16 %v5272, %v5264
        %v5689 = vpack.c.b16 %v5273, %v5265
        %v5690 = vpack.c.b16 %v5274, %v5266
        %v5691 = vpack.c.b16 %v5283, %v5275
        %v5692 = vpack.c.b16 %v5284, %v5276
        %v5693 = vpack.c.b16 %v5285, %v5277
        %v5694 = vpack.c.b16 %v5286, %v5278
        %v5695 = vpack.c.b16 %v5287, %v5279
        %v5696 = vpack.c.b16 %v5288, %v5280
        %v5697 = vpack.c.b16 %v5289, %v5281
        %v5698 = vpack.c.b16 %v5290, %v5282
        %v5699 = vpack.c.b16 %v5299, %v5291
        %v5700 = vpack.c.b16 %v5300, %v5292
        %v5701 = vpack.c.b16 %v5301, %v5293
        %v5702 = vpack.c.b16 %v5302, %v5294
        %v5703 = vpack.c.b16 %v5303, %v5295
        %v5704 = vpack.c.b16 %v5304, %v5296
        %v5705 = vpack.c.b16 %v5305, %v5297
        %v5706 = vpack.c.b16 %v5306, %v5298
        %v5707 = vpack.c.b16 %v5315, %v5307
        %v5708 = vpack.c.b16 %v5316, %v5308
        %v5709 = vpack.c.b16 %v5317, %v5309
        %v5710 = vpack.c.b16 %v5318, %v5310
        %v5711 = vpack.c.b16 %v5319, %v5311
        %v5712 = vpack.c.b16 %v5320, %v5312
        %v5713 = vpack.c.b16 %v5321, %v5313
        %v5714 = vpack.c.b16 %v5322, %v5314
        %v5715 = vpack.c.b16 %v5331, %v5323
        %v5716 = vpack.c.b16 %v5332, %v5324
        %v5717 = vpack.c.b16 %v5333, %v5325
        %v5718 = vpack.c.b16 %v5334, %v5326
        %v5719 = vpack.c.b16 %v5335, %v5327
        %v5720 = vpack.c.b16 %v5336, %v5328
        %v5721 = vpack.c.b16 %v5337, %v5329
        %v5722 = vpack.c.b16 %v5338, %v5330
        %v5723 = vpack.c.b16 %v5347, %v5339
        %v5724 = vpack.c.b16 %v5348, %v5340
        %v5725 = vpack.c.b16 %v5349, %v5341
        %v5726 = vpack.c.b16 %v5350, %v5342
        %v5727 = vpack.c.b16 %v5351, %v5343
        %v5728 = vpack.c.b16 %v5352, %v5344
        %v5729 = vpack.c.b16 %v5353, %v5345
        %v5730 = vpack.c.b16 %v5354, %v5346
        %v5731 = vpack.c.b16 %v5363, %v5355
        %v5732 = vpack.c.b16 %v5364, %v5356
        %v5733 = vpack.c.b16 %v5365, %v5357
        %v5734 = vpack.c.b16 %v5366, %v5358
        %v5735 = vpack.c.b16 %v5367, %v5359
        %v5736 = vpack.c.b16 %v5368, %v5360
        %v5737 = vpack.c.b16 %v5369, %v5361
        %v5738 = vpack.c.b16 %v5370, %v5362
        %v5739 = vpack.c.b16 %v5379, %v5371
        %v5740 = vpack.c.b16 %v5380, %v5372
        %v5741 = vpack.c.b16 %v5381, %v5373
        %v5742 = vpack.c.b16 %v5382, %v5374
        %v5743 = vpack.c.b16 %v5383, %v5375
        %v5744 = vpack.c.b16 %v5384, %v5376
        %v5745 = vpack.c.b16 %v5385, %v5377
        %v5746 = vpack.c.b16 %v5386, %v5378
        %v5747 = vpack.c.b16 %v5395, %v5387
        %v5748 = vpack.c.b16 %v5396, %v5388
        %v5749 = vpack.c.b16 %v5397, %v5389
        %v5750 = vpack.c.b16 %v5398, %v5390
        %v5751 = vpack.c.b16 %v5399, %v5391
        %v5752 = vpack.c.b16 %v5400, %v5392
        %v5753 = vpack.c.b16 %v5401, %v5393
        %v5754 = vpack.c.b16 %v5402, %v5394
        %v5755 = vpack.c.b16 %v5411, %v5403
        %v5756 = vpack.c.b16 %v5412, %v5404
        %v5757 = vpack.c.b16 %v5413, %v5405
        %v5758 = vpack.c.b16 %v5414, %v5406
        %v5759 = vpack.c.b16 %v5415, %v5407
        %v5760 = vpack.c.b16 %v5416, %v5408
        %v5761 = vpack.c.b16 %v5417, %v5409
        %v5762 = vpack.c.b16 %v5418, %v5410
        %v5763 = vpack.c.b16 %v5427, %v5419
        %v5764 = vpack.c.b16 %v5428, %v5420
        %v5765 = vpack.c.b16 %v5429, %v5421
        %v5766 = vpack.c.b16 %v5430, %v5422
        %v5767 = vpack.c.b16 %v5431, %v5423
        %v5768 = vpack.c.b16 %v5432, %v5424
        %v5769 = vpack.c.b16 %v5433, %v5425
        %v5770 = vpack.c.b16 %v5434, %v5426
        %v5771 = vpack.c.b16 %v5443, %v5435
        %v5772 = vpack.c.b16 %v5444, %v5436
        %v5773 = vpack.c.b16 %v5445, %v5437
        %v5774 = vpack.c.b16 %v5446, %v5438
        %v5775 = vpack.c.b16 %v5447, %v5439
        %v5776 = vpack.c.b16 %v5448, %v5440
        %v5777 = vpack.c.b16 %v5449, %v5441
        %v5778 = vpack.c.b16 %v5450, %v5442
        %v5779 = vpack.c.b16 %v5459, %v5451
        %v5780 = vpack.c.b16 %v5460, %v5452
        %v5781 = vpack.c.b16 %v5461, %v5453
        %v5782 = vpack.c.b16 %v5462, %v5454
        %v5783 = vpack.c.b16 %v5463, %v5455
        %v5784 = vpack.c.b16 %v5464, %v5456
        %v5785 = vpack.c.b16 %v5465, %v5457
        %v5786 = vpack.c.b16 %v5466, %v5458
        %v5787 = vpack.c.b16 %v5475, %v5467
        %v5788 = vpack.c.b16 %v5476, %v5468
        %v5789 = vpack.c.b16 %v5477, %v5469
        %v5790 = vpack.c.b16 %v5478, %v5470
        %v5791 = vpack.c.b16 %v5479, %v5471
        %v5792 = vpack.c.b16 %v5480, %v5472
        %v5793 = vpack.c.b16 %v5481, %v5473
        %v5794 = vpack.c.b16 %v5482, %v5474
        %v5795 = vpack.c.b16 %v5491, %v5483
        %v5796 = vpack.c.b16 %v5492, %v5484
        %v5797 = vpack.c.b16 %v5493, %v5485
        %v5798 = vpack.c.b16 %v5494, %v5486
        %v5799 = vpack.c.b16 %v5495, %v5487
        %v5800 = vpack.c.b16 %v5496, %v5488
        %v5801 = vpack.c.b16 %v5497, %v5489
        %v5802 = vpack.c.b16 %v5498, %v5490
        %v5803 = vpack.c.b16 %v5507, %v5499
        %v5804 = vpack.c.b16 %v5508, %v5500
        %v5805 = vpack.c.b16 %v5509, %v5501
        %v5806 = vpack.c.b16 %v5510, %v5502
        %v5807 = vpack.c.b16 %v5511, %v5503
        %v5808 = vpack.c.b16 %v5512, %v5504
        %v5809 = vpack.c.b16 %v5513, %v5505
        %v5810 = vpack.c.b16 %v5514, %v5506
        %v5811 = vpack.c.b16 %v5523, %v5515
        %v5812 = vpack.c.b16 %v5524, %v5516
        %v5813 = vpack.c.b16 %v5525, %v5517
        %v5814 = vpack.c.b16 %v5526, %v5518
        %v5815 = vpack.c.b16 %v5527, %v5519
        %v5816 = vpack.c.b16 %v5528, %v5520
        %v5817 = vpack.c.b16 %v5529, %v5521
        %v5818 = vpack.c.b16 %v5530, %v5522
        %v5819 = vpack.c.b16 %v5539, %v5531
        %v5820 = vpack.c.b16 %v5540, %v5532
        %v5821 = vpack.c.b16 %v5541, %v5533
        %v5822 = vpack.c.b16 %v5542, %v5534
        %v5823 = vpack.c.b16 %v5543, %v5535
        %v5824 = vpack.c.b16 %v5544, %v5536
        %v5825 = vpack.c.b16 %v5545, %v5537
        %v5826 = vpack.c.b16 %v5546, %v5538
        %v5827 = vpack.c.b16 %v5555, %v5547
        %v5828 = vpack.c.b16 %v5556, %v5548
        %v5829 = vpack.c.b16 %v5557, %v5549
        %v5830 = vpack.c.b16 %v5558, %v5550
        %v5831 = vpack.c.b16 %v5559, %v5551
        %v5832 = vpack.c.b16 %v5560, %v5552
        %v5833 = vpack.c.b16 %v5561, %v5553
        %v5834 = vpack.c.b16 %v5562, %v5554
        %v5835 = vpack.c.b16 %v5571, %v5563
        %v5836 = vpack.c.b16 %v5572, %v5564
        %v5837 = vpack.c.b16 %v5573, %v5565
        %v5838 = vpack.c.b16 %v5574, %v5566
        %v5839 = vpack.c.b16 %v5575, %v5567
        %v5840 = vpack.c.b16 %v5576, %v5568
        %v5841 = vpack.c.b16 %v5577, %v5569
        %v5842 = vpack.c.b16 %v5578, %v5570
        %v5843 = vpack.c.b16 %v5587, %v5579
        %v5844 = vpack.c.b16 %v5588, %v5580
        %v5845 = vpack.c.b16 %v5589, %v5581
        %v5846 = vpack.c.b16 %v5590, %v5582
        %v5847 = vpack.c.b16 %v5591, %v5583
        %v5848 = vpack.c.b16 %v5592, %v5584
        %v5849 = vpack.c.b16 %v5593, %v5585
        %v5850 = vpack.c.b16 %v5594, %v5586
        %6107 = vmatprep.subr.bf16.mxu0 %v5596
        %6108 = vmatpush1.bf16.msra.mxu0 %v5595
        %6109 = vmatprep.subr.bf16.mxu0 %v5604
        %6110 = vmatpush1.bf16.msra.mxu0 %v5603
        %6111 = vmatprep.subr.bf16.mxu0 %v5612
        %6112 = vmatpush1.bf16.msra.mxu0 %v5611
        %6113 = vmatprep.subr.bf16.mxu0 %v5620
        %6114 = vmatpush1.bf16.msra.mxu0 %v5619
        %6115 = vmatprep.subr.bf16.mxu0 %v5628
        %6116 = vmatpush1.bf16.msra.mxu0 %v5627
        %6117 = vmatprep.subr.bf16.mxu0 %v5636
        %6118 = vmatpush1.bf16.msra.mxu0 %v5635
        %6119 = vmatprep.subr.bf16.mxu0 %v5644
        %6120 = vmatpush1.bf16.msra.mxu0 %v5643
        %6121 = vmatprep.subr.bf16.mxu0 %v5652
        %6122 = vmatpush1.bf16.msra.mxu0 %v5651
        %6123 = vmatprep.subr.bf16.mxu0 %v5660
        %6124 = vmatpush1.bf16.msra.mxu0 %v5659
        %6125 = vmatprep.subr.bf16.mxu0 %v5668
        %6126 = vmatpush1.bf16.msra.mxu0 %v5667
        %6127 = vmatprep.subr.bf16.mxu0 %v5676
        %6128 = vmatpush1.bf16.msra.mxu0 %v5675
        %6129 = vmatprep.subr.bf16.mxu0 %v5684
        %6130 = vmatpush1.bf16.msra.mxu0 %v5683
        %6131 = vmatprep.subr.bf16.mxu0 %v5692
        %6132 = vmatpush1.bf16.msra.mxu0 %v5691
        %6133 = vmatprep.subr.bf16.mxu0 %v5700
        %6134 = vmatpush1.bf16.msra.mxu0 %v5699
        %6135 = vmatprep.subr.bf16.mxu0 %v5708
        %6136 = vmatpush1.bf16.msra.mxu0 %v5707
        %6137 = vmatprep.subr.bf16.mxu0 %v5716
        %6138 = vmatpush1.bf16.msra.mxu0 %v5715
        %6139 = vmatprep.mubr.bf16.mxu0 %v4498
        %6140 = vmatmul.mubr.bf16.gmra.mrb[0].mxu0 %v4497
        %v6141 = vpop.f32.mrb[0].mxu0
        %v6142 = vadd.f32 %v4790, %v6141
        %v6143 = vpop.f32.mrb[0].mxu0
        %v6144 = vadd.f32 %v4794, %v6143
        %v6145 = vpop.f32.mrb[0].mxu0
        %v6146 = vadd.f32 %v4790, %v6145
        %v6147 = vpop.f32.mrb[0].mxu0
        %v6148 = vadd.f32 %v4794, %v6147
        %6149 = vmatprep.mubr.bf16.mxu0 %v4502
        %6150 = vmatmul.mubr.bf16.gmra.mrb[0].mxu0 %v4501
        %v6151 = vpop.f32.mrb[0].mxu0
        %v6152 = vadd.f32 %v4790, %v6151
        %v6153 = vpop.f32.mrb[0].mxu0
        %v6154 = vadd.f32 %v4794, %v6153
        %v6155 = vpop.f32.mrb[0].mxu0
        %v6156 = vadd.f32 %v4790, %v6155
        %v6157 = vpop.f32.mrb[0].mxu0
        %v6158 = vadd.f32 %v4794, %v6157
        %6159 = vmatprep.mubr.bf16.mxu0 %v4506
        %6160 = vmatmul.mubr.bf16.gmra.mrb[0].mxu0 %v4505
        %v6161 = vpop.f32.mrb[0].mxu0
        %v6162 = vadd.f32 %v4790, %v6161
        %v6163 = vpop.f32.mrb[0].mxu0
        %v6164 = vadd.f32 %v4794, %v6163
        %v6165 = vpop.f32.mrb[0].mxu0
        %v6166 = vadd.f32 %v4790, %v6165
        %v6167 = vpop.f32.mrb[0].mxu0
        %v6168 = vadd.f32 %v4794, %v6167
        %6169 = vmatprep.mubr.bf16.mxu0 %v4510
        %6170 = vmatmul.mubr.bf16.gmra.mrb[0].mxu0 %v4509
        %v6171 = vpop.f32.mrb[0].mxu0
        %v6172 = vadd.f32 %v4790, %v6171
        %v6173 = vpop.f32.mrb[0].mxu0
        %v6174 = vadd.f32 %v4794, %v6173
        %v6175 = vpop.f32.mrb[0].mxu0
        %v6176 = vadd.f32 %v4790, %v6175
        %v6177 = vpop.f32.mrb[0].mxu0
        %v6178 = vadd.f32 %v4794, %v6177
        %6179 = vmatprep.mubr.bf16.mxu0 %v4514
        %6180 = vmatmul.mubr.bf16.gmra.mrb[0].mxu0 %v4513
        %v6181 = vpop.f32.mrb[0].mxu0
        %v6182 = vadd.f32 %v4790, %v6181
        %v6183 = vpop.f32.mrb[0].mxu0
        %v6184 = vadd.f32 %v4794, %v6183
        %v6185 = vpop.f32.mrb[0].mxu0
        %v6186 = vadd.f32 %v4790, %v6185
        %v6187 = vpop.f32.mrb[0].mxu0
        %v6188 = vadd.f32 %v4794, %v6187
        %6189 = vmatprep.mubr.bf16.mxu0 %v4518
        %6190 = vmatmul.mubr.bf16.gmra.mrb[0].mxu0 %v4517
        %v6191 = vpop.f32.mrb[0].mxu0
        %v6192 = vadd.f32 %v4790, %v6191
        %v6193 = vpop.f32.mrb[0].mxu0
        %v6194 = vadd.f32 %v4794, %v6193
        %v6195 = vpop.f32.mrb[0].mxu0
        %v6196 = vadd.f32 %v4790, %v6195
        %v6197 = vpop.f32.mrb[0].mxu0
        %v6198 = vadd.f32 %v4794, %v6197
        %6199 = vmatprep.mubr.bf16.mxu0 %v4522
        %6200 = vmatmul.mubr.bf16.gmra.mrb[0].mxu0 %v4521
        %v6201 = vpop.f32.mrb[0].mxu0
        %v6202 = vadd.f32 %v4790, %v6201
        %v6203 = vpop.f32.mrb[0].mxu0
        %v6204 = vadd.f32 %v4794, %v6203
        %v6205 = vpop.f32.mrb[0].mxu0
        %v6206 = vadd.f32 %v4790, %v6205
        %v6207 = vpop.f32.mrb[0].mxu0
        %v6208 = vadd.f32 %v4794, %v6207
        %6209 = vmatprep.mubr.bf16.mxu0 %v4526
        %6210 = vmatmul.mubr.bf16.gmra.mrb[0].mxu0 %v4525
        %v6211 = vpop.f32.mrb[0].mxu0
        %v6212 = vadd.f32 %v4790, %v6211
        %v6213 = vpop.f32.mrb[0].mxu0
        %v6214 = vadd.f32 %v4794, %v6213
        %v6215 = vpop.f32.mrb[0].mxu0
        %v6216 = vadd.f32 %v4790, %v6215
        %v6217 = vpop.f32.mrb[0].mxu0
        %v6218 = vadd.f32 %v4794, %v6217
        %6219 = vdwg.mxu0
        %6220 = vmatprep.subr.bf16.mxu0 %v5724
        %6221 = vmatpush1.bf16.msra.mxu0 %v5723
        %6222 = vmatprep.subr.bf16.mxu0 %v5732
        %6223 = vmatpush1.bf16.msra.mxu0 %v5731
        %6224 = vmatprep.subr.bf16.mxu0 %v5740
        %6225 = vmatpush1.bf16.msra.mxu0 %v5739
        %6226 = vmatprep.subr.bf16.mxu0 %v5748
        %6227 = vmatpush1.bf16.msra.mxu0 %v5747
        %6228 = vmatprep.subr.bf16.mxu0 %v5756
        %6229 = vmatpush1.bf16.msra.mxu0 %v5755
        %6230 = vmatprep.subr.bf16.mxu0 %v5764
        %6231 = vmatpush1.bf16.msra.mxu0 %v5763
        %6232 = vmatprep.subr.bf16.mxu0 %v5772
        %6233 = vmatpush1.bf16.msra.mxu0 %v5771
        %6234 = vmatprep.subr.bf16.mxu0 %v5780
        %6235 = vmatpush1.bf16.msra.mxu0 %v5779
        %6236 = vmatprep.subr.bf16.mxu0 %v5788
        %6237 = vmatpush1.bf16.msra.mxu0 %v5787
        %6238 = vmatprep.subr.bf16.mxu0 %v5796
        %6239 = vmatpush1.bf16.msra.mxu0 %v5795
        %6240 = vmatprep.subr.bf16.mxu0 %v5804
        %6241 = vmatpush1.bf16.msra.mxu0 %v5803
        %6242 = vmatprep.subr.bf16.mxu0 %v5812
        %6243 = vmatpush1.bf16.msra.mxu0 %v5811
        %6244 = vmatprep.subr.bf16.mxu0 %v5820
        %6245 = vmatpush1.bf16.msra.mxu0 %v5819
        %6246 = vmatprep.subr.bf16.mxu0 %v5828
        %6247 = vmatpush1.bf16.msra.mxu0 %v5827
        %6248 = vmatprep.subr.bf16.mxu0 %v5836
        %6249 = vmatpush1.bf16.msra.mxu0 %v5835
        %6250 = vmatprep.subr.bf16.mxu0 %v5844
        %6251 = vmatpush1.bf16.msra.mxu0 %v5843
        %6252 = vmatprep.mubr.bf16.mxu0 %v4500
        %6253 = vmatmul.mubr.bf16.gmra.mrb[0].mxu0 %v4499
        %v6254 = vpop.f32.mrb[0].mxu0
        %v6255 = vadd.f32 %v6142, %v6254
        %v6256 = vpop.f32.mrb[0].mxu0
        %v6257 = vadd.f32 %v6144, %v6256
        %v6258 = vpop.f32.mrb[0].mxu0
        %v6259 = vadd.f32 %v6146, %v6258
        %v6260 = vpop.f32.mrb[0].mxu0
        %v6261 = vadd.f32 %v6148, %v6260
        %6262 = vmatprep.mubr.bf16.mxu0 %v4504
        %6263 = vmatmul.mubr.bf16.gmra.mrb[0].mxu0 %v4503
        %v6264 = vpop.f32.mrb[0].mxu0
        %v6265 = vadd.f32 %v6152, %v6264
        %v6266 = vpop.f32.mrb[0].mxu0
        %v6267 = vadd.f32 %v6154, %v6266
        %v6268 = vpop.f32.mrb[0].mxu0
        %v6269 = vadd.f32 %v6156, %v6268
        %v6270 = vpop.f32.mrb[0].mxu0
        %v6271 = vadd.f32 %v6158, %v6270
        %6272 = vmatprep.mubr.bf16.mxu0 %v4508
        %6273 = vmatmul.mubr.bf16.gmra.mrb[0].mxu0 %v4507
        %v6274 = vpop.f32.mrb[0].mxu0
        %v6275 = vadd.f32 %v6162, %v6274
        %v6276 = vpop.f32.mrb[0].mxu0
        %v6277 = vadd.f32 %v6164, %v6276
        %v6278 = vpop.f32.mrb[0].mxu0
        %v6279 = vadd.f32 %v6166, %v6278
        %v6280 = vpop.f32.mrb[0].mxu0
        %v6281 = vadd.f32 %v6168, %v6280
        %6282 = vmatprep.mubr.bf16.mxu0 %v4512
        %6283 = vmatmul.mubr.bf16.gmra.mrb[0].mxu0 %v4511
        %v6284 = vpop.f32.mrb[0].mxu0
        %v6285 = vadd.f32 %v6172, %v6284
        %v6286 = vpop.f32.mrb[0].mxu0
        %v6287 = vadd.f32 %v6174, %v6286
        %v6288 = vpop.f32.mrb[0].mxu0
        %v6289 = vadd.f32 %v6176, %v6288
        %v6290 = vpop.f32.mrb[0].mxu0
        %v6291 = vadd.f32 %v6178, %v6290
        %6292 = vmatprep.mubr.bf16.mxu0 %v4516
        %6293 = vmatmul.mubr.bf16.gmra.mrb[0].mxu0 %v4515
        %v6294 = vpop.f32.mrb[0].mxu0
        %v6295 = vadd.f32 %v6182, %v6294
        %v6296 = vpop.f32.mrb[0].mxu0
        %v6297 = vadd.f32 %v6184, %v6296
        %v6298 = vpop.f32.mrb[0].mxu0
        %v6299 = vadd.f32 %v6186, %v6298
        %v6300 = vpop.f32.mrb[0].mxu0
        %v6301 = vadd.f32 %v6188, %v6300
        %6302 = vmatprep.mubr.bf16.mxu0 %v4520
        %6303 = vmatmul.mubr.bf16.gmra.mrb[0].mxu0 %v4519
        %v6304 = vpop.f32.mrb[0].mxu0
        %v6305 = vadd.f32 %v6192, %v6304
        %v6306 = vpop.f32.mrb[0].mxu0
        %v6307 = vadd.f32 %v6194, %v6306
        %v6308 = vpop.f32.mrb[0].mxu0
        %v6309 = vadd.f32 %v6196, %v6308
        %v6310 = vpop.f32.mrb[0].mxu0
        %v6311 = vadd.f32 %v6198, %v6310
        %6312 = vmatprep.mubr.bf16.mxu0 %v4524
        %6313 = vmatmul.mubr.bf16.gmra.mrb[0].mxu0 %v4523
        %v6314 = vpop.f32.mrb[0].mxu0
        %v6315 = vadd.f32 %v6202, %v6314
        %v6316 = vpop.f32.mrb[0].mxu0
        %v6317 = vadd.f32 %v6204, %v6316
        %v6318 = vpop.f32.mrb[0].mxu0
        %v6319 = vadd.f32 %v6206, %v6318
        %v6320 = vpop.f32.mrb[0].mxu0
        %v6321 = vadd.f32 %v6208, %v6320
        %6322 = vmatprep.mubr.bf16.mxu0 %v4528
        %6323 = vmatmul.mubr.bf16.gmra.mrb[0].mxu0 %v4527
        %v6324 = vpop.f32.mrb[0].mxu0
        %v6325 = vadd.f32 %v6212, %v6324
        %v6326 = vpop.f32.mrb[0].mxu0
        %v6327 = vadd.f32 %v6214, %v6326
        %v6328 = vpop.f32.mrb[0].mxu0
        %v6329 = vadd.f32 %v6216, %v6328
        %v6330 = vpop.f32.mrb[0].mxu0
        %v6331 = vadd.f32 %v6218, %v6330
        %6332 = vdwg.mxu0
        %6333 = vmatprep.subr.bf16.mxu0 %v5598
        %6334 = vmatpush1.bf16.msra.mxu0 %v5597
        %6335 = vmatprep.subr.bf16.mxu0 %v5606
        %6336 = vmatpush1.bf16.msra.mxu0 %v5605
        %6337 = vmatprep.subr.bf16.mxu0 %v5614
        %6338 = vmatpush1.bf16.msra.mxu0 %v5613
        %6339 = vmatprep.subr.bf16.mxu0 %v5622
        %6340 = vmatpush1.bf16.msra.mxu0 %v5621
        %6341 = vmatprep.subr.bf16.mxu0 %v5630
        %6342 = vmatpush1.bf16.msra.mxu0 %v5629
        %6343 = vmatprep.subr.bf16.mxu0 %v5638
        %6344 = vmatpush1.bf16.msra.mxu0 %v5637
        %6345 = vmatprep.subr.bf16.mxu0 %v5646
        %6346 = vmatpush1.bf16.msra.mxu0 %v5645
        %6347 = vmatprep.subr.bf16.mxu0 %v5654
        %6348 = vmatpush1.bf16.msra.mxu0 %v5653
        %6349 = vmatprep.subr.bf16.mxu0 %v5662
        %6350 = vmatpush1.bf16.msra.mxu0 %v5661
        %6351 = vmatprep.subr.bf16.mxu0 %v5670
        %6352 = vmatpush1.bf16.msra.mxu0 %v5669
        %6353 = vmatprep.subr.bf16.mxu0 %v5678
        %6354 = vmatpush1.bf16.msra.mxu0 %v5677
        %6355 = vmatprep.subr.bf16.mxu0 %v5686
        %6356 = vmatpush1.bf16.msra.mxu0 %v5685
        %6357 = vmatprep.subr.bf16.mxu0 %v5694
        %6358 = vmatpush1.bf16.msra.mxu0 %v5693
        %6359 = vmatprep.subr.bf16.mxu0 %v5702
        %6360 = vmatpush1.bf16.msra.mxu0 %v5701
        %6361 = vmatprep.subr.bf16.mxu0 %v5710
        %6362 = vmatpush1.bf16.msra.mxu0 %v5709
        %6363 = vmatprep.subr.bf16.mxu0 %v5718
        %6364 = vmatpush1.bf16.msra.mxu0 %v5717
        %6365 = vmatprep.mubr.bf16.mxu0 %v4498
        %6366 = vmatmul.mubr.bf16.gmra.mrb[0].mxu0 %v4497
        %v6367 = vpop.f32.mrb[0].mxu0
        %v6368 = vadd.f32 %v4798, %v6367
        %v6369 = vpop.f32.mrb[0].mxu0
        %v6370 = vadd.f32 %v4802, %v6369
        %v6371 = vpop.f32.mrb[0].mxu0
        %v6372 = vadd.f32 %v4798, %v6371
        %v6373 = vpop.f32.mrb[0].mxu0
        %v6374 = vadd.f32 %v4802, %v6373
        %6375 = vmatprep.mubr.bf16.mxu0 %v4502
        %6376 = vmatmul.mubr.bf16.gmra.mrb[0].mxu0 %v4501
        %v6377 = vpop.f32.mrb[0].mxu0
        %v6378 = vadd.f32 %v4798, %v6377
        %v6379 = vpop.f32.mrb[0].mxu0
        %v6380 = vadd.f32 %v4802, %v6379
        %v6381 = vpop.f32.mrb[0].mxu0
        %v6382 = vadd.f32 %v4798, %v6381
        %v6383 = vpop.f32.mrb[0].mxu0
        %v6384 = vadd.f32 %v4802, %v6383
        %6385 = vmatprep.mubr.bf16.mxu0 %v4506
        %6386 = vmatmul.mubr.bf16.gmra.mrb[0].mxu0 %v4505
        %v6387 = vpop.f32.mrb[0].mxu0
        %v6388 = vadd.f32 %v4798, %v6387
        %v6389 = vpop.f32.mrb[0].mxu0
        %v6390 = vadd.f32 %v4802, %v6389
        %v6391 = vpop.f32.mrb[0].mxu0
        %v6392 = vadd.f32 %v4798, %v6391
        %v6393 = vpop.f32.mrb[0].mxu0
        %v6394 = vadd.f32 %v4802, %v6393
        %6395 = vmatprep.mubr.bf16.mxu0 %v4510
        %6396 = vmatmul.mubr.bf16.gmra.mrb[0].mxu0 %v4509
        %v6397 = vpop.f32.mrb[0].mxu0
        %v6398 = vadd.f32 %v4798, %v6397
        %v6399 = vpop.f32.mrb[0].mxu0
        %v6400 = vadd.f32 %v4802, %v6399
        %v6401 = vpop.f32.mrb[0].mxu0
        %v6402 = vadd.f32 %v4798, %v6401
        %v6403 = vpop.f32.mrb[0].mxu0
        %v6404 = vadd.f32 %v4802, %v6403
        %6405 = vmatprep.mubr.bf16.mxu0 %v4514
        %6406 = vmatmul.mubr.bf16.gmra.mrb[0].mxu0 %v4513
        %v6407 = vpop.f32.mrb[0].mxu0
        %v6408 = vadd.f32 %v4798, %v6407
        %v6409 = vpop.f32.mrb[0].mxu0
        %v6410 = vadd.f32 %v4802, %v6409
        %v6411 = vpop.f32.mrb[0].mxu0
        %v6412 = vadd.f32 %v4798, %v6411
        %v6413 = vpop.f32.mrb[0].mxu0
        %v6414 = vadd.f32 %v4802, %v6413
        %6415 = vmatprep.mubr.bf16.mxu0 %v4518
        %6416 = vmatmul.mubr.bf16.gmra.mrb[0].mxu0 %v4517
        %v6417 = vpop.f32.mrb[0].mxu0
        %v6418 = vadd.f32 %v4798, %v6417
        %v6419 = vpop.f32.mrb[0].mxu0
        %v6420 = vadd.f32 %v4802, %v6419
        %v6421 = vpop.f32.mrb[0].mxu0
        %v6422 = vadd.f32 %v4798, %v6421
        %v6423 = vpop.f32.mrb[0].mxu0
        %v6424 = vadd.f32 %v4802, %v6423
        %6425 = vmatprep.mubr.bf16.mxu0 %v4522
        %6426 = vmatmul.mubr.bf16.gmra.mrb[0].mxu0 %v4521
        %v6427 = vpop.f32.mrb[0].mxu0
        %v6428 = vadd.f32 %v4798, %v6427
        %v6429 = vpop.f32.mrb[0].mxu0
        %v6430 = vadd.f32 %v4802, %v6429
        %v6431 = vpop.f32.mrb[0].mxu0
        %v6432 = vadd.f32 %v4798, %v6431
        %v6433 = vpop.f32.mrb[0].mxu0
        %v6434 = vadd.f32 %v4802, %v6433
        %6435 = vmatprep.mubr.bf16.mxu0 %v4526
        %6436 = vmatmul.mubr.bf16.gmra.mrb[0].mxu0 %v4525
        %v6437 = vpop.f32.mrb[0].mxu0
        %v6438 = vadd.f32 %v4798, %v6437
        %v6439 = vpop.f32.mrb[0].mxu0
        %v6440 = vadd.f32 %v4802, %v6439
        %v6441 = vpop.f32.mrb[0].mxu0
        %v6442 = vadd.f32 %v4798, %v6441
        %v6443 = vpop.f32.mrb[0].mxu0
        %v6444 = vadd.f32 %v4802, %v6443
        %6445 = vdwg.mxu0
        %6446 = vmatprep.subr.bf16.mxu0 %v5726
        %6447 = vmatpush1.bf16.msra.mxu0 %v5725
        %6448 = vmatprep.subr.bf16.mxu0 %v5734
        %6449 = vmatpush1.bf16.msra.mxu0 %v5733
        %6450 = vmatprep.subr.bf16.mxu0 %v5742
        %6451 = vmatpush1.bf16.msra.mxu0 %v5741
        %6452 = vmatprep.subr.bf16.mxu0 %v5750
        %6453 = vmatpush1.bf16.msra.mxu0 %v5749
        %6454 = vmatprep.subr.bf16.mxu0 %v5758
        %6455 = vmatpush1.bf16.msra.mxu0 %v5757
        %6456 = vmatprep.subr.bf16.mxu0 %v5766
        %6457 = vmatpush1.bf16.msra.mxu0 %v5765
        %6458 = vmatprep.subr.bf16.mxu0 %v5774
        %6459 = vmatpush1.bf16.msra.mxu0 %v5773
        %6460 = vmatprep.subr.bf16.mxu0 %v5782
        %6461 = vmatpush1.bf16.msra.mxu0 %v5781
        %6462 = vmatprep.subr.bf16.mxu0 %v5790
        %6463 = vmatpush1.bf16.msra.mxu0 %v5789
        %6464 = vmatprep.subr.bf16.mxu0 %v5798
        %6465 = vmatpush1.bf16.msra.mxu0 %v5797
        %6466 = vmatprep.subr.bf16.mxu0 %v5806
        %6467 = vmatpush1.bf16.msra.mxu0 %v5805
        %6468 = vmatprep.subr.bf16.mxu0 %v5814
        %6469 = vmatpush1.bf16.msra.mxu0 %v5813
        %6470 = vmatprep.subr.bf16.mxu0 %v5822
        %6471 = vmatpush1.bf16.msra.mxu0 %v5821
        %6472 = vmatprep.subr.bf16.mxu0 %v5830
        %6473 = vmatpush1.bf16.msra.mxu0 %v5829
        %6474 = vmatprep.subr.bf16.mxu0 %v5838
        %6475 = vmatpush1.bf16.msra.mxu0 %v5837
        %6476 = vmatprep.subr.bf16.mxu0 %v5846
        %6477 = vmatpush1.bf16.msra.mxu0 %v5845
        %6478 = vmatprep.mubr.bf16.mxu0 %v4500
        %6479 = vmatmul.mubr.bf16.gmra.mrb[0].mxu0 %v4499
        %v6480 = vpop.f32.mrb[0].mxu0
        %v6481 = vadd.f32 %v6368, %v6480
        %v6482 = vpop.f32.mrb[0].mxu0
        %v6483 = vadd.f32 %v6370, %v6482
        %v6484 = vpop.f32.mrb[0].mxu0
        %v6485 = vadd.f32 %v6372, %v6484
        %v6486 = vpop.f32.mrb[0].mxu0
        %v6487 = vadd.f32 %v6374, %v6486
        %6488 = vmatprep.mubr.bf16.mxu0 %v4504
        %6489 = vmatmul.mubr.bf16.gmra.mrb[0].mxu0 %v4503
        %v6490 = vpop.f32.mrb[0].mxu0
        %v6491 = vadd.f32 %v6378, %v6490
        %v6492 = vpop.f32.mrb[0].mxu0
        %v6493 = vadd.f32 %v6380, %v6492
        %v6494 = vpop.f32.mrb[0].mxu0
        %v6495 = vadd.f32 %v6382, %v6494
        %v6496 = vpop.f32.mrb[0].mxu0
        %v6497 = vadd.f32 %v6384, %v6496
        %6498 = vmatprep.mubr.bf16.mxu0 %v4508
        %6499 = vmatmul.mubr.bf16.gmra.mrb[0].mxu0 %v4507
        %v6500 = vpop.f32.mrb[0].mxu0
        %v6501 = vadd.f32 %v6388, %v6500
        %v6502 = vpop.f32.mrb[0].mxu0
        %v6503 = vadd.f32 %v6390, %v6502
        %v6504 = vpop.f32.mrb[0].mxu0
        %v6505 = vadd.f32 %v6392, %v6504
        %v6506 = vpop.f32.mrb[0].mxu0
        %v6507 = vadd.f32 %v6394, %v6506
        %6508 = vmatprep.mubr.bf16.mxu0 %v4512
        %6509 = vmatmul.mubr.bf16.gmra.mrb[0].mxu0 %v4511
        %v6510 = vpop.f32.mrb[0].mxu0
        %v6511 = vadd.f32 %v6398, %v6510
        %v6512 = vpop.f32.mrb[0].mxu0
        %v6513 = vadd.f32 %v6400, %v6512
        %v6514 = vpop.f32.mrb[0].mxu0
        %v6515 = vadd.f32 %v6402, %v6514
        %v6516 = vpop.f32.mrb[0].mxu0
        %v6517 = vadd.f32 %v6404, %v6516
        %6518 = vmatprep.mubr.bf16.mxu0 %v4516
        %6519 = vmatmul.mubr.bf16.gmra.mrb[0].mxu0 %v4515
        %v6520 = vpop.f32.mrb[0].mxu0
        %v6521 = vadd.f32 %v6408, %v6520
        %v6522 = vpop.f32.mrb[0].mxu0
        %v6523 = vadd.f32 %v6410, %v6522
        %v6524 = vpop.f32.mrb[0].mxu0
        %v6525 = vadd.f32 %v6412, %v6524
        %v6526 = vpop.f32.mrb[0].mxu0
        %v6527 = vadd.f32 %v6414, %v6526
        %6528 = vmatprep.mubr.bf16.mxu0 %v4520
        %6529 = vmatmul.mubr.bf16.gmra.mrb[0].mxu0 %v4519
        %v6530 = vpop.f32.mrb[0].mxu0
        %v6531 = vadd.f32 %v6418, %v6530
        %v6532 = vpop.f32.mrb[0].mxu0
        %v6533 = vadd.f32 %v6420, %v6532
        %v6534 = vpop.f32.mrb[0].mxu0
        %v6535 = vadd.f32 %v6422, %v6534
        %v6536 = vpop.f32.mrb[0].mxu0
        %v6537 = vadd.f32 %v6424, %v6536
        %6538 = vmatprep.mubr.bf16.mxu0 %v4524
        %6539 = vmatmul.mubr.bf16.gmra.mrb[0].mxu0 %v4523
        %v6540 = vpop.f32.mrb[0].mxu0
        %v6541 = vadd.f32 %v6428, %v6540
        %v6542 = vpop.f32.mrb[0].mxu0
        %v6543 = vadd.f32 %v6430, %v6542
        %v6544 = vpop.f32.mrb[0].mxu0
        %v6545 = vadd.f32 %v6432, %v6544
        %v6546 = vpop.f32.mrb[0].mxu0
        %v6547 = vadd.f32 %v6434, %v6546
        %6548 = vmatprep.mubr.bf16.mxu0 %v4528
        %6549 = vmatmul.mubr.bf16.gmra.mrb[0].mxu0 %v4527
        %v6550 = vpop.f32.mrb[0].mxu0
        %v6551 = vadd.f32 %v6438, %v6550
        %v6552 = vpop.f32.mrb[0].mxu0
        %v6553 = vadd.f32 %v6440, %v6552
        %v6554 = vpop.f32.mrb[0].mxu0
        %v6555 = vadd.f32 %v6442, %v6554
        %v6556 = vpop.f32.mrb[0].mxu0
        %v6557 = vadd.f32 %v6444, %v6556
        %6558 = vdwg.mxu0
        %6559 = vmatprep.subr.bf16.mxu0 %v5600
        %6560 = vmatpush1.bf16.msra.mxu0 %v5599
        %6561 = vmatprep.subr.bf16.mxu0 %v5608
        %6562 = vmatpush1.bf16.msra.mxu0 %v5607
        %6563 = vmatprep.subr.bf16.mxu0 %v5616
        %6564 = vmatpush1.bf16.msra.mxu0 %v5615
        %6565 = vmatprep.subr.bf16.mxu0 %v5624
        %6566 = vmatpush1.bf16.msra.mxu0 %v5623
        %6567 = vmatprep.subr.bf16.mxu0 %v5632
        %6568 = vmatpush1.bf16.msra.mxu0 %v5631
        %6569 = vmatprep.subr.bf16.mxu0 %v5640
        %6570 = vmatpush1.bf16.msra.mxu0 %v5639
        %6571 = vmatprep.subr.bf16.mxu0 %v5648
        %6572 = vmatpush1.bf16.msra.mxu0 %v5647
        %6573 = vmatprep.subr.bf16.mxu0 %v5656
        %6574 = vmatpush1.bf16.msra.mxu0 %v5655
        %6575 = vmatprep.subr.bf16.mxu0 %v5664
        %6576 = vmatpush1.bf16.msra.mxu0 %v5663
        %6577 = vmatprep.subr.bf16.mxu0 %v5672
        %6578 = vmatpush1.bf16.msra.mxu0 %v5671
        %6579 = vmatprep.subr.bf16.mxu0 %v5680
        %6580 = vmatpush1.bf16.msra.mxu0 %v5679
        %6581 = vmatprep.subr.bf16.mxu0 %v5688
        %6582 = vmatpush1.bf16.msra.mxu0 %v5687
        %6583 = vmatprep.subr.bf16.mxu0 %v5696
        %6584 = vmatpush1.bf16.msra.mxu0 %v5695
        %6585 = vmatprep.subr.bf16.mxu0 %v5704
        %6586 = vmatpush1.bf16.msra.mxu0 %v5703
        %6587 = vmatprep.subr.bf16.mxu0 %v5712
        %6588 = vmatpush1.bf16.msra.mxu0 %v5711
        %6589 = vmatprep.subr.bf16.mxu0 %v5720
        %6590 = vmatpush1.bf16.msra.mxu0 %v5719
        %6591 = vmatprep.mubr.bf16.mxu0 %v4498
        %6592 = vmatmul.mubr.bf16.gmra.mrb[0].mxu0 %v4497
        %v6593 = vpop.f32.mrb[0].mxu0
        %v6594 = vadd.f32 %v4806, %v6593
        %v6595 = vpop.f32.mrb[0].mxu0
        %v6596 = vadd.f32 %v4810, %v6595
        %v6597 = vpop.f32.mrb[0].mxu0
        %v6598 = vadd.f32 %v4806, %v6597
        %v6599 = vpop.f32.mrb[0].mxu0
        %v6600 = vadd.f32 %v4810, %v6599
        %6601 = vmatprep.mubr.bf16.mxu0 %v4502
        %6602 = vmatmul.mubr.bf16.gmra.mrb[0].mxu0 %v4501
        %v6603 = vpop.f32.mrb[0].mxu0
        %v6604 = vadd.f32 %v4806, %v6603
        %v6605 = vpop.f32.mrb[0].mxu0
        %v6606 = vadd.f32 %v4810, %v6605
        %v6607 = vpop.f32.mrb[0].mxu0
        %v6608 = vadd.f32 %v4806, %v6607
        %v6609 = vpop.f32.mrb[0].mxu0
        %v6610 = vadd.f32 %v4810, %v6609
        %6611 = vmatprep.mubr.bf16.mxu0 %v4506
        %6612 = vmatmul.mubr.bf16.gmra.mrb[0].mxu0 %v4505
        %v6613 = vpop.f32.mrb[0].mxu0
        %v6614 = vadd.f32 %v4806, %v6613
        %v6615 = vpop.f32.mrb[0].mxu0
        %v6616 = vadd.f32 %v4810, %v6615
        %v6617 = vpop.f32.mrb[0].mxu0
        %v6618 = vadd.f32 %v4806, %v6617
        %v6619 = vpop.f32.mrb[0].mxu0
        %v6620 = vadd.f32 %v4810, %v6619
        %6621 = vmatprep.mubr.bf16.mxu0 %v4510
        %6622 = vmatmul.mubr.bf16.gmra.mrb[0].mxu0 %v4509
        %v6623 = vpop.f32.mrb[0].mxu0
        %v6624 = vadd.f32 %v4806, %v6623
        %v6625 = vpop.f32.mrb[0].mxu0
        %v6626 = vadd.f32 %v4810, %v6625
        %v6627 = vpop.f32.mrb[0].mxu0
        %v6628 = vadd.f32 %v4806, %v6627
        %v6629 = vpop.f32.mrb[0].mxu0
        %v6630 = vadd.f32 %v4810, %v6629
        %6631 = vmatprep.mubr.bf16.mxu0 %v4514
        %6632 = vmatmul.mubr.bf16.gmra.mrb[0].mxu0 %v4513
        %v6633 = vpop.f32.mrb[0].mxu0
        %v6634 = vadd.f32 %v4806, %v6633
        %v6635 = vpop.f32.mrb[0].mxu0
        %v6636 = vadd.f32 %v4810, %v6635
        %v6637 = vpop.f32.mrb[0].mxu0
        %v6638 = vadd.f32 %v4806, %v6637
        %v6639 = vpop.f32.mrb[0].mxu0
        %v6640 = vadd.f32 %v4810, %v6639
        %6641 = vmatprep.mubr.bf16.mxu0 %v4518
        %6642 = vmatmul.mubr.bf16.gmra.mrb[0].mxu0 %v4517
        %v6643 = vpop.f32.mrb[0].mxu0
        %v6644 = vadd.f32 %v4806, %v6643
        %v6645 = vpop.f32.mrb[0].mxu0
        %v6646 = vadd.f32 %v4810, %v6645
        %v6647 = vpop.f32.mrb[0].mxu0
        %v6648 = vadd.f32 %v4806, %v6647
        %v6649 = vpop.f32.mrb[0].mxu0
        %v6650 = vadd.f32 %v4810, %v6649
        %6651 = vmatprep.mubr.bf16.mxu0 %v4522
        %6652 = vmatmul.mubr.bf16.gmra.mrb[0].mxu0 %v4521
        %v6653 = vpop.f32.mrb[0].mxu0
        %v6654 = vadd.f32 %v4806, %v6653
        %v6655 = vpop.f32.mrb[0].mxu0
        %v6656 = vadd.f32 %v4810, %v6655
        %v6657 = vpop.f32.mrb[0].mxu0
        %v6658 = vadd.f32 %v4806, %v6657
        %v6659 = vpop.f32.mrb[0].mxu0
        %v6660 = vadd.f32 %v4810, %v6659
        %6661 = vmatprep.mubr.bf16.mxu0 %v4526
        %6662 = vmatmul.mubr.bf16.gmra.mrb[0].mxu0 %v4525
        %v6663 = vpop.f32.mrb[0].mxu0
        %v6664 = vadd.f32 %v4806, %v6663
        %v6665 = vpop.f32.mrb[0].mxu0
        %v6666 = vadd.f32 %v4810, %v6665
        %v6667 = vpop.f32.mrb[0].mxu0
        %v6668 = vadd.f32 %v4806, %v6667
        %v6669 = vpop.f32.mrb[0].mxu0
        %v6670 = vadd.f32 %v4810, %v6669
        %6671 = vdwg.mxu0
        %6672 = vmatprep.subr.bf16.mxu0 %v5728
        %6673 = vmatpush1.bf16.msra.mxu0 %v5727
        %6674 = vmatprep.subr.bf16.mxu0 %v5736
        %6675 = vmatpush1.bf16.msra.mxu0 %v5735
        %6676 = vmatprep.subr.bf16.mxu0 %v5744
        %6677 = vmatpush1.bf16.msra.mxu0 %v5743
        %6678 = vmatprep.subr.bf16.mxu0 %v5752
        %6679 = vmatpush1.bf16.msra.mxu0 %v5751
        %6680 = vmatprep.subr.bf16.mxu0 %v5760
        %6681 = vmatpush1.bf16.msra.mxu0 %v5759
        %6682 = vmatprep.subr.bf16.mxu0 %v5768
        %6683 = vmatpush1.bf16.msra.mxu0 %v5767
        %6684 = vmatprep.subr.bf16.mxu0 %v5776
        %6685 = vmatpush1.bf16.msra.mxu0 %v5775
        %6686 = vmatprep.subr.bf16.mxu0 %v5784
        %6687 = vmatpush1.bf16.msra.mxu0 %v5783
        %6688 = vmatprep.subr.bf16.mxu0 %v5792
        %6689 = vmatpush1.bf16.msra.mxu0 %v5791
        %6690 = vmatprep.subr.bf16.mxu0 %v5800
        %6691 = vmatpush1.bf16.msra.mxu0 %v5799
        %6692 = vmatprep.subr.bf16.mxu0 %v5808
        %6693 = vmatpush1.bf16.msra.mxu0 %v5807
        %6694 = vmatprep.subr.bf16.mxu0 %v5816
        %6695 = vmatpush1.bf16.msra.mxu0 %v5815
        %6696 = vmatprep.subr.bf16.mxu0 %v5824
        %6697 = vmatpush1.bf16.msra.mxu0 %v5823
        %6698 = vmatprep.subr.bf16.mxu0 %v5832
        %6699 = vmatpush1.bf16.msra.mxu0 %v5831
        %6700 = vmatprep.subr.bf16.mxu0 %v5840
        %6701 = vmatpush1.bf16.msra.mxu0 %v5839
        %6702 = vmatprep.subr.bf16.mxu0 %v5848
        %6703 = vmatpush1.bf16.msra.mxu0 %v5847
        %6704 = vmatprep.mubr.bf16.mxu0 %v4500
        %6705 = vmatmul.mubr.bf16.gmra.mrb[0].mxu0 %v4499
        %v6706 = vpop.f32.mrb[0].mxu0
        %v6707 = vadd.f32 %v6594, %v6706
        %v6708 = vpop.f32.mrb[0].mxu0
        %v6709 = vadd.f32 %v6596, %v6708
        %v6710 = vpop.f32.mrb[0].mxu0
        %v6711 = vadd.f32 %v6598, %v6710
        %v6712 = vpop.f32.mrb[0].mxu0
        %v6713 = vadd.f32 %v6600, %v6712
        %6714 = vmatprep.mubr.bf16.mxu0 %v4504
        %6715 = vmatmul.mubr.bf16.gmra.mrb[0].mxu0 %v4503
        %v6716 = vpop.f32.mrb[0].mxu0
        %v6717 = vadd.f32 %v6604, %v6716
        %v6718 = vpop.f32.mrb[0].mxu0
        %v6719 = vadd.f32 %v6606, %v6718
        %v6720 = vpop.f32.mrb[0].mxu0
        %v6721 = vadd.f32 %v6608, %v6720
        %v6722 = vpop.f32.mrb[0].mxu0
        %v6723 = vadd.f32 %v6610, %v6722
        %6724 = vmatprep.mubr.bf16.mxu0 %v4508
        %6725 = vmatmul.mubr.bf16.gmra.mrb[0].mxu0 %v4507
        %v6726 = vpop.f32.mrb[0].mxu0
        %v6727 = vadd.f32 %v6614, %v6726
        %v6728 = vpop.f32.mrb[0].mxu0
        %v6729 = vadd.f32 %v6616, %v6728
        %v6730 = vpop.f32.mrb[0].mxu0
        %v6731 = vadd.f32 %v6618, %v6730
        %v6732 = vpop.f32.mrb[0].mxu0
        %v6733 = vadd.f32 %v6620, %v6732
        %6734 = vmatprep.mubr.bf16.mxu0 %v4512
        %6735 = vmatmul.mubr.bf16.gmra.mrb[0].mxu0 %v4511
        %v6736 = vpop.f32.mrb[0].mxu0
        %v6737 = vadd.f32 %v6624, %v6736
        %v6738 = vpop.f32.mrb[0].mxu0
        %v6739 = vadd.f32 %v6626, %v6738
        %v6740 = vpop.f32.mrb[0].mxu0
        %v6741 = vadd.f32 %v6628, %v6740
        %v6742 = vpop.f32.mrb[0].mxu0
        %v6743 = vadd.f32 %v6630, %v6742
        %6744 = vmatprep.mubr.bf16.mxu0 %v4516
        %6745 = vmatmul.mubr.bf16.gmra.mrb[0].mxu0 %v4515
        %v6746 = vpop.f32.mrb[0].mxu0
        %v6747 = vadd.f32 %v6634, %v6746
        %v6748 = vpop.f32.mrb[0].mxu0
        %v6749 = vadd.f32 %v6636, %v6748
        %v6750 = vpop.f32.mrb[0].mxu0
        %v6751 = vadd.f32 %v6638, %v6750
        %v6752 = vpop.f32.mrb[0].mxu0
        %v6753 = vadd.f32 %v6640, %v6752
        %6754 = vmatprep.mubr.bf16.mxu0 %v4520
        %6755 = vmatmul.mubr.bf16.gmra.mrb[0].mxu0 %v4519
        %v6756 = vpop.f32.mrb[0].mxu0
        %v6757 = vadd.f32 %v6644, %v6756
        %v6758 = vpop.f32.mrb[0].mxu0
        %v6759 = vadd.f32 %v6646, %v6758
        %v6760 = vpop.f32.mrb[0].mxu0
        %v6761 = vadd.f32 %v6648, %v6760
        %v6762 = vpop.f32.mrb[0].mxu0
        %v6763 = vadd.f32 %v6650, %v6762
        %6764 = vmatprep.mubr.bf16.mxu0 %v4524
        %6765 = vmatmul.mubr.bf16.gmra.mrb[0].mxu0 %v4523
        %v6766 = vpop.f32.mrb[0].mxu0
        %v6767 = vadd.f32 %v6654, %v6766
        %v6768 = vpop.f32.mrb[0].mxu0
        %v6769 = vadd.f32 %v6656, %v6768
        %v6770 = vpop.f32.mrb[0].mxu0
        %v6771 = vadd.f32 %v6658, %v6770
        %v6772 = vpop.f32.mrb[0].mxu0
        %v6773 = vadd.f32 %v6660, %v6772
        %6774 = vmatprep.mubr.bf16.mxu0 %v4528
        %6775 = vmatmul.mubr.bf16.gmra.mrb[0].mxu0 %v4527
        %v6776 = vpop.f32.mrb[0].mxu0
        %v6777 = vadd.f32 %v6664, %v6776
        %v6778 = vpop.f32.mrb[0].mxu0
        %v6779 = vadd.f32 %v6666, %v6778
        %v6780 = vpop.f32.mrb[0].mxu0
        %v6781 = vadd.f32 %v6668, %v6780
        %v6782 = vpop.f32.mrb[0].mxu0
        %v6783 = vadd.f32 %v6670, %v6782
        %6784 = vdwg.mxu0
        %6785 = vmatprep.subr.bf16.mxu0 %v5602
        %6786 = vmatpush1.bf16.msra.mxu0 %v5601
        %6787 = vmatprep.subr.bf16.mxu0 %v5610
        %6788 = vmatpush1.bf16.msra.mxu0 %v5609
        %6789 = vmatprep.subr.bf16.mxu0 %v5618
        %6790 = vmatpush1.bf16.msra.mxu0 %v5617
        %6791 = vmatprep.subr.bf16.mxu0 %v5626
        %6792 = vmatpush1.bf16.msra.mxu0 %v5625
        %6793 = vmatprep.subr.bf16.mxu0 %v5634
        %6794 = vmatpush1.bf16.msra.mxu0 %v5633
        %6795 = vmatprep.subr.bf16.mxu0 %v5642
        %6796 = vmatpush1.bf16.msra.mxu0 %v5641
        %6797 = vmatprep.subr.bf16.mxu0 %v5650
        %6798 = vmatpush1.bf16.msra.mxu0 %v5649
        %6799 = vmatprep.subr.bf16.mxu0 %v5658
        %6800 = vmatpush1.bf16.msra.mxu0 %v5657
        %6801 = vmatprep.subr.bf16.mxu0 %v5666
        %6802 = vmatpush1.bf16.msra.mxu0 %v5665
        %6803 = vmatprep.subr.bf16.mxu0 %v5674
        %6804 = vmatpush1.bf16.msra.mxu0 %v5673
        %6805 = vmatprep.subr.bf16.mxu0 %v5682
        %6806 = vmatpush1.bf16.msra.mxu0 %v5681
        %6807 = vmatprep.subr.bf16.mxu0 %v5690
        %6808 = vmatpush1.bf16.msra.mxu0 %v5689
        %6809 = vmatprep.subr.bf16.mxu0 %v5698
        %6810 = vmatpush1.bf16.msra.mxu0 %v5697
        %6811 = vmatprep.subr.bf16.mxu0 %v5706
        %6812 = vmatpush1.bf16.msra.mxu0 %v5705
        %6813 = vmatprep.subr.bf16.mxu0 %v5714
        %6814 = vmatpush1.bf16.msra.mxu0 %v5713
        %6815 = vmatprep.subr.bf16.mxu0 %v5722
        %6816 = vmatpush1.bf16.msra.mxu0 %v5721
        %6817 = vmatprep.mubr.bf16.mxu0 %v4498
        %6818 = vmatmul.mubr.bf16.gmra.mrb[0].mxu0 %v4497
        %v6819 = vpop.f32.mrb[0].mxu0
        %v6820 = vadd.f32 %v4814, %v6819
        %v6821 = vpop.f32.mrb[0].mxu0
        %v6822 = vadd.f32 %v4818, %v6821
        %v6823 = vpop.f32.mrb[0].mxu0
        %v6824 = vadd.f32 %v4814, %v6823
        %v6825 = vpop.f32.mrb[0].mxu0
        %v6826 = vadd.f32 %v4818, %v6825
        %6827 = vmatprep.mubr.bf16.mxu0 %v4502
        %6828 = vmatmul.mubr.bf16.gmra.mrb[0].mxu0 %v4501
        %v6829 = vpop.f32.mrb[0].mxu0
        %v6830 = vadd.f32 %v4814, %v6829
        %v6831 = vpop.f32.mrb[0].mxu0
        %v6832 = vadd.f32 %v4818, %v6831
        %v6833 = vpop.f32.mrb[0].mxu0
        %v6834 = vadd.f32 %v4814, %v6833
        %v6835 = vpop.f32.mrb[0].mxu0
        %v6836 = vadd.f32 %v4818, %v6835
        %6837 = vmatprep.mubr.bf16.mxu0 %v4506
        %6838 = vmatmul.mubr.bf16.gmra.mrb[0].mxu0 %v4505
        %v6839 = vpop.f32.mrb[0].mxu0
        %v6840 = vadd.f32 %v4814, %v6839
        %v6841 = vpop.f32.mrb[0].mxu0
        %v6842 = vadd.f32 %v4818, %v6841
        %v6843 = vpop.f32.mrb[0].mxu0
        %v6844 = vadd.f32 %v4814, %v6843
        %v6845 = vpop.f32.mrb[0].mxu0
        %v6846 = vadd.f32 %v4818, %v6845
        %6847 = vmatprep.mubr.bf16.mxu0 %v4510
        %6848 = vmatmul.mubr.bf16.gmra.mrb[0].mxu0 %v4509
        %v6849 = vpop.f32.mrb[0].mxu0
        %v6850 = vadd.f32 %v4814, %v6849
        %v6851 = vpop.f32.mrb[0].mxu0
        %v6852 = vadd.f32 %v4818, %v6851
        %v6853 = vpop.f32.mrb[0].mxu0
        %v6854 = vadd.f32 %v4814, %v6853
        %v6855 = vpop.f32.mrb[0].mxu0
        %v6856 = vadd.f32 %v4818, %v6855
        %6857 = vmatprep.mubr.bf16.mxu0 %v4514
        %6858 = vmatmul.mubr.bf16.gmra.mrb[0].mxu0 %v4513
        %v6859 = vpop.f32.mrb[0].mxu0
        %v6860 = vadd.f32 %v4814, %v6859
        %v6861 = vpop.f32.mrb[0].mxu0
        %v6862 = vadd.f32 %v4818, %v6861
        %v6863 = vpop.f32.mrb[0].mxu0
        %v6864 = vadd.f32 %v4814, %v6863
        %v6865 = vpop.f32.mrb[0].mxu0
        %v6866 = vadd.f32 %v4818, %v6865
        %6867 = vmatprep.mubr.bf16.mxu0 %v4518
        %6868 = vmatmul.mubr.bf16.gmra.mrb[0].mxu0 %v4517
        %v6869 = vpop.f32.mrb[0].mxu0
        %v6870 = vadd.f32 %v4814, %v6869
        %v6871 = vpop.f32.mrb[0].mxu0
        %v6872 = vadd.f32 %v4818, %v6871
        %v6873 = vpop.f32.mrb[0].mxu0
        %v6874 = vadd.f32 %v4814, %v6873
        %v6875 = vpop.f32.mrb[0].mxu0
        %v6876 = vadd.f32 %v4818, %v6875
        %6877 = vmatprep.mubr.bf16.mxu0 %v4522
        %6878 = vmatmul.mubr.bf16.gmra.mrb[0].mxu0 %v4521
        %v6879 = vpop.f32.mrb[0].mxu0
        %v6880 = vadd.f32 %v4814, %v6879
        %v6881 = vpop.f32.mrb[0].mxu0
        %v6882 = vadd.f32 %v4818, %v6881
        %v6883 = vpop.f32.mrb[0].mxu0
        %v6884 = vadd.f32 %v4814, %v6883
        %v6885 = vpop.f32.mrb[0].mxu0
        %v6886 = vadd.f32 %v4818, %v6885
        %6887 = vmatprep.mubr.bf16.mxu0 %v4526
        %6888 = vmatmul.mubr.bf16.gmra.mrb[0].mxu0 %v4525
        %v6889 = vpop.f32.mrb[0].mxu0
        %v6890 = vadd.f32 %v4814, %v6889
        %v6891 = vpop.f32.mrb[0].mxu0
        %v6892 = vadd.f32 %v4818, %v6891
        %v6893 = vpop.f32.mrb[0].mxu0
        %v6894 = vadd.f32 %v4814, %v6893
        %v6895 = vpop.f32.mrb[0].mxu0
        %v6896 = vadd.f32 %v4818, %v6895
        %6897 = vdwg.mxu0
        %6898 = vmatprep.subr.bf16.mxu0 %v5730
        %6899 = vmatpush1.bf16.msra.mxu0 %v5729
        %6900 = vmatprep.subr.bf16.mxu0 %v5738
        %6901 = vmatpush1.bf16.msra.mxu0 %v5737
        %6902 = vmatprep.subr.bf16.mxu0 %v5746
        %6903 = vmatpush1.bf16.msra.mxu0 %v5745
        %6904 = vmatprep.subr.bf16.mxu0 %v5754
        %6905 = vmatpush1.bf16.msra.mxu0 %v5753
        %6906 = vmatprep.subr.bf16.mxu0 %v5762
        %6907 = vmatpush1.bf16.msra.mxu0 %v5761
        %6908 = vmatprep.subr.bf16.mxu0 %v5770
        %6909 = vmatpush1.bf16.msra.mxu0 %v5769
        %6910 = vmatprep.subr.bf16.mxu0 %v5778
        %6911 = vmatpush1.bf16.msra.mxu0 %v5777
        %6912 = vmatprep.subr.bf16.mxu0 %v5786
        %6913 = vmatpush1.bf16.msra.mxu0 %v5785
        %6914 = vmatprep.subr.bf16.mxu0 %v5794
        %6915 = vmatpush1.bf16.msra.mxu0 %v5793
        %6916 = vmatprep.subr.bf16.mxu0 %v5802
        %6917 = vmatpush1.bf16.msra.mxu0 %v5801
        %6918 = vmatprep.subr.bf16.mxu0 %v5810
        %6919 = vmatpush1.bf16.msra.mxu0 %v5809
        %6920 = vmatprep.subr.bf16.mxu0 %v5818
        %6921 = vmatpush1.bf16.msra.mxu0 %v5817
        %6922 = vmatprep.subr.bf16.mxu0 %v5826
        %6923 = vmatpush1.bf16.msra.mxu0 %v5825
        %6924 = vmatprep.subr.bf16.mxu0 %v5834
        %6925 = vmatpush1.bf16.msra.mxu0 %v5833
        %6926 = vmatprep.subr.bf16.mxu0 %v5842
        %6927 = vmatpush1.bf16.msra.mxu0 %v5841
        %6928 = vmatprep.subr.bf16.mxu0 %v5850
        %6929 = vmatpush1.bf16.msra.mxu0 %v5849
        %6930 = vmatprep.mubr.bf16.mxu0 %v4500
        %6931 = vmatmul.mubr.bf16.gmra.mrb[0].mxu0 %v4499
        %v6932 = vpop.f32.mrb[0].mxu0
        %v6933 = vadd.f32 %v6820, %v6932
        %v6934 = vpop.f32.mrb[0].mxu0
        %v6935 = vadd.f32 %v6822, %v6934
        %v6936 = vpop.f32.mrb[0].mxu0
        %v6937 = vadd.f32 %v6824, %v6936
        %v6938 = vpop.f32.mrb[0].mxu0
        %v6939 = vadd.f32 %v6826, %v6938
        %6940 = vmatprep.mubr.bf16.mxu0 %v4504
        %6941 = vmatmul.mubr.bf16.gmra.mrb[0].mxu0 %v4503
        %v6942 = vpop.f32.mrb[0].mxu0
        %v6943 = vadd.f32 %v6830, %v6942
        %v6944 = vpop.f32.mrb[0].mxu0
        %v6945 = vadd.f32 %v6832, %v6944
        %v6946 = vpop.f32.mrb[0].mxu0
        %v6947 = vadd.f32 %v6834, %v6946
        %v6948 = vpop.f32.mrb[0].mxu0
        %v6949 = vadd.f32 %v6836, %v6948
        %6950 = vmatprep.mubr.bf16.mxu0 %v4508
        %6951 = vmatmul.mubr.bf16.gmra.mrb[0].mxu0 %v4507
        %v6952 = vpop.f32.mrb[0].mxu0
        %v6953 = vadd.f32 %v6840, %v6952
        %v6954 = vpop.f32.mrb[0].mxu0
        %v6955 = vadd.f32 %v6842, %v6954
        %v6956 = vpop.f32.mrb[0].mxu0
        %v6957 = vadd.f32 %v6844, %v6956
        %v6958 = vpop.f32.mrb[0].mxu0
        %v6959 = vadd.f32 %v6846, %v6958
        %6960 = vmatprep.mubr.bf16.mxu0 %v4512
        %6961 = vmatmul.mubr.bf16.gmra.mrb[0].mxu0 %v4511
        %v6962 = vpop.f32.mrb[0].mxu0
        %v6963 = vadd.f32 %v6850, %v6962
        %v6964 = vpop.f32.mrb[0].mxu0
        %v6965 = vadd.f32 %v6852, %v6964
        %v6966 = vpop.f32.mrb[0].mxu0
        %v6967 = vadd.f32 %v6854, %v6966
        %v6968 = vpop.f32.mrb[0].mxu0
        %v6969 = vadd.f32 %v6856, %v6968
        %6970 = vmatprep.mubr.bf16.mxu0 %v4516
        %6971 = vmatmul.mubr.bf16.gmra.mrb[0].mxu0 %v4515
        %v6972 = vpop.f32.mrb[0].mxu0
        %v6973 = vadd.f32 %v6860, %v6972
        %v6974 = vpop.f32.mrb[0].mxu0
        %v6975 = vadd.f32 %v6862, %v6974
        %v6976 = vpop.f32.mrb[0].mxu0
        %v6977 = vadd.f32 %v6864, %v6976
        %v6978 = vpop.f32.mrb[0].mxu0
        %v6979 = vadd.f32 %v6866, %v6978
        %6980 = vmatprep.mubr.bf16.mxu0 %v4520
        %6981 = vmatmul.mubr.bf16.gmra.mrb[0].mxu0 %v4519
        %v6982 = vpop.f32.mrb[0].mxu0
        %v6983 = vadd.f32 %v6870, %v6982
        %v6984 = vpop.f32.mrb[0].mxu0
        %v6985 = vadd.f32 %v6872, %v6984
        %v6986 = vpop.f32.mrb[0].mxu0
        %v6987 = vadd.f32 %v6874, %v6986
        %v6988 = vpop.f32.mrb[0].mxu0
        %v6989 = vadd.f32 %v6876, %v6988
        %6990 = vmatprep.mubr.bf16.mxu0 %v4524
        %6991 = vmatmul.mubr.bf16.gmra.mrb[0].mxu0 %v4523
        %v6992 = vpop.f32.mrb[0].mxu0
        %v6993 = vadd.f32 %v6880, %v6992
        %v6994 = vpop.f32.mrb[0].mxu0
        %v6995 = vadd.f32 %v6882, %v6994
        %v6996 = vpop.f32.mrb[0].mxu0
        %v6997 = vadd.f32 %v6884, %v6996
        %v6998 = vpop.f32.mrb[0].mxu0
        %v6999 = vadd.f32 %v6886, %v6998
        %7000 = vmatprep.mubr.bf16.mxu0 %v4528
        %7001 = vmatmul.mubr.bf16.gmra.mrb[0].mxu0 %v4527
        %v7002 = vpop.f32.mrb[0].mxu0
        %v7003 = vadd.f32 %v6890, %v7002
        %v7004 = vpop.f32.mrb[0].mxu0
        %v7005 = vadd.f32 %v6892, %v7004
        %v7006 = vpop.f32.mrb[0].mxu0
        %v7007 = vadd.f32 %v6894, %v7006
        %v7008 = vpop.f32.mrb[0].mxu0
        %v7009 = vadd.f32 %v6896, %v7008
        %7010 = vdwg.mxu0
        %v7011 = vmax.f32 %v6255, 0.0
        %v7012 = vmax.f32 %v6257, 0.0
        %v7013 = vmax.f32 %v6481, 0.0
        %v7014 = vmax.f32 %v6483, 0.0
        %v7015 = vmax.f32 %v6707, 0.0
        %v7016 = vmax.f32 %v6709, 0.0
        %v7017 = vmax.f32 %v6933, 0.0
        %v7018 = vmax.f32 %v6935, 0.0
        %v7019 = vmax.f32 %v6259, 0.0
        %v7020 = vmax.f32 %v6261, 0.0
        %v7021 = vmax.f32 %v6485, 0.0
        %v7022 = vmax.f32 %v6487, 0.0
        %v7023 = vmax.f32 %v6711, 0.0
        %v7024 = vmax.f32 %v6713, 0.0
        %v7025 = vmax.f32 %v6937, 0.0
        %v7026 = vmax.f32 %v6939, 0.0
        %v7027 = vmax.f32 %v6265, 0.0
        %v7028 = vmax.f32 %v6267, 0.0
        %v7029 = vmax.f32 %v6491, 0.0
        %v7030 = vmax.f32 %v6493, 0.0
        %v7031 = vmax.f32 %v6717, 0.0
        %v7032 = vmax.f32 %v6719, 0.0
        %v7033 = vmax.f32 %v6943, 0.0
        %v7034 = vmax.f32 %v6945, 0.0
        %v7035 = vmax.f32 %v6269, 0.0
        %v7036 = vmax.f32 %v6271, 0.0
        %v7037 = vmax.f32 %v6495, 0.0
        %v7038 = vmax.f32 %v6497, 0.0
        %v7039 = vmax.f32 %v6721, 0.0
        %v7040 = vmax.f32 %v6723, 0.0
        %v7041 = vmax.f32 %v6947, 0.0
        %v7042 = vmax.f32 %v6949, 0.0
        %v7043 = vmax.f32 %v6275, 0.0
        %v7044 = vmax.f32 %v6277, 0.0
        %v7045 = vmax.f32 %v6501, 0.0
        %v7046 = vmax.f32 %v6503, 0.0
        %v7047 = vmax.f32 %v6727, 0.0
        %v7048 = vmax.f32 %v6729, 0.0
        %v7049 = vmax.f32 %v6953, 0.0
        %v7050 = vmax.f32 %v6955, 0.0
        %v7051 = vmax.f32 %v6279, 0.0
        %v7052 = vmax.f32 %v6281, 0.0
        %v7053 = vmax.f32 %v6505, 0.0
        %v7054 = vmax.f32 %v6507, 0.0
        %v7055 = vmax.f32 %v6731, 0.0
        %v7056 = vmax.f32 %v6733, 0.0
        %v7057 = vmax.f32 %v6957, 0.0
        %v7058 = vmax.f32 %v6959, 0.0
        %v7059 = vmax.f32 %v6285, 0.0
        %v7060 = vmax.f32 %v6287, 0.0
        %v7061 = vmax.f32 %v6511, 0.0
        %v7062 = vmax.f32 %v6513, 0.0
        %v7063 = vmax.f32 %v6737, 0.0
        %v7064 = vmax.f32 %v6739, 0.0
        %v7065 = vmax.f32 %v6963, 0.0
        %v7066 = vmax.f32 %v6965, 0.0
        %v7067 = vmax.f32 %v6289, 0.0
        %v7068 = vmax.f32 %v6291, 0.0
        %v7069 = vmax.f32 %v6515, 0.0
        %v7070 = vmax.f32 %v6517, 0.0
        %v7071 = vmax.f32 %v6741, 0.0
        %v7072 = vmax.f32 %v6743, 0.0
        %v7073 = vmax.f32 %v6967, 0.0
        %v7074 = vmax.f32 %v6969, 0.0
        %v7075 = vmax.f32 %v6295, 0.0
        %v7076 = vmax.f32 %v6297, 0.0
        %v7077 = vmax.f32 %v6521, 0.0
        %v7078 = vmax.f32 %v6523, 0.0
        %v7079 = vmax.f32 %v6747, 0.0
        %v7080 = vmax.f32 %v6749, 0.0
        %v7081 = vmax.f32 %v6973, 0.0
        %v7082 = vmax.f32 %v6975, 0.0
        %v7083 = vmax.f32 %v6299, 0.0
        %v7084 = vmax.f32 %v6301, 0.0
        %v7085 = vmax.f32 %v6525, 0.0
        %v7086 = vmax.f32 %v6527, 0.0
        %v7087 = vmax.f32 %v6751, 0.0
        %v7088 = vmax.f32 %v6753, 0.0
        %v7089 = vmax.f32 %v6977, 0.0
        %v7090 = vmax.f32 %v6979, 0.0
        %v7091 = vmax.f32 %v6305, 0.0
        %v7092 = vmax.f32 %v6307, 0.0
        %v7093 = vmax.f32 %v6531, 0.0
        %v7094 = vmax.f32 %v6533, 0.0
        %v7095 = vmax.f32 %v6757, 0.0
        %v7096 = vmax.f32 %v6759, 0.0
        %v7097 = vmax.f32 %v6983, 0.0
        %v7098 = vmax.f32 %v6985, 0.0
        %v7099 = vmax.f32 %v6309, 0.0
        %v7100 = vmax.f32 %v6311, 0.0
        %v7101 = vmax.f32 %v6535, 0.0
        %v7102 = vmax.f32 %v6537, 0.0
        %v7103 = vmax.f32 %v6761, 0.0
        %v7104 = vmax.f32 %v6763, 0.0
        %v7105 = vmax.f32 %v6987, 0.0
        %v7106 = vmax.f32 %v6989, 0.0
        %v7107 = vmax.f32 %v6315, 0.0
        %v7108 = vmax.f32 %v6317, 0.0
        %v7109 = vmax.f32 %v6541, 0.0
        %v7110 = vmax.f32 %v6543, 0.0
        %v7111 = vmax.f32 %v6767, 0.0
        %v7112 = vmax.f32 %v6769, 0.0
        %v7113 = vmax.f32 %v6993, 0.0
        %v7114 = vmax.f32 %v6995, 0.0
        %v7115 = vmax.f32 %v6319, 0.0
        %v7116 = vmax.f32 %v6321, 0.0
        %v7117 = vmax.f32 %v6545, 0.0
        %v7118 = vmax.f32 %v6547, 0.0
        %v7119 = vmax.f32 %v6771, 0.0
        %v7120 = vmax.f32 %v6773, 0.0
        %v7121 = vmax.f32 %v6997, 0.0
        %v7122 = vmax.f32 %v6999, 0.0
        %v7123 = vmax.f32 %v6325, 0.0
        %v7124 = vmax.f32 %v6327, 0.0
        %v7125 = vmax.f32 %v6551, 0.0
        %v7126 = vmax.f32 %v6553, 0.0
        %v7127 = vmax.f32 %v6777, 0.0
        %v7128 = vmax.f32 %v6779, 0.0
        %v7129 = vmax.f32 %v7003, 0.0
        %v7130 = vmax.f32 %v7005, 0.0
        %v7131 = vmax.f32 %v6329, 0.0
        %v7132 = vmax.f32 %v6331, 0.0
        %v7133 = vmax.f32 %v6555, 0.0
        %v7134 = vmax.f32 %v6557, 0.0
        %v7135 = vmax.f32 %v6781, 0.0
        %v7136 = vmax.f32 %v6783, 0.0
        %v7137 = vmax.f32 %v7007, 0.0
        %v7138 = vmax.f32 %v7009, 0.0
        %7139 = vst [vmem:[#allocation2] sm:$0xff] %v7011
        %7140 = vst [vmem:[#allocation2 + $0x8] sm:$0xff] %v7012
        %7141 = vst [vmem:[#allocation2 + $0x10] sm:$0xff] %v7013
        %7142 = vst [vmem:[#allocation2 + $0x18] sm:$0xff] %v7014
        %7143 = vst [vmem:[#allocation2 + $0x20] sm:$0xff] %v7015
        %7144 = vst [vmem:[#allocation2 + $0x28] sm:$0xff] %v7016
        %7145 = vst [vmem:[#allocation2 + $0x30] sm:$0xff] %v7017
        %7146 = vst [vmem:[#allocation2 + $0x38] sm:$0xff] %v7018
        %7147 = vst [vmem:[#allocation2 + $0x40] sm:$0xff] %v7019
        %7148 = vst [vmem:[#allocation2 + $0x48] sm:$0xff] %v7020
        %7149 = vst [vmem:[#allocation2 + $0x50] sm:$0xff] %v7021
        %7150 = vst [vmem:[#allocation2 + $0x58] sm:$0xff] %v7022
        %7151 = vst [vmem:[#allocation2 + $0x60] sm:$0xff] %v7023
        %7152 = vst [vmem:[#allocation2 + $0x68] sm:$0xff] %v7024
        %7153 = vst [vmem:[#allocation2 + $0x70] sm:$0xff] %v7025
        %7154 = vst [vmem:[#allocation2 + $0x78] sm:$0xff] %v7026
        %7155 = vst [vmem:[#allocation2 + $0x80] sm:$0xff] %v7027
        %7156 = vst [vmem:[#allocation2 + $0x88] sm:$0xff] %v7028
        %7157 = vst [vmem:[#allocation2 + $0x90] sm:$0xff] %v7029
        %7158 = vst [vmem:[#allocation2 + $0x98] sm:$0xff] %v7030
        %7159 = vst [vmem:[#allocation2 + $0xa0] sm:$0xff] %v7031
        %7160 = vst [vmem:[#allocation2 + $0xa8] sm:$0xff] %v7032
        %7161 = vst [vmem:[#allocation2 + $0xb0] sm:$0xff] %v7033
        %7162 = vst [vmem:[#allocation2 + $0xb8] sm:$0xff] %v7034
        %7163 = vst [vmem:[#allocation2 + $0xc0] sm:$0xff] %v7035
        %7164 = vst [vmem:[#allocation2 + $0xc8] sm:$0xff] %v7036
        %7165 = vst [vmem:[#allocation2 + $0xd0] sm:$0xff] %v7037
        %7166 = vst [vmem:[#allocation2 + $0xd8] sm:$0xff] %v7038
        %7167 = vst [vmem:[#allocation2 + $0xe0] sm:$0xff] %v7039
        %7168 = vst [vmem:[#allocation2 + $0xe8] sm:$0xff] %v7040
        %7169 = vst [vmem:[#allocation2 + $0xf0] sm:$0xff] %v7041
        %7170 = vst [vmem:[#allocation2 + $0xf8] sm:$0xff] %v7042
        %7171 = vst [vmem:[#allocation2 + $0x100] sm:$0xff] %v7043
        %7172 = vst [vmem:[#allocation2 + $0x108] sm:$0xff] %v7044
        %7173 = vst [vmem:[#allocation2 + $0x110] sm:$0xff] %v7045
        %7174 = vst [vmem:[#allocation2 + $0x118] sm:$0xff] %v7046
        %7175 = vst [vmem:[#allocation2 + $0x120] sm:$0xff] %v7047
        %7176 = vst [vmem:[#allocation2 + $0x128] sm:$0xff] %v7048
        %7177 = vst [vmem:[#allocation2 + $0x130] sm:$0xff] %v7049
        %7178 = vst [vmem:[#allocation2 + $0x138] sm:$0xff] %v7050
        %7179 = vst [vmem:[#allocation2 + $0x140] sm:$0xff] %v7051
        %7180 = vst [vmem:[#allocation2 + $0x148] sm:$0xff] %v7052
        %7181 = vst [vmem:[#allocation2 + $0x150] sm:$0xff] %v7053
        %7182 = vst [vmem:[#allocation2 + $0x158] sm:$0xff] %v7054
        %7183 = vst [vmem:[#allocation2 + $0x160] sm:$0xff] %v7055
        %7184 = vst [vmem:[#allocation2 + $0x168] sm:$0xff] %v7056
        %7185 = vst [vmem:[#allocation2 + $0x170] sm:$0xff] %v7057
        %7186 = vst [vmem:[#allocation2 + $0x178] sm:$0xff] %v7058
        %7187 = vst [vmem:[#allocation2 + $0x180] sm:$0xff] %v7059
        %7188 = vst [vmem:[#allocation2 + $0x188] sm:$0xff] %v7060
        %7189 = vst [vmem:[#allocation2 + $0x190] sm:$0xff] %v7061
        %7190 = vst [vmem:[#allocation2 + $0x198] sm:$0xff] %v7062
        %7191 = vst [vmem:[#allocation2 + $0x1a0] sm:$0xff] %v7063
        %7192 = vst [vmem:[#allocation2 + $0x1a8] sm:$0xff] %v7064
        %7193 = vst [vmem:[#allocation2 + $0x1b0] sm:$0xff] %v7065
        %7194 = vst [vmem:[#allocation2 + $0x1b8] sm:$0xff] %v7066
        %7195 = vst [vmem:[#allocation2 + $0x1c0] sm:$0xff] %v7067
        %7196 = vst [vmem:[#allocation2 + $0x1c8] sm:$0xff] %v7068
        %7197 = vst [vmem:[#allocation2 + $0x1d0] sm:$0xff] %v7069
        %7198 = vst [vmem:[#allocation2 + $0x1d8] sm:$0xff] %v7070
        %7199 = vst [vmem:[#allocation2 + $0x1e0] sm:$0xff] %v7071
        %7200 = vst [vmem:[#allocation2 + $0x1e8] sm:$0xff] %v7072
        %7201 = vst [vmem:[#allocation2 + $0x1f0] sm:$0xff] %v7073
        %7202 = vst [vmem:[#allocation2 + $0x1f8] sm:$0xff] %v7074
        %7203 = vst [vmem:[#allocation2 + $0x200] sm:$0xff] %v7075
        %7204 = vst [vmem:[#allocation2 + $0x208] sm:$0xff] %v7076
        %7205 = vst [vmem:[#allocation2 + $0x210] sm:$0xff] %v7077
        %7206 = vst [vmem:[#allocation2 + $0x218] sm:$0xff] %v7078
        %7207 = vst [vmem:[#allocation2 + $0x220] sm:$0xff] %v7079
        %7208 = vst [vmem:[#allocation2 + $0x228] sm:$0xff] %v7080
        %7209 = vst [vmem:[#allocation2 + $0x230] sm:$0xff] %v7081
        %7210 = vst [vmem:[#allocation2 + $0x238] sm:$0xff] %v7082
        %7211 = vst [vmem:[#allocation2 + $0x240] sm:$0xff] %v7083
        %7212 = vst [vmem:[#allocation2 + $0x248] sm:$0xff] %v7084
        %7213 = vst [vmem:[#allocation2 + $0x250] sm:$0xff] %v7085
        %7214 = vst [vmem:[#allocation2 + $0x258] sm:$0xff] %v7086
        %7215 = vst [vmem:[#allocation2 + $0x260] sm:$0xff] %v7087
        %7216 = vst [vmem:[#allocation2 + $0x268] sm:$0xff] %v7088
        %7217 = vst [vmem:[#allocation2 + $0x270] sm:$0xff] %v7089
        %7218 = vst [vmem:[#allocation2 + $0x278] sm:$0xff] %v7090
        %7219 = vst [vmem:[#allocation2 + $0x280] sm:$0xff] %v7091
        %7220 = vst [vmem:[#allocation2 + $0x288] sm:$0xff] %v7092
        %7221 = vst [vmem:[#allocation2 + $0x290] sm:$0xff] %v7093
        %7222 = vst [vmem:[#allocation2 + $0x298] sm:$0xff] %v7094
        %7223 = vst [vmem:[#allocation2 + $0x2a0] sm:$0xff] %v7095
        %7224 = vst [vmem:[#allocation2 + $0x2a8] sm:$0xff] %v7096
        %7225 = vst [vmem:[#allocation2 + $0x2b0] sm:$0xff] %v7097
        %7226 = vst [vmem:[#allocation2 + $0x2b8] sm:$0xff] %v7098
        %7227 = vst [vmem:[#allocation2 + $0x2c0] sm:$0xff] %v7099
        %7228 = vst [vmem:[#allocation2 + $0x2c8] sm:$0xff] %v7100
        %7229 = vst [vmem:[#allocation2 + $0x2d0] sm:$0xff] %v7101
        %7230 = vst [vmem:[#allocation2 + $0x2d8] sm:$0xff] %v7102
        %7231 = vst [vmem:[#allocation2 + $0x2e0] sm:$0xff] %v7103
        %7232 = vst [vmem:[#allocation2 + $0x2e8] sm:$0xff] %v7104
        %7233 = vst [vmem:[#allocation2 + $0x2f0] sm:$0xff] %v7105
        %7234 = vst [vmem:[#allocation2 + $0x2f8] sm:$0xff] %v7106
        %7235 = vst [vmem:[#allocation2 + $0x300] sm:$0xff] %v7107
        %7236 = vst [vmem:[#allocation2 + $0x308] sm:$0xff] %v7108
        %7237 = vst [vmem:[#allocation2 + $0x310] sm:$0xff] %v7109
        %7238 = vst [vmem:[#allocation2 + $0x318] sm:$0xff] %v7110
        %7239 = vst [vmem:[#allocation2 + $0x320] sm:$0xff] %v7111
        %7240 = vst [vmem:[#allocation2 + $0x328] sm:$0xff] %v7112
        %7241 = vst [vmem:[#allocation2 + $0x330] sm:$0xff] %v7113
        %7242 = vst [vmem:[#allocation2 + $0x338] sm:$0xff] %v7114
        %7243 = vst [vmem:[#allocation2 + $0x340] sm:$0xff] %v7115
        %7244 = vst [vmem:[#allocation2 + $0x348] sm:$0xff] %v7116
        %7245 = vst [vmem:[#allocation2 + $0x350] sm:$0xff] %v7117
        %7246 = vst [vmem:[#allocation2 + $0x358] sm:$0xff] %v7118
        %7247 = vst [vmem:[#allocation2 + $0x360] sm:$0xff] %v7119
        %7248 = vst [vmem:[#allocation2 + $0x368] sm:$0xff] %v7120
        %7249 = vst [vmem:[#allocation2 + $0x370] sm:$0xff] %v7121
        %7250 = vst [vmem:[#allocation2 + $0x378] sm:$0xff] %v7122
        %7251 = vst [vmem:[#allocation2 + $0x380] sm:$0xff] %v7123
        %7252 = vst [vmem:[#allocation2 + $0x388] sm:$0xff] %v7124
        %7253 = vst [vmem:[#allocation2 + $0x390] sm:$0xff] %v7125
        %7254 = vst [vmem:[#allocation2 + $0x398] sm:$0xff] %v7126
        %7255 = vst [vmem:[#allocation2 + $0x3a0] sm:$0xff] %v7127
        %7256 = vst [vmem:[#allocation2 + $0x3a8] sm:$0xff] %v7128
        %7257 = vst [vmem:[#allocation2 + $0x3b0] sm:$0xff] %v7129
        %7258 = vst [vmem:[#allocation2 + $0x3b8] sm:$0xff] %v7130
        %7259 = vst [vmem:[#allocation2 + $0x3c0] sm:$0xff] %v7131
        %7260 = vst [vmem:[#allocation2 + $0x3c8] sm:$0xff] %v7132
        %7261 = vst [vmem:[#allocation2 + $0x3d0] sm:$0xff] %v7133
        %7262 = vst [vmem:[#allocation2 + $0x3d8] sm:$0xff] %v7134
        %7263 = vst [vmem:[#allocation2 + $0x3e0] sm:$0xff] %v7135
        %7264 = vst [vmem:[#allocation2 + $0x3e8] sm:$0xff] %v7136
        %7265 = vst [vmem:[#allocation2 + $0x3f0] sm:$0xff] %v7137
        %7266 = vst [vmem:[#allocation2 + $0x3f8] sm:$0xff] %v7138
        %v7267 = vld [vmem:[#allocation2] sm:$0xff]
        %v7268 = vld [vmem:[#allocation2 + $0x8] sm:$0xff]
        %v7269 = vld [vmem:[#allocation2 + $0x10] sm:$0xff]
        %v7270 = vld [vmem:[#allocation2 + $0x18] sm:$0xff]
        %v7271 = vld [vmem:[#allocation2 + $0x20] sm:$0xff]
        %v7272 = vld [vmem:[#allocation2 + $0x28] sm:$0xff]
        %v7273 = vld [vmem:[#allocation2 + $0x30] sm:$0xff]
        %v7274 = vld [vmem:[#allocation2 + $0x38] sm:$0xff]
        %v7275 = vld [vmem:[#allocation2 + $0x40] sm:$0xff]
        %v7276 = vld [vmem:[#allocation2 + $0x48] sm:$0xff]
        %v7277 = vld [vmem:[#allocation2 + $0x50] sm:$0xff]
        %v7278 = vld [vmem:[#allocation2 + $0x58] sm:$0xff]
        %v7279 = vld [vmem:[#allocation2 + $0x60] sm:$0xff]
        %v7280 = vld [vmem:[#allocation2 + $0x68] sm:$0xff]
        %v7281 = vld [vmem:[#allocation2 + $0x70] sm:$0xff]
        %v7282 = vld [vmem:[#allocation2 + $0x78] sm:$0xff]
        %v7283 = vld [vmem:[#allocation2 + $0x80] sm:$0xff]
        %v7284 = vld [vmem:[#allocation2 + $0x88] sm:$0xff]
        %v7285 = vld [vmem:[#allocation2 + $0x90] sm:$0xff]
        %v7286 = vld [vmem:[#allocation2 + $0x98] sm:$0xff]
        %v7287 = vld [vmem:[#allocation2 + $0xa0] sm:$0xff]
        %v7288 = vld [vmem:[#allocation2 + $0xa8] sm:$0xff]
        %v7289 = vld [vmem:[#allocation2 + $0xb0] sm:$0xff]
        %v7290 = vld [vmem:[#allocation2 + $0xb8] sm:$0xff]
        %v7291 = vld [vmem:[#allocation2 + $0xc0] sm:$0xff]
        %v7292 = vld [vmem:[#allocation2 + $0xc8] sm:$0xff]
        %v7293 = vld [vmem:[#allocation2 + $0xd0] sm:$0xff]
        %v7294 = vld [vmem:[#allocation2 + $0xd8] sm:$0xff]
        %v7295 = vld [vmem:[#allocation2 + $0xe0] sm:$0xff]
        %v7296 = vld [vmem:[#allocation2 + $0xe8] sm:$0xff]
        %v7297 = vld [vmem:[#allocation2 + $0xf0] sm:$0xff]
        %v7298 = vld [vmem:[#allocation2 + $0xf8] sm:$0xff]
        %v7299 = vld [vmem:[#allocation2 + $0x100] sm:$0xff]
        %v7300 = vld [vmem:[#allocation2 + $0x108] sm:$0xff]
        %v7301 = vld [vmem:[#allocation2 + $0x110] sm:$0xff]
        %v7302 = vld [vmem:[#allocation2 + $0x118] sm:$0xff]
        %v7303 = vld [vmem:[#allocation2 + $0x120] sm:$0xff]
        %v7304 = vld [vmem:[#allocation2 + $0x128] sm:$0xff]
        %v7305 = vld [vmem:[#allocation2 + $0x130] sm:$0xff]
        %v7306 = vld [vmem:[#allocation2 + $0x138] sm:$0xff]
        %v7307 = vld [vmem:[#allocation2 + $0x140] sm:$0xff]
        %v7308 = vld [vmem:[#allocation2 + $0x148] sm:$0xff]
        %v7309 = vld [vmem:[#allocation2 + $0x150] sm:$0xff]
        %v7310 = vld [vmem:[#allocation2 + $0x158] sm:$0xff]
        %v7311 = vld [vmem:[#allocation2 + $0x160] sm:$0xff]
        %v7312 = vld [vmem:[#allocation2 + $0x168] sm:$0xff]
        %v7313 = vld [vmem:[#allocation2 + $0x170] sm:$0xff]
        %v7314 = vld [vmem:[#allocation2 + $0x178] sm:$0xff]
        %v7315 = vld [vmem:[#allocation2 + $0x180] sm:$0xff]
        %v7316 = vld [vmem:[#allocation2 + $0x188] sm:$0xff]
        %v7317 = vld [vmem:[#allocation2 + $0x190] sm:$0xff]
        %v7318 = vld [vmem:[#allocation2 + $0x198] sm:$0xff]
        %v7319 = vld [vmem:[#allocation2 + $0x1a0] sm:$0xff]
        %v7320 = vld [vmem:[#allocation2 + $0x1a8] sm:$0xff]
        %v7321 = vld [vmem:[#allocation2 + $0x1b0] sm:$0xff]
        %v7322 = vld [vmem:[#allocation2 + $0x1b8] sm:$0xff]
        %v7323 = vld [vmem:[#allocation2 + $0x1c0] sm:$0xff]
        %v7324 = vld [vmem:[#allocation2 + $0x1c8] sm:$0xff]
        %v7325 = vld [vmem:[#allocation2 + $0x1d0] sm:$0xff]
        %v7326 = vld [vmem:[#allocation2 + $0x1d8] sm:$0xff]
        %v7327 = vld [vmem:[#allocation2 + $0x1e0] sm:$0xff]
        %v7328 = vld [vmem:[#allocation2 + $0x1e8] sm:$0xff]
        %v7329 = vld [vmem:[#allocation2 + $0x1f0] sm:$0xff]
        %v7330 = vld [vmem:[#allocation2 + $0x1f8] sm:$0xff]
        %v7331 = vld [vmem:[#allocation2 + $0x200] sm:$0xff]
        %v7332 = vld [vmem:[#allocation2 + $0x208] sm:$0xff]
        %v7333 = vld [vmem:[#allocation2 + $0x210] sm:$0xff]
        %v7334 = vld [vmem:[#allocation2 + $0x218] sm:$0xff]
        %v7335 = vld [vmem:[#allocation2 + $0x220] sm:$0xff]
        %v7336 = vld [vmem:[#allocation2 + $0x228] sm:$0xff]
        %v7337 = vld [vmem:[#allocation2 + $0x230] sm:$0xff]
        %v7338 = vld [vmem:[#allocation2 + $0x238] sm:$0xff]
        %v7339 = vld [vmem:[#allocation2 + $0x240] sm:$0xff]
        %v7340 = vld [vmem:[#allocation2 + $0x248] sm:$0xff]
        %v7341 = vld [vmem:[#allocation2 + $0x250] sm:$0xff]
        %v7342 = vld [vmem:[#allocation2 + $0x258] sm:$0xff]
        %v7343 = vld [vmem:[#allocation2 + $0x260] sm:$0xff]
        %v7344 = vld [vmem:[#allocation2 + $0x268] sm:$0xff]
        %v7345 = vld [vmem:[#allocation2 + $0x270] sm:$0xff]
        %v7346 = vld [vmem:[#allocation2 + $0x278] sm:$0xff]
        %v7347 = vld [vmem:[#allocation2 + $0x280] sm:$0xff]
        %v7348 = vld [vmem:[#allocation2 + $0x288] sm:$0xff]
        %v7349 = vld [vmem:[#allocation2 + $0x290] sm:$0xff]
        %v7350 = vld [vmem:[#allocation2 + $0x298] sm:$0xff]
        %v7351 = vld [vmem:[#allocation2 + $0x2a0] sm:$0xff]
        %v7352 = vld [vmem:[#allocation2 + $0x2a8] sm:$0xff]
        %v7353 = vld [vmem:[#allocation2 + $0x2b0] sm:$0xff]
        %v7354 = vld [vmem:[#allocation2 + $0x2b8] sm:$0xff]
        %v7355 = vld [vmem:[#allocation2 + $0x2c0] sm:$0xff]
        %v7356 = vld [vmem:[#allocation2 + $0x2c8] sm:$0xff]
        %v7357 = vld [vmem:[#allocation2 + $0x2d0] sm:$0xff]
        %v7358 = vld [vmem:[#allocation2 + $0x2d8] sm:$0xff]
        %v7359 = vld [vmem:[#allocation2 + $0x2e0] sm:$0xff]
        %v7360 = vld [vmem:[#allocation2 + $0x2e8] sm:$0xff]
        %v7361 = vld [vmem:[#allocation2 + $0x2f0] sm:$0xff]
        %v7362 = vld [vmem:[#allocation2 + $0x2f8] sm:$0xff]
        %v7363 = vld [vmem:[#allocation2 + $0x300] sm:$0xff]
        %v7364 = vld [vmem:[#allocation2 + $0x308] sm:$0xff]
        %v7365 = vld [vmem:[#allocation2 + $0x310] sm:$0xff]
        %v7366 = vld [vmem:[#allocation2 + $0x318] sm:$0xff]
        %v7367 = vld [vmem:[#allocation2 + $0x320] sm:$0xff]
        %v7368 = vld [vmem:[#allocation2 + $0x328] sm:$0xff]
        %v7369 = vld [vmem:[#allocation2 + $0x330] sm:$0xff]
        %v7370 = vld [vmem:[#allocation2 + $0x338] sm:$0xff]
        %v7371 = vld [vmem:[#allocation2 + $0x340] sm:$0xff]
        %v7372 = vld [vmem:[#allocation2 + $0x348] sm:$0xff]
        %v7373 = vld [vmem:[#allocation2 + $0x350] sm:$0xff]
        %v7374 = vld [vmem:[#allocation2 + $0x358] sm:$0xff]
        %v7375 = vld [vmem:[#allocation2 + $0x360] sm:$0xff]
        %v7376 = vld [vmem:[#allocation2 + $0x368] sm:$0xff]
        %v7377 = vld [vmem:[#allocation2 + $0x370] sm:$0xff]
        %v7378 = vld [vmem:[#allocation2 + $0x378] sm:$0xff]
        %v7379 = vld [vmem:[#allocation2 + $0x380] sm:$0xff]
        %v7380 = vld [vmem:[#allocation2 + $0x388] sm:$0xff]
        %v7381 = vld [vmem:[#allocation2 + $0x390] sm:$0xff]
        %v7382 = vld [vmem:[#allocation2 + $0x398] sm:$0xff]
        %v7383 = vld [vmem:[#allocation2 + $0x3a0] sm:$0xff]
        %v7384 = vld [vmem:[#allocation2 + $0x3a8] sm:$0xff]
        %v7385 = vld [vmem:[#allocation2 + $0x3b0] sm:$0xff]
        %v7386 = vld [vmem:[#allocation2 + $0x3b8] sm:$0xff]
        %v7387 = vld [vmem:[#allocation2 + $0x3c0] sm:$0xff]
        %v7388 = vld [vmem:[#allocation2 + $0x3c8] sm:$0xff]
        %v7389 = vld [vmem:[#allocation2 + $0x3d0] sm:$0xff]
        %v7390 = vld [vmem:[#allocation2 + $0x3d8] sm:$0xff]
        %v7391 = vld [vmem:[#allocation2 + $0x3e0] sm:$0xff]
        %v7392 = vld [vmem:[#allocation2 + $0x3e8] sm:$0xff]
        %v7393 = vld [vmem:[#allocation2 + $0x3f0] sm:$0xff]
        %v7394 = vld [vmem:[#allocation2 + $0x3f8] sm:$0xff]
        %v7395 = vpack.c.bf16 %v7275, %v7267
        %v7396 = vpack.c.bf16 %v7276, %v7268
        %v7397 = vpack.c.bf16 %v7277, %v7269
        %v7398 = vpack.c.bf16 %v7278, %v7270
        %v7399 = vpack.c.bf16 %v7279, %v7271
        %v7400 = vpack.c.bf16 %v7280, %v7272
        %v7401 = vpack.c.bf16 %v7281, %v7273
        %v7402 = vpack.c.bf16 %v7282, %v7274
        %v7403 = vpack.c.bf16 %v7291, %v7283
        %v7404 = vpack.c.bf16 %v7292, %v7284
        %v7405 = vpack.c.bf16 %v7293, %v7285
        %v7406 = vpack.c.bf16 %v7294, %v7286
        %v7407 = vpack.c.bf16 %v7295, %v7287
        %v7408 = vpack.c.bf16 %v7296, %v7288
        %v7409 = vpack.c.bf16 %v7297, %v7289
        %v7410 = vpack.c.bf16 %v7298, %v7290
        %v7411 = vpack.c.bf16 %v7307, %v7299
        %v7412 = vpack.c.bf16 %v7308, %v7300
        %v7413 = vpack.c.bf16 %v7309, %v7301
        %v7414 = vpack.c.bf16 %v7310, %v7302
        %v7415 = vpack.c.bf16 %v7311, %v7303
        %v7416 = vpack.c.bf16 %v7312, %v7304
        %v7417 = vpack.c.bf16 %v7313, %v7305
        %v7418 = vpack.c.bf16 %v7314, %v7306
        %v7419 = vpack.c.bf16 %v7323, %v7315
        %v7420 = vpack.c.bf16 %v7324, %v7316
        %v7421 = vpack.c.bf16 %v7325, %v7317
        %v7422 = vpack.c.bf16 %v7326, %v7318
        %v7423 = vpack.c.bf16 %v7327, %v7319
        %v7424 = vpack.c.bf16 %v7328, %v7320
        %v7425 = vpack.c.bf16 %v7329, %v7321
        %v7426 = vpack.c.bf16 %v7330, %v7322
        %v7427 = vpack.c.bf16 %v7339, %v7331
        %v7428 = vpack.c.bf16 %v7340, %v7332
        %v7429 = vpack.c.bf16 %v7341, %v7333
        %v7430 = vpack.c.bf16 %v7342, %v7334
        %v7431 = vpack.c.bf16 %v7343, %v7335
        %v7432 = vpack.c.bf16 %v7344, %v7336
        %v7433 = vpack.c.bf16 %v7345, %v7337
        %v7434 = vpack.c.bf16 %v7346, %v7338
        %v7435 = vpack.c.bf16 %v7355, %v7347
        %v7436 = vpack.c.bf16 %v7356, %v7348
        %v7437 = vpack.c.bf16 %v7357, %v7349
        %v7438 = vpack.c.bf16 %v7358, %v7350
        %v7439 = vpack.c.bf16 %v7359, %v7351
        %v7440 = vpack.c.bf16 %v7360, %v7352
        %v7441 = vpack.c.bf16 %v7361, %v7353
        %v7442 = vpack.c.bf16 %v7362, %v7354
        %v7443 = vpack.c.bf16 %v7371, %v7363
        %v7444 = vpack.c.bf16 %v7372, %v7364
        %v7445 = vpack.c.bf16 %v7373, %v7365
        %v7446 = vpack.c.bf16 %v7374, %v7366
        %v7447 = vpack.c.bf16 %v7375, %v7367
        %v7448 = vpack.c.bf16 %v7376, %v7368
        %v7449 = vpack.c.bf16 %v7377, %v7369
        %v7450 = vpack.c.bf16 %v7378, %v7370
        %v7451 = vpack.c.bf16 %v7387, %v7379
        %v7452 = vpack.c.bf16 %v7388, %v7380
        %v7453 = vpack.c.bf16 %v7389, %v7381
        %v7454 = vpack.c.bf16 %v7390, %v7382
        %v7455 = vpack.c.bf16 %v7391, %v7383
        %v7456 = vpack.c.bf16 %v7392, %v7384
        %v7457 = vpack.c.bf16 %v7393, %v7385
        %v7458 = vpack.c.bf16 %v7394, %v7386
        %v7459 = vld [vmem:[#allocation13] sm:$0xff]
        %v7460 = vld [vmem:[#allocation13 + $0x8] sm:$0xff]
        %v7461 = vld [vmem:[#allocation13 + $0x10] sm:$0xff]
        %v7462 = vld [vmem:[#allocation13 + $0x18] sm:$0xff]
        %v7463 = vld [vmem:[#allocation13 + $0x20] sm:$0xff]
        %v7464 = vld [vmem:[#allocation13 + $0x28] sm:$0xff]
        %v7465 = vld [vmem:[#allocation13 + $0x30] sm:$0xff]
        %v7466 = vld [vmem:[#allocation13 + $0x38] sm:$0xff]
        %v7467 = vld [vmem:[#allocation13 + $0x40] sm:$0xff]
        %v7468 = vld [vmem:[#allocation13 + $0x48] sm:$0xff]
        %v7469 = vld [vmem:[#allocation13 + $0x50] sm:$0xff]
        %v7470 = vld [vmem:[#allocation13 + $0x58] sm:$0xff]
        %v7471 = vld [vmem:[#allocation13 + $0x60] sm:$0xff]
        %v7472 = vld [vmem:[#allocation13 + $0x68] sm:$0xff]
        %v7473 = vld [vmem:[#allocation13 + $0x70] sm:$0xff]
        %v7474 = vld [vmem:[#allocation13 + $0x78] sm:$0xff]
        %v7475 = vld [vmem:[#allocation13 + $0x80] sm:$0xff]
        %v7476 = vld [vmem:[#allocation13 + $0x88] sm:$0xff]
        %v7477 = vld [vmem:[#allocation13 + $0x90] sm:$0xff]
        %v7478 = vld [vmem:[#allocation13 + $0x98] sm:$0xff]
        %v7479 = vld [vmem:[#allocation13 + $0xa0] sm:$0xff]
        %v7480 = vld [vmem:[#allocation13 + $0xa8] sm:$0xff]
        %v7481 = vld [vmem:[#allocation13 + $0xb0] sm:$0xff]
        %v7482 = vld [vmem:[#allocation13 + $0xb8] sm:$0xff]
        %v7483 = vld [vmem:[#allocation13 + $0xc0] sm:$0xff]
        %v7484 = vld [vmem:[#allocation13 + $0xc8] sm:$0xff]
        %v7485 = vld [vmem:[#allocation13 + $0xd0] sm:$0xff]
        %v7486 = vld [vmem:[#allocation13 + $0xd8] sm:$0xff]
        %v7487 = vld [vmem:[#allocation13 + $0xe0] sm:$0xff]
        %v7488 = vld [vmem:[#allocation13 + $0xe8] sm:$0xff]
        %v7489 = vld [vmem:[#allocation13 + $0xf0] sm:$0xff]
        %v7490 = vld [vmem:[#allocation13 + $0xf8] sm:$0xff]
        %v7491 = vld [vmem:[#allocation13 + $0x100] sm:$0xff]
        %v7492 = vld [vmem:[#allocation13 + $0x108] sm:$0xff]
        %v7493 = vld [vmem:[#allocation13 + $0x110] sm:$0xff]
        %v7494 = vld [vmem:[#allocation13 + $0x118] sm:$0xff]
        %v7495 = vld [vmem:[#allocation13 + $0x120] sm:$0xff]
        %v7496 = vld [vmem:[#allocation13 + $0x128] sm:$0xff]
        %v7497 = vld [vmem:[#allocation13 + $0x130] sm:$0xff]
        %v7498 = vld [vmem:[#allocation13 + $0x138] sm:$0xff]
        %v7499 = vld [vmem:[#allocation13 + $0x140] sm:$0xff]
        %v7500 = vld [vmem:[#allocation13 + $0x148] sm:$0xff]
        %v7501 = vld [vmem:[#allocation13 + $0x150] sm:$0xff]
        %v7502 = vld [vmem:[#allocation13 + $0x158] sm:$0xff]
        %v7503 = vld [vmem:[#allocation13 + $0x160] sm:$0xff]
        %v7504 = vld [vmem:[#allocation13 + $0x168] sm:$0xff]
        %v7505 = vld [vmem:[#allocation13 + $0x170] sm:$0xff]
        %v7506 = vld [vmem:[#allocation13 + $0x178] sm:$0xff]
        %v7507 = vld [vmem:[#allocation13 + $0x180] sm:$0xff]
        %v7508 = vld [vmem:[#allocation13 + $0x188] sm:$0xff]
        %v7509 = vld [vmem:[#allocation13 + $0x190] sm:$0xff]
        %v7510 = vld [vmem:[#allocation13 + $0x198] sm:$0xff]
        %v7511 = vld [vmem:[#allocation13 + $0x1a0] sm:$0xff]
        %v7512 = vld [vmem:[#allocation13 + $0x1a8] sm:$0xff]
        %v7513 = vld [vmem:[#allocation13 + $0x1b0] sm:$0xff]
        %v7514 = vld [vmem:[#allocation13 + $0x1b8] sm:$0xff]
        %v7515 = vld [vmem:[#allocation13 + $0x1c0] sm:$0xff]
        %v7516 = vld [vmem:[#allocation13 + $0x1c8] sm:$0xff]
        %v7517 = vld [vmem:[#allocation13 + $0x1d0] sm:$0xff]
        %v7518 = vld [vmem:[#allocation13 + $0x1d8] sm:$0xff]
        %v7519 = vld [vmem:[#allocation13 + $0x1e0] sm:$0xff]
        %v7520 = vld [vmem:[#allocation13 + $0x1e8] sm:$0xff]
        %v7521 = vld [vmem:[#allocation13 + $0x1f0] sm:$0xff]
        %v7522 = vld [vmem:[#allocation13 + $0x1f8] sm:$0xff]
        %v7523 = vld [vmem:[#allocation13 + $0x200] sm:$0xff]
        %v7524 = vld [vmem:[#allocation13 + $0x208] sm:$0xff]
        %v7525 = vld [vmem:[#allocation13 + $0x210] sm:$0xff]
        %v7526 = vld [vmem:[#allocation13 + $0x218] sm:$0xff]
        %v7527 = vld [vmem:[#allocation13 + $0x220] sm:$0xff]
        %v7528 = vld [vmem:[#allocation13 + $0x228] sm:$0xff]
        %v7529 = vld [vmem:[#allocation13 + $0x230] sm:$0xff]
        %v7530 = vld [vmem:[#allocation13 + $0x238] sm:$0xff]
        %v7531 = vld [vmem:[#allocation13 + $0x240] sm:$0xff]
        %v7532 = vld [vmem:[#allocation13 + $0x248] sm:$0xff]
        %v7533 = vld [vmem:[#allocation13 + $0x250] sm:$0xff]
        %v7534 = vld [vmem:[#allocation13 + $0x258] sm:$0xff]
        %v7535 = vld [vmem:[#allocation13 + $0x260] sm:$0xff]
        %v7536 = vld [vmem:[#allocation13 + $0x268] sm:$0xff]
        %v7537 = vld [vmem:[#allocation13 + $0x270] sm:$0xff]
        %v7538 = vld [vmem:[#allocation13 + $0x278] sm:$0xff]
        %v7539 = vld [vmem:[#allocation13 + $0x280] sm:$0xff]
        %v7540 = vld [vmem:[#allocation13 + $0x288] sm:$0xff]
        %v7541 = vld [vmem:[#allocation13 + $0x290] sm:$0xff]
        %v7542 = vld [vmem:[#allocation13 + $0x298] sm:$0xff]
        %v7543 = vld [vmem:[#allocation13 + $0x2a0] sm:$0xff]
        %v7544 = vld [vmem:[#allocation13 + $0x2a8] sm:$0xff]
        %v7545 = vld [vmem:[#allocation13 + $0x2b0] sm:$0xff]
        %v7546 = vld [vmem:[#allocation13 + $0x2b8] sm:$0xff]
        %v7547 = vld [vmem:[#allocation13 + $0x2c0] sm:$0xff]
        %v7548 = vld [vmem:[#allocation13 + $0x2c8] sm:$0xff]
        %v7549 = vld [vmem:[#allocation13 + $0x2d0] sm:$0xff]
        %v7550 = vld [vmem:[#allocation13 + $0x2d8] sm:$0xff]
        %v7551 = vld [vmem:[#allocation13 + $0x2e0] sm:$0xff]
        %v7552 = vld [vmem:[#allocation13 + $0x2e8] sm:$0xff]
        %v7553 = vld [vmem:[#allocation13 + $0x2f0] sm:$0xff]
        %v7554 = vld [vmem:[#allocation13 + $0x2f8] sm:$0xff]
        %v7555 = vld [vmem:[#allocation13 + $0x300] sm:$0xff]
        %v7556 = vld [vmem:[#allocation13 + $0x308] sm:$0xff]
        %v7557 = vld [vmem:[#allocation13 + $0x310] sm:$0xff]
        %v7558 = vld [vmem:[#allocation13 + $0x318] sm:$0xff]
        %v7559 = vld [vmem:[#allocation13 + $0x320] sm:$0xff]
        %v7560 = vld [vmem:[#allocation13 + $0x328] sm:$0xff]
        %v7561 = vld [vmem:[#allocation13 + $0x330] sm:$0xff]
        %v7562 = vld [vmem:[#allocation13 + $0x338] sm:$0xff]
        %v7563 = vld [vmem:[#allocation13 + $0x340] sm:$0xff]
        %v7564 = vld [vmem:[#allocation13 + $0x348] sm:$0xff]
        %v7565 = vld [vmem:[#allocation13 + $0x350] sm:$0xff]
        %v7566 = vld [vmem:[#allocation13 + $0x358] sm:$0xff]
        %v7567 = vld [vmem:[#allocation13 + $0x360] sm:$0xff]
        %v7568 = vld [vmem:[#allocation13 + $0x368] sm:$0xff]
        %v7569 = vld [vmem:[#allocation13 + $0x370] sm:$0xff]
        %v7570 = vld [vmem:[#allocation13 + $0x378] sm:$0xff]
        %v7571 = vld [vmem:[#allocation13 + $0x380] sm:$0xff]
        %v7572 = vld [vmem:[#allocation13 + $0x388] sm:$0xff]
        %v7573 = vld [vmem:[#allocation13 + $0x390] sm:$0xff]
        %v7574 = vld [vmem:[#allocation13 + $0x398] sm:$0xff]
        %v7575 = vld [vmem:[#allocation13 + $0x3a0] sm:$0xff]
        %v7576 = vld [vmem:[#allocation13 + $0x3a8] sm:$0xff]
        %v7577 = vld [vmem:[#allocation13 + $0x3b0] sm:$0xff]
        %v7578 = vld [vmem:[#allocation13 + $0x3b8] sm:$0xff]
        %v7579 = vld [vmem:[#allocation13 + $0x3c0] sm:$0xff]
        %v7580 = vld [vmem:[#allocation13 + $0x3c8] sm:$0xff]
        %v7581 = vld [vmem:[#allocation13 + $0x3d0] sm:$0xff]
        %v7582 = vld [vmem:[#allocation13 + $0x3d8] sm:$0xff]
        %v7583 = vld [vmem:[#allocation13 + $0x3e0] sm:$0xff]
        %v7584 = vld [vmem:[#allocation13 + $0x3e8] sm:$0xff]
        %v7585 = vld [vmem:[#allocation13 + $0x3f0] sm:$0xff]
        %v7586 = vld [vmem:[#allocation13 + $0x3f8] sm:$0xff]
        %v7587 = vld [vmem:[#allocation13 + $0x400] sm:$0xff]
        %v7588 = vld [vmem:[#allocation13 + $0x408] sm:$0xff]
        %v7589 = vld [vmem:[#allocation13 + $0x410] sm:$0xff]
        %v7590 = vld [vmem:[#allocation13 + $0x418] sm:$0xff]
        %v7591 = vld [vmem:[#allocation13 + $0x420] sm:$0xff]
        %v7592 = vld [vmem:[#allocation13 + $0x428] sm:$0xff]
        %v7593 = vld [vmem:[#allocation13 + $0x430] sm:$0xff]
        %v7594 = vld [vmem:[#allocation13 + $0x438] sm:$0xff]
        %v7595 = vld [vmem:[#allocation13 + $0x440] sm:$0xff]
        %v7596 = vld [vmem:[#allocation13 + $0x448] sm:$0xff]
        %v7597 = vld [vmem:[#allocation13 + $0x450] sm:$0xff]
        %v7598 = vld [vmem:[#allocation13 + $0x458] sm:$0xff]
        %v7599 = vld [vmem:[#allocation13 + $0x460] sm:$0xff]
        %v7600 = vld [vmem:[#allocation13 + $0x468] sm:$0xff]
        %v7601 = vld [vmem:[#allocation13 + $0x470] sm:$0xff]
        %v7602 = vld [vmem:[#allocation13 + $0x478] sm:$0xff]
        %v7603 = vld [vmem:[#allocation13 + $0x480] sm:$0xff]
        %v7604 = vld [vmem:[#allocation13 + $0x488] sm:$0xff]
        %v7605 = vld [vmem:[#allocation13 + $0x490] sm:$0xff]
        %v7606 = vld [vmem:[#allocation13 + $0x498] sm:$0xff]
        %v7607 = vld [vmem:[#allocation13 + $0x4a0] sm:$0xff]
        %v7608 = vld [vmem:[#allocation13 + $0x4a8] sm:$0xff]
        %v7609 = vld [vmem:[#allocation13 + $0x4b0] sm:$0xff]
        %v7610 = vld [vmem:[#allocation13 + $0x4b8] sm:$0xff]
        %v7611 = vld [vmem:[#allocation13 + $0x4c0] sm:$0xff]
        %v7612 = vld [vmem:[#allocation13 + $0x4c8] sm:$0xff]
        %v7613 = vld [vmem:[#allocation13 + $0x4d0] sm:$0xff]
        %v7614 = vld [vmem:[#allocation13 + $0x4d8] sm:$0xff]
        %v7615 = vld [vmem:[#allocation13 + $0x4e0] sm:$0xff]
        %v7616 = vld [vmem:[#allocation13 + $0x4e8] sm:$0xff]
        %v7617 = vld [vmem:[#allocation13 + $0x4f0] sm:$0xff]
        %v7618 = vld [vmem:[#allocation13 + $0x4f8] sm:$0xff]
        %v7619 = vld [vmem:[#allocation13 + $0x500] sm:$0xff]
        %v7620 = vld [vmem:[#allocation13 + $0x508] sm:$0xff]
        %v7621 = vld [vmem:[#allocation13 + $0x510] sm:$0xff]
        %v7622 = vld [vmem:[#allocation13 + $0x518] sm:$0xff]
        %v7623 = vld [vmem:[#allocation13 + $0x520] sm:$0xff]
        %v7624 = vld [vmem:[#allocation13 + $0x528] sm:$0xff]
        %v7625 = vld [vmem:[#allocation13 + $0x530] sm:$0xff]
        %v7626 = vld [vmem:[#allocation13 + $0x538] sm:$0xff]
        %v7627 = vld [vmem:[#allocation13 + $0x540] sm:$0xff]
        %v7628 = vld [vmem:[#allocation13 + $0x548] sm:$0xff]
        %v7629 = vld [vmem:[#allocation13 + $0x550] sm:$0xff]
        %v7630 = vld [vmem:[#allocation13 + $0x558] sm:$0xff]
        %v7631 = vld [vmem:[#allocation13 + $0x560] sm:$0xff]
        %v7632 = vld [vmem:[#allocation13 + $0x568] sm:$0xff]
        %v7633 = vld [vmem:[#allocation13 + $0x570] sm:$0xff]
        %v7634 = vld [vmem:[#allocation13 + $0x578] sm:$0xff]
        %v7635 = vld [vmem:[#allocation13 + $0x580] sm:$0xff]
        %v7636 = vld [vmem:[#allocation13 + $0x588] sm:$0xff]
        %v7637 = vld [vmem:[#allocation13 + $0x590] sm:$0xff]
        %v7638 = vld [vmem:[#allocation13 + $0x598] sm:$0xff]
        %v7639 = vld [vmem:[#allocation13 + $0x5a0] sm:$0xff]
        %v7640 = vld [vmem:[#allocation13 + $0x5a8] sm:$0xff]
        %v7641 = vld [vmem:[#allocation13 + $0x5b0] sm:$0xff]
        %v7642 = vld [vmem:[#allocation13 + $0x5b8] sm:$0xff]
        %v7643 = vld [vmem:[#allocation13 + $0x5c0] sm:$0xff]
        %v7644 = vld [vmem:[#allocation13 + $0x5c8] sm:$0xff]
        %v7645 = vld [vmem:[#allocation13 + $0x5d0] sm:$0xff]
        %v7646 = vld [vmem:[#allocation13 + $0x5d8] sm:$0xff]
        %v7647 = vld [vmem:[#allocation13 + $0x5e0] sm:$0xff]
        %v7648 = vld [vmem:[#allocation13 + $0x5e8] sm:$0xff]
        %v7649 = vld [vmem:[#allocation13 + $0x5f0] sm:$0xff]
        %v7650 = vld [vmem:[#allocation13 + $0x5f8] sm:$0xff]
        %v7651 = vld [vmem:[#allocation13 + $0x600] sm:$0xff]
        %v7652 = vld [vmem:[#allocation13 + $0x608] sm:$0xff]
        %v7653 = vld [vmem:[#allocation13 + $0x610] sm:$0xff]
        %v7654 = vld [vmem:[#allocation13 + $0x618] sm:$0xff]
        %v7655 = vld [vmem:[#allocation13 + $0x620] sm:$0xff]
        %v7656 = vld [vmem:[#allocation13 + $0x628] sm:$0xff]
        %v7657 = vld [vmem:[#allocation13 + $0x630] sm:$0xff]
        %v7658 = vld [vmem:[#allocation13 + $0x638] sm:$0xff]
        %v7659 = vld [vmem:[#allocation13 + $0x640] sm:$0xff]
        %v7660 = vld [vmem:[#allocation13 + $0x648] sm:$0xff]
        %v7661 = vld [vmem:[#allocation13 + $0x650] sm:$0xff]
        %v7662 = vld [vmem:[#allocation13 + $0x658] sm:$0xff]
        %v7663 = vld [vmem:[#allocation13 + $0x660] sm:$0xff]
        %v7664 = vld [vmem:[#allocation13 + $0x668] sm:$0xff]
        %v7665 = vld [vmem:[#allocation13 + $0x670] sm:$0xff]
        %v7666 = vld [vmem:[#allocation13 + $0x678] sm:$0xff]
        %v7667 = vld [vmem:[#allocation13 + $0x680] sm:$0xff]
        %v7668 = vld [vmem:[#allocation13 + $0x688] sm:$0xff]
        %v7669 = vld [vmem:[#allocation13 + $0x690] sm:$0xff]
        %v7670 = vld [vmem:[#allocation13 + $0x698] sm:$0xff]
        %v7671 = vld [vmem:[#allocation13 + $0x6a0] sm:$0xff]
        %v7672 = vld [vmem:[#allocation13 + $0x6a8] sm:$0xff]
        %v7673 = vld [vmem:[#allocation13 + $0x6b0] sm:$0xff]
        %v7674 = vld [vmem:[#allocation13 + $0x6b8] sm:$0xff]
        %v7675 = vld [vmem:[#allocation13 + $0x6c0] sm:$0xff]
        %v7676 = vld [vmem:[#allocation13 + $0x6c8] sm:$0xff]
        %v7677 = vld [vmem:[#allocation13 + $0x6d0] sm:$0xff]
        %v7678 = vld [vmem:[#allocation13 + $0x6d8] sm:$0xff]
        %v7679 = vld [vmem:[#allocation13 + $0x6e0] sm:$0xff]
        %v7680 = vld [vmem:[#allocation13 + $0x6e8] sm:$0xff]
        %v7681 = vld [vmem:[#allocation13 + $0x6f0] sm:$0xff]
        %v7682 = vld [vmem:[#allocation13 + $0x6f8] sm:$0xff]
        %v7683 = vld [vmem:[#allocation13 + $0x700] sm:$0xff]
        %v7684 = vld [vmem:[#allocation13 + $0x708] sm:$0xff]
        %v7685 = vld [vmem:[#allocation13 + $0x710] sm:$0xff]
        %v7686 = vld [vmem:[#allocation13 + $0x718] sm:$0xff]
        %v7687 = vld [vmem:[#allocation13 + $0x720] sm:$0xff]
        %v7688 = vld [vmem:[#allocation13 + $0x728] sm:$0xff]
        %v7689 = vld [vmem:[#allocation13 + $0x730] sm:$0xff]
        %v7690 = vld [vmem:[#allocation13 + $0x738] sm:$0xff]
        %v7691 = vld [vmem:[#allocation13 + $0x740] sm:$0xff]
        %v7692 = vld [vmem:[#allocation13 + $0x748] sm:$0xff]
        %v7693 = vld [vmem:[#allocation13 + $0x750] sm:$0xff]
        %v7694 = vld [vmem:[#allocation13 + $0x758] sm:$0xff]
        %v7695 = vld [vmem:[#allocation13 + $0x760] sm:$0xff]
        %v7696 = vld [vmem:[#allocation13 + $0x768] sm:$0xff]
        %v7697 = vld [vmem:[#allocation13 + $0x770] sm:$0xff]
        %v7698 = vld [vmem:[#allocation13 + $0x778] sm:$0xff]
        %v7699 = vld [vmem:[#allocation13 + $0x780] sm:$0xff]
        %v7700 = vld [vmem:[#allocation13 + $0x788] sm:$0xff]
        %v7701 = vld [vmem:[#allocation13 + $0x790] sm:$0xff]
        %v7702 = vld [vmem:[#allocation13 + $0x798] sm:$0xff]
        %v7703 = vld [vmem:[#allocation13 + $0x7a0] sm:$0xff]
        %v7704 = vld [vmem:[#allocation13 + $0x7a8] sm:$0xff]
        %v7705 = vld [vmem:[#allocation13 + $0x7b0] sm:$0xff]
        %v7706 = vld [vmem:[#allocation13 + $0x7b8] sm:$0xff]
        %v7707 = vld [vmem:[#allocation13 + $0x7c0] sm:$0xff]
        %v7708 = vld [vmem:[#allocation13 + $0x7c8] sm:$0xff]
        %v7709 = vld [vmem:[#allocation13 + $0x7d0] sm:$0xff]
        %v7710 = vld [vmem:[#allocation13 + $0x7d8] sm:$0xff]
        %v7711 = vld [vmem:[#allocation13 + $0x7e0] sm:$0xff]
        %v7712 = vld [vmem:[#allocation13 + $0x7e8] sm:$0xff]
        %v7713 = vld [vmem:[#allocation13 + $0x7f0] sm:$0xff]
        %v7714 = vld [vmem:[#allocation13 + $0x7f8] sm:$0xff]
        %v7715 = vld [vmem:[%s8] sm:$0xf]
        %v7717 = vlaneseq
        %v7718 = vshrl.u32 %v7717, 7
        %v7719 = vsub.s32 0, %v7718
        %v7720 = vrot.slane %v7715, %v7719
        %v7721 = vlaneseq
        %v7722 = vshrl.u32 %v7721, 7
        %v7723 = vsub.s32 1, %v7722
        %v7724 = vrot.slane %v7715, %v7723
        %v7725 = vlaneseq
        %v7726 = vshrl.u32 %v7725, 7
        %v7727 = vsub.s32 2, %v7726
        %v7728 = vrot.slane %v7715, %v7727
        %v7729 = vlaneseq
        %v7730 = vshrl.u32 %v7729, 7
        %v7731 = vsub.s32 3, %v7730
        %v7732 = vrot.slane %v7715, %v7731
        %v7993 = vunpack.c.l.b16 %v7459
        %v7994 = vunpack.c.h.b16 %v7459
        %v7995 = vunpack.c.l.b16 %v7460
        %v7996 = vunpack.c.h.b16 %v7460
        %v7997 = vunpack.c.l.b16 %v7461
        %v7998 = vunpack.c.h.b16 %v7461
        %v7999 = vunpack.c.l.b16 %v7462
        %v8000 = vunpack.c.h.b16 %v7462
        %v8001 = vunpack.c.l.b16 %v7463
        %v8002 = vunpack.c.h.b16 %v7463
        %v8003 = vunpack.c.l.b16 %v7464
        %v8004 = vunpack.c.h.b16 %v7464
        %v8005 = vunpack.c.l.b16 %v7465
        %v8006 = vunpack.c.h.b16 %v7465
        %v8007 = vunpack.c.l.b16 %v7466
        %v8008 = vunpack.c.h.b16 %v7466
        %v8009 = vunpack.c.l.b16 %v7467
        %v8010 = vunpack.c.h.b16 %v7467
        %v8011 = vunpack.c.l.b16 %v7468
        %v8012 = vunpack.c.h.b16 %v7468
        %v8013 = vunpack.c.l.b16 %v7469
        %v8014 = vunpack.c.h.b16 %v7469
        %v8015 = vunpack.c.l.b16 %v7470
        %v8016 = vunpack.c.h.b16 %v7470
        %v8017 = vunpack.c.l.b16 %v7471
        %v8018 = vunpack.c.h.b16 %v7471
        %v8019 = vunpack.c.l.b16 %v7472
        %v8020 = vunpack.c.h.b16 %v7472
        %v8021 = vunpack.c.l.b16 %v7473
        %v8022 = vunpack.c.h.b16 %v7473
        %v8023 = vunpack.c.l.b16 %v7474
        %v8024 = vunpack.c.h.b16 %v7474
        %v8025 = vunpack.c.l.b16 %v7475
        %v8026 = vunpack.c.h.b16 %v7475
        %v8027 = vunpack.c.l.b16 %v7476
        %v8028 = vunpack.c.h.b16 %v7476
        %v8029 = vunpack.c.l.b16 %v7477
        %v8030 = vunpack.c.h.b16 %v7477
        %v8031 = vunpack.c.l.b16 %v7478
        %v8032 = vunpack.c.h.b16 %v7478
        %v8033 = vunpack.c.l.b16 %v7479
        %v8034 = vunpack.c.h.b16 %v7479
        %v8035 = vunpack.c.l.b16 %v7480
        %v8036 = vunpack.c.h.b16 %v7480
        %v8037 = vunpack.c.l.b16 %v7481
        %v8038 = vunpack.c.h.b16 %v7481
        %v8039 = vunpack.c.l.b16 %v7482
        %v8040 = vunpack.c.h.b16 %v7482
        %v8041 = vunpack.c.l.b16 %v7483
        %v8042 = vunpack.c.h.b16 %v7483
        %v8043 = vunpack.c.l.b16 %v7484
        %v8044 = vunpack.c.h.b16 %v7484
        %v8045 = vunpack.c.l.b16 %v7485
        %v8046 = vunpack.c.h.b16 %v7485
        %v8047 = vunpack.c.l.b16 %v7486
        %v8048 = vunpack.c.h.b16 %v7486
        %v8049 = vunpack.c.l.b16 %v7487
        %v8050 = vunpack.c.h.b16 %v7487
        %v8051 = vunpack.c.l.b16 %v7488
        %v8052 = vunpack.c.h.b16 %v7488
        %v8053 = vunpack.c.l.b16 %v7489
        %v8054 = vunpack.c.h.b16 %v7489
        %v8055 = vunpack.c.l.b16 %v7490
        %v8056 = vunpack.c.h.b16 %v7490
        %v8057 = vunpack.c.l.b16 %v7491
        %v8058 = vunpack.c.h.b16 %v7491
        %v8059 = vunpack.c.l.b16 %v7492
        %v8060 = vunpack.c.h.b16 %v7492
        %v8061 = vunpack.c.l.b16 %v7493
        %v8062 = vunpack.c.h.b16 %v7493
        %v8063 = vunpack.c.l.b16 %v7494
        %v8064 = vunpack.c.h.b16 %v7494
        %v8065 = vunpack.c.l.b16 %v7495
        %v8066 = vunpack.c.h.b16 %v7495
        %v8067 = vunpack.c.l.b16 %v7496
        %v8068 = vunpack.c.h.b16 %v7496
        %v8069 = vunpack.c.l.b16 %v7497
        %v8070 = vunpack.c.h.b16 %v7497
        %v8071 = vunpack.c.l.b16 %v7498
        %v8072 = vunpack.c.h.b16 %v7498
        %v8073 = vunpack.c.l.b16 %v7499
        %v8074 = vunpack.c.h.b16 %v7499
        %v8075 = vunpack.c.l.b16 %v7500
        %v8076 = vunpack.c.h.b16 %v7500
        %v8077 = vunpack.c.l.b16 %v7501
        %v8078 = vunpack.c.h.b16 %v7501
        %v8079 = vunpack.c.l.b16 %v7502
        %v8080 = vunpack.c.h.b16 %v7502
        %v8081 = vunpack.c.l.b16 %v7503
        %v8082 = vunpack.c.h.b16 %v7503
        %v8083 = vunpack.c.l.b16 %v7504
        %v8084 = vunpack.c.h.b16 %v7504
        %v8085 = vunpack.c.l.b16 %v7505
        %v8086 = vunpack.c.h.b16 %v7505
        %v8087 = vunpack.c.l.b16 %v7506
        %v8088 = vunpack.c.h.b16 %v7506
        %v8089 = vunpack.c.l.b16 %v7507
        %v8090 = vunpack.c.h.b16 %v7507
        %v8091 = vunpack.c.l.b16 %v7508
        %v8092 = vunpack.c.h.b16 %v7508
        %v8093 = vunpack.c.l.b16 %v7509
        %v8094 = vunpack.c.h.b16 %v7509
        %v8095 = vunpack.c.l.b16 %v7510
        %v8096 = vunpack.c.h.b16 %v7510
        %v8097 = vunpack.c.l.b16 %v7511
        %v8098 = vunpack.c.h.b16 %v7511
        %v8099 = vunpack.c.l.b16 %v7512
        %v8100 = vunpack.c.h.b16 %v7512
        %v8101 = vunpack.c.l.b16 %v7513
        %v8102 = vunpack.c.h.b16 %v7513
        %v8103 = vunpack.c.l.b16 %v7514
        %v8104 = vunpack.c.h.b16 %v7514
        %v8105 = vunpack.c.l.b16 %v7515
        %v8106 = vunpack.c.h.b16 %v7515
        %v8107 = vunpack.c.l.b16 %v7516
        %v8108 = vunpack.c.h.b16 %v7516
        %v8109 = vunpack.c.l.b16 %v7517
        %v8110 = vunpack.c.h.b16 %v7517
        %v8111 = vunpack.c.l.b16 %v7518
        %v8112 = vunpack.c.h.b16 %v7518
        %v8113 = vunpack.c.l.b16 %v7519
        %v8114 = vunpack.c.h.b16 %v7519
        %v8115 = vunpack.c.l.b16 %v7520
        %v8116 = vunpack.c.h.b16 %v7520
        %v8117 = vunpack.c.l.b16 %v7521
        %v8118 = vunpack.c.h.b16 %v7521
        %v8119 = vunpack.c.l.b16 %v7522
        %v8120 = vunpack.c.h.b16 %v7522
        %v8121 = vunpack.c.l.b16 %v7523
        %v8122 = vunpack.c.h.b16 %v7523
        %v8123 = vunpack.c.l.b16 %v7524
        %v8124 = vunpack.c.h.b16 %v7524
        %v8125 = vunpack.c.l.b16 %v7525
        %v8126 = vunpack.c.h.b16 %v7525
        %v8127 = vunpack.c.l.b16 %v7526
        %v8128 = vunpack.c.h.b16 %v7526
        %v8129 = vunpack.c.l.b16 %v7527
        %v8130 = vunpack.c.h.b16 %v7527
        %v8131 = vunpack.c.l.b16 %v7528
        %v8132 = vunpack.c.h.b16 %v7528
        %v8133 = vunpack.c.l.b16 %v7529
        %v8134 = vunpack.c.h.b16 %v7529
        %v8135 = vunpack.c.l.b16 %v7530
        %v8136 = vunpack.c.h.b16 %v7530
        %v8137 = vunpack.c.l.b16 %v7531
        %v8138 = vunpack.c.h.b16 %v7531
        %v8139 = vunpack.c.l.b16 %v7532
        %v8140 = vunpack.c.h.b16 %v7532
        %v8141 = vunpack.c.l.b16 %v7533
        %v8142 = vunpack.c.h.b16 %v7533
        %v8143 = vunpack.c.l.b16 %v7534
        %v8144 = vunpack.c.h.b16 %v7534
        %v8145 = vunpack.c.l.b16 %v7535
        %v8146 = vunpack.c.h.b16 %v7535
        %v8147 = vunpack.c.l.b16 %v7536
        %v8148 = vunpack.c.h.b16 %v7536
        %v8149 = vunpack.c.l.b16 %v7537
        %v8150 = vunpack.c.h.b16 %v7537
        %v8151 = vunpack.c.l.b16 %v7538
        %v8152 = vunpack.c.h.b16 %v7538
        %v8153 = vunpack.c.l.b16 %v7539
        %v8154 = vunpack.c.h.b16 %v7539
        %v8155 = vunpack.c.l.b16 %v7540
        %v8156 = vunpack.c.h.b16 %v7540
        %v8157 = vunpack.c.l.b16 %v7541
        %v8158 = vunpack.c.h.b16 %v7541
        %v8159 = vunpack.c.l.b16 %v7542
        %v8160 = vunpack.c.h.b16 %v7542
        %v8161 = vunpack.c.l.b16 %v7543
        %v8162 = vunpack.c.h.b16 %v7543
        %v8163 = vunpack.c.l.b16 %v7544
        %v8164 = vunpack.c.h.b16 %v7544
        %v8165 = vunpack.c.l.b16 %v7545
        %v8166 = vunpack.c.h.b16 %v7545
        %v8167 = vunpack.c.l.b16 %v7546
        %v8168 = vunpack.c.h.b16 %v7546
        %v8169 = vunpack.c.l.b16 %v7547
        %v8170 = vunpack.c.h.b16 %v7547
        %v8171 = vunpack.c.l.b16 %v7548
        %v8172 = vunpack.c.h.b16 %v7548
        %v8173 = vunpack.c.l.b16 %v7549
        %v8174 = vunpack.c.h.b16 %v7549
        %v8175 = vunpack.c.l.b16 %v7550
        %v8176 = vunpack.c.h.b16 %v7550
        %v8177 = vunpack.c.l.b16 %v7551
        %v8178 = vunpack.c.h.b16 %v7551
        %v8179 = vunpack.c.l.b16 %v7552
        %v8180 = vunpack.c.h.b16 %v7552
        %v8181 = vunpack.c.l.b16 %v7553
        %v8182 = vunpack.c.h.b16 %v7553
        %v8183 = vunpack.c.l.b16 %v7554
        %v8184 = vunpack.c.h.b16 %v7554
        %v8185 = vunpack.c.l.b16 %v7555
        %v8186 = vunpack.c.h.b16 %v7555
        %v8187 = vunpack.c.l.b16 %v7556
        %v8188 = vunpack.c.h.b16 %v7556
        %v8189 = vunpack.c.l.b16 %v7557
        %v8190 = vunpack.c.h.b16 %v7557
        %v8191 = vunpack.c.l.b16 %v7558
        %v8192 = vunpack.c.h.b16 %v7558
        %v8193 = vunpack.c.l.b16 %v7559
        %v8194 = vunpack.c.h.b16 %v7559
        %v8195 = vunpack.c.l.b16 %v7560
        %v8196 = vunpack.c.h.b16 %v7560
        %v8197 = vunpack.c.l.b16 %v7561
        %v8198 = vunpack.c.h.b16 %v7561
        %v8199 = vunpack.c.l.b16 %v7562
        %v8200 = vunpack.c.h.b16 %v7562
        %v8201 = vunpack.c.l.b16 %v7563
        %v8202 = vunpack.c.h.b16 %v7563
        %v8203 = vunpack.c.l.b16 %v7564
        %v8204 = vunpack.c.h.b16 %v7564
        %v8205 = vunpack.c.l.b16 %v7565
        %v8206 = vunpack.c.h.b16 %v7565
        %v8207 = vunpack.c.l.b16 %v7566
        %v8208 = vunpack.c.h.b16 %v7566
        %v8209 = vunpack.c.l.b16 %v7567
        %v8210 = vunpack.c.h.b16 %v7567
        %v8211 = vunpack.c.l.b16 %v7568
        %v8212 = vunpack.c.h.b16 %v7568
        %v8213 = vunpack.c.l.b16 %v7569
        %v8214 = vunpack.c.h.b16 %v7569
        %v8215 = vunpack.c.l.b16 %v7570
        %v8216 = vunpack.c.h.b16 %v7570
        %v8217 = vunpack.c.l.b16 %v7571
        %v8218 = vunpack.c.h.b16 %v7571
        %v8219 = vunpack.c.l.b16 %v7572
        %v8220 = vunpack.c.h.b16 %v7572
        %v8221 = vunpack.c.l.b16 %v7573
        %v8222 = vunpack.c.h.b16 %v7573
        %v8223 = vunpack.c.l.b16 %v7574
        %v8224 = vunpack.c.h.b16 %v7574
        %v8225 = vunpack.c.l.b16 %v7575
        %v8226 = vunpack.c.h.b16 %v7575
        %v8227 = vunpack.c.l.b16 %v7576
        %v8228 = vunpack.c.h.b16 %v7576
        %v8229 = vunpack.c.l.b16 %v7577
        %v8230 = vunpack.c.h.b16 %v7577
        %v8231 = vunpack.c.l.b16 %v7578
        %v8232 = vunpack.c.h.b16 %v7578
        %v8233 = vunpack.c.l.b16 %v7579
        %v8234 = vunpack.c.h.b16 %v7579
        %v8235 = vunpack.c.l.b16 %v7580
        %v8236 = vunpack.c.h.b16 %v7580
        %v8237 = vunpack.c.l.b16 %v7581
        %v8238 = vunpack.c.h.b16 %v7581
        %v8239 = vunpack.c.l.b16 %v7582
        %v8240 = vunpack.c.h.b16 %v7582
        %v8241 = vunpack.c.l.b16 %v7583
        %v8242 = vunpack.c.h.b16 %v7583
        %v8243 = vunpack.c.l.b16 %v7584
        %v8244 = vunpack.c.h.b16 %v7584
        %v8245 = vunpack.c.l.b16 %v7585
        %v8246 = vunpack.c.h.b16 %v7585
        %v8247 = vunpack.c.l.b16 %v7586
        %v8248 = vunpack.c.h.b16 %v7586
        %v8249 = vunpack.c.l.b16 %v7587
        %v8250 = vunpack.c.h.b16 %v7587
        %v8251 = vunpack.c.l.b16 %v7588
        %v8252 = vunpack.c.h.b16 %v7588
        %v8253 = vunpack.c.l.b16 %v7589
        %v8254 = vunpack.c.h.b16 %v7589
        %v8255 = vunpack.c.l.b16 %v7590
        %v8256 = vunpack.c.h.b16 %v7590
        %v8257 = vunpack.c.l.b16 %v7591
        %v8258 = vunpack.c.h.b16 %v7591
        %v8259 = vunpack.c.l.b16 %v7592
        %v8260 = vunpack.c.h.b16 %v7592
        %v8261 = vunpack.c.l.b16 %v7593
        %v8262 = vunpack.c.h.b16 %v7593
        %v8263 = vunpack.c.l.b16 %v7594
        %v8264 = vunpack.c.h.b16 %v7594
        %v8265 = vunpack.c.l.b16 %v7595
        %v8266 = vunpack.c.h.b16 %v7595
        %v8267 = vunpack.c.l.b16 %v7596
        %v8268 = vunpack.c.h.b16 %v7596
        %v8269 = vunpack.c.l.b16 %v7597
        %v8270 = vunpack.c.h.b16 %v7597
        %v8271 = vunpack.c.l.b16 %v7598
        %v8272 = vunpack.c.h.b16 %v7598
        %v8273 = vunpack.c.l.b16 %v7599
        %v8274 = vunpack.c.h.b16 %v7599
        %v8275 = vunpack.c.l.b16 %v7600
        %v8276 = vunpack.c.h.b16 %v7600
        %v8277 = vunpack.c.l.b16 %v7601
        %v8278 = vunpack.c.h.b16 %v7601
        %v8279 = vunpack.c.l.b16 %v7602
        %v8280 = vunpack.c.h.b16 %v7602
        %v8281 = vunpack.c.l.b16 %v7603
        %v8282 = vunpack.c.h.b16 %v7603
        %v8283 = vunpack.c.l.b16 %v7604
        %v8284 = vunpack.c.h.b16 %v7604
        %v8285 = vunpack.c.l.b16 %v7605
        %v8286 = vunpack.c.h.b16 %v7605
        %v8287 = vunpack.c.l.b16 %v7606
        %v8288 = vunpack.c.h.b16 %v7606
        %v8289 = vunpack.c.l.b16 %v7607
        %v8290 = vunpack.c.h.b16 %v7607
        %v8291 = vunpack.c.l.b16 %v7608
        %v8292 = vunpack.c.h.b16 %v7608
        %v8293 = vunpack.c.l.b16 %v7609
        %v8294 = vunpack.c.h.b16 %v7609
        %v8295 = vunpack.c.l.b16 %v7610
        %v8296 = vunpack.c.h.b16 %v7610
        %v8297 = vunpack.c.l.b16 %v7611
        %v8298 = vunpack.c.h.b16 %v7611
        %v8299 = vunpack.c.l.b16 %v7612
        %v8300 = vunpack.c.h.b16 %v7612
        %v8301 = vunpack.c.l.b16 %v7613
        %v8302 = vunpack.c.h.b16 %v7613
        %v8303 = vunpack.c.l.b16 %v7614
        %v8304 = vunpack.c.h.b16 %v7614
        %v8305 = vunpack.c.l.b16 %v7615
        %v8306 = vunpack.c.h.b16 %v7615
        %v8307 = vunpack.c.l.b16 %v7616
        %v8308 = vunpack.c.h.b16 %v7616
        %v8309 = vunpack.c.l.b16 %v7617
        %v8310 = vunpack.c.h.b16 %v7617
        %v8311 = vunpack.c.l.b16 %v7618
        %v8312 = vunpack.c.h.b16 %v7618
        %v8313 = vunpack.c.l.b16 %v7619
        %v8314 = vunpack.c.h.b16 %v7619
        %v8315 = vunpack.c.l.b16 %v7620
        %v8316 = vunpack.c.h.b16 %v7620
        %v8317 = vunpack.c.l.b16 %v7621
        %v8318 = vunpack.c.h.b16 %v7621
        %v8319 = vunpack.c.l.b16 %v7622
        %v8320 = vunpack.c.h.b16 %v7622
        %v8321 = vunpack.c.l.b16 %v7623
        %v8322 = vunpack.c.h.b16 %v7623
        %v8323 = vunpack.c.l.b16 %v7624
        %v8324 = vunpack.c.h.b16 %v7624
        %v8325 = vunpack.c.l.b16 %v7625
        %v8326 = vunpack.c.h.b16 %v7625
        %v8327 = vunpack.c.l.b16 %v7626
        %v8328 = vunpack.c.h.b16 %v7626
        %v8329 = vunpack.c.l.b16 %v7627
        %v8330 = vunpack.c.h.b16 %v7627
        %v8331 = vunpack.c.l.b16 %v7628
        %v8332 = vunpack.c.h.b16 %v7628
        %v8333 = vunpack.c.l.b16 %v7629
        %v8334 = vunpack.c.h.b16 %v7629
        %v8335 = vunpack.c.l.b16 %v7630
        %v8336 = vunpack.c.h.b16 %v7630
        %v8337 = vunpack.c.l.b16 %v7631
        %v8338 = vunpack.c.h.b16 %v7631
        %v8339 = vunpack.c.l.b16 %v7632
        %v8340 = vunpack.c.h.b16 %v7632
        %v8341 = vunpack.c.l.b16 %v7633
        %v8342 = vunpack.c.h.b16 %v7633
        %v8343 = vunpack.c.l.b16 %v7634
        %v8344 = vunpack.c.h.b16 %v7634
        %v8345 = vunpack.c.l.b16 %v7635
        %v8346 = vunpack.c.h.b16 %v7635
        %v8347 = vunpack.c.l.b16 %v7636
        %v8348 = vunpack.c.h.b16 %v7636
        %v8349 = vunpack.c.l.b16 %v7637
        %v8350 = vunpack.c.h.b16 %v7637
        %v8351 = vunpack.c.l.b16 %v7638
        %v8352 = vunpack.c.h.b16 %v7638
        %v8353 = vunpack.c.l.b16 %v7639
        %v8354 = vunpack.c.h.b16 %v7639
        %v8355 = vunpack.c.l.b16 %v7640
        %v8356 = vunpack.c.h.b16 %v7640
        %v8357 = vunpack.c.l.b16 %v7641
        %v8358 = vunpack.c.h.b16 %v7641
        %v8359 = vunpack.c.l.b16 %v7642
        %v8360 = vunpack.c.h.b16 %v7642
        %v8361 = vunpack.c.l.b16 %v7643
        %v8362 = vunpack.c.h.b16 %v7643
        %v8363 = vunpack.c.l.b16 %v7644
        %v8364 = vunpack.c.h.b16 %v7644
        %v8365 = vunpack.c.l.b16 %v7645
        %v8366 = vunpack.c.h.b16 %v7645
        %v8367 = vunpack.c.l.b16 %v7646
        %v8368 = vunpack.c.h.b16 %v7646
        %v8369 = vunpack.c.l.b16 %v7647
        %v8370 = vunpack.c.h.b16 %v7647
        %v8371 = vunpack.c.l.b16 %v7648
        %v8372 = vunpack.c.h.b16 %v7648
        %v8373 = vunpack.c.l.b16 %v7649
        %v8374 = vunpack.c.h.b16 %v7649
        %v8375 = vunpack.c.l.b16 %v7650
        %v8376 = vunpack.c.h.b16 %v7650
        %v8377 = vunpack.c.l.b16 %v7651
        %v8378 = vunpack.c.h.b16 %v7651
        %v8379 = vunpack.c.l.b16 %v7652
        %v8380 = vunpack.c.h.b16 %v7652
        %v8381 = vunpack.c.l.b16 %v7653
        %v8382 = vunpack.c.h.b16 %v7653
        %v8383 = vunpack.c.l.b16 %v7654
        %v8384 = vunpack.c.h.b16 %v7654
        %v8385 = vunpack.c.l.b16 %v7655
        %v8386 = vunpack.c.h.b16 %v7655
        %v8387 = vunpack.c.l.b16 %v7656
        %v8388 = vunpack.c.h.b16 %v7656
        %v8389 = vunpack.c.l.b16 %v7657
        %v8390 = vunpack.c.h.b16 %v7657
        %v8391 = vunpack.c.l.b16 %v7658
        %v8392 = vunpack.c.h.b16 %v7658
        %v8393 = vunpack.c.l.b16 %v7659
        %v8394 = vunpack.c.h.b16 %v7659
        %v8395 = vunpack.c.l.b16 %v7660
        %v8396 = vunpack.c.h.b16 %v7660
        %v8397 = vunpack.c.l.b16 %v7661
        %v8398 = vunpack.c.h.b16 %v7661
        %v8399 = vunpack.c.l.b16 %v7662
        %v8400 = vunpack.c.h.b16 %v7662
        %v8401 = vunpack.c.l.b16 %v7663
        %v8402 = vunpack.c.h.b16 %v7663
        %v8403 = vunpack.c.l.b16 %v7664
        %v8404 = vunpack.c.h.b16 %v7664
        %v8405 = vunpack.c.l.b16 %v7665
        %v8406 = vunpack.c.h.b16 %v7665
        %v8407 = vunpack.c.l.b16 %v7666
        %v8408 = vunpack.c.h.b16 %v7666
        %v8409 = vunpack.c.l.b16 %v7667
        %v8410 = vunpack.c.h.b16 %v7667
        %v8411 = vunpack.c.l.b16 %v7668
        %v8412 = vunpack.c.h.b16 %v7668
        %v8413 = vunpack.c.l.b16 %v7669
        %v8414 = vunpack.c.h.b16 %v7669
        %v8415 = vunpack.c.l.b16 %v7670
        %v8416 = vunpack.c.h.b16 %v7670
        %v8417 = vunpack.c.l.b16 %v7671
        %v8418 = vunpack.c.h.b16 %v7671
        %v8419 = vunpack.c.l.b16 %v7672
        %v8420 = vunpack.c.h.b16 %v7672
        %v8421 = vunpack.c.l.b16 %v7673
        %v8422 = vunpack.c.h.b16 %v7673
        %v8423 = vunpack.c.l.b16 %v7674
        %v8424 = vunpack.c.h.b16 %v7674
        %v8425 = vunpack.c.l.b16 %v7675
        %v8426 = vunpack.c.h.b16 %v7675
        %v8427 = vunpack.c.l.b16 %v7676
        %v8428 = vunpack.c.h.b16 %v7676
        %v8429 = vunpack.c.l.b16 %v7677
        %v8430 = vunpack.c.h.b16 %v7677
        %v8431 = vunpack.c.l.b16 %v7678
        %v8432 = vunpack.c.h.b16 %v7678
        %v8433 = vunpack.c.l.b16 %v7679
        %v8434 = vunpack.c.h.b16 %v7679
        %v8435 = vunpack.c.l.b16 %v7680
        %v8436 = vunpack.c.h.b16 %v7680
        %v8437 = vunpack.c.l.b16 %v7681
        %v8438 = vunpack.c.h.b16 %v7681
        %v8439 = vunpack.c.l.b16 %v7682
        %v8440 = vunpack.c.h.b16 %v7682
        %v8441 = vunpack.c.l.b16 %v7683
        %v8442 = vunpack.c.h.b16 %v7683
        %v8443 = vunpack.c.l.b16 %v7684
        %v8444 = vunpack.c.h.b16 %v7684
        %v8445 = vunpack.c.l.b16 %v7685
        %v8446 = vunpack.c.h.b16 %v7685
        %v8447 = vunpack.c.l.b16 %v7686
        %v8448 = vunpack.c.h.b16 %v7686
        %v8449 = vunpack.c.l.b16 %v7687
        %v8450 = vunpack.c.h.b16 %v7687
        %v8451 = vunpack.c.l.b16 %v7688
        %v8452 = vunpack.c.h.b16 %v7688
        %v8453 = vunpack.c.l.b16 %v7689
        %v8454 = vunpack.c.h.b16 %v7689
        %v8455 = vunpack.c.l.b16 %v7690
        %v8456 = vunpack.c.h.b16 %v7690
        %v8457 = vunpack.c.l.b16 %v7691
        %v8458 = vunpack.c.h.b16 %v7691
        %v8459 = vunpack.c.l.b16 %v7692
        %v8460 = vunpack.c.h.b16 %v7692
        %v8461 = vunpack.c.l.b16 %v7693
        %v8462 = vunpack.c.h.b16 %v7693
        %v8463 = vunpack.c.l.b16 %v7694
        %v8464 = vunpack.c.h.b16 %v7694
        %v8465 = vunpack.c.l.b16 %v7695
        %v8466 = vunpack.c.h.b16 %v7695
        %v8467 = vunpack.c.l.b16 %v7696
        %v8468 = vunpack.c.h.b16 %v7696
        %v8469 = vunpack.c.l.b16 %v7697
        %v8470 = vunpack.c.h.b16 %v7697
        %v8471 = vunpack.c.l.b16 %v7698
        %v8472 = vunpack.c.h.b16 %v7698
        %v8473 = vunpack.c.l.b16 %v7699
        %v8474 = vunpack.c.h.b16 %v7699
        %v8475 = vunpack.c.l.b16 %v7700
        %v8476 = vunpack.c.h.b16 %v7700
        %v8477 = vunpack.c.l.b16 %v7701
        %v8478 = vunpack.c.h.b16 %v7701
        %v8479 = vunpack.c.l.b16 %v7702
        %v8480 = vunpack.c.h.b16 %v7702
        %v8481 = vunpack.c.l.b16 %v7703
        %v8482 = vunpack.c.h.b16 %v7703
        %v8483 = vunpack.c.l.b16 %v7704
        %v8484 = vunpack.c.h.b16 %v7704
        %v8485 = vunpack.c.l.b16 %v7705
        %v8486 = vunpack.c.h.b16 %v7705
        %v8487 = vunpack.c.l.b16 %v7706
        %v8488 = vunpack.c.h.b16 %v7706
        %v8489 = vunpack.c.l.b16 %v7707
        %v8490 = vunpack.c.h.b16 %v7707
        %v8491 = vunpack.c.l.b16 %v7708
        %v8492 = vunpack.c.h.b16 %v7708
        %v8493 = vunpack.c.l.b16 %v7709
        %v8494 = vunpack.c.h.b16 %v7709
        %v8495 = vunpack.c.l.b16 %v7710
        %v8496 = vunpack.c.h.b16 %v7710
        %v8497 = vunpack.c.l.b16 %v7711
        %v8498 = vunpack.c.h.b16 %v7711
        %v8499 = vunpack.c.l.b16 %v7712
        %v8500 = vunpack.c.h.b16 %v7712
        %v8501 = vunpack.c.l.b16 %v7713
        %v8502 = vunpack.c.h.b16 %v7713
        %v8503 = vunpack.c.l.b16 %v7714
        %v8504 = vunpack.c.h.b16 %v7714
        %v8505 = vpack.c.b16 %v7997, %v7993
        %v8506 = vpack.c.b16 %v7998, %v7994
        %v8507 = vpack.c.b16 %v7999, %v7995
        %v8508 = vpack.c.b16 %v8000, %v7996
        %v8509 = vpack.c.b16 %v8005, %v8001
        %v8510 = vpack.c.b16 %v8006, %v8002
        %v8511 = vpack.c.b16 %v8007, %v8003
        %v8512 = vpack.c.b16 %v8008, %v8004
        %v8513 = vpack.c.b16 %v8013, %v8009
        %v8514 = vpack.c.b16 %v8014, %v8010
        %v8515 = vpack.c.b16 %v8015, %v8011
        %v8516 = vpack.c.b16 %v8016, %v8012
        %v8517 = vpack.c.b16 %v8021, %v8017
        %v8518 = vpack.c.b16 %v8022, %v8018
        %v8519 = vpack.c.b16 %v8023, %v8019
        %v8520 = vpack.c.b16 %v8024, %v8020
        %v8521 = vpack.c.b16 %v8029, %v8025
        %v8522 = vpack.c.b16 %v8030, %v8026
        %v8523 = vpack.c.b16 %v8031, %v8027
        %v8524 = vpack.c.b16 %v8032, %v8028
        %v8525 = vpack.c.b16 %v8037, %v8033
        %v8526 = vpack.c.b16 %v8038, %v8034
        %v8527 = vpack.c.b16 %v8039, %v8035
        %v8528 = vpack.c.b16 %v8040, %v8036
        %v8529 = vpack.c.b16 %v8045, %v8041
        %v8530 = vpack.c.b16 %v8046, %v8042
        %v8531 = vpack.c.b16 %v8047, %v8043
        %v8532 = vpack.c.b16 %v8048, %v8044
        %v8533 = vpack.c.b16 %v8053, %v8049
        %v8534 = vpack.c.b16 %v8054, %v8050
        %v8535 = vpack.c.b16 %v8055, %v8051
        %v8536 = vpack.c.b16 %v8056, %v8052
        %v8537 = vpack.c.b16 %v8061, %v8057
        %v8538 = vpack.c.b16 %v8062, %v8058
        %v8539 = vpack.c.b16 %v8063, %v8059
        %v8540 = vpack.c.b16 %v8064, %v8060
        %v8541 = vpack.c.b16 %v8069, %v8065
        %v8542 = vpack.c.b16 %v8070, %v8066
        %v8543 = vpack.c.b16 %v8071, %v8067
        %v8544 = vpack.c.b16 %v8072, %v8068
        %v8545 = vpack.c.b16 %v8077, %v8073
        %v8546 = vpack.c.b16 %v8078, %v8074
        %v8547 = vpack.c.b16 %v8079, %v8075
        %v8548 = vpack.c.b16 %v8080, %v8076
        %v8549 = vpack.c.b16 %v8085, %v8081
        %v8550 = vpack.c.b16 %v8086, %v8082
        %v8551 = vpack.c.b16 %v8087, %v8083
        %v8552 = vpack.c.b16 %v8088, %v8084
        %v8553 = vpack.c.b16 %v8093, %v8089
        %v8554 = vpack.c.b16 %v8094, %v8090
        %v8555 = vpack.c.b16 %v8095, %v8091
        %v8556 = vpack.c.b16 %v8096, %v8092
        %v8557 = vpack.c.b16 %v8101, %v8097
        %v8558 = vpack.c.b16 %v8102, %v8098
        %v8559 = vpack.c.b16 %v8103, %v8099
        %v8560 = vpack.c.b16 %v8104, %v8100
        %v8561 = vpack.c.b16 %v8109, %v8105
        %v8562 = vpack.c.b16 %v8110, %v8106
        %v8563 = vpack.c.b16 %v8111, %v8107
        %v8564 = vpack.c.b16 %v8112, %v8108
        %v8565 = vpack.c.b16 %v8117, %v8113
        %v8566 = vpack.c.b16 %v8118, %v8114
        %v8567 = vpack.c.b16 %v8119, %v8115
        %v8568 = vpack.c.b16 %v8120, %v8116
        %v8569 = vpack.c.b16 %v8125, %v8121
        %v8570 = vpack.c.b16 %v8126, %v8122
        %v8571 = vpack.c.b16 %v8127, %v8123
        %v8572 = vpack.c.b16 %v8128, %v8124
        %v8573 = vpack.c.b16 %v8133, %v8129
        %v8574 = vpack.c.b16 %v8134, %v8130
        %v8575 = vpack.c.b16 %v8135, %v8131
        %v8576 = vpack.c.b16 %v8136, %v8132
        %v8577 = vpack.c.b16 %v8141, %v8137
        %v8578 = vpack.c.b16 %v8142, %v8138
        %v8579 = vpack.c.b16 %v8143, %v8139
        %v8580 = vpack.c.b16 %v8144, %v8140
        %v8581 = vpack.c.b16 %v8149, %v8145
        %v8582 = vpack.c.b16 %v8150, %v8146
        %v8583 = vpack.c.b16 %v8151, %v8147
        %v8584 = vpack.c.b16 %v8152, %v8148
        %v8585 = vpack.c.b16 %v8157, %v8153
        %v8586 = vpack.c.b16 %v8158, %v8154
        %v8587 = vpack.c.b16 %v8159, %v8155
        %v8588 = vpack.c.b16 %v8160, %v8156
        %v8589 = vpack.c.b16 %v8165, %v8161
        %v8590 = vpack.c.b16 %v8166, %v8162
        %v8591 = vpack.c.b16 %v8167, %v8163
        %v8592 = vpack.c.b16 %v8168, %v8164
        %v8593 = vpack.c.b16 %v8173, %v8169
        %v8594 = vpack.c.b16 %v8174, %v8170
        %v8595 = vpack.c.b16 %v8175, %v8171
        %v8596 = vpack.c.b16 %v8176, %v8172
        %v8597 = vpack.c.b16 %v8181, %v8177
        %v8598 = vpack.c.b16 %v8182, %v8178
        %v8599 = vpack.c.b16 %v8183, %v8179
        %v8600 = vpack.c.b16 %v8184, %v8180
        %v8601 = vpack.c.b16 %v8189, %v8185
        %v8602 = vpack.c.b16 %v8190, %v8186
        %v8603 = vpack.c.b16 %v8191, %v8187
        %v8604 = vpack.c.b16 %v8192, %v8188
        %v8605 = vpack.c.b16 %v8197, %v8193
        %v8606 = vpack.c.b16 %v8198, %v8194
        %v8607 = vpack.c.b16 %v8199, %v8195
        %v8608 = vpack.c.b16 %v8200, %v8196
        %v8609 = vpack.c.b16 %v8205, %v8201
        %v8610 = vpack.c.b16 %v8206, %v8202
        %v8611 = vpack.c.b16 %v8207, %v8203
        %v8612 = vpack.c.b16 %v8208, %v8204
        %v8613 = vpack.c.b16 %v8213, %v8209
        %v8614 = vpack.c.b16 %v8214, %v8210
        %v8615 = vpack.c.b16 %v8215, %v8211
        %v8616 = vpack.c.b16 %v8216, %v8212
        %v8617 = vpack.c.b16 %v8221, %v8217
        %v8618 = vpack.c.b16 %v8222, %v8218
        %v8619 = vpack.c.b16 %v8223, %v8219
        %v8620 = vpack.c.b16 %v8224, %v8220
        %v8621 = vpack.c.b16 %v8229, %v8225
        %v8622 = vpack.c.b16 %v8230, %v8226
        %v8623 = vpack.c.b16 %v8231, %v8227
        %v8624 = vpack.c.b16 %v8232, %v8228
        %v8625 = vpack.c.b16 %v8237, %v8233
        %v8626 = vpack.c.b16 %v8238, %v8234
        %v8627 = vpack.c.b16 %v8239, %v8235
        %v8628 = vpack.c.b16 %v8240, %v8236
        %v8629 = vpack.c.b16 %v8245, %v8241
        %v8630 = vpack.c.b16 %v8246, %v8242
        %v8631 = vpack.c.b16 %v8247, %v8243
        %v8632 = vpack.c.b16 %v8248, %v8244
        %v8633 = vpack.c.b16 %v8253, %v8249
        %v8634 = vpack.c.b16 %v8254, %v8250
        %v8635 = vpack.c.b16 %v8255, %v8251
        %v8636 = vpack.c.b16 %v8256, %v8252
        %v8637 = vpack.c.b16 %v8261, %v8257
        %v8638 = vpack.c.b16 %v8262, %v8258
        %v8639 = vpack.c.b16 %v8263, %v8259
        %v8640 = vpack.c.b16 %v8264, %v8260
        %v8641 = vpack.c.b16 %v8269, %v8265
        %v8642 = vpack.c.b16 %v8270, %v8266
        %v8643 = vpack.c.b16 %v8271, %v8267
        %v8644 = vpack.c.b16 %v8272, %v8268
        %v8645 = vpack.c.b16 %v8277, %v8273
        %v8646 = vpack.c.b16 %v8278, %v8274
        %v8647 = vpack.c.b16 %v8279, %v8275
        %v8648 = vpack.c.b16 %v8280, %v8276
        %v8649 = vpack.c.b16 %v8285, %v8281
        %v8650 = vpack.c.b16 %v8286, %v8282
        %v8651 = vpack.c.b16 %v8287, %v8283
        %v8652 = vpack.c.b16 %v8288, %v8284
        %v8653 = vpack.c.b16 %v8293, %v8289
        %v8654 = vpack.c.b16 %v8294, %v8290
        %v8655 = vpack.c.b16 %v8295, %v8291
        %v8656 = vpack.c.b16 %v8296, %v8292
        %v8657 = vpack.c.b16 %v8301, %v8297
        %v8658 = vpack.c.b16 %v8302, %v8298
        %v8659 = vpack.c.b16 %v8303, %v8299
        %v8660 = vpack.c.b16 %v8304, %v8300
        %v8661 = vpack.c.b16 %v8309, %v8305
        %v8662 = vpack.c.b16 %v8310, %v8306
        %v8663 = vpack.c.b16 %v8311, %v8307
        %v8664 = vpack.c.b16 %v8312, %v8308
        %v8665 = vpack.c.b16 %v8317, %v8313
        %v8666 = vpack.c.b16 %v8318, %v8314
        %v8667 = vpack.c.b16 %v8319, %v8315
        %v8668 = vpack.c.b16 %v8320, %v8316
        %v8669 = vpack.c.b16 %v8325, %v8321
        %v8670 = vpack.c.b16 %v8326, %v8322
        %v8671 = vpack.c.b16 %v8327, %v8323
        %v8672 = vpack.c.b16 %v8328, %v8324
        %v8673 = vpack.c.b16 %v8333, %v8329
        %v8674 = vpack.c.b16 %v8334, %v8330
        %v8675 = vpack.c.b16 %v8335, %v8331
        %v8676 = vpack.c.b16 %v8336, %v8332
        %v8677 = vpack.c.b16 %v8341, %v8337
        %v8678 = vpack.c.b16 %v8342, %v8338
        %v8679 = vpack.c.b16 %v8343, %v8339
        %v8680 = vpack.c.b16 %v8344, %v8340
        %v8681 = vpack.c.b16 %v8349, %v8345
        %v8682 = vpack.c.b16 %v8350, %v8346
        %v8683 = vpack.c.b16 %v8351, %v8347
        %v8684 = vpack.c.b16 %v8352, %v8348
        %v8685 = vpack.c.b16 %v8357, %v8353
        %v8686 = vpack.c.b16 %v8358, %v8354
        %v8687 = vpack.c.b16 %v8359, %v8355
        %v8688 = vpack.c.b16 %v8360, %v8356
        %v8689 = vpack.c.b16 %v8365, %v8361
        %v8690 = vpack.c.b16 %v8366, %v8362
        %v8691 = vpack.c.b16 %v8367, %v8363
        %v8692 = vpack.c.b16 %v8368, %v8364
        %v8693 = vpack.c.b16 %v8373, %v8369
        %v8694 = vpack.c.b16 %v8374, %v8370
        %v8695 = vpack.c.b16 %v8375, %v8371
        %v8696 = vpack.c.b16 %v8376, %v8372
        %v8697 = vpack.c.b16 %v8381, %v8377
        %v8698 = vpack.c.b16 %v8382, %v8378
        %v8699 = vpack.c.b16 %v8383, %v8379
        %v8700 = vpack.c.b16 %v8384, %v8380
        %v8701 = vpack.c.b16 %v8389, %v8385
        %v8702 = vpack.c.b16 %v8390, %v8386
        %v8703 = vpack.c.b16 %v8391, %v8387
        %v8704 = vpack.c.b16 %v8392, %v8388
        %v8705 = vpack.c.b16 %v8397, %v8393
        %v8706 = vpack.c.b16 %v8398, %v8394
        %v8707 = vpack.c.b16 %v8399, %v8395
        %v8708 = vpack.c.b16 %v8400, %v8396
        %v8709 = vpack.c.b16 %v8405, %v8401
        %v8710 = vpack.c.b16 %v8406, %v8402
        %v8711 = vpack.c.b16 %v8407, %v8403
        %v8712 = vpack.c.b16 %v8408, %v8404
        %v8713 = vpack.c.b16 %v8413, %v8409
        %v8714 = vpack.c.b16 %v8414, %v8410
        %v8715 = vpack.c.b16 %v8415, %v8411
        %v8716 = vpack.c.b16 %v8416, %v8412
        %v8717 = vpack.c.b16 %v8421, %v8417
        %v8718 = vpack.c.b16 %v8422, %v8418
        %v8719 = vpack.c.b16 %v8423, %v8419
        %v8720 = vpack.c.b16 %v8424, %v8420
        %v8721 = vpack.c.b16 %v8429, %v8425
        %v8722 = vpack.c.b16 %v8430, %v8426
        %v8723 = vpack.c.b16 %v8431, %v8427
        %v8724 = vpack.c.b16 %v8432, %v8428
        %v8725 = vpack.c.b16 %v8437, %v8433
        %v8726 = vpack.c.b16 %v8438, %v8434
        %v8727 = vpack.c.b16 %v8439, %v8435
        %v8728 = vpack.c.b16 %v8440, %v8436
        %v8729 = vpack.c.b16 %v8445, %v8441
        %v8730 = vpack.c.b16 %v8446, %v8442
        %v8731 = vpack.c.b16 %v8447, %v8443
        %v8732 = vpack.c.b16 %v8448, %v8444
        %v8733 = vpack.c.b16 %v8453, %v8449
        %v8734 = vpack.c.b16 %v8454, %v8450
        %v8735 = vpack.c.b16 %v8455, %v8451
        %v8736 = vpack.c.b16 %v8456, %v8452
        %v8737 = vpack.c.b16 %v8461, %v8457
        %v8738 = vpack.c.b16 %v8462, %v8458
        %v8739 = vpack.c.b16 %v8463, %v8459
        %v8740 = vpack.c.b16 %v8464, %v8460
        %v8741 = vpack.c.b16 %v8469, %v8465
        %v8742 = vpack.c.b16 %v8470, %v8466
        %v8743 = vpack.c.b16 %v8471, %v8467
        %v8744 = vpack.c.b16 %v8472, %v8468
        %v8745 = vpack.c.b16 %v8477, %v8473
        %v8746 = vpack.c.b16 %v8478, %v8474
        %v8747 = vpack.c.b16 %v8479, %v8475
        %v8748 = vpack.c.b16 %v8480, %v8476
        %v8749 = vpack.c.b16 %v8485, %v8481
        %v8750 = vpack.c.b16 %v8486, %v8482
        %v8751 = vpack.c.b16 %v8487, %v8483
        %v8752 = vpack.c.b16 %v8488, %v8484
        %v8753 = vpack.c.b16 %v8493, %v8489
        %v8754 = vpack.c.b16 %v8494, %v8490
        %v8755 = vpack.c.b16 %v8495, %v8491
        %v8756 = vpack.c.b16 %v8496, %v8492
        %v8757 = vpack.c.b16 %v8501, %v8497
        %v8758 = vpack.c.b16 %v8502, %v8498
        %v8759 = vpack.c.b16 %v8503, %v8499
        %v8760 = vpack.c.b16 %v8504, %v8500
        %9017 = vmatprep.subr.bf16.mxu0 %v8506
        %9018 = vmatpush1.bf16.msra.mxu0 %v8505
        %9019 = vmatprep.subr.bf16.mxu0 %v8510
        %9020 = vmatpush1.bf16.msra.mxu0 %v8509
        %9021 = vmatprep.subr.bf16.mxu0 %v8514
        %9022 = vmatpush1.bf16.msra.mxu0 %v8513
        %9023 = vmatprep.subr.bf16.mxu0 %v8518
        %9024 = vmatpush1.bf16.msra.mxu0 %v8517
        %9025 = vmatprep.subr.bf16.mxu0 %v8522
        %9026 = vmatpush1.bf16.msra.mxu0 %v8521
        %9027 = vmatprep.subr.bf16.mxu0 %v8526
        %9028 = vmatpush1.bf16.msra.mxu0 %v8525
        %9029 = vmatprep.subr.bf16.mxu0 %v8530
        %9030 = vmatpush1.bf16.msra.mxu0 %v8529
        %9031 = vmatprep.subr.bf16.mxu0 %v8534
        %9032 = vmatpush1.bf16.msra.mxu0 %v8533
        %9033 = vmatprep.subr.bf16.mxu0 %v8538
        %9034 = vmatpush1.bf16.msra.mxu0 %v8537
        %9035 = vmatprep.subr.bf16.mxu0 %v8542
        %9036 = vmatpush1.bf16.msra.mxu0 %v8541
        %9037 = vmatprep.subr.bf16.mxu0 %v8546
        %9038 = vmatpush1.bf16.msra.mxu0 %v8545
        %9039 = vmatprep.subr.bf16.mxu0 %v8550
        %9040 = vmatpush1.bf16.msra.mxu0 %v8549
        %9041 = vmatprep.subr.bf16.mxu0 %v8554
        %9042 = vmatpush1.bf16.msra.mxu0 %v8553
        %9043 = vmatprep.subr.bf16.mxu0 %v8558
        %9044 = vmatpush1.bf16.msra.mxu0 %v8557
        %9045 = vmatprep.subr.bf16.mxu0 %v8562
        %9046 = vmatpush1.bf16.msra.mxu0 %v8561
        %9047 = vmatprep.subr.bf16.mxu0 %v8566
        %9048 = vmatpush1.bf16.msra.mxu0 %v8565
        %9049 = vmatprep.mubr.bf16.mxu0 %v7396
        %9050 = vmatmul.mubr.bf16.gmra.mrb[0].mxu0 %v7395
        %v9051 = vpop.f32.mrb[0].mxu0
        %v9052 = vadd.f32 %v7720, %v9051
        %v9053 = vpop.f32.mrb[0].mxu0
        %v9054 = vadd.f32 %v7724, %v9053
        %v9055 = vpop.f32.mrb[0].mxu0
        %v9056 = vadd.f32 %v7720, %v9055
        %v9057 = vpop.f32.mrb[0].mxu0
        %v9058 = vadd.f32 %v7724, %v9057
        %9059 = vmatprep.mubr.bf16.mxu0 %v7404
        %9060 = vmatmul.mubr.bf16.gmra.mrb[0].mxu0 %v7403
        %v9061 = vpop.f32.mrb[0].mxu0
        %v9062 = vadd.f32 %v7720, %v9061
        %v9063 = vpop.f32.mrb[0].mxu0
        %v9064 = vadd.f32 %v7724, %v9063
        %v9065 = vpop.f32.mrb[0].mxu0
        %v9066 = vadd.f32 %v7720, %v9065
        %v9067 = vpop.f32.mrb[0].mxu0
        %v9068 = vadd.f32 %v7724, %v9067
        %9069 = vmatprep.mubr.bf16.mxu0 %v7412
        %9070 = vmatmul.mubr.bf16.gmra.mrb[0].mxu0 %v7411
        %v9071 = vpop.f32.mrb[0].mxu0
        %v9072 = vadd.f32 %v7720, %v9071
        %v9073 = vpop.f32.mrb[0].mxu0
        %v9074 = vadd.f32 %v7724, %v9073
        %v9075 = vpop.f32.mrb[0].mxu0
        %v9076 = vadd.f32 %v7720, %v9075
        %v9077 = vpop.f32.mrb[0].mxu0
        %v9078 = vadd.f32 %v7724, %v9077
        %9079 = vmatprep.mubr.bf16.mxu0 %v7420
        %9080 = vmatmul.mubr.bf16.gmra.mrb[0].mxu0 %v7419
        %v9081 = vpop.f32.mrb[0].mxu0
        %v9082 = vadd.f32 %v7720, %v9081
        %v9083 = vpop.f32.mrb[0].mxu0
        %v9084 = vadd.f32 %v7724, %v9083
        %v9085 = vpop.f32.mrb[0].mxu0
        %v9086 = vadd.f32 %v7720, %v9085
        %v9087 = vpop.f32.mrb[0].mxu0
        %v9088 = vadd.f32 %v7724, %v9087
        %9089 = vmatprep.mubr.bf16.mxu0 %v7428
        %9090 = vmatmul.mubr.bf16.gmra.mrb[0].mxu0 %v7427
        %v9091 = vpop.f32.mrb[0].mxu0
        %v9092 = vadd.f32 %v7720, %v9091
        %v9093 = vpop.f32.mrb[0].mxu0
        %v9094 = vadd.f32 %v7724, %v9093
        %v9095 = vpop.f32.mrb[0].mxu0
        %v9096 = vadd.f32 %v7720, %v9095
        %v9097 = vpop.f32.mrb[0].mxu0
        %v9098 = vadd.f32 %v7724, %v9097
        %9099 = vmatprep.mubr.bf16.mxu0 %v7436
        %9100 = vmatmul.mubr.bf16.gmra.mrb[0].mxu0 %v7435
        %v9101 = vpop.f32.mrb[0].mxu0
        %v9102 = vadd.f32 %v7720, %v9101
        %v9103 = vpop.f32.mrb[0].mxu0
        %v9104 = vadd.f32 %v7724, %v9103
        %v9105 = vpop.f32.mrb[0].mxu0
        %v9106 = vadd.f32 %v7720, %v9105
        %v9107 = vpop.f32.mrb[0].mxu0
        %v9108 = vadd.f32 %v7724, %v9107
        %9109 = vmatprep.mubr.bf16.mxu0 %v7444
        %9110 = vmatmul.mubr.bf16.gmra.mrb[0].mxu0 %v7443
        %v9111 = vpop.f32.mrb[0].mxu0
        %v9112 = vadd.f32 %v7720, %v9111
        %v9113 = vpop.f32.mrb[0].mxu0
        %v9114 = vadd.f32 %v7724, %v9113
        %v9115 = vpop.f32.mrb[0].mxu0
        %v9116 = vadd.f32 %v7720, %v9115
        %v9117 = vpop.f32.mrb[0].mxu0
        %v9118 = vadd.f32 %v7724, %v9117
        %9119 = vmatprep.mubr.bf16.mxu0 %v7452
        %9120 = vmatmul.mubr.bf16.gmra.mrb[0].mxu0 %v7451
        %v9121 = vpop.f32.mrb[0].mxu0
        %v9122 = vadd.f32 %v7720, %v9121
        %v9123 = vpop.f32.mrb[0].mxu0
        %v9124 = vadd.f32 %v7724, %v9123
        %v9125 = vpop.f32.mrb[0].mxu0
        %v9126 = vadd.f32 %v7720, %v9125
        %v9127 = vpop.f32.mrb[0].mxu0
        %v9128 = vadd.f32 %v7724, %v9127
        %9129 = vdwg.mxu0
        %9130 = vmatprep.subr.bf16.mxu0 %v8570
        %9131 = vmatpush1.bf16.msra.mxu0 %v8569
        %9132 = vmatprep.subr.bf16.mxu0 %v8574
        %9133 = vmatpush1.bf16.msra.mxu0 %v8573
        %9134 = vmatprep.subr.bf16.mxu0 %v8578
        %9135 = vmatpush1.bf16.msra.mxu0 %v8577
        %9136 = vmatprep.subr.bf16.mxu0 %v8582
        %9137 = vmatpush1.bf16.msra.mxu0 %v8581
        %9138 = vmatprep.subr.bf16.mxu0 %v8586
        %9139 = vmatpush1.bf16.msra.mxu0 %v8585
        %9140 = vmatprep.subr.bf16.mxu0 %v8590
        %9141 = vmatpush1.bf16.msra.mxu0 %v8589
        %9142 = vmatprep.subr.bf16.mxu0 %v8594
        %9143 = vmatpush1.bf16.msra.mxu0 %v8593
        %9144 = vmatprep.subr.bf16.mxu0 %v8598
        %9145 = vmatpush1.bf16.msra.mxu0 %v8597
        %9146 = vmatprep.subr.bf16.mxu0 %v8602
        %9147 = vmatpush1.bf16.msra.mxu0 %v8601
        %9148 = vmatprep.subr.bf16.mxu0 %v8606
        %9149 = vmatpush1.bf16.msra.mxu0 %v8605
        %9150 = vmatprep.subr.bf16.mxu0 %v8610
        %9151 = vmatpush1.bf16.msra.mxu0 %v8609
        %9152 = vmatprep.subr.bf16.mxu0 %v8614
        %9153 = vmatpush1.bf16.msra.mxu0 %v8613
        %9154 = vmatprep.subr.bf16.mxu0 %v8618
        %9155 = vmatpush1.bf16.msra.mxu0 %v8617
        %9156 = vmatprep.subr.bf16.mxu0 %v8622
        %9157 = vmatpush1.bf16.msra.mxu0 %v8621
        %9158 = vmatprep.subr.bf16.mxu0 %v8626
        %9159 = vmatpush1.bf16.msra.mxu0 %v8625
        %9160 = vmatprep.subr.bf16.mxu0 %v8630
        %9161 = vmatpush1.bf16.msra.mxu0 %v8629
        %9162 = vmatprep.mubr.bf16.mxu0 %v7398
        %9163 = vmatmul.mubr.bf16.gmra.mrb[0].mxu0 %v7397
        %v9164 = vpop.f32.mrb[0].mxu0
        %v9165 = vadd.f32 %v9052, %v9164
        %v9166 = vpop.f32.mrb[0].mxu0
        %v9167 = vadd.f32 %v9054, %v9166
        %v9168 = vpop.f32.mrb[0].mxu0
        %v9169 = vadd.f32 %v9056, %v9168
        %v9170 = vpop.f32.mrb[0].mxu0
        %v9171 = vadd.f32 %v9058, %v9170
        %9172 = vmatprep.mubr.bf16.mxu0 %v7406
        %9173 = vmatmul.mubr.bf16.gmra.mrb[0].mxu0 %v7405
        %v9174 = vpop.f32.mrb[0].mxu0
        %v9175 = vadd.f32 %v9062, %v9174
        %v9176 = vpop.f32.mrb[0].mxu0
        %v9177 = vadd.f32 %v9064, %v9176
        %v9178 = vpop.f32.mrb[0].mxu0
        %v9179 = vadd.f32 %v9066, %v9178
        %v9180 = vpop.f32.mrb[0].mxu0
        %v9181 = vadd.f32 %v9068, %v9180
        %9182 = vmatprep.mubr.bf16.mxu0 %v7414
        %9183 = vmatmul.mubr.bf16.gmra.mrb[0].mxu0 %v7413
        %v9184 = vpop.f32.mrb[0].mxu0
        %v9185 = vadd.f32 %v9072, %v9184
        %v9186 = vpop.f32.mrb[0].mxu0
        %v9187 = vadd.f32 %v9074, %v9186
        %v9188 = vpop.f32.mrb[0].mxu0
        %v9189 = vadd.f32 %v9076, %v9188
        %v9190 = vpop.f32.mrb[0].mxu0
        %v9191 = vadd.f32 %v9078, %v9190
        %9192 = vmatprep.mubr.bf16.mxu0 %v7422
        %9193 = vmatmul.mubr.bf16.gmra.mrb[0].mxu0 %v7421
        %v9194 = vpop.f32.mrb[0].mxu0
        %v9195 = vadd.f32 %v9082, %v9194
        %v9196 = vpop.f32.mrb[0].mxu0
        %v9197 = vadd.f32 %v9084, %v9196
        %v9198 = vpop.f32.mrb[0].mxu0
        %v9199 = vadd.f32 %v9086, %v9198
        %v9200 = vpop.f32.mrb[0].mxu0
        %v9201 = vadd.f32 %v9088, %v9200
        %9202 = vmatprep.mubr.bf16.mxu0 %v7430
        %9203 = vmatmul.mubr.bf16.gmra.mrb[0].mxu0 %v7429
        %v9204 = vpop.f32.mrb[0].mxu0
        %v9205 = vadd.f32 %v9092, %v9204
        %v9206 = vpop.f32.mrb[0].mxu0
        %v9207 = vadd.f32 %v9094, %v9206
        %v9208 = vpop.f32.mrb[0].mxu0
        %v9209 = vadd.f32 %v9096, %v9208
        %v9210 = vpop.f32.mrb[0].mxu0
        %v9211 = vadd.f32 %v9098, %v9210
        %9212 = vmatprep.mubr.bf16.mxu0 %v7438
        %9213 = vmatmul.mubr.bf16.gmra.mrb[0].mxu0 %v7437
        %v9214 = vpop.f32.mrb[0].mxu0
        %v9215 = vadd.f32 %v9102, %v9214
        %v9216 = vpop.f32.mrb[0].mxu0
        %v9217 = vadd.f32 %v9104, %v9216
        %v9218 = vpop.f32.mrb[0].mxu0
        %v9219 = vadd.f32 %v9106, %v9218
        %v9220 = vpop.f32.mrb[0].mxu0
        %v9221 = vadd.f32 %v9108, %v9220
        %9222 = vmatprep.mubr.bf16.mxu0 %v7446
        %9223 = vmatmul.mubr.bf16.gmra.mrb[0].mxu0 %v7445
        %v9224 = vpop.f32.mrb[0].mxu0
        %v9225 = vadd.f32 %v9112, %v9224
        %v9226 = vpop.f32.mrb[0].mxu0
        %v9227 = vadd.f32 %v9114, %v9226
        %v9228 = vpop.f32.mrb[0].mxu0
        %v9229 = vadd.f32 %v9116, %v9228
        %v9230 = vpop.f32.mrb[0].mxu0
        %v9231 = vadd.f32 %v9118, %v9230
        %9232 = vmatprep.mubr.bf16.mxu0 %v7454
        %9233 = vmatmul.mubr.bf16.gmra.mrb[0].mxu0 %v7453
        %v9234 = vpop.f32.mrb[0].mxu0
        %v9235 = vadd.f32 %v9122, %v9234
        %v9236 = vpop.f32.mrb[0].mxu0
        %v9237 = vadd.f32 %v9124, %v9236
        %v9238 = vpop.f32.mrb[0].mxu0
        %v9239 = vadd.f32 %v9126, %v9238
        %v9240 = vpop.f32.mrb[0].mxu0
        %v9241 = vadd.f32 %v9128, %v9240
        %9242 = vdwg.mxu0
        %9243 = vmatprep.subr.bf16.mxu0 %v8634
        %9244 = vmatpush1.bf16.msra.mxu0 %v8633
        %9245 = vmatprep.subr.bf16.mxu0 %v8638
        %9246 = vmatpush1.bf16.msra.mxu0 %v8637
        %9247 = vmatprep.subr.bf16.mxu0 %v8642
        %9248 = vmatpush1.bf16.msra.mxu0 %v8641
        %9249 = vmatprep.subr.bf16.mxu0 %v8646
        %9250 = vmatpush1.bf16.msra.mxu0 %v8645
        %9251 = vmatprep.subr.bf16.mxu0 %v8650
        %9252 = vmatpush1.bf16.msra.mxu0 %v8649
        %9253 = vmatprep.subr.bf16.mxu0 %v8654
        %9254 = vmatpush1.bf16.msra.mxu0 %v8653
        %9255 = vmatprep.subr.bf16.mxu0 %v8658
        %9256 = vmatpush1.bf16.msra.mxu0 %v8657
        %9257 = vmatprep.subr.bf16.mxu0 %v8662
        %9258 = vmatpush1.bf16.msra.mxu0 %v8661
        %9259 = vmatprep.subr.bf16.mxu0 %v8666
        %9260 = vmatpush1.bf16.msra.mxu0 %v8665
        %9261 = vmatprep.subr.bf16.mxu0 %v8670
        %9262 = vmatpush1.bf16.msra.mxu0 %v8669
        %9263 = vmatprep.subr.bf16.mxu0 %v8674
        %9264 = vmatpush1.bf16.msra.mxu0 %v8673
        %9265 = vmatprep.subr.bf16.mxu0 %v8678
        %9266 = vmatpush1.bf16.msra.mxu0 %v8677
        %9267 = vmatprep.subr.bf16.mxu0 %v8682
        %9268 = vmatpush1.bf16.msra.mxu0 %v8681
        %9269 = vmatprep.subr.bf16.mxu0 %v8686
        %9270 = vmatpush1.bf16.msra.mxu0 %v8685
        %9271 = vmatprep.subr.bf16.mxu0 %v8690
        %9272 = vmatpush1.bf16.msra.mxu0 %v8689
        %9273 = vmatprep.subr.bf16.mxu0 %v8694
        %9274 = vmatpush1.bf16.msra.mxu0 %v8693
        %9275 = vmatprep.mubr.bf16.mxu0 %v7400
        %9276 = vmatmul.mubr.bf16.gmra.mrb[0].mxu0 %v7399
        %v9277 = vpop.f32.mrb[0].mxu0
        %v9278 = vadd.f32 %v9165, %v9277
        %v9279 = vpop.f32.mrb[0].mxu0
        %v9280 = vadd.f32 %v9167, %v9279
        %v9281 = vpop.f32.mrb[0].mxu0
        %v9282 = vadd.f32 %v9169, %v9281
        %v9283 = vpop.f32.mrb[0].mxu0
        %v9284 = vadd.f32 %v9171, %v9283
        %9285 = vmatprep.mubr.bf16.mxu0 %v7408
        %9286 = vmatmul.mubr.bf16.gmra.mrb[0].mxu0 %v7407
        %v9287 = vpop.f32.mrb[0].mxu0
        %v9288 = vadd.f32 %v9175, %v9287
        %v9289 = vpop.f32.mrb[0].mxu0
        %v9290 = vadd.f32 %v9177, %v9289
        %v9291 = vpop.f32.mrb[0].mxu0
        %v9292 = vadd.f32 %v9179, %v9291
        %v9293 = vpop.f32.mrb[0].mxu0
        %v9294 = vadd.f32 %v9181, %v9293
        %9295 = vmatprep.mubr.bf16.mxu0 %v7416
        %9296 = vmatmul.mubr.bf16.gmra.mrb[0].mxu0 %v7415
        %v9297 = vpop.f32.mrb[0].mxu0
        %v9298 = vadd.f32 %v9185, %v9297
        %v9299 = vpop.f32.mrb[0].mxu0
        %v9300 = vadd.f32 %v9187, %v9299
        %v9301 = vpop.f32.mrb[0].mxu0
        %v9302 = vadd.f32 %v9189, %v9301
        %v9303 = vpop.f32.mrb[0].mxu0
        %v9304 = vadd.f32 %v9191, %v9303
        %9305 = vmatprep.mubr.bf16.mxu0 %v7424
        %9306 = vmatmul.mubr.bf16.gmra.mrb[0].mxu0 %v7423
        %v9307 = vpop.f32.mrb[0].mxu0
        %v9308 = vadd.f32 %v9195, %v9307
        %v9309 = vpop.f32.mrb[0].mxu0
        %v9310 = vadd.f32 %v9197, %v9309
        %v9311 = vpop.f32.mrb[0].mxu0
        %v9312 = vadd.f32 %v9199, %v9311
        %v9313 = vpop.f32.mrb[0].mxu0
        %v9314 = vadd.f32 %v9201, %v9313
        %9315 = vmatprep.mubr.bf16.mxu0 %v7432
        %9316 = vmatmul.mubr.bf16.gmra.mrb[0].mxu0 %v7431
        %v9317 = vpop.f32.mrb[0].mxu0
        %v9318 = vadd.f32 %v9205, %v9317
        %v9319 = vpop.f32.mrb[0].mxu0
        %v9320 = vadd.f32 %v9207, %v9319
        %v9321 = vpop.f32.mrb[0].mxu0
        %v9322 = vadd.f32 %v9209, %v9321
        %v9323 = vpop.f32.mrb[0].mxu0
        %v9324 = vadd.f32 %v9211, %v9323
        %9325 = vmatprep.mubr.bf16.mxu0 %v7440
        %9326 = vmatmul.mubr.bf16.gmra.mrb[0].mxu0 %v7439
        %v9327 = vpop.f32.mrb[0].mxu0
        %v9328 = vadd.f32 %v9215, %v9327
        %v9329 = vpop.f32.mrb[0].mxu0
        %v9330 = vadd.f32 %v9217, %v9329
        %v9331 = vpop.f32.mrb[0].mxu0
        %v9332 = vadd.f32 %v9219, %v9331
        %v9333 = vpop.f32.mrb[0].mxu0
        %v9334 = vadd.f32 %v9221, %v9333
        %9335 = vmatprep.mubr.bf16.mxu0 %v7448
        %9336 = vmatmul.mubr.bf16.gmra.mrb[0].mxu0 %v7447
        %v9337 = vpop.f32.mrb[0].mxu0
        %v9338 = vadd.f32 %v9225, %v9337
        %v9339 = vpop.f32.mrb[0].mxu0
        %v9340 = vadd.f32 %v9227, %v9339
        %v9341 = vpop.f32.mrb[0].mxu0
        %v9342 = vadd.f32 %v9229, %v9341
        %v9343 = vpop.f32.mrb[0].mxu0
        %v9344 = vadd.f32 %v9231, %v9343
        %9345 = vmatprep.mubr.bf16.mxu0 %v7456
        %9346 = vmatmul.mubr.bf16.gmra.mrb[0].mxu0 %v7455
        %v9347 = vpop.f32.mrb[0].mxu0
        %v9348 = vadd.f32 %v9235, %v9347
        %v9349 = vpop.f32.mrb[0].mxu0
        %v9350 = vadd.f32 %v9237, %v9349
        %v9351 = vpop.f32.mrb[0].mxu0
        %v9352 = vadd.f32 %v9239, %v9351
        %v9353 = vpop.f32.mrb[0].mxu0
        %v9354 = vadd.f32 %v9241, %v9353
        %9355 = vdwg.mxu0
        %9356 = vmatprep.subr.bf16.mxu0 %v8698
        %9357 = vmatpush1.bf16.msra.mxu0 %v8697
        %9358 = vmatprep.subr.bf16.mxu0 %v8702
        %9359 = vmatpush1.bf16.msra.mxu0 %v8701
        %9360 = vmatprep.subr.bf16.mxu0 %v8706
        %9361 = vmatpush1.bf16.msra.mxu0 %v8705
        %9362 = vmatprep.subr.bf16.mxu0 %v8710
        %9363 = vmatpush1.bf16.msra.mxu0 %v8709
        %9364 = vmatprep.subr.bf16.mxu0 %v8714
        %9365 = vmatpush1.bf16.msra.mxu0 %v8713
        %9366 = vmatprep.subr.bf16.mxu0 %v8718
        %9367 = vmatpush1.bf16.msra.mxu0 %v8717
        %9368 = vmatprep.subr.bf16.mxu0 %v8722
        %9369 = vmatpush1.bf16.msra.mxu0 %v8721
        %9370 = vmatprep.subr.bf16.mxu0 %v8726
        %9371 = vmatpush1.bf16.msra.mxu0 %v8725
        %9372 = vmatprep.subr.bf16.mxu0 %v8730
        %9373 = vmatpush1.bf16.msra.mxu0 %v8729
        %9374 = vmatprep.subr.bf16.mxu0 %v8734
        %9375 = vmatpush1.bf16.msra.mxu0 %v8733
        %9376 = vmatprep.subr.bf16.mxu0 %v8738
        %9377 = vmatpush1.bf16.msra.mxu0 %v8737
        %9378 = vmatprep.subr.bf16.mxu0 %v8742
        %9379 = vmatpush1.bf16.msra.mxu0 %v8741
        %9380 = vmatprep.subr.bf16.mxu0 %v8746
        %9381 = vmatpush1.bf16.msra.mxu0 %v8745
        %9382 = vmatprep.subr.bf16.mxu0 %v8750
        %9383 = vmatpush1.bf16.msra.mxu0 %v8749
        %9384 = vmatprep.subr.bf16.mxu0 %v8754
        %9385 = vmatpush1.bf16.msra.mxu0 %v8753
        %9386 = vmatprep.subr.bf16.mxu0 %v8758
        %9387 = vmatpush1.bf16.msra.mxu0 %v8757
        %9388 = vmatprep.mubr.bf16.mxu0 %v7402
        %9389 = vmatmul.mubr.bf16.gmra.mrb[0].mxu0 %v7401
        %v9390 = vpop.f32.mrb[0].mxu0
        %v9391 = vadd.f32 %v9278, %v9390
        %v9392 = vpop.f32.mrb[0].mxu0
        %v9393 = vadd.f32 %v9280, %v9392
        %v9394 = vpop.f32.mrb[0].mxu0
        %v9395 = vadd.f32 %v9282, %v9394
        %v9396 = vpop.f32.mrb[0].mxu0
        %v9397 = vadd.f32 %v9284, %v9396
        %9398 = vmatprep.mubr.bf16.mxu0 %v7410
        %9399 = vmatmul.mubr.bf16.gmra.mrb[0].mxu0 %v7409
        %v9400 = vpop.f32.mrb[0].mxu0
        %v9401 = vadd.f32 %v9288, %v9400
        %v9402 = vpop.f32.mrb[0].mxu0
        %v9403 = vadd.f32 %v9290, %v9402
        %v9404 = vpop.f32.mrb[0].mxu0
        %v9405 = vadd.f32 %v9292, %v9404
        %v9406 = vpop.f32.mrb[0].mxu0
        %v9407 = vadd.f32 %v9294, %v9406
        %9408 = vmatprep.mubr.bf16.mxu0 %v7418
        %9409 = vmatmul.mubr.bf16.gmra.mrb[0].mxu0 %v7417
        %v9410 = vpop.f32.mrb[0].mxu0
        %v9411 = vadd.f32 %v9298, %v9410
        %v9412 = vpop.f32.mrb[0].mxu0
        %v9413 = vadd.f32 %v9300, %v9412
        %v9414 = vpop.f32.mrb[0].mxu0
        %v9415 = vadd.f32 %v9302, %v9414
        %v9416 = vpop.f32.mrb[0].mxu0
        %v9417 = vadd.f32 %v9304, %v9416
        %9418 = vmatprep.mubr.bf16.mxu0 %v7426
        %9419 = vmatmul.mubr.bf16.gmra.mrb[0].mxu0 %v7425
        %v9420 = vpop.f32.mrb[0].mxu0
        %v9421 = vadd.f32 %v9308, %v9420
        %v9422 = vpop.f32.mrb[0].mxu0
        %v9423 = vadd.f32 %v9310, %v9422
        %v9424 = vpop.f32.mrb[0].mxu0
        %v9425 = vadd.f32 %v9312, %v9424
        %v9426 = vpop.f32.mrb[0].mxu0
        %v9427 = vadd.f32 %v9314, %v9426
        %9428 = vmatprep.mubr.bf16.mxu0 %v7434
        %9429 = vmatmul.mubr.bf16.gmra.mrb[0].mxu0 %v7433
        %v9430 = vpop.f32.mrb[0].mxu0
        %v9431 = vadd.f32 %v9318, %v9430
        %v9432 = vpop.f32.mrb[0].mxu0
        %v9433 = vadd.f32 %v9320, %v9432
        %v9434 = vpop.f32.mrb[0].mxu0
        %v9435 = vadd.f32 %v9322, %v9434
        %v9436 = vpop.f32.mrb[0].mxu0
        %v9437 = vadd.f32 %v9324, %v9436
        %9438 = vmatprep.mubr.bf16.mxu0 %v7442
        %9439 = vmatmul.mubr.bf16.gmra.mrb[0].mxu0 %v7441
        %v9440 = vpop.f32.mrb[0].mxu0
        %v9441 = vadd.f32 %v9328, %v9440
        %v9442 = vpop.f32.mrb[0].mxu0
        %v9443 = vadd.f32 %v9330, %v9442
        %v9444 = vpop.f32.mrb[0].mxu0
        %v9445 = vadd.f32 %v9332, %v9444
        %v9446 = vpop.f32.mrb[0].mxu0
        %v9447 = vadd.f32 %v9334, %v9446
        %9448 = vmatprep.mubr.bf16.mxu0 %v7450
        %9449 = vmatmul.mubr.bf16.gmra.mrb[0].mxu0 %v7449
        %v9450 = vpop.f32.mrb[0].mxu0
        %v9451 = vadd.f32 %v9338, %v9450
        %v9452 = vpop.f32.mrb[0].mxu0
        %v9453 = vadd.f32 %v9340, %v9452
        %v9454 = vpop.f32.mrb[0].mxu0
        %v9455 = vadd.f32 %v9342, %v9454
        %v9456 = vpop.f32.mrb[0].mxu0
        %v9457 = vadd.f32 %v9344, %v9456
        %9458 = vmatprep.mubr.bf16.mxu0 %v7458
        %9459 = vmatmul.mubr.bf16.gmra.mrb[0].mxu0 %v7457
        %v9460 = vpop.f32.mrb[0].mxu0
        %v9461 = vadd.f32 %v9348, %v9460
        %v9462 = vpop.f32.mrb[0].mxu0
        %v9463 = vadd.f32 %v9350, %v9462
        %v9464 = vpop.f32.mrb[0].mxu0
        %v9465 = vadd.f32 %v9352, %v9464
        %v9466 = vpop.f32.mrb[0].mxu0
        %v9467 = vadd.f32 %v9354, %v9466
        %9468 = vdwg.mxu0
        %9469 = vmatprep.subr.bf16.mxu0 %v8508
        %9470 = vmatpush1.bf16.msra.mxu0 %v8507
        %9471 = vmatprep.subr.bf16.mxu0 %v8512
        %9472 = vmatpush1.bf16.msra.mxu0 %v8511
        %9473 = vmatprep.subr.bf16.mxu0 %v8516
        %9474 = vmatpush1.bf16.msra.mxu0 %v8515
        %9475 = vmatprep.subr.bf16.mxu0 %v8520
        %9476 = vmatpush1.bf16.msra.mxu0 %v8519
        %9477 = vmatprep.subr.bf16.mxu0 %v8524
        %9478 = vmatpush1.bf16.msra.mxu0 %v8523
        %9479 = vmatprep.subr.bf16.mxu0 %v8528
        %9480 = vmatpush1.bf16.msra.mxu0 %v8527
        %9481 = vmatprep.subr.bf16.mxu0 %v8532
        %9482 = vmatpush1.bf16.msra.mxu0 %v8531
        %9483 = vmatprep.subr.bf16.mxu0 %v8536
        %9484 = vmatpush1.bf16.msra.mxu0 %v8535
        %9485 = vmatprep.subr.bf16.mxu0 %v8540
        %9486 = vmatpush1.bf16.msra.mxu0 %v8539
        %9487 = vmatprep.subr.bf16.mxu0 %v8544
        %9488 = vmatpush1.bf16.msra.mxu0 %v8543
        %9489 = vmatprep.subr.bf16.mxu0 %v8548
        %9490 = vmatpush1.bf16.msra.mxu0 %v8547
        %9491 = vmatprep.subr.bf16.mxu0 %v8552
        %9492 = vmatpush1.bf16.msra.mxu0 %v8551
        %9493 = vmatprep.subr.bf16.mxu0 %v8556
        %9494 = vmatpush1.bf16.msra.mxu0 %v8555
        %9495 = vmatprep.subr.bf16.mxu0 %v8560
        %9496 = vmatpush1.bf16.msra.mxu0 %v8559
        %9497 = vmatprep.subr.bf16.mxu0 %v8564
        %9498 = vmatpush1.bf16.msra.mxu0 %v8563
        %9499 = vmatprep.subr.bf16.mxu0 %v8568
        %9500 = vmatpush1.bf16.msra.mxu0 %v8567
        %9501 = vmatprep.mubr.bf16.mxu0 %v7396
        %9502 = vmatmul.mubr.bf16.gmra.mrb[0].mxu0 %v7395
        %v9503 = vpop.f32.mrb[0].mxu0
        %v9504 = vadd.f32 %v7728, %v9503
        %v9505 = vpop.f32.mrb[0].mxu0
        %v9506 = vadd.f32 %v7732, %v9505
        %v9507 = vpop.f32.mrb[0].mxu0
        %v9508 = vadd.f32 %v7728, %v9507
        %v9509 = vpop.f32.mrb[0].mxu0
        %v9510 = vadd.f32 %v7732, %v9509
        %9511 = vmatprep.mubr.bf16.mxu0 %v7404
        %9512 = vmatmul.mubr.bf16.gmra.mrb[0].mxu0 %v7403
        %v9513 = vpop.f32.mrb[0].mxu0
        %v9514 = vadd.f32 %v7728, %v9513
        %v9515 = vpop.f32.mrb[0].mxu0
        %v9516 = vadd.f32 %v7732, %v9515
        %v9517 = vpop.f32.mrb[0].mxu0
        %v9518 = vadd.f32 %v7728, %v9517
        %v9519 = vpop.f32.mrb[0].mxu0
        %v9520 = vadd.f32 %v7732, %v9519
        %9521 = vmatprep.mubr.bf16.mxu0 %v7412
        %9522 = vmatmul.mubr.bf16.gmra.mrb[0].mxu0 %v7411
        %v9523 = vpop.f32.mrb[0].mxu0
        %v9524 = vadd.f32 %v7728, %v9523
        %v9525 = vpop.f32.mrb[0].mxu0
        %v9526 = vadd.f32 %v7732, %v9525
        %v9527 = vpop.f32.mrb[0].mxu0
        %v9528 = vadd.f32 %v7728, %v9527
        %v9529 = vpop.f32.mrb[0].mxu0
        %v9530 = vadd.f32 %v7732, %v9529
        %9531 = vmatprep.mubr.bf16.mxu0 %v7420
        %9532 = vmatmul.mubr.bf16.gmra.mrb[0].mxu0 %v7419
        %v9533 = vpop.f32.mrb[0].mxu0
        %v9534 = vadd.f32 %v7728, %v9533
        %v9535 = vpop.f32.mrb[0].mxu0
        %v9536 = vadd.f32 %v7732, %v9535
        %v9537 = vpop.f32.mrb[0].mxu0
        %v9538 = vadd.f32 %v7728, %v9537
        %v9539 = vpop.f32.mrb[0].mxu0
        %v9540 = vadd.f32 %v7732, %v9539
        %9541 = vmatprep.mubr.bf16.mxu0 %v7428
        %9542 = vmatmul.mubr.bf16.gmra.mrb[0].mxu0 %v7427
        %v9543 = vpop.f32.mrb[0].mxu0
        %v9544 = vadd.f32 %v7728, %v9543
        %v9545 = vpop.f32.mrb[0].mxu0
        %v9546 = vadd.f32 %v7732, %v9545
        %v9547 = vpop.f32.mrb[0].mxu0
        %v9548 = vadd.f32 %v7728, %v9547
        %v9549 = vpop.f32.mrb[0].mxu0
        %v9550 = vadd.f32 %v7732, %v9549
        %9551 = vmatprep.mubr.bf16.mxu0 %v7436
        %9552 = vmatmul.mubr.bf16.gmra.mrb[0].mxu0 %v7435
        %v9553 = vpop.f32.mrb[0].mxu0
        %v9554 = vadd.f32 %v7728, %v9553
        %v9555 = vpop.f32.mrb[0].mxu0
        %v9556 = vadd.f32 %v7732, %v9555
        %v9557 = vpop.f32.mrb[0].mxu0
        %v9558 = vadd.f32 %v7728, %v9557
        %v9559 = vpop.f32.mrb[0].mxu0
        %v9560 = vadd.f32 %v7732, %v9559
        %9561 = vmatprep.mubr.bf16.mxu0 %v7444
        %9562 = vmatmul.mubr.bf16.gmra.mrb[0].mxu0 %v7443
        %v9563 = vpop.f32.mrb[0].mxu0
        %v9564 = vadd.f32 %v7728, %v9563
        %v9565 = vpop.f32.mrb[0].mxu0
        %v9566 = vadd.f32 %v7732, %v9565
        %v9567 = vpop.f32.mrb[0].mxu0
        %v9568 = vadd.f32 %v7728, %v9567
        %v9569 = vpop.f32.mrb[0].mxu0
        %v9570 = vadd.f32 %v7732, %v9569
        %9571 = vmatprep.mubr.bf16.mxu0 %v7452
        %9572 = vmatmul.mubr.bf16.gmra.mrb[0].mxu0 %v7451
        %v9573 = vpop.f32.mrb[0].mxu0
        %v9574 = vadd.f32 %v7728, %v9573
        %v9575 = vpop.f32.mrb[0].mxu0
        %v9576 = vadd.f32 %v7732, %v9575
        %v9577 = vpop.f32.mrb[0].mxu0
        %v9578 = vadd.f32 %v7728, %v9577
        %v9579 = vpop.f32.mrb[0].mxu0
        %v9580 = vadd.f32 %v7732, %v9579
        %9581 = vdwg.mxu0
        %9582 = vmatprep.subr.bf16.mxu0 %v8572
        %9583 = vmatpush1.bf16.msra.mxu0 %v8571
        %9584 = vmatprep.subr.bf16.mxu0 %v8576
        %9585 = vmatpush1.bf16.msra.mxu0 %v8575
        %9586 = vmatprep.subr.bf16.mxu0 %v8580
        %9587 = vmatpush1.bf16.msra.mxu0 %v8579
        %9588 = vmatprep.subr.bf16.mxu0 %v8584
        %9589 = vmatpush1.bf16.msra.mxu0 %v8583
        %9590 = vmatprep.subr.bf16.mxu0 %v8588
        %9591 = vmatpush1.bf16.msra.mxu0 %v8587
        %9592 = vmatprep.subr.bf16.mxu0 %v8592
        %9593 = vmatpush1.bf16.msra.mxu0 %v8591
        %9594 = vmatprep.subr.bf16.mxu0 %v8596
        %9595 = vmatpush1.bf16.msra.mxu0 %v8595
        %9596 = vmatprep.subr.bf16.mxu0 %v8600
        %9597 = vmatpush1.bf16.msra.mxu0 %v8599
        %9598 = vmatprep.subr.bf16.mxu0 %v8604
        %9599 = vmatpush1.bf16.msra.mxu0 %v8603
        %9600 = vmatprep.subr.bf16.mxu0 %v8608
        %9601 = vmatpush1.bf16.msra.mxu0 %v8607
        %9602 = vmatprep.subr.bf16.mxu0 %v8612
        %9603 = vmatpush1.bf16.msra.mxu0 %v8611
        %9604 = vmatprep.subr.bf16.mxu0 %v8616
        %9605 = vmatpush1.bf16.msra.mxu0 %v8615
        %9606 = vmatprep.subr.bf16.mxu0 %v8620
        %9607 = vmatpush1.bf16.msra.mxu0 %v8619
        %9608 = vmatprep.subr.bf16.mxu0 %v8624
        %9609 = vmatpush1.bf16.msra.mxu0 %v8623
        %9610 = vmatprep.subr.bf16.mxu0 %v8628
        %9611 = vmatpush1.bf16.msra.mxu0 %v8627
        %9612 = vmatprep.subr.bf16.mxu0 %v8632
        %9613 = vmatpush1.bf16.msra.mxu0 %v8631
        %9614 = vmatprep.mubr.bf16.mxu0 %v7398
        %9615 = vmatmul.mubr.bf16.gmra.mrb[0].mxu0 %v7397
        %v9616 = vpop.f32.mrb[0].mxu0
        %v9617 = vadd.f32 %v9504, %v9616
        %v9618 = vpop.f32.mrb[0].mxu0
        %v9619 = vadd.f32 %v9506, %v9618
        %v9620 = vpop.f32.mrb[0].mxu0
        %v9621 = vadd.f32 %v9508, %v9620
        %v9622 = vpop.f32.mrb[0].mxu0
        %v9623 = vadd.f32 %v9510, %v9622
        %9624 = vmatprep.mubr.bf16.mxu0 %v7406
        %9625 = vmatmul.mubr.bf16.gmra.mrb[0].mxu0 %v7405
        %v9626 = vpop.f32.mrb[0].mxu0
        %v9627 = vadd.f32 %v9514, %v9626
        %v9628 = vpop.f32.mrb[0].mxu0
        %v9629 = vadd.f32 %v9516, %v9628
        %v9630 = vpop.f32.mrb[0].mxu0
        %v9631 = vadd.f32 %v9518, %v9630
        %v9632 = vpop.f32.mrb[0].mxu0
        %v9633 = vadd.f32 %v9520, %v9632
        %9634 = vmatprep.mubr.bf16.mxu0 %v7414
        %9635 = vmatmul.mubr.bf16.gmra.mrb[0].mxu0 %v7413
        %v9636 = vpop.f32.mrb[0].mxu0
        %v9637 = vadd.f32 %v9524, %v9636
        %v9638 = vpop.f32.mrb[0].mxu0
        %v9639 = vadd.f32 %v9526, %v9638
        %v9640 = vpop.f32.mrb[0].mxu0
        %v9641 = vadd.f32 %v9528, %v9640
        %v9642 = vpop.f32.mrb[0].mxu0
        %v9643 = vadd.f32 %v9530, %v9642
        %9644 = vmatprep.mubr.bf16.mxu0 %v7422
        %9645 = vmatmul.mubr.bf16.gmra.mrb[0].mxu0 %v7421
        %v9646 = vpop.f32.mrb[0].mxu0
        %v9647 = vadd.f32 %v9534, %v9646
        %v9648 = vpop.f32.mrb[0].mxu0
        %v9649 = vadd.f32 %v9536, %v9648
        %v9650 = vpop.f32.mrb[0].mxu0
        %v9651 = vadd.f32 %v9538, %v9650
        %v9652 = vpop.f32.mrb[0].mxu0
        %v9653 = vadd.f32 %v9540, %v9652
        %9654 = vmatprep.mubr.bf16.mxu0 %v7430
        %9655 = vmatmul.mubr.bf16.gmra.mrb[0].mxu0 %v7429
        %v9656 = vpop.f32.mrb[0].mxu0
        %v9657 = vadd.f32 %v9544, %v9656
        %v9658 = vpop.f32.mrb[0].mxu0
        %v9659 = vadd.f32 %v9546, %v9658
        %v9660 = vpop.f32.mrb[0].mxu0
        %v9661 = vadd.f32 %v9548, %v9660
        %v9662 = vpop.f32.mrb[0].mxu0
        %v9663 = vadd.f32 %v9550, %v9662
        %9664 = vmatprep.mubr.bf16.mxu0 %v7438
        %9665 = vmatmul.mubr.bf16.gmra.mrb[0].mxu0 %v7437
        %v9666 = vpop.f32.mrb[0].mxu0
        %v9667 = vadd.f32 %v9554, %v9666
        %v9668 = vpop.f32.mrb[0].mxu0
        %v9669 = vadd.f32 %v9556, %v9668
        %v9670 = vpop.f32.mrb[0].mxu0
        %v9671 = vadd.f32 %v9558, %v9670
        %v9672 = vpop.f32.mrb[0].mxu0
        %v9673 = vadd.f32 %v9560, %v9672
        %9674 = vmatprep.mubr.bf16.mxu0 %v7446
        %9675 = vmatmul.mubr.bf16.gmra.mrb[0].mxu0 %v7445
        %v9676 = vpop.f32.mrb[0].mxu0
        %v9677 = vadd.f32 %v9564, %v9676
        %v9678 = vpop.f32.mrb[0].mxu0
        %v9679 = vadd.f32 %v9566, %v9678
        %v9680 = vpop.f32.mrb[0].mxu0
        %v9681 = vadd.f32 %v9568, %v9680
        %v9682 = vpop.f32.mrb[0].mxu0
        %v9683 = vadd.f32 %v9570, %v9682
        %9684 = vmatprep.mubr.bf16.mxu0 %v7454
        %9685 = vmatmul.mubr.bf16.gmra.mrb[0].mxu0 %v7453
        %v9686 = vpop.f32.mrb[0].mxu0
        %v9687 = vadd.f32 %v9574, %v9686
        %v9688 = vpop.f32.mrb[0].mxu0
        %v9689 = vadd.f32 %v9576, %v9688
        %v9690 = vpop.f32.mrb[0].mxu0
        %v9691 = vadd.f32 %v9578, %v9690
        %v9692 = vpop.f32.mrb[0].mxu0
        %v9693 = vadd.f32 %v9580, %v9692
        %9694 = vdwg.mxu0
        %9695 = vmatprep.subr.bf16.mxu0 %v8636
        %9696 = vmatpush1.bf16.msra.mxu0 %v8635
        %9697 = vmatprep.subr.bf16.mxu0 %v8640
        %9698 = vmatpush1.bf16.msra.mxu0 %v8639
        %9699 = vmatprep.subr.bf16.mxu0 %v8644
        %9700 = vmatpush1.bf16.msra.mxu0 %v8643
        %9701 = vmatprep.subr.bf16.mxu0 %v8648
        %9702 = vmatpush1.bf16.msra.mxu0 %v8647
        %9703 = vmatprep.subr.bf16.mxu0 %v8652
        %9704 = vmatpush1.bf16.msra.mxu0 %v8651
        %9705 = vmatprep.subr.bf16.mxu0 %v8656
        %9706 = vmatpush1.bf16.msra.mxu0 %v8655
        %9707 = vmatprep.subr.bf16.mxu0 %v8660
        %9708 = vmatpush1.bf16.msra.mxu0 %v8659
        %9709 = vmatprep.subr.bf16.mxu0 %v8664
        %9710 = vmatpush1.bf16.msra.mxu0 %v8663
        %9711 = vmatprep.subr.bf16.mxu0 %v8668
        %9712 = vmatpush1.bf16.msra.mxu0 %v8667
        %9713 = vmatprep.subr.bf16.mxu0 %v8672
        %9714 = vmatpush1.bf16.msra.mxu0 %v8671
        %9715 = vmatprep.subr.bf16.mxu0 %v8676
        %9716 = vmatpush1.bf16.msra.mxu0 %v8675
        %9717 = vmatprep.subr.bf16.mxu0 %v8680
        %9718 = vmatpush1.bf16.msra.mxu0 %v8679
        %9719 = vmatprep.subr.bf16.mxu0 %v8684
        %9720 = vmatpush1.bf16.msra.mxu0 %v8683
        %9721 = vmatprep.subr.bf16.mxu0 %v8688
        %9722 = vmatpush1.bf16.msra.mxu0 %v8687
        %9723 = vmatprep.subr.bf16.mxu0 %v8692
        %9724 = vmatpush1.bf16.msra.mxu0 %v8691
        %9725 = vmatprep.subr.bf16.mxu0 %v8696
        %9726 = vmatpush1.bf16.msra.mxu0 %v8695
        %9727 = vmatprep.mubr.bf16.mxu0 %v7400
        %9728 = vmatmul.mubr.bf16.gmra.mrb[0].mxu0 %v7399
        %v9729 = vpop.f32.mrb[0].mxu0
        %v9730 = vadd.f32 %v9617, %v9729
        %v9731 = vpop.f32.mrb[0].mxu0
        %v9732 = vadd.f32 %v9619, %v9731
        %v9733 = vpop.f32.mrb[0].mxu0
        %v9734 = vadd.f32 %v9621, %v9733
        %v9735 = vpop.f32.mrb[0].mxu0
        %v9736 = vadd.f32 %v9623, %v9735
        %9737 = vmatprep.mubr.bf16.mxu0 %v7408
        %9738 = vmatmul.mubr.bf16.gmra.mrb[0].mxu0 %v7407
        %v9739 = vpop.f32.mrb[0].mxu0
        %v9740 = vadd.f32 %v9627, %v9739
        %v9741 = vpop.f32.mrb[0].mxu0
        %v9742 = vadd.f32 %v9629, %v9741
        %v9743 = vpop.f32.mrb[0].mxu0
        %v9744 = vadd.f32 %v9631, %v9743
        %v9745 = vpop.f32.mrb[0].mxu0
        %v9746 = vadd.f32 %v9633, %v9745
        %9747 = vmatprep.mubr.bf16.mxu0 %v7416
        %9748 = vmatmul.mubr.bf16.gmra.mrb[0].mxu0 %v7415
        %v9749 = vpop.f32.mrb[0].mxu0
        %v9750 = vadd.f32 %v9637, %v9749
        %v9751 = vpop.f32.mrb[0].mxu0
        %v9752 = vadd.f32 %v9639, %v9751
        %v9753 = vpop.f32.mrb[0].mxu0
        %v9754 = vadd.f32 %v9641, %v9753
        %v9755 = vpop.f32.mrb[0].mxu0
        %v9756 = vadd.f32 %v9643, %v9755
        %9757 = vmatprep.mubr.bf16.mxu0 %v7424
        %9758 = vmatmul.mubr.bf16.gmra.mrb[0].mxu0 %v7423
        %v9759 = vpop.f32.mrb[0].mxu0
        %v9760 = vadd.f32 %v9647, %v9759
        %v9761 = vpop.f32.mrb[0].mxu0
        %v9762 = vadd.f32 %v9649, %v9761
        %v9763 = vpop.f32.mrb[0].mxu0
        %v9764 = vadd.f32 %v9651, %v9763
        %v9765 = vpop.f32.mrb[0].mxu0
        %v9766 = vadd.f32 %v9653, %v9765
        %9767 = vmatprep.mubr.bf16.mxu0 %v7432
        %9768 = vmatmul.mubr.bf16.gmra.mrb[0].mxu0 %v7431
        %v9769 = vpop.f32.mrb[0].mxu0
        %v9770 = vadd.f32 %v9657, %v9769
        %v9771 = vpop.f32.mrb[0].mxu0
        %v9772 = vadd.f32 %v9659, %v9771
        %v9773 = vpop.f32.mrb[0].mxu0
        %v9774 = vadd.f32 %v9661, %v9773
        %v9775 = vpop.f32.mrb[0].mxu0
        %v9776 = vadd.f32 %v9663, %v9775
        %9777 = vmatprep.mubr.bf16.mxu0 %v7440
        %9778 = vmatmul.mubr.bf16.gmra.mrb[0].mxu0 %v7439
        %v9779 = vpop.f32.mrb[0].mxu0
        %v9780 = vadd.f32 %v9667, %v9779
        %v9781 = vpop.f32.mrb[0].mxu0
        %v9782 = vadd.f32 %v9669, %v9781
        %v9783 = vpop.f32.mrb[0].mxu0
        %v9784 = vadd.f32 %v9671, %v9783
        %v9785 = vpop.f32.mrb[0].mxu0
        %v9786 = vadd.f32 %v9673, %v9785
        %9787 = vmatprep.mubr.bf16.mxu0 %v7448
        %9788 = vmatmul.mubr.bf16.gmra.mrb[0].mxu0 %v7447
        %v9789 = vpop.f32.mrb[0].mxu0
        %v9790 = vadd.f32 %v9677, %v9789
        %v9791 = vpop.f32.mrb[0].mxu0
        %v9792 = vadd.f32 %v9679, %v9791
        %v9793 = vpop.f32.mrb[0].mxu0
        %v9794 = vadd.f32 %v9681, %v9793
        %v9795 = vpop.f32.mrb[0].mxu0
        %v9796 = vadd.f32 %v9683, %v9795
        %9797 = vmatprep.mubr.bf16.mxu0 %v7456
        %9798 = vmatmul.mubr.bf16.gmra.mrb[0].mxu0 %v7455
        %v9799 = vpop.f32.mrb[0].mxu0
        %v9800 = vadd.f32 %v9687, %v9799
        %v9801 = vpop.f32.mrb[0].mxu0
        %v9802 = vadd.f32 %v9689, %v9801
        %v9803 = vpop.f32.mrb[0].mxu0
        %v9804 = vadd.f32 %v9691, %v9803
        %v9805 = vpop.f32.mrb[0].mxu0
        %v9806 = vadd.f32 %v9693, %v9805
        %9807 = vdwg.mxu0
        %9808 = vmatprep.subr.bf16.mxu0 %v8700
        %9809 = vmatpush1.bf16.msra.mxu0 %v8699
        %9810 = vmatprep.subr.bf16.mxu0 %v8704
        %9811 = vmatpush1.bf16.msra.mxu0 %v8703
        %9812 = vmatprep.subr.bf16.mxu0 %v8708
        %9813 = vmatpush1.bf16.msra.mxu0 %v8707
        %9814 = vmatprep.subr.bf16.mxu0 %v8712
        %9815 = vmatpush1.bf16.msra.mxu0 %v8711
        %9816 = vmatprep.subr.bf16.mxu0 %v8716
        %9817 = vmatpush1.bf16.msra.mxu0 %v8715
        %9818 = vmatprep.subr.bf16.mxu0 %v8720
        %9819 = vmatpush1.bf16.msra.mxu0 %v8719
        %9820 = vmatprep.subr.bf16.mxu0 %v8724
        %9821 = vmatpush1.bf16.msra.mxu0 %v8723
        %9822 = vmatprep.subr.bf16.mxu0 %v8728
        %9823 = vmatpush1.bf16.msra.mxu0 %v8727
        %9824 = vmatprep.subr.bf16.mxu0 %v8732
        %9825 = vmatpush1.bf16.msra.mxu0 %v8731
        %9826 = vmatprep.subr.bf16.mxu0 %v8736
        %9827 = vmatpush1.bf16.msra.mxu0 %v8735
        %9828 = vmatprep.subr.bf16.mxu0 %v8740
        %9829 = vmatpush1.bf16.msra.mxu0 %v8739
        %9830 = vmatprep.subr.bf16.mxu0 %v8744
        %9831 = vmatpush1.bf16.msra.mxu0 %v8743
        %9832 = vmatprep.subr.bf16.mxu0 %v8748
        %9833 = vmatpush1.bf16.msra.mxu0 %v8747
        %9834 = vmatprep.subr.bf16.mxu0 %v8752
        %9835 = vmatpush1.bf16.msra.mxu0 %v8751
        %9836 = vmatprep.subr.bf16.mxu0 %v8756
        %9837 = vmatpush1.bf16.msra.mxu0 %v8755
        %9838 = vmatprep.subr.bf16.mxu0 %v8760
        %9839 = vmatpush1.bf16.msra.mxu0 %v8759
        %9840 = vmatprep.mubr.bf16.mxu0 %v7402
        %9841 = vmatmul.mubr.bf16.gmra.mrb[0].mxu0 %v7401
        %v9842 = vpop.f32.mrb[0].mxu0
        %v9843 = vadd.f32 %v9730, %v9842
        %v9844 = vpop.f32.mrb[0].mxu0
        %v9845 = vadd.f32 %v9732, %v9844
        %v9846 = vpop.f32.mrb[0].mxu0
        %v9847 = vadd.f32 %v9734, %v9846
        %v9848 = vpop.f32.mrb[0].mxu0
        %v9849 = vadd.f32 %v9736, %v9848
        %9850 = vmatprep.mubr.bf16.mxu0 %v7410
        %9851 = vmatmul.mubr.bf16.gmra.mrb[0].mxu0 %v7409
        %v9852 = vpop.f32.mrb[0].mxu0
        %v9853 = vadd.f32 %v9740, %v9852
        %v9854 = vpop.f32.mrb[0].mxu0
        %v9855 = vadd.f32 %v9742, %v9854
        %v9856 = vpop.f32.mrb[0].mxu0
        %v9857 = vadd.f32 %v9744, %v9856
        %v9858 = vpop.f32.mrb[0].mxu0
        %v9859 = vadd.f32 %v9746, %v9858
        %9860 = vmatprep.mubr.bf16.mxu0 %v7418
        %9861 = vmatmul.mubr.bf16.gmra.mrb[0].mxu0 %v7417
        %v9862 = vpop.f32.mrb[0].mxu0
        %v9863 = vadd.f32 %v9750, %v9862
        %v9864 = vpop.f32.mrb[0].mxu0
        %v9865 = vadd.f32 %v9752, %v9864
        %v9866 = vpop.f32.mrb[0].mxu0
        %v9867 = vadd.f32 %v9754, %v9866
        %v9868 = vpop.f32.mrb[0].mxu0
        %v9869 = vadd.f32 %v9756, %v9868
        %9870 = vmatprep.mubr.bf16.mxu0 %v7426
        %9871 = vmatmul.mubr.bf16.gmra.mrb[0].mxu0 %v7425
        %v9872 = vpop.f32.mrb[0].mxu0
        %v9873 = vadd.f32 %v9760, %v9872
        %v9874 = vpop.f32.mrb[0].mxu0
        %v9875 = vadd.f32 %v9762, %v9874
        %v9876 = vpop.f32.mrb[0].mxu0
        %v9877 = vadd.f32 %v9764, %v9876
        %v9878 = vpop.f32.mrb[0].mxu0
        %v9879 = vadd.f32 %v9766, %v9878
        %9880 = vmatprep.mubr.bf16.mxu0 %v7434
        %9881 = vmatmul.mubr.bf16.gmra.mrb[0].mxu0 %v7433
        %v9882 = vpop.f32.mrb[0].mxu0
        %v9883 = vadd.f32 %v9770, %v9882
        %v9884 = vpop.f32.mrb[0].mxu0
        %v9885 = vadd.f32 %v9772, %v9884
        %v9886 = vpop.f32.mrb[0].mxu0
        %v9887 = vadd.f32 %v9774, %v9886
        %v9888 = vpop.f32.mrb[0].mxu0
        %v9889 = vadd.f32 %v9776, %v9888
        %9890 = vmatprep.mubr.bf16.mxu0 %v7442
        %9891 = vmatmul.mubr.bf16.gmra.mrb[0].mxu0 %v7441
        %v9892 = vpop.f32.mrb[0].mxu0
        %v9893 = vadd.f32 %v9780, %v9892
        %v9894 = vpop.f32.mrb[0].mxu0
        %v9895 = vadd.f32 %v9782, %v9894
        %v9896 = vpop.f32.mrb[0].mxu0
        %v9897 = vadd.f32 %v9784, %v9896
        %v9898 = vpop.f32.mrb[0].mxu0
        %v9899 = vadd.f32 %v9786, %v9898
        %9900 = vmatprep.mubr.bf16.mxu0 %v7450
        %9901 = vmatmul.mubr.bf16.gmra.mrb[0].mxu0 %v7449
        %v9902 = vpop.f32.mrb[0].mxu0
        %v9903 = vadd.f32 %v9790, %v9902
        %v9904 = vpop.f32.mrb[0].mxu0
        %v9905 = vadd.f32 %v9792, %v9904
        %v9906 = vpop.f32.mrb[0].mxu0
        %v9907 = vadd.f32 %v9794, %v9906
        %v9908 = vpop.f32.mrb[0].mxu0
        %v9909 = vadd.f32 %v9796, %v9908
        %9910 = vmatprep.mubr.bf16.mxu0 %v7458
        %9911 = vmatmul.mubr.bf16.gmra.mrb[0].mxu0 %v7457
        %v9912 = vpop.f32.mrb[0].mxu0
        %v9913 = vadd.f32 %v9800, %v9912
        %v9914 = vpop.f32.mrb[0].mxu0
        %v9915 = vadd.f32 %v9802, %v9914
        %v9916 = vpop.f32.mrb[0].mxu0
        %v9917 = vadd.f32 %v9804, %v9916
        %v9918 = vpop.f32.mrb[0].mxu0
        %v9919 = vadd.f32 %v9806, %v9918
        %9920 = vdwg.mxu0
        %v9921 = vmax.f32 %v9391, 0.0
        %v9922 = vmax.f32 %v9393, 0.0
        %v9923 = vmax.f32 %v9843, 0.0
        %v9924 = vmax.f32 %v9845, 0.0
        %v9925 = vmax.f32 %v9395, 0.0
        %v9926 = vmax.f32 %v9397, 0.0
        %v9927 = vmax.f32 %v9847, 0.0
        %v9928 = vmax.f32 %v9849, 0.0
        %v9929 = vmax.f32 %v9401, 0.0
        %v9930 = vmax.f32 %v9403, 0.0
        %v9931 = vmax.f32 %v9853, 0.0
        %v9932 = vmax.f32 %v9855, 0.0
        %v9933 = vmax.f32 %v9405, 0.0
        %v9934 = vmax.f32 %v9407, 0.0
        %v9935 = vmax.f32 %v9857, 0.0
        %v9936 = vmax.f32 %v9859, 0.0
        %v9937 = vmax.f32 %v9411, 0.0
        %v9938 = vmax.f32 %v9413, 0.0
        %v9939 = vmax.f32 %v9863, 0.0
        %v9940 = vmax.f32 %v9865, 0.0
        %v9941 = vmax.f32 %v9415, 0.0
        %v9942 = vmax.f32 %v9417, 0.0
        %v9943 = vmax.f32 %v9867, 0.0
        %v9944 = vmax.f32 %v9869, 0.0
        %v9945 = vmax.f32 %v9421, 0.0
        %v9946 = vmax.f32 %v9423, 0.0
        %v9947 = vmax.f32 %v9873, 0.0
        %v9948 = vmax.f32 %v9875, 0.0
        %v9949 = vmax.f32 %v9425, 0.0
        %v9950 = vmax.f32 %v9427, 0.0
        %v9951 = vmax.f32 %v9877, 0.0
        %v9952 = vmax.f32 %v9879, 0.0
        %v9953 = vmax.f32 %v9431, 0.0
        %v9954 = vmax.f32 %v9433, 0.0
        %v9955 = vmax.f32 %v9883, 0.0
        %v9956 = vmax.f32 %v9885, 0.0
        %v9957 = vmax.f32 %v9435, 0.0
        %v9958 = vmax.f32 %v9437, 0.0
        %v9959 = vmax.f32 %v9887, 0.0
        %v9960 = vmax.f32 %v9889, 0.0
        %v9961 = vmax.f32 %v9441, 0.0
        %v9962 = vmax.f32 %v9443, 0.0
        %v9963 = vmax.f32 %v9893, 0.0
        %v9964 = vmax.f32 %v9895, 0.0
        %v9965 = vmax.f32 %v9445, 0.0
        %v9966 = vmax.f32 %v9447, 0.0
        %v9967 = vmax.f32 %v9897, 0.0
        %v9968 = vmax.f32 %v9899, 0.0
        %v9969 = vmax.f32 %v9451, 0.0
        %v9970 = vmax.f32 %v9453, 0.0
        %v9971 = vmax.f32 %v9903, 0.0
        %v9972 = vmax.f32 %v9905, 0.0
        %v9973 = vmax.f32 %v9455, 0.0
        %v9974 = vmax.f32 %v9457, 0.0
        %v9975 = vmax.f32 %v9907, 0.0
        %v9976 = vmax.f32 %v9909, 0.0
        %v9977 = vmax.f32 %v9461, 0.0
        %v9978 = vmax.f32 %v9463, 0.0
        %v9979 = vmax.f32 %v9913, 0.0
        %v9980 = vmax.f32 %v9915, 0.0
        %v9981 = vmax.f32 %v9465, 0.0
        %v9982 = vmax.f32 %v9467, 0.0
        %v9983 = vmax.f32 %v9917, 0.0
        %v9984 = vmax.f32 %v9919, 0.0
        %9985 = vst [vmem:[#allocation3] sm:$0xff] %v9921
        %9986 = vst [vmem:[#allocation3 + $0x8] sm:$0xff] %v9922
        %9987 = vst [vmem:[#allocation3 + $0x10] sm:$0xff] %v9923
        %9988 = vst [vmem:[#allocation3 + $0x18] sm:$0xff] %v9924
        %9989 = vst [vmem:[#allocation3 + $0x20] sm:$0xff] %v9925
        %9990 = vst [vmem:[#allocation3 + $0x28] sm:$0xff] %v9926
        %9991 = vst [vmem:[#allocation3 + $0x30] sm:$0xff] %v9927
        %9992 = vst [vmem:[#allocation3 + $0x38] sm:$0xff] %v9928
        %9993 = vst [vmem:[#allocation3 + $0x40] sm:$0xff] %v9929
        %9994 = vst [vmem:[#allocation3 + $0x48] sm:$0xff] %v9930
        %9995 = vst [vmem:[#allocation3 + $0x50] sm:$0xff] %v9931
        %9996 = vst [vmem:[#allocation3 + $0x58] sm:$0xff] %v9932
        %9997 = vst [vmem:[#allocation3 + $0x60] sm:$0xff] %v9933
        %9998 = vst [vmem:[#allocation3 + $0x68] sm:$0xff] %v9934
        %9999 = vst [vmem:[#allocation3 + $0x70] sm:$0xff] %v9935
        %10000 = vst [vmem:[#allocation3 + $0x78] sm:$0xff] %v9936
        %10001 = vst [vmem:[#allocation3 + $0x80] sm:$0xff] %v9937
        %10002 = vst [vmem:[#allocation3 + $0x88] sm:$0xff] %v9938
        %10003 = vst [vmem:[#allocation3 + $0x90] sm:$0xff] %v9939
        %10004 = vst [vmem:[#allocation3 + $0x98] sm:$0xff] %v9940
        %10005 = vst [vmem:[#allocation3 + $0xa0] sm:$0xff] %v9941
        %10006 = vst [vmem:[#allocation3 + $0xa8] sm:$0xff] %v9942
        %10007 = vst [vmem:[#allocation3 + $0xb0] sm:$0xff] %v9943
        %10008 = vst [vmem:[#allocation3 + $0xb8] sm:$0xff] %v9944
        %10009 = vst [vmem:[#allocation3 + $0xc0] sm:$0xff] %v9945
        %10010 = vst [vmem:[#allocation3 + $0xc8] sm:$0xff] %v9946
        %10011 = vst [vmem:[#allocation3 + $0xd0] sm:$0xff] %v9947
        %10012 = vst [vmem:[#allocation3 + $0xd8] sm:$0xff] %v9948
        %10013 = vst [vmem:[#allocation3 + $0xe0] sm:$0xff] %v9949
        %10014 = vst [vmem:[#allocation3 + $0xe8] sm:$0xff] %v9950
        %10015 = vst [vmem:[#allocation3 + $0xf0] sm:$0xff] %v9951
        %10016 = vst [vmem:[#allocation3 + $0xf8] sm:$0xff] %v9952
        %10017 = vst [vmem:[#allocation3 + $0x100] sm:$0xff] %v9953
        %10018 = vst [vmem:[#allocation3 + $0x108] sm:$0xff] %v9954
        %10019 = vst [vmem:[#allocation3 + $0x110] sm:$0xff] %v9955
        %10020 = vst [vmem:[#allocation3 + $0x118] sm:$0xff] %v9956
        %10021 = vst [vmem:[#allocation3 + $0x120] sm:$0xff] %v9957
        %10022 = vst [vmem:[#allocation3 + $0x128] sm:$0xff] %v9958
        %10023 = vst [vmem:[#allocation3 + $0x130] sm:$0xff] %v9959
        %10024 = vst [vmem:[#allocation3 + $0x138] sm:$0xff] %v9960
        %10025 = vst [vmem:[#allocation3 + $0x140] sm:$0xff] %v9961
        %10026 = vst [vmem:[#allocation3 + $0x148] sm:$0xff] %v9962
        %10027 = vst [vmem:[#allocation3 + $0x150] sm:$0xff] %v9963
        %10028 = vst [vmem:[#allocation3 + $0x158] sm:$0xff] %v9964
        %10029 = vst [vmem:[#allocation3 + $0x160] sm:$0xff] %v9965
        %10030 = vst [vmem:[#allocation3 + $0x168] sm:$0xff] %v9966
        %10031 = vst [vmem:[#allocation3 + $0x170] sm:$0xff] %v9967
        %10032 = vst [vmem:[#allocation3 + $0x178] sm:$0xff] %v9968
        %10033 = vst [vmem:[#allocation3 + $0x180] sm:$0xff] %v9969
        %10034 = vst [vmem:[#allocation3 + $0x188] sm:$0xff] %v9970
        %10035 = vst [vmem:[#allocation3 + $0x190] sm:$0xff] %v9971
        %10036 = vst [vmem:[#allocation3 + $0x198] sm:$0xff] %v9972
        %10037 = vst [vmem:[#allocation3 + $0x1a0] sm:$0xff] %v9973
        %10038 = vst [vmem:[#allocation3 + $0x1a8] sm:$0xff] %v9974
        %10039 = vst [vmem:[#allocation3 + $0x1b0] sm:$0xff] %v9975
        %10040 = vst [vmem:[#allocation3 + $0x1b8] sm:$0xff] %v9976
        %10041 = vst [vmem:[#allocation3 + $0x1c0] sm:$0xff] %v9977
        %10042 = vst [vmem:[#allocation3 + $0x1c8] sm:$0xff] %v9978
        %10043 = vst [vmem:[#allocation3 + $0x1d0] sm:$0xff] %v9979
        %10044 = vst [vmem:[#allocation3 + $0x1d8] sm:$0xff] %v9980
        %10045 = vst [vmem:[#allocation3 + $0x1e0] sm:$0xff] %v9981
        %10046 = vst [vmem:[#allocation3 + $0x1e8] sm:$0xff] %v9982
        %10047 = vst [vmem:[#allocation3 + $0x1f0] sm:$0xff] %v9983
        %10048 = vst [vmem:[#allocation3 + $0x1f8] sm:$0xff] %v9984
        %v10049 = vld [vmem:[#allocation3] sm:$0xff]
        %v10050 = vld [vmem:[#allocation3 + $0x8] sm:$0xff]
        %v10051 = vld [vmem:[#allocation3 + $0x10] sm:$0xff]
        %v10052 = vld [vmem:[#allocation3 + $0x18] sm:$0xff]
        %v10053 = vld [vmem:[#allocation3 + $0x20] sm:$0xff]
        %v10054 = vld [vmem:[#allocation3 + $0x28] sm:$0xff]
        %v10055 = vld [vmem:[#allocation3 + $0x30] sm:$0xff]
        %v10056 = vld [vmem:[#allocation3 + $0x38] sm:$0xff]
        %v10057 = vld [vmem:[#allocation3 + $0x40] sm:$0xff]
        %v10058 = vld [vmem:[#allocation3 + $0x48] sm:$0xff]
        %v10059 = vld [vmem:[#allocation3 + $0x50] sm:$0xff]
        %v10060 = vld [vmem:[#allocation3 + $0x58] sm:$0xff]
        %v10061 = vld [vmem:[#allocation3 + $0x60] sm:$0xff]
        %v10062 = vld [vmem:[#allocation3 + $0x68] sm:$0xff]
        %v10063 = vld [vmem:[#allocation3 + $0x70] sm:$0xff]
        %v10064 = vld [vmem:[#allocation3 + $0x78] sm:$0xff]
        %v10065 = vld [vmem:[#allocation3 + $0x80] sm:$0xff]
        %v10066 = vld [vmem:[#allocation3 + $0x88] sm:$0xff]
        %v10067 = vld [vmem:[#allocation3 + $0x90] sm:$0xff]
        %v10068 = vld [vmem:[#allocation3 + $0x98] sm:$0xff]
        %v10069 = vld [vmem:[#allocation3 + $0xa0] sm:$0xff]
        %v10070 = vld [vmem:[#allocation3 + $0xa8] sm:$0xff]
        %v10071 = vld [vmem:[#allocation3 + $0xb0] sm:$0xff]
        %v10072 = vld [vmem:[#allocation3 + $0xb8] sm:$0xff]
        %v10073 = vld [vmem:[#allocation3 + $0xc0] sm:$0xff]
        %v10074 = vld [vmem:[#allocation3 + $0xc8] sm:$0xff]
        %v10075 = vld [vmem:[#allocation3 + $0xd0] sm:$0xff]
        %v10076 = vld [vmem:[#allocation3 + $0xd8] sm:$0xff]
        %v10077 = vld [vmem:[#allocation3 + $0xe0] sm:$0xff]
        %v10078 = vld [vmem:[#allocation3 + $0xe8] sm:$0xff]
        %v10079 = vld [vmem:[#allocation3 + $0xf0] sm:$0xff]
        %v10080 = vld [vmem:[#allocation3 + $0xf8] sm:$0xff]
        %v10081 = vld [vmem:[#allocation3 + $0x100] sm:$0xff]
        %v10082 = vld [vmem:[#allocation3 + $0x108] sm:$0xff]
        %v10083 = vld [vmem:[#allocation3 + $0x110] sm:$0xff]
        %v10084 = vld [vmem:[#allocation3 + $0x118] sm:$0xff]
        %v10085 = vld [vmem:[#allocation3 + $0x120] sm:$0xff]
        %v10086 = vld [vmem:[#allocation3 + $0x128] sm:$0xff]
        %v10087 = vld [vmem:[#allocation3 + $0x130] sm:$0xff]
        %v10088 = vld [vmem:[#allocation3 + $0x138] sm:$0xff]
        %v10089 = vld [vmem:[#allocation3 + $0x140] sm:$0xff]
        %v10090 = vld [vmem:[#allocation3 + $0x148] sm:$0xff]
        %v10091 = vld [vmem:[#allocation3 + $0x150] sm:$0xff]
        %v10092 = vld [vmem:[#allocation3 + $0x158] sm:$0xff]
        %v10093 = vld [vmem:[#allocation3 + $0x160] sm:$0xff]
        %v10094 = vld [vmem:[#allocation3 + $0x168] sm:$0xff]
        %v10095 = vld [vmem:[#allocation3 + $0x170] sm:$0xff]
        %v10096 = vld [vmem:[#allocation3 + $0x178] sm:$0xff]
        %v10097 = vld [vmem:[#allocation3 + $0x180] sm:$0xff]
        %v10098 = vld [vmem:[#allocation3 + $0x188] sm:$0xff]
        %v10099 = vld [vmem:[#allocation3 + $0x190] sm:$0xff]
        %v10100 = vld [vmem:[#allocation3 + $0x198] sm:$0xff]
        %v10101 = vld [vmem:[#allocation3 + $0x1a0] sm:$0xff]
        %v10102 = vld [vmem:[#allocation3 + $0x1a8] sm:$0xff]
        %v10103 = vld [vmem:[#allocation3 + $0x1b0] sm:$0xff]
        %v10104 = vld [vmem:[#allocation3 + $0x1b8] sm:$0xff]
        %v10105 = vld [vmem:[#allocation3 + $0x1c0] sm:$0xff]
        %v10106 = vld [vmem:[#allocation3 + $0x1c8] sm:$0xff]
        %v10107 = vld [vmem:[#allocation3 + $0x1d0] sm:$0xff]
        %v10108 = vld [vmem:[#allocation3 + $0x1d8] sm:$0xff]
        %v10109 = vld [vmem:[#allocation3 + $0x1e0] sm:$0xff]
        %v10110 = vld [vmem:[#allocation3 + $0x1e8] sm:$0xff]
        %v10111 = vld [vmem:[#allocation3 + $0x1f0] sm:$0xff]
        %v10112 = vld [vmem:[#allocation3 + $0x1f8] sm:$0xff]
        %v10113 = vpack.c.bf16 %v10053, %v10049
        %v10114 = vpack.c.bf16 %v10054, %v10050
        %v10115 = vpack.c.bf16 %v10055, %v10051
        %v10116 = vpack.c.bf16 %v10056, %v10052
        %v10117 = vpack.c.bf16 %v10061, %v10057
        %v10118 = vpack.c.bf16 %v10062, %v10058
        %v10119 = vpack.c.bf16 %v10063, %v10059
        %v10120 = vpack.c.bf16 %v10064, %v10060
        %v10121 = vpack.c.bf16 %v10069, %v10065
        %v10122 = vpack.c.bf16 %v10070, %v10066
        %v10123 = vpack.c.bf16 %v10071, %v10067
        %v10124 = vpack.c.bf16 %v10072, %v10068
        %v10125 = vpack.c.bf16 %v10077, %v10073
        %v10126 = vpack.c.bf16 %v10078, %v10074
        %v10127 = vpack.c.bf16 %v10079, %v10075
        %v10128 = vpack.c.bf16 %v10080, %v10076
        %v10129 = vpack.c.bf16 %v10085, %v10081
        %v10130 = vpack.c.bf16 %v10086, %v10082
        %v10131 = vpack.c.bf16 %v10087, %v10083
        %v10132 = vpack.c.bf16 %v10088, %v10084
        %v10133 = vpack.c.bf16 %v10093, %v10089
        %v10134 = vpack.c.bf16 %v10094, %v10090
        %v10135 = vpack.c.bf16 %v10095, %v10091
        %v10136 = vpack.c.bf16 %v10096, %v10092
        %v10137 = vpack.c.bf16 %v10101, %v10097
        %v10138 = vpack.c.bf16 %v10102, %v10098
        %v10139 = vpack.c.bf16 %v10103, %v10099
        %v10140 = vpack.c.bf16 %v10104, %v10100
        %v10141 = vpack.c.bf16 %v10109, %v10105
        %v10142 = vpack.c.bf16 %v10110, %v10106
        %v10143 = vpack.c.bf16 %v10111, %v10107
        %v10144 = vpack.c.bf16 %v10112, %v10108
        %v10145 = vld [vmem:[#allocation15] sm:$0xf]
        %v10146 = vld [vmem:[#allocation15 + $0x4] sm:$0xf]
        %v10147 = vld [vmem:[#allocation15 + $0x8] sm:$0xf]
        %v10148 = vld [vmem:[#allocation15 + $0xc] sm:$0xf]
        %v10149 = vld [vmem:[#allocation15 + $0x10] sm:$0xf]
        %v10150 = vld [vmem:[#allocation15 + $0x14] sm:$0xf]
        %v10151 = vld [vmem:[#allocation15 + $0x18] sm:$0xf]
        %v10152 = vld [vmem:[#allocation15 + $0x1c] sm:$0xf]
        %v10153 = vld [vmem:[#allocation15 + $0x20] sm:$0xf]
        %v10154 = vld [vmem:[#allocation15 + $0x24] sm:$0xf]
        %v10155 = vld [vmem:[#allocation15 + $0x28] sm:$0xf]
        %v10156 = vld [vmem:[#allocation15 + $0x2c] sm:$0xf]
        %v10157 = vld [vmem:[#allocation15 + $0x30] sm:$0xf]
        %v10158 = vld [vmem:[#allocation15 + $0x34] sm:$0xf]
        %v10159 = vld [vmem:[#allocation15 + $0x38] sm:$0xf]
        %v10160 = vld [vmem:[#allocation15 + $0x3c] sm:$0xf]
        %v10161 = vld [vmem:[#allocation15 + $0x40] sm:$0xf]
        %v10162 = vld [vmem:[#allocation15 + $0x44] sm:$0xf]
        %v10163 = vld [vmem:[#allocation15 + $0x48] sm:$0xf]
        %v10164 = vld [vmem:[#allocation15 + $0x4c] sm:$0xf]
        %v10165 = vld [vmem:[#allocation15 + $0x50] sm:$0xf]
        %v10166 = vld [vmem:[#allocation15 + $0x54] sm:$0xf]
        %v10167 = vld [vmem:[#allocation15 + $0x58] sm:$0xf]
        %v10168 = vld [vmem:[#allocation15 + $0x5c] sm:$0xf]
        %v10169 = vld [vmem:[#allocation15 + $0x60] sm:$0xf]
        %v10170 = vld [vmem:[#allocation15 + $0x64] sm:$0xf]
        %v10171 = vld [vmem:[#allocation15 + $0x68] sm:$0xf]
        %v10172 = vld [vmem:[#allocation15 + $0x6c] sm:$0xf]
        %v10173 = vld [vmem:[#allocation15 + $0x70] sm:$0xf]
        %v10174 = vld [vmem:[#allocation15 + $0x74] sm:$0xf]
        %v10175 = vld [vmem:[#allocation15 + $0x78] sm:$0xf]
        %v10176 = vld [vmem:[#allocation15 + $0x7c] sm:$0xf]
        %v10177 = vld [vmem:[#allocation15 + $0x80] sm:$0xf]
        %v10178 = vld [vmem:[#allocation15 + $0x84] sm:$0xf]
        %v10179 = vld [vmem:[#allocation15 + $0x88] sm:$0xf]
        %v10180 = vld [vmem:[#allocation15 + $0x8c] sm:$0xf]
        %v10181 = vld [vmem:[#allocation15 + $0x90] sm:$0xf]
        %v10182 = vld [vmem:[#allocation15 + $0x94] sm:$0xf]
        %v10183 = vld [vmem:[#allocation15 + $0x98] sm:$0xf]
        %v10184 = vld [vmem:[#allocation15 + $0x9c] sm:$0xf]
        %v10185 = vld [vmem:[#allocation15 + $0xa0] sm:$0xf]
        %v10186 = vld [vmem:[#allocation15 + $0xa4] sm:$0xf]
        %v10187 = vld [vmem:[#allocation15 + $0xa8] sm:$0xf]
        %v10188 = vld [vmem:[#allocation15 + $0xac] sm:$0xf]
        %v10189 = vld [vmem:[#allocation15 + $0xb0] sm:$0xf]
        %v10190 = vld [vmem:[#allocation15 + $0xb4] sm:$0xf]
        %v10191 = vld [vmem:[#allocation15 + $0xb8] sm:$0xf]
        %v10192 = vld [vmem:[#allocation15 + $0xbc] sm:$0xf]
        %v10193 = vld [vmem:[#allocation15 + $0xc0] sm:$0xf]
        %v10194 = vld [vmem:[#allocation15 + $0xc4] sm:$0xf]
        %v10195 = vld [vmem:[#allocation15 + $0xc8] sm:$0xf]
        %v10196 = vld [vmem:[#allocation15 + $0xcc] sm:$0xf]
        %v10197 = vld [vmem:[#allocation15 + $0xd0] sm:$0xf]
        %v10198 = vld [vmem:[#allocation15 + $0xd4] sm:$0xf]
        %v10199 = vld [vmem:[#allocation15 + $0xd8] sm:$0xf]
        %v10200 = vld [vmem:[#allocation15 + $0xdc] sm:$0xf]
        %v10201 = vld [vmem:[#allocation15 + $0xe0] sm:$0xf]
        %v10202 = vld [vmem:[#allocation15 + $0xe4] sm:$0xf]
        %v10203 = vld [vmem:[#allocation15 + $0xe8] sm:$0xf]
        %v10204 = vld [vmem:[#allocation15 + $0xec] sm:$0xf]
        %v10205 = vld [vmem:[#allocation15 + $0xf0] sm:$0xf]
        %v10206 = vld [vmem:[#allocation15 + $0xf4] sm:$0xf]
        %v10207 = vld [vmem:[#allocation15 + $0xf8] sm:$0xf]
        %v10208 = vld [vmem:[#allocation15 + $0xfc] sm:$0xf]
        %v10209 = vld [vmem:[%s10] sm:$0x1]
        %v10211 = vlaneseq
        %v10212 = vshrl.u32 %v10211, 7
        %v10213 = vsub.s32 0, %v10212
        %v10214 = vrot.slane %v10209, %v10213
        %v10280 = vunpack.c.l.b16 %v10145
        %v10281 = vunpack.c.l.b16 %v10146
        %v10282 = vunpack.c.l.b16 %v10147
        %v10283 = vunpack.c.l.b16 %v10148
        %v10284 = vunpack.c.l.b16 %v10149
        %v10285 = vunpack.c.l.b16 %v10150
        %v10286 = vunpack.c.l.b16 %v10151
        %v10287 = vunpack.c.l.b16 %v10152
        %v10288 = vunpack.c.l.b16 %v10153
        %v10289 = vunpack.c.l.b16 %v10154
        %v10290 = vunpack.c.l.b16 %v10155
        %v10291 = vunpack.c.l.b16 %v10156
        %v10292 = vunpack.c.l.b16 %v10157
        %v10293 = vunpack.c.l.b16 %v10158
        %v10294 = vunpack.c.l.b16 %v10159
        %v10295 = vunpack.c.l.b16 %v10160
        %v10296 = vunpack.c.l.b16 %v10161
        %v10297 = vunpack.c.l.b16 %v10162
        %v10298 = vunpack.c.l.b16 %v10163
        %v10299 = vunpack.c.l.b16 %v10164
        %v10300 = vunpack.c.l.b16 %v10165
        %v10301 = vunpack.c.l.b16 %v10166
        %v10302 = vunpack.c.l.b16 %v10167
        %v10303 = vunpack.c.l.b16 %v10168
        %v10304 = vunpack.c.l.b16 %v10169
        %v10305 = vunpack.c.l.b16 %v10170
        %v10306 = vunpack.c.l.b16 %v10171
        %v10307 = vunpack.c.l.b16 %v10172
        %v10308 = vunpack.c.l.b16 %v10173
        %v10309 = vunpack.c.l.b16 %v10174
        %v10310 = vunpack.c.l.b16 %v10175
        %v10311 = vunpack.c.l.b16 %v10176
        %v10312 = vunpack.c.l.b16 %v10177
        %v10313 = vunpack.c.l.b16 %v10178
        %v10314 = vunpack.c.l.b16 %v10179
        %v10315 = vunpack.c.l.b16 %v10180
        %v10316 = vunpack.c.l.b16 %v10181
        %v10317 = vunpack.c.l.b16 %v10182
        %v10318 = vunpack.c.l.b16 %v10183
        %v10319 = vunpack.c.l.b16 %v10184
        %v10320 = vunpack.c.l.b16 %v10185
        %v10321 = vunpack.c.l.b16 %v10186
        %v10322 = vunpack.c.l.b16 %v10187
        %v10323 = vunpack.c.l.b16 %v10188
        %v10324 = vunpack.c.l.b16 %v10189
        %v10325 = vunpack.c.l.b16 %v10190
        %v10326 = vunpack.c.l.b16 %v10191
        %v10327 = vunpack.c.l.b16 %v10192
        %v10328 = vunpack.c.l.b16 %v10193
        %v10329 = vunpack.c.l.b16 %v10194
        %v10330 = vunpack.c.l.b16 %v10195
        %v10331 = vunpack.c.l.b16 %v10196
        %v10332 = vunpack.c.l.b16 %v10197
        %v10333 = vunpack.c.l.b16 %v10198
        %v10334 = vunpack.c.l.b16 %v10199
        %v10335 = vunpack.c.l.b16 %v10200
        %v10336 = vunpack.c.l.b16 %v10201
        %v10337 = vunpack.c.l.b16 %v10202
        %v10338 = vunpack.c.l.b16 %v10203
        %v10339 = vunpack.c.l.b16 %v10204
        %v10340 = vunpack.c.l.b16 %v10205
        %v10341 = vunpack.c.l.b16 %v10206
        %v10342 = vunpack.c.l.b16 %v10207
        %v10343 = vunpack.c.l.b16 %v10208
        %v10344 = vpack.c.b16 %v10281, %v10280
        %v10345 = vpack.c.b16 %v10283, %v10282
        %v10346 = vpack.c.b16 %v10285, %v10284
        %v10347 = vpack.c.b16 %v10287, %v10286
        %v10348 = vpack.c.b16 %v10289, %v10288
        %v10349 = vpack.c.b16 %v10291, %v10290
        %v10350 = vpack.c.b16 %v10293, %v10292
        %v10351 = vpack.c.b16 %v10295, %v10294
        %v10352 = vpack.c.b16 %v10297, %v10296
        %v10353 = vpack.c.b16 %v10299, %v10298
        %v10354 = vpack.c.b16 %v10301, %v10300
        %v10355 = vpack.c.b16 %v10303, %v10302
        %v10356 = vpack.c.b16 %v10305, %v10304
        %v10357 = vpack.c.b16 %v10307, %v10306
        %v10358 = vpack.c.b16 %v10309, %v10308
        %v10359 = vpack.c.b16 %v10311, %v10310
        %v10360 = vpack.c.b16 %v10313, %v10312
        %v10361 = vpack.c.b16 %v10315, %v10314
        %v10362 = vpack.c.b16 %v10317, %v10316
        %v10363 = vpack.c.b16 %v10319, %v10318
        %v10364 = vpack.c.b16 %v10321, %v10320
        %v10365 = vpack.c.b16 %v10323, %v10322
        %v10366 = vpack.c.b16 %v10325, %v10324
        %v10367 = vpack.c.b16 %v10327, %v10326
        %v10368 = vpack.c.b16 %v10329, %v10328
        %v10369 = vpack.c.b16 %v10331, %v10330
        %v10370 = vpack.c.b16 %v10333, %v10332
        %v10371 = vpack.c.b16 %v10335, %v10334
        %v10372 = vpack.c.b16 %v10337, %v10336
        %v10373 = vpack.c.b16 %v10339, %v10338
        %v10374 = vpack.c.b16 %v10341, %v10340
        %v10375 = vpack.c.b16 %v10343, %v10342
        %10408 = vmatprep.subr.bf16.mxu0 0
        %10409 = vmatpush1.bf16.msra.mxu0 %v10344
        %10410 = vmatprep.subr.bf16.mxu0 0
        %10411 = vmatpush1.bf16.msra.mxu0 %v10345
        %10412 = vmatprep.subr.bf16.mxu0 0
        %10413 = vmatpush1.bf16.msra.mxu0 %v10346
        %10414 = vmatprep.subr.bf16.mxu0 0
        %10415 = vmatpush1.bf16.msra.mxu0 %v10347
        %10416 = vmatprep.subr.bf16.mxu0 0
        %10417 = vmatpush1.bf16.msra.mxu0 %v10348
        %10418 = vmatprep.subr.bf16.mxu0 0
        %10419 = vmatpush1.bf16.msra.mxu0 %v10349
        %10420 = vmatprep.subr.bf16.mxu0 0
        %10421 = vmatpush1.bf16.msra.mxu0 %v10350
        %10422 = vmatprep.subr.bf16.mxu0 0
        %10423 = vmatpush1.bf16.msra.mxu0 %v10351
        %10424 = vmatprep.subr.bf16.mxu0 0
        %10425 = vmatpush1.bf16.msra.mxu0 %v10352
        %10426 = vmatprep.subr.bf16.mxu0 0
        %10427 = vmatpush1.bf16.msra.mxu0 %v10353
        %10428 = vmatprep.subr.bf16.mxu0 0
        %10429 = vmatpush1.bf16.msra.mxu0 %v10354
        %10430 = vmatprep.subr.bf16.mxu0 0
        %10431 = vmatpush1.bf16.msra.mxu0 %v10355
        %10432 = vmatprep.subr.bf16.mxu0 0
        %10433 = vmatpush1.bf16.msra.mxu0 %v10356
        %10434 = vmatprep.subr.bf16.mxu0 0
        %10435 = vmatpush1.bf16.msra.mxu0 %v10357
        %10436 = vmatprep.subr.bf16.mxu0 0
        %10437 = vmatpush1.bf16.msra.mxu0 %v10358
        %10438 = vmatprep.subr.bf16.mxu0 0
        %10439 = vmatpush1.bf16.msra.mxu0 %v10359
        %10440 = vmatprep.mubr.bf16.mxu0 %v10114
        %10441 = vmatmul.mubr.bf16.gmra.mrb[0].mxu0 %v10113
        %v10442 = vpop.f32.mrb[0].mxu0
        %v10443 = vadd.f32 %v10214, %v10442
        %v10444 = vpop.f32.mrb[0].mxu0
        %v10445 = vpop.f32.mrb[0].mxu0
        %v10446 = vadd.f32 %v10214, %v10445
        %v10447 = vpop.f32.mrb[0].mxu0
        %10448 = vmatprep.mubr.bf16.mxu0 %v10118
        %10449 = vmatmul.mubr.bf16.gmra.mrb[0].mxu0 %v10117
        %v10450 = vpop.f32.mrb[0].mxu0
        %v10451 = vadd.f32 %v10214, %v10450
        %v10452 = vpop.f32.mrb[0].mxu0
        %v10453 = vpop.f32.mrb[0].mxu0
        %v10454 = vadd.f32 %v10214, %v10453
        %v10455 = vpop.f32.mrb[0].mxu0
        %10456 = vmatprep.mubr.bf16.mxu0 %v10122
        %10457 = vmatmul.mubr.bf16.gmra.mrb[0].mxu0 %v10121
        %v10458 = vpop.f32.mrb[0].mxu0
        %v10459 = vadd.f32 %v10214, %v10458
        %v10460 = vpop.f32.mrb[0].mxu0
        %v10461 = vpop.f32.mrb[0].mxu0
        %v10462 = vadd.f32 %v10214, %v10461
        %v10463 = vpop.f32.mrb[0].mxu0
        %10464 = vmatprep.mubr.bf16.mxu0 %v10126
        %10465 = vmatmul.mubr.bf16.gmra.mrb[0].mxu0 %v10125
        %v10466 = vpop.f32.mrb[0].mxu0
        %v10467 = vadd.f32 %v10214, %v10466
        %v10468 = vpop.f32.mrb[0].mxu0
        %v10469 = vpop.f32.mrb[0].mxu0
        %v10470 = vadd.f32 %v10214, %v10469
        %v10471 = vpop.f32.mrb[0].mxu0
        %10472 = vmatprep.mubr.bf16.mxu0 %v10130
        %10473 = vmatmul.mubr.bf16.gmra.mrb[0].mxu0 %v10129
        %v10474 = vpop.f32.mrb[0].mxu0
        %v10475 = vadd.f32 %v10214, %v10474
        %v10476 = vpop.f32.mrb[0].mxu0
        %v10477 = vpop.f32.mrb[0].mxu0
        %v10478 = vadd.f32 %v10214, %v10477
        %v10479 = vpop.f32.mrb[0].mxu0
        %10480 = vmatprep.mubr.bf16.mxu0 %v10134
        %10481 = vmatmul.mubr.bf16.gmra.mrb[0].mxu0 %v10133
        %v10482 = vpop.f32.mrb[0].mxu0
        %v10483 = vadd.f32 %v10214, %v10482
        %v10484 = vpop.f32.mrb[0].mxu0
        %v10485 = vpop.f32.mrb[0].mxu0
        %v10486 = vadd.f32 %v10214, %v10485
        %v10487 = vpop.f32.mrb[0].mxu0
        %10488 = vmatprep.mubr.bf16.mxu0 %v10138
        %10489 = vmatmul.mubr.bf16.gmra.mrb[0].mxu0 %v10137
        %v10490 = vpop.f32.mrb[0].mxu0
        %v10491 = vadd.f32 %v10214, %v10490
        %v10492 = vpop.f32.mrb[0].mxu0
        %v10493 = vpop.f32.mrb[0].mxu0
        %v10494 = vadd.f32 %v10214, %v10493
        %v10495 = vpop.f32.mrb[0].mxu0
        %10496 = vmatprep.mubr.bf16.mxu0 %v10142
        %10497 = vmatmul.mubr.bf16.gmra.mrb[0].mxu0 %v10141
        %v10498 = vpop.f32.mrb[0].mxu0
        %v10499 = vadd.f32 %v10214, %v10498
        %v10500 = vpop.f32.mrb[0].mxu0
        %v10501 = vpop.f32.mrb[0].mxu0
        %v10502 = vadd.f32 %v10214, %v10501
        %v10503 = vpop.f32.mrb[0].mxu0
        %10504 = vdwg.mxu0
        %10505 = vmatprep.subr.bf16.mxu0 0
        %10506 = vmatpush1.bf16.msra.mxu0 %v10360
        %10507 = vmatprep.subr.bf16.mxu0 0
        %10508 = vmatpush1.bf16.msra.mxu0 %v10361
        %10509 = vmatprep.subr.bf16.mxu0 0
        %10510 = vmatpush1.bf16.msra.mxu0 %v10362
        %10511 = vmatprep.subr.bf16.mxu0 0
        %10512 = vmatpush1.bf16.msra.mxu0 %v10363
        %10513 = vmatprep.subr.bf16.mxu0 0
        %10514 = vmatpush1.bf16.msra.mxu0 %v10364
        %10515 = vmatprep.subr.bf16.mxu0 0
        %10516 = vmatpush1.bf16.msra.mxu0 %v10365
        %10517 = vmatprep.subr.bf16.mxu0 0
        %10518 = vmatpush1.bf16.msra.mxu0 %v10366
        %10519 = vmatprep.subr.bf16.mxu0 0
        %10520 = vmatpush1.bf16.msra.mxu0 %v10367
        %10521 = vmatprep.subr.bf16.mxu0 0
        %10522 = vmatpush1.bf16.msra.mxu0 %v10368
        %10523 = vmatprep.subr.bf16.mxu0 0
        %10524 = vmatpush1.bf16.msra.mxu0 %v10369
        %10525 = vmatprep.subr.bf16.mxu0 0
        %10526 = vmatpush1.bf16.msra.mxu0 %v10370
        %10527 = vmatprep.subr.bf16.mxu0 0
        %10528 = vmatpush1.bf16.msra.mxu0 %v10371
        %10529 = vmatprep.subr.bf16.mxu0 0
        %10530 = vmatpush1.bf16.msra.mxu0 %v10372
        %10531 = vmatprep.subr.bf16.mxu0 0
        %10532 = vmatpush1.bf16.msra.mxu0 %v10373
        %10533 = vmatprep.subr.bf16.mxu0 0
        %10534 = vmatpush1.bf16.msra.mxu0 %v10374
        %10535 = vmatprep.subr.bf16.mxu0 0
        %10536 = vmatpush1.bf16.msra.mxu0 %v10375
        %10537 = vmatprep.mubr.bf16.mxu0 %v10116
        %10538 = vmatmul.mubr.bf16.gmra.mrb[0].mxu0 %v10115
        %v10539 = vpop.f32.mrb[0].mxu0
        %v10540 = vadd.f32 %v10443, %v10539
        %v10541 = vpop.f32.mrb[0].mxu0
        %v10542 = vpop.f32.mrb[0].mxu0
        %v10543 = vadd.f32 %v10446, %v10542
        %v10544 = vpop.f32.mrb[0].mxu0
        %10545 = vmatprep.mubr.bf16.mxu0 %v10120
        %10546 = vmatmul.mubr.bf16.gmra.mrb[0].mxu0 %v10119
        %v10547 = vpop.f32.mrb[0].mxu0
        %v10548 = vadd.f32 %v10451, %v10547
        %v10549 = vpop.f32.mrb[0].mxu0
        %v10550 = vpop.f32.mrb[0].mxu0
        %v10551 = vadd.f32 %v10454, %v10550
        %v10552 = vpop.f32.mrb[0].mxu0
        %10553 = vmatprep.mubr.bf16.mxu0 %v10124
        %10554 = vmatmul.mubr.bf16.gmra.mrb[0].mxu0 %v10123
        %v10555 = vpop.f32.mrb[0].mxu0
        %v10556 = vadd.f32 %v10459, %v10555
        %v10557 = vpop.f32.mrb[0].mxu0
        %v10558 = vpop.f32.mrb[0].mxu0
        %v10559 = vadd.f32 %v10462, %v10558
        %v10560 = vpop.f32.mrb[0].mxu0
        %10561 = vmatprep.mubr.bf16.mxu0 %v10128
        %10562 = vmatmul.mubr.bf16.gmra.mrb[0].mxu0 %v10127
        %v10563 = vpop.f32.mrb[0].mxu0
        %v10564 = vadd.f32 %v10467, %v10563
        %v10565 = vpop.f32.mrb[0].mxu0
        %v10566 = vpop.f32.mrb[0].mxu0
        %v10567 = vadd.f32 %v10470, %v10566
        %v10568 = vpop.f32.mrb[0].mxu0
        %10569 = vmatprep.mubr.bf16.mxu0 %v10132
        %10570 = vmatmul.mubr.bf16.gmra.mrb[0].mxu0 %v10131
        %v10571 = vpop.f32.mrb[0].mxu0
        %v10572 = vadd.f32 %v10475, %v10571
        %v10573 = vpop.f32.mrb[0].mxu0
        %v10574 = vpop.f32.mrb[0].mxu0
        %v10575 = vadd.f32 %v10478, %v10574
        %v10576 = vpop.f32.mrb[0].mxu0
        %10577 = vmatprep.mubr.bf16.mxu0 %v10136
        %10578 = vmatmul.mubr.bf16.gmra.mrb[0].mxu0 %v10135
        %v10579 = vpop.f32.mrb[0].mxu0
        %v10580 = vadd.f32 %v10483, %v10579
        %v10581 = vpop.f32.mrb[0].mxu0
        %v10582 = vpop.f32.mrb[0].mxu0
        %v10583 = vadd.f32 %v10486, %v10582
        %v10584 = vpop.f32.mrb[0].mxu0
        %10585 = vmatprep.mubr.bf16.mxu0 %v10140
        %10586 = vmatmul.mubr.bf16.gmra.mrb[0].mxu0 %v10139
        %v10587 = vpop.f32.mrb[0].mxu0
        %v10588 = vadd.f32 %v10491, %v10587
        %v10589 = vpop.f32.mrb[0].mxu0
        %v10590 = vpop.f32.mrb[0].mxu0
        %v10591 = vadd.f32 %v10494, %v10590
        %v10592 = vpop.f32.mrb[0].mxu0
        %10593 = vmatprep.mubr.bf16.mxu0 %v10144
        %10594 = vmatmul.mubr.bf16.gmra.mrb[0].mxu0 %v10143
        %v10595 = vpop.f32.mrb[0].mxu0
        %v10596 = vadd.f32 %v10499, %v10595
        %v10597 = vpop.f32.mrb[0].mxu0
        %v10598 = vpop.f32.mrb[0].mxu0
        %v10599 = vadd.f32 %v10502, %v10598
        %v10600 = vpop.f32.mrb[0].mxu0
        %10601 = vdwg.mxu0
        %10602 = vst [vmem:[%s489] sm:$0xff] %v10540
        %10603 = vst [vmem:[%s489 + $0x8] sm:$0xff] %v10543
        %10604 = vst [vmem:[%s489 + $0x10] sm:$0xff] %v10548
        %10605 = vst [vmem:[%s489 + $0x18] sm:$0xff] %v10551
        %10606 = vst [vmem:[%s489 + $0x20] sm:$0xff] %v10556
        %10607 = vst [vmem:[%s489 + $0x28] sm:$0xff] %v10559
        %10608 = vst [vmem:[%s489 + $0x30] sm:$0xff] %v10564
        %10609 = vst [vmem:[%s489 + $0x38] sm:$0xff] %v10567
        %10610 = vst [vmem:[%s489 + $0x40] sm:$0xff] %v10572
        %10611 = vst [vmem:[%s489 + $0x48] sm:$0xff] %v10575
        %10612 = vst [vmem:[%s489 + $0x50] sm:$0xff] %v10580
        %10613 = vst [vmem:[%s489 + $0x58] sm:$0xff] %v10583
        %10614 = vst [vmem:[%s489 + $0x60] sm:$0xff] %v10588
        %10615 = vst [vmem:[%s489 + $0x68] sm:$0xff] %v10591
        %10616 = vst [vmem:[%s489 + $0x70] sm:$0xff] %v10596
        %10617 = vst [vmem:[%s489 + $0x78] sm:$0xff] %v10599
        %s10618 = sand.u32 %s275, 1
        %s10619 = scalar_lea.sflag [#allocation6], %s10618
        %s10620 = sand.u32 %s275, 1
        %s10621 = smul.addr %s10620, 128
        %s10622 = scalar_lea.vmem [#allocation16], %s10621
        // Predicated region
        $region93: #{tpu_custom_call.1} parent=63 // pred_check
          %p10623 = pneg %p285
        $region94: #{tpu_custom_call.1} parent=63 // pred_check_branch
          %10625 = sbr.rel (%p10623) target = $region96
        $region95: #{tpu_custom_call.1} parent=63 // pred_region
          %s10626 = smul.u32 16, %s31
          %s10628 = ssub.s32 2048, 2048
          %10629 = vsyncadd %s10619, %s10628
          %s10630 = smul.addr %s10626, 128
          %s10631 = scalar_lea.hbm %s11, %s10630
          %s10632 = sshll.u32 %s10622, 4
          %s10633 = int_to_ptr.vmem [resolvable:$true] %s10632
          %10638 = dma.vmem_to_hbm [thread:$0]  %s10633, 2048, %s10631, %s10619, 128, 128, 8
        $region96: #{tpu_custom_call.1} parent=63 // pred_fallthru
          _
      $region64: #{tpu_custom_call.1} parent=5 // pred_fallthru
        _
      %p10639 = scmp.le.s32.totalorder 2, %s26
      // Predicated region
      $region97: #{tpu_custom_call.1} parent=5 // pred_check
        %p10640 = pneg %p10639
      $region98: #{tpu_custom_call.1} parent=5 // pred_check_branch
        %10642 = sbr.rel (%p10640) target = $region100
      $region99: #{tpu_custom_call.1} parent=5 // pred_region
        %s10643 = ssub.s32 %s26, 2
        // Predicated region
        $region101: #{tpu_custom_call.1} parent=99 // pred_check
          %p10644 = pneg %p291
        $region102: #{tpu_custom_call.1} parent=99 // pred_check_branch
          %10646 = sbr.rel (%p10644) target = $region104
        $region103: #{tpu_custom_call.1} parent=99 // pred_region
          %s10647 = sand.u32 %s276, 1
          %s10648 = scalar_lea.sflag [#allocation6], %s10647
          %s10649 = sand.u32 %s276, 1
          %s10650 = smul.addr %s10649, 128
          %s10651 = scalar_lea.vmem [#allocation16], %s10650
          %10652 = dma.done %s10648, 2048
        $region104: #{tpu_custom_call.1} parent=99 // pred_fallthru
          _
      $region100: #{tpu_custom_call.1} parent=5 // pred_fallthru
        _
    $region6: #{tpu_custom_call.1} parent=1 // loop_footer
      %s30 = sadd.s32 1, %s26
    $region7: #{tpu_custom_call.1} parent=1 // loop_footer_branch
      %25 = sbr.rel target = $region3
    $region8: #{tpu_custom_call.1} parent=1 // loop_exit
      _
    %10653 = vsyncpa [#allocation5], 1
    %s10654 = scalar_lea.sflag [#allocation5], 1
    %10655 = vsyncpa %s10654, 1
    %10656 = vsyncpa [#allocation8], 1
    %10657 = vsyncpa [#allocation11], 1
    %10658 = vsyncpa [#allocation14], 1
    %10659 = vsyncpa [#allocation6], 1
    %s10660 = scalar_lea.sflag [#allocation6], 1
    %10661 = vsyncpa %s10660, 1

</llo_original>
